<compile_context>
chip_gen: v7x
topology: tpu7x:2x2x1
jax: 0.10.0
libtpu: 0.0.40
codegen_flags: <defaults>
</compile_context>

<pallas_src>
import math
import functools

import numpy as np
import jax
import jax.numpy as jnp
from jax.experimental import pallas as pl
from jax.experimental.pallas import tpu as pltpu


# ----------------------------------------------------------------------------
# Fused transformer kernel (one grid step == one batch element)
# ----------------------------------------------------------------------------
def transformer_kernel(src_ref, pos_ref, bias_ref, qemb_ref, w_ref,
                       mem_ref, hs_ref, *,
                       nhead, num_enc, num_dec, d, offsets):
    hd = d // nhead

    def W(name):
        r0, nr, nc = offsets[name]          # static python ints -> free slicing
        return w_ref[r0:r0 + nr, :nc]

    def layer_norm(x, gname, bname):
        g, b = W(gname), W(bname)
        mu = jnp.mean(x, axis=-1, keepdims=True)
        xc = x - mu
        var = jnp.mean(xc * xc, axis=-1, keepdims=True)
        return xc * jax.lax.rsqrt(var + 1e-5) * g + b

    def dense(x, wname, bname):
        return jnp.dot(x, W(wname), preferred_element_type=jnp.float32) + W(bname)

    def attn_core(q, k, v, bias, wo_name, bo_name):
        # q:(Lq,d) k,v:(Lk,d); heads contiguous along the lane axis; q pre-scaled.
        outs = []
        for h in range(nhead):
            sl = slice(h * hd, (h + 1) * hd)
            s = jax.lax.dot_general(q[:, sl], k[:, sl],
                                    (((1,), (1,)), ((), ())),
                                    preferred_element_type=jnp.float32)  # (Lq,Lk)
            if bias is not None:
                s = s + bias
            s = s - jnp.max(s, axis=-1, keepdims=True)
            e = jnp.exp(s)
            inv = pl.reciprocal(jnp.sum(e, axis=-1, keepdims=True), approx=True)
            outs.append(jnp.dot(e * inv, v[:, sl],
                                preferred_element_type=jnp.float32))     # (Lq,hd)
        o = jnp.concatenate(outs, axis=-1)          # (Lq, d): lane-concat heads
        return dense(o, wo_name, bo_name)           # single (Lq,d)@(d,d) out-proj

    def mha_self(x_qk, x_v, bias, p):
        qk = dense(x_qk, p + 'wqk', p + 'bqk')      # fused (L,d)@(d,2d) Q|K
        v = dense(x_v, p + 'wv', p + 'bv')
        return attn_core(qk[:, :d], qk[:, d:], v, bias, p + 'wo', p + 'bo')

    def mha_cross(x_q, x_k, x_v, bias, p):
        q = dense(x_q, p + 'wq', p + 'bq')
        k = dense(x_k, p + 'wk', p + 'bk')
        v = dense(x_v, p + 'wv', p + 'bv')
        return attn_core(q, k, v, bias, p + 'wo', p + 'bo')

    def ffn(x, p):
        h = jnp.maximum(dense(x, p + 'w1', p + 'b1'), 0.0)
        return dense(h, p + 'w2', p + 'b2')

    pos = pos_ref[0]                                # (L, d)
    bias = bias_ref[0]                              # (1, L) additive mask bias
    x = src_ref[0]                                  # (L, d)

    # -------------------------- encoder stack --------------------------
    for l in range(num_enc):
        p = f'enc{l}_'
        attn = mha_self(x + pos, x, bias, p)
        x = layer_norm(x + attn, p + 'n1g', p + 'n1b')
        x = layer_norm(x + ffn(x, p), p + 'n2g', p + 'n2b')
    memory = x                                      # stays VMEM-resident
    mem_ref[0] = memory.astype(mem_ref.dtype)

    # -------------------------- decoder stack --------------------------
    qpos = qemb_ref[...]                            # (Nq, d)
    nq = qpos.shape[0]
    mem_k = memory + pos                            # cross-attn keys (hoisted)
    # Layer-0 self-attention constant-folded host-side (tgt == 0):
    x = jnp.broadcast_to(W('dec_x0'), (nq, d))
    for l in range(num_dec):
        p = f'dec{l}_'
        if l > 0:
            sa = mha_self(x + qpos, x, None, p + 's_')   # no key-padding mask
            x = layer_norm(x + sa, p + 'n1g', p + 'n1b')
        ca = mha_cross(x + qpos, mem_k, memory, bias, p + 'c_')
        x = layer_norm(x + ca, p + 'n2g', p + 'n2b')
        x = layer_norm(x + ffn(x, p), p + 'n3g', p + 'n3b')
    x = layer_norm(x, 'fng', 'fnb')                 # final decoder norm (fused)
    hs_ref[0] = x.astype(hs_ref.dtype)


# ----------------------------------------------------------------------------
# pallas_call wrapper (whole network == one launch)
# ----------------------------------------------------------------------------
def transformer_forward(slab, src, mask, query_embed, pos_embed, *,
                        offsets, nhead, num_enc, num_dec):
    B, C, H, W_ = src.shape
    L = H * W_
    Nq, D = query_embed.shape
    src_seq = src.reshape(B, C, L).transpose(0, 2, 1)         # (B, L, C)
    pos_seq = pos_embed.reshape(B, C, L).transpose(0, 2, 1)   # (B, L, C)
    bias = jnp.where(mask.reshape(B, 1, L), -1e30, 0.0).astype(jnp.float32)

    kernel = functools.partial(transformer_kernel, nhead=nhead,
                               num_enc=num_enc, num_dec=num_dec,
                               d=D, offsets=offsets)
    memory, hs = pl.pallas_call(
        kernel,
        out_shape=(jax.ShapeDtypeStruct((B, L, D), jnp.float32),
                   jax.ShapeDtypeStruct((B, Nq, D), jnp.float32)),
        grid=(B,),
        in_specs=[
            pl.BlockSpec((1, L, D), lambda b: (b, 0, 0)),     # src
            pl.BlockSpec((1, L, D), lambda b: (b, 0, 0)),     # pos
            pl.BlockSpec((1, 1, L), lambda b: (b, 0, 0)),     # mask bias
            pl.BlockSpec((Nq, D), lambda b: (0, 0)),          # query_embed
            pl.BlockSpec(slab.shape, lambda b: (0, 0)),       # packed weights
        ],
        out_specs=(
            pl.BlockSpec((1, L, D), lambda b: (b, 0, 0)),     # memory
            pl.BlockSpec((1, Nq, D), lambda b: (b, 0, 0)),    # hs
        ),
        compiler_params=pltpu.CompilerParams(
            dimension_semantics=("parallel",)),
    )(src_seq, pos_seq, bias, query_embed, slab)

    hs_out = hs[None, ...]                                    # (1, B, Nq, C)
    mem_out = memory.transpose(0, 2, 1).reshape(B, C, H, W_)  # (B, C, H, W)
    return hs_out, mem_out


# ----------------------------------------------------------------------------
# Parameter init (PyTorch layout)
# ----------------------------------------------------------------------------
def xavier_uniform(key, shape):
    fan_out, fan_in = shape
    bound = math.sqrt(6.0 / (fan_in + fan_out))
    return jax.random.uniform(key, shape, jnp.float32, -bound, bound)


def init_attn(key, d):
    k1, k2 = jax.random.split(key)
    return dict(in_w=xavier_uniform(k1, (3 * d, d)),   # nn.MultiheadAttention.in_proj_weight
                in_b=jnp.zeros((3 * d,), jnp.float32),
                out_w=xavier_uniform(k2, (d, d)),      # out_proj.weight
                out_b=jnp.zeros((d,), jnp.float32))


def init_encoder_layer(key, d, dff):
    ka, k1, k2 = jax.random.split(key, 3)
    return dict(attn=init_attn(ka, d),
                w1=xavier_uniform(k1, (dff, d)), b1=jnp.zeros((dff,), jnp.float32),
                w2=xavier_uniform(k2, (d, dff)), b2=jnp.zeros((d,), jnp.float32),
                n1g=jnp.ones((d,), jnp.float32), n1b=jnp.zeros((d,), jnp.float32),
                n2g=jnp.ones((d,), jnp.float32), n2b=jnp.zeros((d,), jnp.float32))


def init_decoder_layer(key, d, dff):
    ka, kc, k1, k2 = jax.random.split(key, 4)
    return dict(self_attn=init_attn(ka, d), cross_attn=init_attn(kc, d),
                w1=xavier_uniform(k1, (dff, d)), b1=jnp.zeros((dff,), jnp.float32),
                w2=xavier_uniform(k2, (d, dff)), b2=jnp.zeros((d,), jnp.float32),
                n1g=jnp.ones((d,), jnp.float32), n1b=jnp.zeros((d,), jnp.float32),
                n2g=jnp.ones((d,), jnp.float32), n2b=jnp.zeros((d,), jnp.float32),
                n3g=jnp.ones((d,), jnp.float32), n3b=jnp.zeros((d,), jnp.float32))


# ----------------------------------------------------------------------------
# Host-side prep: dense (right-multiply) attention weights + single weight slab
# ----------------------------------------------------------------------------
def _layer_norm_host(x, g, b, eps=1e-5):
    mu = x.mean(-1, keepdims=True)
    xc = x - mu
    var = (xc * xc).mean(-1, keepdims=True)
    return xc * jax.lax.rsqrt(var + eps) * g + b


def prep_attn_dense(p, d, nhead):
    """PyTorch MHA params -> right-multiply matrices, 1/sqrt(hd) folded into q."""
    hd = d // nhead
    scale = 1.0 / math.sqrt(hd)
    wq = p['in_w'][:d].T * scale
    bq = p['in_b'][:d] * scale
    wk = p['in_w'][d:2 * d].T
    bk = p['in_b'][d:2 * d]
    wv = p['in_w'][2 * d:].T
    bv = p['in_b'][2 * d:]
    wo = p['out_w'].T
    bo = p['out_b']
    return wq, bq, wk, bk, wv, bv, wo, bo


def _round_up(x, m):
    return (x + m - 1) // m * m


def build_slab(entries):
    """Pack (name, 2-D array) entries into one f32 slab.

    Each entry starts on an 8-row (sublane) boundary and is zero-padded on the
    lane axis to the common width.  Returns (slab, offsets) with
    offsets[name] = (row0, nrows, ncols) for static in-kernel slicing.
    """
    cmax = max(int(a.shape[1]) for _, a in entries)
    offsets = {}
    placed = []
    r = 0
    for name, a in entries:
        a = np.asarray(a, np.float32)
        r0 = _round_up(r, 8)
        offsets[name] = (r0, int(a.shape[0]), int(a.shape[1]))
        placed.append((r0, a))
        r = r0 + a.shape[0]
    rtot = _round_up(r, 8)
    slab = np.zeros((rtot, cmax), np.float32)
    for r0, a in placed:
        slab[r0:r0 + a.shape[0], :a.shape[1]] = a
    return jnp.asarray(slab), offsets


def prep_params(enc_layers, dec_layers, final_g, final_b, d, dff, nhead):
    ent = []
    for l, lp in enumerate(enc_layers):
        wq, bq, wk, bk, wv, bv, wo, bo = prep_attn_dense(lp['attn'], d, nhead)
        p = f'enc{l}_'
        ent += [
            (p + 'wqk', jnp.concatenate([wq, wk], axis=1)),
            (p + 'bqk', jnp.concatenate([bq, bk]).reshape(1, 2 * d)),
            (p + 'wv', wv), (p + 'bv', bv.reshape(1, d)),
            (p + 'wo', wo), (p + 'bo', bo.reshape(1, d)),
            (p + 'n1g', lp['n1g'].reshape(1, d)), (p + 'n1b', lp['n1b'].reshape(1, d)),
            (p + 'w1', lp['w1'].T), (p + 'b1', lp['b1'].reshape(1, dff)),
            (p + 'w2', lp['w2'].T), (p + 'b2', lp['b2'].reshape(1, d)),
            (p + 'n2g', lp['n2g'].reshape(1, d)), (p + 'n2b', lp['n2b'].reshape(1, d)),
        ]
    for l, lp in enumerate(dec_layers):
        p = f'dec{l}_'
        if l > 0:   # layer-0 self-attn + norm1 are constant-folded (tgt == 0)
            wq, bq, wk, bk, wv, bv, wo, bo = prep_attn_dense(lp['self_attn'], d, nhead)
            ent += [
                (p + 's_wqk', jnp.concatenate([wq, wk], axis=1)),
                (p + 's_bqk', jnp.concatenate([bq, bk]).reshape(1, 2 * d)),
                (p + 's_wv', wv), (p + 's_bv', bv.reshape(1, d)),
                (p + 's_wo', wo), (p + 's_bo', bo.reshape(1, d)),
                (p + 'n1g', lp['n1g'].reshape(1, d)), (p + 'n1b', lp['n1b'].reshape(1, d)),
            ]
        cwq, cbq, cwk, cbk, cwv, cbv, cwo, cbo = prep_attn_dense(lp['cross_attn'], d, nhead)
        ent += [
            (p + 'c_wq', cwq), (p + 'c_bq', cbq.reshape(1, d)),
            (p + 'c_wk', cwk), (p + 'c_bk', cbk.reshape(1, d)),
            (p + 'c_wv', cwv), (p + 'c_bv', cbv.reshape(1, d)),
            (p + 'c_wo', cwo), (p + 'c_bo', cbo.reshape(1, d)),
            (p + 'n2g', lp['n2g'].reshape(1, d)), (p + 'n2b', lp['n2b'].reshape(1, d)),
            (p + 'w1', lp['w1'].T), (p + 'b1', lp['b1'].reshape(1, dff)),
            (p + 'w2', lp['w2'].T), (p + 'b2', lp['b2'].reshape(1, d)),
            (p + 'n3g', lp['n3g'].reshape(1, d)), (p + 'n3b', lp['n3b'].reshape(1, d)),
        ]
    # Constant fold of decoder layer-0 self-attention (value == 0 => every
    # attention output row equals bv; out-proj + residual(0) + norm1 host-side).
    sa0 = dec_layers[0]['self_attn']
    bv0 = sa0['in_b'][2 * d:]
    const_row = bv0 @ sa0['out_w'].T + sa0['out_b']
    x0 = _layer_norm_host(const_row.reshape(1, d),
                          dec_layers[0]['n1g'].reshape(1, d),
                          dec_layers[0]['n1b'].reshape(1, d))
    ent += [('dec_x0', x0),
            ('fng', final_g.reshape(1, d)),
            ('fnb', final_b.reshape(1, d))]
    return build_slab(ent)


# ----------------------------------------------------------------------------
# Main
# ----------------------------------------------------------------------------
if __name__ == "__main__":
    key = jax.random.PRNGKey(0)
    B, C, H, W = 2, 32, 4, 4        # d_model == C
    nhead = 4
    dim_ff = 64
    num_enc, num_dec = 2, 2
    Nq = 8                          # num_queries

    kparam, kdata = jax.random.split(key)
    kl = jax.random.split(kparam, num_enc + num_dec)
    enc_layers = [init_encoder_layer(kl[i], C, dim_ff) for i in range(num_enc)]
    dec_layers = [init_decoder_layer(kl[num_enc + i], C, dim_ff) for i in range(num_dec)]
    slab, offsets = prep_params(enc_layers, dec_layers,
                                jnp.ones((C,), jnp.float32),
                                jnp.zeros((C,), jnp.float32),
                                C, dim_ff, nhead)

    k1, k2, k3 = jax.random.split(kdata, 3)
    src = jax.random.normal(k1, (B, C, H, W), jnp.float32)
    pos_embed = jax.random.normal(k2, (B, C, H, W), jnp.float32)
    query_embed = jax.random.normal(k3, (Nq, C), jnp.float32)
    mask = jnp.zeros((B, H, W), jnp.bool_)     # no padded positions

    fwd = jax.jit(functools.partial(transformer_forward, offsets=offsets,
                                    nhead=nhead, num_enc=num_enc,
                                    num_dec=num_dec))
    hs, mem = fwd(slab, src, mask, query_embed, pos_embed)
    jax.block_until_ready((hs, mem))

    assert hs.shape == (1, B, Nq, C), hs.shape
    assert mem.shape == (B, C, H, W), mem.shape
    assert bool(jnp.all(jnp.isfinite(hs))) and bool(jnp.all(jnp.isfinite(mem)))
    print("KERNEL_OK")
</pallas_src>

<mosaic_0001>
module attributes {stable_mosaic.version = 11 : i64} {
  func.func @transformer_kernel(%arg0: i32, %arg1: memref<1x16x32xf32, #tpu.memory_space<vmem>>, %arg2: memref<1x16x32xf32, #tpu.memory_space<vmem>>, %arg3: memref<1x1x16xf32, #tpu.memory_space<vmem>>, %arg4: memref<8x32xf32, #tpu.memory_space<vmem>>, %arg5: memref<1296x64xf32, #tpu.memory_space<vmem>>, %arg6: memref<1x16x32xf32, #tpu.memory_space<vmem>>, %arg7: memref<1x8x32xf32, #tpu.memory_space<vmem>>) attributes {dimension_semantics = [#tpu.dimension_semantics<parallel>], iteration_bounds = array<i64: 2>, scalar_prefetch = 0 : i64, scratch_operands = 0 : i64, tpu.core_type = #tpu.core_type<tc>, window_params = [{transform_indices = @transform_0, window_bounds = array<i64: 1, 16, 32>}, {transform_indices = @transform_1, window_bounds = array<i64: 1, 16, 32>}, {transform_indices = @transform_2, window_bounds = array<i64: 1, 1, 16>}, {pipeline_mode = #tpu.pipeline_mode<synchronous>, transform_indices = @transform_3, window_bounds = array<i64: 8, 32>}, {pipeline_mode = #tpu.pipeline_mode<synchronous>, transform_indices = @transform_4, window_bounds = array<i64: 1296, 64>}, {transform_indices = @transform_5, window_bounds = array<i64: 1, 16, 32>}, {transform_indices = @transform_6, window_bounds = array<i64: 1, 8, 32>}]} {
    %c0 = arith.constant 0 : index
    %c0_0 = arith.constant 0 : index
    %c0_1 = arith.constant 0 : index
    %0 = vector.load %arg2[%c0, %c0_0, %c0_1] : memref<1x16x32xf32, #tpu.memory_space<vmem>>, vector<1x16x32xf32>
    %1 = vector.shape_cast %0 : vector<1x16x32xf32> to vector<16x32xf32>
    %c0_2 = arith.constant 0 : index
    %c0_3 = arith.constant 0 : index
    %c0_4 = arith.constant 0 : index
    %2 = vector.load %arg3[%c0_2, %c0_3, %c0_4] : memref<1x1x16xf32, #tpu.memory_space<vmem>>, vector<1x1x16xf32>
    %3 = vector.shape_cast %2 : vector<1x1x16xf32> to vector<1x16xf32>
    %c0_5 = arith.constant 0 : index
    %c0_6 = arith.constant 0 : index
    %c0_7 = arith.constant 0 : index
    %4 = vector.load %arg1[%c0_5, %c0_6, %c0_7] : memref<1x16x32xf32, #tpu.memory_space<vmem>>, vector<1x16x32xf32>
    %5 = vector.shape_cast %4 : vector<1x16x32xf32> to vector<16x32xf32>
    %6 = arith.addf %5, %1 : vector<16x32xf32>
    %c0_8 = arith.constant 0 : index
    %c0_9 = arith.constant 0 : index
    %7 = vector.load %arg5[%c0_8, %c0_9] : memref<1296x64xf32, #tpu.memory_space<vmem>>, vector<32x64xf32>
    %cst = arith.constant dense<0.000000e+00> : vector<16x64xf32>
    %8 = tpu.matmul %6, %7, %cst {dimension_numbers = #tpu.dot_dimension_numbers<[1], [0], [0], [1], [0, 0, 1, 1], [], []>} : vector<16x32xf32>, vector<32x64xf32>, vector<16x64xf32> -> vector<16x64xf32>
    %c32 = arith.constant 32 : index
    %c0_10 = arith.constant 0 : index
    %9 = vector.load %arg5[%c32, %c0_10] : memref<1296x64xf32, #tpu.memory_space<vmem>>, vector<1x64xf32>
    %10 = vector.broadcast %9 : vector<1x64xf32> to vector<16x64xf32>
    %11 = arith.addf %8, %10 : vector<16x64xf32>
    %c40 = arith.constant 40 : index
    %c0_11 = arith.constant 0 : index
    %12 = vector.load %arg5[%c40, %c0_11] : memref<1296x64xf32, #tpu.memory_space<vmem>>, vector<32x32xf32>
    %cst_12 = arith.constant dense<0.000000e+00> : vector<16x32xf32>
    %13 = tpu.matmul %5, %12, %cst_12 {dimension_numbers = #tpu.dot_dimension_numbers<[1], [0], [0], [1], [0, 0, 1, 1], [], []>} : vector<16x32xf32>, vector<32x32xf32>, vector<16x32xf32> -> vector<16x32xf32>
    %c72 = arith.constant 72 : index
    %c0_13 = arith.constant 0 : index
    %14 = vector.load %arg5[%c72, %c0_13] : memref<1296x64xf32, #tpu.memory_space<vmem>>, vector<1x32xf32>
    %15 = vector.broadcast %14 : vector<1x32xf32> to vector<16x32xf32>
    %16 = arith.addf %13, %15 : vector<16x32xf32>
    %17 = vector.extract_strided_slice %11 {offsets = [0, 0], sizes = [16, 32], strides = [1, 1]} : vector<16x64xf32> to vector<16x32xf32>
    %18 = vector.extract_strided_slice %11 {offsets = [0, 32], sizes = [16, 32], strides = [1, 1]} : vector<16x64xf32> to vector<16x32xf32>
    %19 = vector.extract_strided_slice %17 {offsets = [0, 0], sizes = [16, 8], strides = [1, 1]} : vector<16x32xf32> to vector<16x8xf32>
    %20 = vector.extract_strided_slice %18 {offsets = [0, 0], sizes = [16, 8], strides = [1, 1]} : vector<16x32xf32> to vector<16x8xf32>
    %cst_14 = arith.constant dense<0.000000e+00> : vector<16x16xf32>
    %21 = tpu.matmul %19, %20, %cst_14 {dimension_numbers = #tpu.dot_dimension_numbers<[1], [1], [0], [0], [0, 0, 1, 0], [], []>} : vector<16x8xf32>, vector<16x8xf32>, vector<16x16xf32> -> vector<16x16xf32>
    %22 = vector.broadcast %3 : vector<1x16xf32> to vector<16x16xf32>
    %23 = arith.addf %21, %22 : vector<16x16xf32>
    %cst_15 = arith.constant dense<0xFF800000> : vector<16xf32>
    %24 = vector.multi_reduction <maximumf>, %23, %cst_15 [1] : vector<16x16xf32> to vector<16xf32>
    %25 = vector.shape_cast %24 : vector<16xf32> to vector<16x1xf32>
    %26 = vector.broadcast %25 : vector<16x1xf32> to vector<16x16xf32>
    %27 = arith.subf %23, %26 : vector<16x16xf32>
    %28 = math.exp %27 : vector<16x16xf32>
    %cst_16 = arith.constant dense<0.000000e+00> : vector<16xf32>
    %29 = vector.multi_reduction <add>, %28, %cst_16 [1] : vector<16x16xf32> to vector<16xf32>
    %30 = vector.shape_cast %29 : vector<16xf32> to vector<16x1xf32>
    %31 = tpu.reciprocal %30 {approx = true} : vector<16x1xf32> -> vector<16x1xf32>
    %32 = vector.broadcast %31 : vector<16x1xf32> to vector<16x16xf32>
    %33 = arith.mulf %28, %32 : vector<16x16xf32>
    %34 = vector.extract_strided_slice %16 {offsets = [0, 0], sizes = [16, 8], strides = [1, 1]} : vector<16x32xf32> to vector<16x8xf32>
    %cst_17 = arith.constant dense<0.000000e+00> : vector<16x8xf32>
    %35 = tpu.matmul %33, %34, %cst_17 {dimension_numbers = #tpu.dot_dimension_numbers<[1], [0], [0], [1], [0, 0, 1, 1], [], []>} : vector<16x16xf32>, vector<16x8xf32>, vector<16x8xf32> -> vector<16x8xf32>
    %36 = vector.extract_strided_slice %17 {offsets = [0, 8], sizes = [16, 8], strides = [1, 1]} : vector<16x32xf32> to vector<16x8xf32>
    %37 = vector.extract_strided_slice %18 {offsets = [0, 8], sizes = [16, 8], strides = [1, 1]} : vector<16x32xf32> to vector<16x8xf32>
    %cst_18 = arith.constant dense<0.000000e+00> : vector<16x16xf32>
    %38 = tpu.matmul %36, %37, %cst_18 {dimension_numbers = #tpu.dot_dimension_numbers<[1], [1], [0], [0], [0, 0, 1, 0], [], []>} : vector<16x8xf32>, vector<16x8xf32>, vector<16x16xf32> -> vector<16x16xf32>
    %39 = vector.broadcast %3 : vector<1x16xf32> to vector<16x16xf32>
    %40 = arith.addf %38, %39 : vector<16x16xf32>
    %cst_19 = arith.constant dense<0xFF800000> : vector<16xf32>
    %41 = vector.multi_reduction <maximumf>, %40, %cst_19 [1] : vector<16x16xf32> to vector<16xf32>
    %42 = vector.shape_cast %41 : vector<16xf32> to vector<16x1xf32>
    %43 = vector.broadcast %42 : vector<16x1xf32> to vector<16x16xf32>
    %44 = arith.subf %40, %43 : vector<16x16xf32>
    %45 = math.exp %44 : vector<16x16xf32>
    %cst_20 = arith.constant dense<0.000000e+00> : vector<16xf32>
    %46 = vector.multi_reduction <add>, %45, %cst_20 [1] : vector<16x16xf32> to vector<16xf32>
    %47 = vector.shape_cast %46 : vector<16xf32> to vector<16x1xf32>
    %48 = tpu.reciprocal %47 {approx = true} : vector<16x1xf32> -> vector<16x1xf32>
    %49 = vector.broadcast %48 : vector<16x1xf32> to vector<16x16xf32>
    %50 = arith.mulf %45, %49 : vector<16x16xf32>
    %51 = vector.extract_strided_slice %16 {offsets = [0, 8], sizes = [16, 8], strides = [1, 1]} : vector<16x32xf32> to vector<16x8xf32>
    %cst_21 = arith.constant dense<0.000000e+00> : vector<16x8xf32>
    %52 = tpu.matmul %50, %51, %cst_21 {dimension_numbers = #tpu.dot_dimension_numbers<[1], [0], [0], [1], [0, 0, 1, 1], [], []>} : vector<16x16xf32>, vector<16x8xf32>, vector<16x8xf32> -> vector<16x8xf32>
    %53 = vector.extract_strided_slice %17 {offsets = [0, 16], sizes = [16, 8], strides = [1, 1]} : vector<16x32xf32> to vector<16x8xf32>
    %54 = vector.extract_strided_slice %18 {offsets = [0, 16], sizes = [16, 8], strides = [1, 1]} : vector<16x32xf32> to vector<16x8xf32>
    %cst_22 = arith.constant dense<0.000000e+00> : vector<16x16xf32>
    %55 = tpu.matmul %53, %54, %cst_22 {dimension_numbers = #tpu.dot_dimension_numbers<[1], [1], [0], [0], [0, 0, 1, 0], [], []>} : vector<16x8xf32>, vector<16x8xf32>, vector<16x16xf32> -> vector<16x16xf32>
    %56 = vector.broadcast %3 : vector<1x16xf32> to vector<16x16xf32>
    %57 = arith.addf %55, %56 : vector<16x16xf32>
    %cst_23 = arith.constant dense<0xFF800000> : vector<16xf32>
    %58 = vector.multi_reduction <maximumf>, %57, %cst_23 [1] : vector<16x16xf32> to vector<16xf32>
    %59 = vector.shape_cast %58 : vector<16xf32> to vector<16x1xf32>
    %60 = vector.broadcast %59 : vector<16x1xf32> to vector<16x16xf32>
    %61 = arith.subf %57, %60 : vector<16x16xf32>
    %62 = math.exp %61 : vector<16x16xf32>
    %cst_24 = arith.constant dense<0.000000e+00> : vector<16xf32>
    %63 = vector.multi_reduction <add>, %62, %cst_24 [1] : vector<16x16xf32> to vector<16xf32>
    %64 = vector.shape_cast %63 : vector<16xf32> to vector<16x1xf32>
    %65 = tpu.reciprocal %64 {approx = true} : vector<16x1xf32> -> vector<16x1xf32>
    %66 = vector.broadcast %65 : vector<16x1xf32> to vector<16x16xf32>
    %67 = arith.mulf %62, %66 : vector<16x16xf32>
    %68 = vector.extract_strided_slice %16 {offsets = [0, 16], sizes = [16, 8], strides = [1, 1]} : vector<16x32xf32> to vector<16x8xf32>
    %cst_25 = arith.constant dense<0.000000e+00> : vector<16x8xf32>
    %69 = tpu.matmul %67, %68, %cst_25 {dimension_numbers = #tpu.dot_dimension_numbers<[1], [0], [0], [1], [0, 0, 1, 1], [], []>} : vector<16x16xf32>, vector<16x8xf32>, vector<16x8xf32> -> vector<16x8xf32>
    %70 = vector.extract_strided_slice %17 {offsets = [0, 24], sizes = [16, 8], strides = [1, 1]} : vector<16x32xf32> to vector<16x8xf32>
    %71 = vector.extract_strided_slice %18 {offsets = [0, 24], sizes = [16, 8], strides = [1, 1]} : vector<16x32xf32> to vector<16x8xf32>
    %cst_26 = arith.constant dense<0.000000e+00> : vector<16x16xf32>
    %72 = tpu.matmul %70, %71, %cst_26 {dimension_numbers = #tpu.dot_dimension_numbers<[1], [1], [0], [0], [0, 0, 1, 0], [], []>} : vector<16x8xf32>, vector<16x8xf32>, vector<16x16xf32> -> vector<16x16xf32>
    %73 = vector.broadcast %3 : vector<1x16xf32> to vector<16x16xf32>
    %74 = arith.addf %72, %73 : vector<16x16xf32>
    %cst_27 = arith.constant dense<0xFF800000> : vector<16xf32>
    %75 = vector.multi_reduction <maximumf>, %74, %cst_27 [1] : vector<16x16xf32> to vector<16xf32>
    %76 = vector.shape_cast %75 : vector<16xf32> to vector<16x1xf32>
    %77 = vector.broadcast %76 : vector<16x1xf32> to vector<16x16xf32>
    %78 = arith.subf %74, %77 : vector<16x16xf32>
    %79 = math.exp %78 : vector<16x16xf32>
    %cst_28 = arith.constant dense<0.000000e+00> : vector<16xf32>
    %80 = vector.multi_reduction <add>, %79, %cst_28 [1] : vector<16x16xf32> to vector<16xf32>
    %81 = vector.shape_cast %80 : vector<16xf32> to vector<16x1xf32>
    %82 = tpu.reciprocal %81 {approx = true} : vector<16x1xf32> -> vector<16x1xf32>
    %83 = vector.broadcast %82 : vector<16x1xf32> to vector<16x16xf32>
    %84 = arith.mulf %79, %83 : vector<16x16xf32>
    %85 = vector.extract_strided_slice %16 {offsets = [0, 24], sizes = [16, 8], strides = [1, 1]} : vector<16x32xf32> to vector<16x8xf32>
    %cst_29 = arith.constant dense<0.000000e+00> : vector<16x8xf32>
    %86 = tpu.matmul %84, %85, %cst_29 {dimension_numbers = #tpu.dot_dimension_numbers<[1], [0], [0], [1], [0, 0, 1, 1], [], []>} : vector<16x16xf32>, vector<16x8xf32>, vector<16x8xf32> -> vector<16x8xf32>
    %87 = tpu.concatenate %35, %52, %69, %86 in 1 : vector<16x8xf32>, vector<16x8xf32>, vector<16x8xf32>, vector<16x8xf32> -> vector<16x32xf32>
    %c80 = arith.constant 80 : index
    %c0_30 = arith.constant 0 : index
    %88 = vector.load %arg5[%c80, %c0_30] : memref<1296x64xf32, #tpu.memory_space<vmem>>, vector<32x32xf32>
    %cst_31 = arith.constant dense<0.000000e+00> : vector<16x32xf32>
    %89 = tpu.matmul %87, %88, %cst_31 {dimension_numbers = #tpu.dot_dimension_numbers<[1], [0], [0], [1], [0, 0, 1, 1], [], []>} : vector<16x32xf32>, vector<32x32xf32>, vector<16x32xf32> -> vector<16x32xf32>
    %c112 = arith.constant 112 : index
    %c0_32 = arith.constant 0 : index
    %90 = vector.load %arg5[%c112, %c0_32] : memref<1296x64xf32, #tpu.memory_space<vmem>>, vector<1x32xf32>
    %91 = vector.broadcast %90 : vector<1x32xf32> to vector<16x32xf32>
    %92 = arith.addf %89, %91 : vector<16x32xf32>
    %93 = arith.addf %5, %92 : vector<16x32xf32>
    %c120 = arith.constant 120 : index
    %c0_33 = arith.constant 0 : index
    %94 = vector.load %arg5[%c120, %c0_33] : memref<1296x64xf32, #tpu.memory_space<vmem>>, vector<1x32xf32>
    %c128 = arith.constant 128 : index
    %c0_34 = arith.constant 0 : index
    %95 = vector.load %arg5[%c128, %c0_34] : memref<1296x64xf32, #tpu.memory_space<vmem>>, vector<1x32xf32>
    %cst_35 = arith.constant dense<0.000000e+00> : vector<16xf32>
    %96 = vector.multi_reduction <add>, %93, %cst_35 [1] : vector<16x32xf32> to vector<16xf32>
    %97 = vector.shape_cast %96 : vector<16xf32> to vector<16x1xf32>
    %cst_36 = arith.constant 3.200000e+01 : f32
    %98 = vector.broadcast %cst_36 : f32 to vector<16x1xf32>
    %99 = arith.divf %97, %98 : vector<16x1xf32>
    %100 = vector.broadcast %99 : vector<16x1xf32> to vector<16x32xf32>
    %101 = arith.subf %93, %100 : vector<16x32xf32>
    %102 = arith.mulf %101, %101 : vector<16x32xf32>
    %cst_37 = arith.constant dense<0.000000e+00> : vector<16xf32>
    %103 = vector.multi_reduction <add>, %102, %cst_37 [1] : vector<16x32xf32> to vector<16xf32>
    %104 = vector.shape_cast %103 : vector<16xf32> to vector<16x1xf32>
    %cst_38 = arith.constant 3.200000e+01 : f32
    %105 = vector.broadcast %cst_38 : f32 to vector<16x1xf32>
    %106 = arith.divf %104, %105 : vector<16x1xf32>
    %cst_39 = arith.constant 9.99999974E-6 : f32
    %107 = vector.broadcast %cst_39 : f32 to vector<16x1xf32>
    %108 = arith.addf %106, %107 : vector<16x1xf32>
    %109 = math.rsqrt %108 : vector<16x1xf32>
    %110 = vector.broadcast %109 : vector<16x1xf32> to vector<16x32xf32>
    %111 = arith.mulf %101, %110 : vector<16x32xf32>
    %112 = vector.broadcast %94 : vector<1x32xf32> to vector<16x32xf32>
    %113 = arith.mulf %111, %112 : vector<16x32xf32>
    %114 = vector.broadcast %95 : vector<1x32xf32> to vector<16x32xf32>
    %115 = arith.addf %113, %114 : vector<16x32xf32>
    %c136 = arith.constant 136 : index
    %c0_40 = arith.constant 0 : index
    %116 = vector.load %arg5[%c136, %c0_40] : memref<1296x64xf32, #tpu.memory_space<vmem>>, vector<32x64xf32>
    %cst_41 = arith.constant dense<0.000000e+00> : vector<16x64xf32>
    %117 = tpu.matmul %115, %116, %cst_41 {dimension_numbers = #tpu.dot_dimension_numbers<[1], [0], [0], [1], [0, 0, 1, 1], [], []>} : vector<16x32xf32>, vector<32x64xf32>, vector<16x64xf32> -> vector<16x64xf32>
    %c168 = arith.constant 168 : index
    %c0_42 = arith.constant 0 : index
    %118 = vector.load %arg5[%c168, %c0_42] : memref<1296x64xf32, #tpu.memory_space<vmem>>, vector<1x64xf32>
    %119 = vector.broadcast %118 : vector<1x64xf32> to vector<16x64xf32>
    %120 = arith.addf %117, %119 : vector<16x64xf32>
    %cst_43 = arith.constant 0.000000e+00 : f32
    %121 = vector.broadcast %cst_43 : f32 to vector<16x64xf32>
    %122 = arith.maximumf %120, %121 : vector<16x64xf32>
    %c176 = arith.constant 176 : index
    %c0_44 = arith.constant 0 : index
    %123 = vector.load %arg5[%c176, %c0_44] : memref<1296x64xf32, #tpu.memory_space<vmem>>, vector<64x32xf32>
    %cst_45 = arith.constant dense<0.000000e+00> : vector<16x32xf32>
    %124 = tpu.matmul %122, %123, %cst_45 {dimension_numbers = #tpu.dot_dimension_numbers<[1], [0], [0], [1], [0, 0, 1, 1], [], []>} : vector<16x64xf32>, vector<64x32xf32>, vector<16x32xf32> -> vector<16x32xf32>
    %c240 = arith.constant 240 : index
    %c0_46 = arith.constant 0 : index
    %125 = vector.load %arg5[%c240, %c0_46] : memref<1296x64xf32, #tpu.memory_space<vmem>>, vector<1x32xf32>
    %126 = vector.broadcast %125 : vector<1x32xf32> to vector<16x32xf32>
    %127 = arith.addf %124, %126 : vector<16x32xf32>
    %128 = arith.addf %115, %127 : vector<16x32xf32>
    %c248 = arith.constant 248 : index
    %c0_47 = arith.constant 0 : index
    %129 = vector.load %arg5[%c248, %c0_47] : memref<1296x64xf32, #tpu.memory_space<vmem>>, vector<1x32xf32>
    %c256 = arith.constant 256 : index
    %c0_48 = arith.constant 0 : index
    %130 = vector.load %arg5[%c256, %c0_48] : memref<1296x64xf32, #tpu.memory_space<vmem>>, vector<1x32xf32>
    %cst_49 = arith.constant dense<0.000000e+00> : vector<16xf32>
    %131 = vector.multi_reduction <add>, %128, %cst_49 [1] : vector<16x32xf32> to vector<16xf32>
    %132 = vector.shape_cast %131 : vector<16xf32> to vector<16x1xf32>
    %cst_50 = arith.constant 3.200000e+01 : f32
    %133 = vector.broadcast %cst_50 : f32 to vector<16x1xf32>
    %134 = arith.divf %132, %133 : vector<16x1xf32>
    %135 = vector.broadcast %134 : vector<16x1xf32> to vector<16x32xf32>
    %136 = arith.subf %128, %135 : vector<16x32xf32>
    %137 = arith.mulf %136, %136 : vector<16x32xf32>
    %cst_51 = arith.constant dense<0.000000e+00> : vector<16xf32>
    %138 = vector.multi_reduction <add>, %137, %cst_51 [1] : vector<16x32xf32> to vector<16xf32>
    %139 = vector.shape_cast %138 : vector<16xf32> to vector<16x1xf32>
    %cst_52 = arith.constant 3.200000e+01 : f32
    %140 = vector.broadcast %cst_52 : f32 to vector<16x1xf32>
    %141 = arith.divf %139, %140 : vector<16x1xf32>
    %cst_53 = arith.constant 9.99999974E-6 : f32
    %142 = vector.broadcast %cst_53 : f32 to vector<16x1xf32>
    %143 = arith.addf %141, %142 : vector<16x1xf32>
    %144 = math.rsqrt %143 : vector<16x1xf32>
    %145 = vector.broadcast %144 : vector<16x1xf32> to vector<16x32xf32>
    %146 = arith.mulf %136, %145 : vector<16x32xf32>
    %147 = vector.broadcast %129 : vector<1x32xf32> to vector<16x32xf32>
    %148 = arith.mulf %146, %147 : vector<16x32xf32>
    %149 = vector.broadcast %130 : vector<1x32xf32> to vector<16x32xf32>
    %150 = arith.addf %148, %149 : vector<16x32xf32>
    %151 = arith.addf %150, %1 : vector<16x32xf32>
    %c264 = arith.constant 264 : index
    %c0_54 = arith.constant 0 : index
    %152 = vector.load %arg5[%c264, %c0_54] : memref<1296x64xf32, #tpu.memory_space<vmem>>, vector<32x64xf32>
    %cst_55 = arith.constant dense<0.000000e+00> : vector<16x64xf32>
    %153 = tpu.matmul %151, %152, %cst_55 {dimension_numbers = #tpu.dot_dimension_numbers<[1], [0], [0], [1], [0, 0, 1, 1], [], []>} : vector<16x32xf32>, vector<32x64xf32>, vector<16x64xf32> -> vector<16x64xf32>
    %c296 = arith.constant 296 : index
    %c0_56 = arith.constant 0 : index
    %154 = vector.load %arg5[%c296, %c0_56] : memref<1296x64xf32, #tpu.memory_space<vmem>>, vector<1x64xf32>
    %155 = vector.broadcast %154 : vector<1x64xf32> to vector<16x64xf32>
    %156 = arith.addf %153, %155 : vector<16x64xf32>
    %c304 = arith.constant 304 : index
    %c0_57 = arith.constant 0 : index
    %157 = vector.load %arg5[%c304, %c0_57] : memref<1296x64xf32, #tpu.memory_space<vmem>>, vector<32x32xf32>
    %cst_58 = arith.constant dense<0.000000e+00> : vector<16x32xf32>
    %158 = tpu.matmul %150, %157, %cst_58 {dimension_numbers = #tpu.dot_dimension_numbers<[1], [0], [0], [1], [0, 0, 1, 1], [], []>} : vector<16x32xf32>, vector<32x32xf32>, vector<16x32xf32> -> vector<16x32xf32>
    %c336 = arith.constant 336 : index
    %c0_59 = arith.constant 0 : index
    %159 = vector.load %arg5[%c336, %c0_59] : memref<1296x64xf32, #tpu.memory_space<vmem>>, vector<1x32xf32>
    %160 = vector.broadcast %159 : vector<1x32xf32> to vector<16x32xf32>
    %161 = arith.addf %158, %160 : vector<16x32xf32>
    %162 = vector.extract_strided_slice %156 {offsets = [0, 0], sizes = [16, 32], strides = [1, 1]} : vector<16x64xf32> to vector<16x32xf32>
    %163 = vector.extract_strided_slice %156 {offsets = [0, 32], sizes = [16, 32], strides = [1, 1]} : vector<16x64xf32> to vector<16x32xf32>
    %164 = vector.extract_strided_slice %162 {offsets = [0, 0], sizes = [16, 8], strides = [1, 1]} : vector<16x32xf32> to vector<16x8xf32>
    %165 = vector.extract_strided_slice %163 {offsets = [0, 0], sizes = [16, 8], strides = [1, 1]} : vector<16x32xf32> to vector<16x8xf32>
    %cst_60 = arith.constant dense<0.000000e+00> : vector<16x16xf32>
    %166 = tpu.matmul %164, %165, %cst_60 {dimension_numbers = #tpu.dot_dimension_numbers<[1], [1], [0], [0], [0, 0, 1, 0], [], []>} : vector<16x8xf32>, vector<16x8xf32>, vector<16x16xf32> -> vector<16x16xf32>
    %167 = vector.broadcast %3 : vector<1x16xf32> to vector<16x16xf32>
    %168 = arith.addf %166, %167 : vector<16x16xf32>
    %cst_61 = arith.constant dense<0xFF800000> : vector<16xf32>
    %169 = vector.multi_reduction <maximumf>, %168, %cst_61 [1] : vector<16x16xf32> to vector<16xf32>
    %170 = vector.shape_cast %169 : vector<16xf32> to vector<16x1xf32>
    %171 = vector.broadcast %170 : vector<16x1xf32> to vector<16x16xf32>
    %172 = arith.subf %168, %171 : vector<16x16xf32>
    %173 = math.exp %172 : vector<16x16xf32>
    %cst_62 = arith.constant dense<0.000000e+00> : vector<16xf32>
    %174 = vector.multi_reduction <add>, %173, %cst_62 [1] : vector<16x16xf32> to vector<16xf32>
    %175 = vector.shape_cast %174 : vector<16xf32> to vector<16x1xf32>
    %176 = tpu.reciprocal %175 {approx = true} : vector<16x1xf32> -> vector<16x1xf32>
    %177 = vector.broadcast %176 : vector<16x1xf32> to vector<16x16xf32>
    %178 = arith.mulf %173, %177 : vector<16x16xf32>
    %179 = vector.extract_strided_slice %161 {offsets = [0, 0], sizes = [16, 8], strides = [1, 1]} : vector<16x32xf32> to vector<16x8xf32>
    %cst_63 = arith.constant dense<0.000000e+00> : vector<16x8xf32>
    %180 = tpu.matmul %178, %179, %cst_63 {dimension_numbers = #tpu.dot_dimension_numbers<[1], [0], [0], [1], [0, 0, 1, 1], [], []>} : vector<16x16xf32>, vector<16x8xf32>, vector<16x8xf32> -> vector<16x8xf32>
    %181 = vector.extract_strided_slice %162 {offsets = [0, 8], sizes = [16, 8], strides = [1, 1]} : vector<16x32xf32> to vector<16x8xf32>
    %182 = vector.extract_strided_slice %163 {offsets = [0, 8], sizes = [16, 8], strides = [1, 1]} : vector<16x32xf32> to vector<16x8xf32>
    %cst_64 = arith.constant dense<0.000000e+00> : vector<16x16xf32>
    %183 = tpu.matmul %181, %182, %cst_64 {dimension_numbers = #tpu.dot_dimension_numbers<[1], [1], [0], [0], [0, 0, 1, 0], [], []>} : vector<16x8xf32>, vector<16x8xf32>, vector<16x16xf32> -> vector<16x16xf32>
    %184 = vector.broadcast %3 : vector<1x16xf32> to vector<16x16xf32>
    %185 = arith.addf %183, %184 : vector<16x16xf32>
    %cst_65 = arith.constant dense<0xFF800000> : vector<16xf32>
    %186 = vector.multi_reduction <maximumf>, %185, %cst_65 [1] : vector<16x16xf32> to vector<16xf32>
    %187 = vector.shape_cast %186 : vector<16xf32> to vector<16x1xf32>
    %188 = vector.broadcast %187 : vector<16x1xf32> to vector<16x16xf32>
    %189 = arith.subf %185, %188 : vector<16x16xf32>
    %190 = math.exp %189 : vector<16x16xf32>
    %cst_66 = arith.constant dense<0.000000e+00> : vector<16xf32>
    %191 = vector.multi_reduction <add>, %190, %cst_66 [1] : vector<16x16xf32> to vector<16xf32>
    %192 = vector.shape_cast %191 : vector<16xf32> to vector<16x1xf32>
    %193 = tpu.reciprocal %192 {approx = true} : vector<16x1xf32> -> vector<16x1xf32>
    %194 = vector.broadcast %193 : vector<16x1xf32> to vector<16x16xf32>
    %195 = arith.mulf %190, %194 : vector<16x16xf32>
    %196 = vector.extract_strided_slice %161 {offsets = [0, 8], sizes = [16, 8], strides = [1, 1]} : vector<16x32xf32> to vector<16x8xf32>
    %cst_67 = arith.constant dense<0.000000e+00> : vector<16x8xf32>
    %197 = tpu.matmul %195, %196, %cst_67 {dimension_numbers = #tpu.dot_dimension_numbers<[1], [0], [0], [1], [0, 0, 1, 1], [], []>} : vector<16x16xf32>, vector<16x8xf32>, vector<16x8xf32> -> vector<16x8xf32>
    %198 = vector.extract_strided_slice %162 {offsets = [0, 16], sizes = [16, 8], strides = [1, 1]} : vector<16x32xf32> to vector<16x8xf32>
    %199 = vector.extract_strided_slice %163 {offsets = [0, 16], sizes = [16, 8], strides = [1, 1]} : vector<16x32xf32> to vector<16x8xf32>
    %cst_68 = arith.constant dense<0.000000e+00> : vector<16x16xf32>
    %200 = tpu.matmul %198, %199, %cst_68 {dimension_numbers = #tpu.dot_dimension_numbers<[1], [1], [0], [0], [0, 0, 1, 0], [], []>} : vector<16x8xf32>, vector<16x8xf32>, vector<16x16xf32> -> vector<16x16xf32>
    %201 = vector.broadcast %3 : vector<1x16xf32> to vector<16x16xf32>
    %202 = arith.addf %200, %201 : vector<16x16xf32>
    %cst_69 = arith.constant dense<0xFF800000> : vector<16xf32>
    %203 = vector.multi_reduction <maximumf>, %202, %cst_69 [1] : vector<16x16xf32> to vector<16xf32>
    %204 = vector.shape_cast %203 : vector<16xf32> to vector<16x1xf32>
    %205 = vector.broadcast %204 : vector<16x1xf32> to vector<16x16xf32>
    %206 = arith.subf %202, %205 : vector<16x16xf32>
    %207 = math.exp %206 : vector<16x16xf32>
    %cst_70 = arith.constant dense<0.000000e+00> : vector<16xf32>
    %208 = vector.multi_reduction <add>, %207, %cst_70 [1] : vector<16x16xf32> to vector<16xf32>
    %209 = vector.shape_cast %208 : vector<16xf32> to vector<16x1xf32>
    %210 = tpu.reciprocal %209 {approx = true} : vector<16x1xf32> -> vector<16x1xf32>
    %211 = vector.broadcast %210 : vector<16x1xf32> to vector<16x16xf32>
    %212 = arith.mulf %207, %211 : vector<16x16xf32>
    %213 = vector.extract_strided_slice %161 {offsets = [0, 16], sizes = [16, 8], strides = [1, 1]} : vector<16x32xf32> to vector<16x8xf32>
    %cst_71 = arith.constant dense<0.000000e+00> : vector<16x8xf32>
    %214 = tpu.matmul %212, %213, %cst_71 {dimension_numbers = #tpu.dot_dimension_numbers<[1], [0], [0], [1], [0, 0, 1, 1], [], []>} : vector<16x16xf32>, vector<16x8xf32>, vector<16x8xf32> -> vector<16x8xf32>
    %215 = vector.extract_strided_slice %162 {offsets = [0, 24], sizes = [16, 8], strides = [1, 1]} : vector<16x32xf32> to vector<16x8xf32>
    %216 = vector.extract_strided_slice %163 {offsets = [0, 24], sizes = [16, 8], strides = [1, 1]} : vector<16x32xf32> to vector<16x8xf32>
    %cst_72 = arith.constant dense<0.000000e+00> : vector<16x16xf32>
    %217 = tpu.matmul %215, %216, %cst_72 {dimension_numbers = #tpu.dot_dimension_numbers<[1], [1], [0], [0], [0, 0, 1, 0], [], []>} : vector<16x8xf32>, vector<16x8xf32>, vector<16x16xf32> -> vector<16x16xf32>
    %218 = vector.broadcast %3 : vector<1x16xf32> to vector<16x16xf32>
    %219 = arith.addf %217, %218 : vector<16x16xf32>
    %cst_73 = arith.constant dense<0xFF800000> : vector<16xf32>
    %220 = vector.multi_reduction <maximumf>, %219, %cst_73 [1] : vector<16x16xf32> to vector<16xf32>
    %221 = vector.shape_cast %220 : vector<16xf32> to vector<16x1xf32>
    %222 = vector.broadcast %221 : vector<16x1xf32> to vector<16x16xf32>
    %223 = arith.subf %219, %222 : vector<16x16xf32>
    %224 = math.exp %223 : vector<16x16xf32>
    %cst_74 = arith.constant dense<0.000000e+00> : vector<16xf32>
    %225 = vector.multi_reduction <add>, %224, %cst_74 [1] : vector<16x16xf32> to vector<16xf32>
    %226 = vector.shape_cast %225 : vector<16xf32> to vector<16x1xf32>
    %227 = tpu.reciprocal %226 {approx = true} : vector<16x1xf32> -> vector<16x1xf32>
    %228 = vector.broadcast %227 : vector<16x1xf32> to vector<16x16xf32>
    %229 = arith.mulf %224, %228 : vector<16x16xf32>
    %230 = vector.extract_strided_slice %161 {offsets = [0, 24], sizes = [16, 8], strides = [1, 1]} : vector<16x32xf32> to vector<16x8xf32>
    %cst_75 = arith.constant dense<0.000000e+00> : vector<16x8xf32>
    %231 = tpu.matmul %229, %230, %cst_75 {dimension_numbers = #tpu.dot_dimension_numbers<[1], [0], [0], [1], [0, 0, 1, 1], [], []>} : vector<16x16xf32>, vector<16x8xf32>, vector<16x8xf32> -> vector<16x8xf32>
    %232 = tpu.concatenate %180, %197, %214, %231 in 1 : vector<16x8xf32>, vector<16x8xf32>, vector<16x8xf32>, vector<16x8xf32> -> vector<16x32xf32>
    %c344 = arith.constant 344 : index
    %c0_76 = arith.constant 0 : index
    %233 = vector.load %arg5[%c344, %c0_76] : memref<1296x64xf32, #tpu.memory_space<vmem>>, vector<32x32xf32>
    %cst_77 = arith.constant dense<0.000000e+00> : vector<16x32xf32>
    %234 = tpu.matmul %232, %233, %cst_77 {dimension_numbers = #tpu.dot_dimension_numbers<[1], [0], [0], [1], [0, 0, 1, 1], [], []>} : vector<16x32xf32>, vector<32x32xf32>, vector<16x32xf32> -> vector<16x32xf32>
    %c376 = arith.constant 376 : index
    %c0_78 = arith.constant 0 : index
    %235 = vector.load %arg5[%c376, %c0_78] : memref<1296x64xf32, #tpu.memory_space<vmem>>, vector<1x32xf32>
    %236 = vector.broadcast %235 : vector<1x32xf32> to vector<16x32xf32>
    %237 = arith.addf %234, %236 : vector<16x32xf32>
    %238 = arith.addf %150, %237 : vector<16x32xf32>
    %c384 = arith.constant 384 : index
    %c0_79 = arith.constant 0 : index
    %239 = vector.load %arg5[%c384, %c0_79] : memref<1296x64xf32, #tpu.memory_space<vmem>>, vector<1x32xf32>
    %c392 = arith.constant 392 : index
    %c0_80 = arith.constant 0 : index
    %240 = vector.load %arg5[%c392, %c0_80] : memref<1296x64xf32, #tpu.memory_space<vmem>>, vector<1x32xf32>
    %cst_81 = arith.constant dense<0.000000e+00> : vector<16xf32>
    %241 = vector.multi_reduction <add>, %238, %cst_81 [1] : vector<16x32xf32> to vector<16xf32>
    %242 = vector.shape_cast %241 : vector<16xf32> to vector<16x1xf32>
    %cst_82 = arith.constant 3.200000e+01 : f32
    %243 = vector.broadcast %cst_82 : f32 to vector<16x1xf32>
    %244 = arith.divf %242, %243 : vector<16x1xf32>
    %245 = vector.broadcast %244 : vector<16x1xf32> to vector<16x32xf32>
    %246 = arith.subf %238, %245 : vector<16x32xf32>
    %247 = arith.mulf %246, %246 : vector<16x32xf32>
    %cst_83 = arith.constant dense<0.000000e+00> : vector<16xf32>
    %248 = vector.multi_reduction <add>, %247, %cst_83 [1] : vector<16x32xf32> to vector<16xf32>
    %249 = vector.shape_cast %248 : vector<16xf32> to vector<16x1xf32>
    %cst_84 = arith.constant 3.200000e+01 : f32
    %250 = vector.broadcast %cst_84 : f32 to vector<16x1xf32>
    %251 = arith.divf %249, %250 : vector<16x1xf32>
    %cst_85 = arith.constant 9.99999974E-6 : f32
    %252 = vector.broadcast %cst_85 : f32 to vector<16x1xf32>
    %253 = arith.addf %251, %252 : vector<16x1xf32>
    %254 = math.rsqrt %253 : vector<16x1xf32>
    %255 = vector.broadcast %254 : vector<16x1xf32> to vector<16x32xf32>
    %256 = arith.mulf %246, %255 : vector<16x32xf32>
    %257 = vector.broadcast %239 : vector<1x32xf32> to vector<16x32xf32>
    %258 = arith.mulf %256, %257 : vector<16x32xf32>
    %259 = vector.broadcast %240 : vector<1x32xf32> to vector<16x32xf32>
    %260 = arith.addf %258, %259 : vector<16x32xf32>
    %c400 = arith.constant 400 : index
    %c0_86 = arith.constant 0 : index
    %261 = vector.load %arg5[%c400, %c0_86] : memref<1296x64xf32, #tpu.memory_space<vmem>>, vector<32x64xf32>
    %cst_87 = arith.constant dense<0.000000e+00> : vector<16x64xf32>
    %262 = tpu.matmul %260, %261, %cst_87 {dimension_numbers = #tpu.dot_dimension_numbers<[1], [0], [0], [1], [0, 0, 1, 1], [], []>} : vector<16x32xf32>, vector<32x64xf32>, vector<16x64xf32> -> vector<16x64xf32>
    %c432 = arith.constant 432 : index
    %c0_88 = arith.constant 0 : index
    %263 = vector.load %arg5[%c432, %c0_88] : memref<1296x64xf32, #tpu.memory_space<vmem>>, vector<1x64xf32>
    %264 = vector.broadcast %263 : vector<1x64xf32> to vector<16x64xf32>
    %265 = arith.addf %262, %264 : vector<16x64xf32>
    %cst_89 = arith.constant 0.000000e+00 : f32
    %266 = vector.broadcast %cst_89 : f32 to vector<16x64xf32>
    %267 = arith.maximumf %265, %266 : vector<16x64xf32>
    %c440 = arith.constant 440 : index
    %c0_90 = arith.constant 0 : index
    %268 = vector.load %arg5[%c440, %c0_90] : memref<1296x64xf32, #tpu.memory_space<vmem>>, vector<64x32xf32>
    %cst_91 = arith.constant dense<0.000000e+00> : vector<16x32xf32>
    %269 = tpu.matmul %267, %268, %cst_91 {dimension_numbers = #tpu.dot_dimension_numbers<[1], [0], [0], [1], [0, 0, 1, 1], [], []>} : vector<16x64xf32>, vector<64x32xf32>, vector<16x32xf32> -> vector<16x32xf32>
    %c504 = arith.constant 504 : index
    %c0_92 = arith.constant 0 : index
    %270 = vector.load %arg5[%c504, %c0_92] : memref<1296x64xf32, #tpu.memory_space<vmem>>, vector<1x32xf32>
    %271 = vector.broadcast %270 : vector<1x32xf32> to vector<16x32xf32>
    %272 = arith.addf %269, %271 : vector<16x32xf32>
    %273 = arith.addf %260, %272 : vector<16x32xf32>
    %c512 = arith.constant 512 : index
    %c0_93 = arith.constant 0 : index
    %274 = vector.load %arg5[%c512, %c0_93] : memref<1296x64xf32, #tpu.memory_space<vmem>>, vector<1x32xf32>
    %c520 = arith.constant 520 : index
    %c0_94 = arith.constant 0 : index
    %275 = vector.load %arg5[%c520, %c0_94] : memref<1296x64xf32, #tpu.memory_space<vmem>>, vector<1x32xf32>
    %cst_95 = arith.constant dense<0.000000e+00> : vector<16xf32>
    %276 = vector.multi_reduction <add>, %273, %cst_95 [1] : vector<16x32xf32> to vector<16xf32>
    %277 = vector.shape_cast %276 : vector<16xf32> to vector<16x1xf32>
    %cst_96 = arith.constant 3.200000e+01 : f32
    %278 = vector.broadcast %cst_96 : f32 to vector<16x1xf32>
    %279 = arith.divf %277, %278 : vector<16x1xf32>
    %280 = vector.broadcast %279 : vector<16x1xf32> to vector<16x32xf32>
    %281 = arith.subf %273, %280 : vector<16x32xf32>
    %282 = arith.mulf %281, %281 : vector<16x32xf32>
    %cst_97 = arith.constant dense<0.000000e+00> : vector<16xf32>
    %283 = vector.multi_reduction <add>, %282, %cst_97 [1] : vector<16x32xf32> to vector<16xf32>
    %284 = vector.shape_cast %283 : vector<16xf32> to vector<16x1xf32>
    %cst_98 = arith.constant 3.200000e+01 : f32
    %285 = vector.broadcast %cst_98 : f32 to vector<16x1xf32>
    %286 = arith.divf %284, %285 : vector<16x1xf32>
    %cst_99 = arith.constant 9.99999974E-6 : f32
    %287 = vector.broadcast %cst_99 : f32 to vector<16x1xf32>
    %288 = arith.addf %286, %287 : vector<16x1xf32>
    %289 = math.rsqrt %288 : vector<16x1xf32>
    %290 = vector.broadcast %289 : vector<16x1xf32> to vector<16x32xf32>
    %291 = arith.mulf %281, %290 : vector<16x32xf32>
    %292 = vector.broadcast %274 : vector<1x32xf32> to vector<16x32xf32>
    %293 = arith.mulf %291, %292 : vector<16x32xf32>
    %294 = vector.broadcast %275 : vector<1x32xf32> to vector<16x32xf32>
    %295 = arith.addf %293, %294 : vector<16x32xf32>
    %c0_100 = arith.constant 0 : index
    %c0_101 = arith.constant 0 : index
    %c0_102 = arith.constant 0 : index
    %296 = vector.load %arg6[%c0_100, %c0_101, %c0_102] : memref<1x16x32xf32, #tpu.memory_space<vmem>>, vector<1x16x32xf32>
    %297 = vector.shape_cast %296 : vector<1x16x32xf32> to vector<16x32xf32>
    %298 = vector.shape_cast %295 : vector<16x32xf32> to vector<1x16x32xf32>
    tpu.vector_store %arg6[%c0_100, %c0_101, %c0_102], %298 {strides = array<i32>} : memref<1x16x32xf32, #tpu.memory_space<vmem>>, vector<1x16x32xf32>,
    %c0_103 = arith.constant 0 : index
    %c0_104 = arith.constant 0 : index
    %299 = vector.load %arg4[%c0_103, %c0_104] : memref<8x32xf32, #tpu.memory_space<vmem>>, vector<8x32xf32>
    %300 = arith.addf %295, %1 : vector<16x32xf32>
    %c1272 = arith.constant 1272 : index
    %c0_105 = arith.constant 0 : index
    %301 = vector.load %arg5[%c1272, %c0_105] : memref<1296x64xf32, #tpu.memory_space<vmem>>, vector<1x32xf32>
    %302 = vector.shape_cast %301 : vector<1x32xf32> to vector<1x32xf32>
    %303 = vector.broadcast %302 : vector<1x32xf32> to vector<8x32xf32>
    %304 = arith.addf %303, %299 : vector<8x32xf32>
    %c528 = arith.constant 528 : index
    %c0_106 = arith.constant 0 : index
    %305 = vector.load %arg5[%c528, %c0_106] : memref<1296x64xf32, #tpu.memory_space<vmem>>, vector<32x32xf32>
    %cst_107 = arith.constant dense<0.000000e+00> : vector<8x32xf32>
    %306 = tpu.matmul %304, %305, %cst_107 {dimension_numbers = #tpu.dot_dimension_numbers<[1], [0], [0], [1], [0, 0, 1, 1], [], []>} : vector<8x32xf32>, vector<32x32xf32>, vector<8x32xf32> -> vector<8x32xf32>
    %c560 = arith.constant 560 : index
    %c0_108 = arith.constant 0 : index
    %307 = vector.load %arg5[%c560, %c0_108] : memref<1296x64xf32, #tpu.memory_space<vmem>>, vector<1x32xf32>
    %308 = vector.broadcast %307 : vector<1x32xf32> to vector<8x32xf32>
    %309 = arith.addf %306, %308 : vector<8x32xf32>
    %c568 = arith.constant 568 : index
    %c0_109 = arith.constant 0 : index
    %310 = vector.load %arg5[%c568, %c0_109] : memref<1296x64xf32, #tpu.memory_space<vmem>>, vector<32x32xf32>
    %cst_110 = arith.constant dense<0.000000e+00> : vector<16x32xf32>
    %311 = tpu.matmul %300, %310, %cst_110 {dimension_numbers = #tpu.dot_dimension_numbers<[1], [0], [0], [1], [0, 0, 1, 1], [], []>} : vector<16x32xf32>, vector<32x32xf32>, vector<16x32xf32> -> vector<16x32xf32>
    %c600 = arith.constant 600 : index
    %c0_111 = arith.constant 0 : index
    %312 = vector.load %arg5[%c600, %c0_111] : memref<1296x64xf32, #tpu.memory_space<vmem>>, vector<1x32xf32>
    %313 = vector.broadcast %312 : vector<1x32xf32> to vector<16x32xf32>
    %314 = arith.addf %311, %313 : vector<16x32xf32>
    %c608 = arith.constant 608 : index
    %c0_112 = arith.constant 0 : index
    %315 = vector.load %arg5[%c608, %c0_112] : memref<1296x64xf32, #tpu.memory_space<vmem>>, vector<32x32xf32>
    %cst_113 = arith.constant dense<0.000000e+00> : vector<16x32xf32>
    %316 = tpu.matmul %295, %315, %cst_113 {dimension_numbers = #tpu.dot_dimension_numbers<[1], [0], [0], [1], [0, 0, 1, 1], [], []>} : vector<16x32xf32>, vector<32x32xf32>, vector<16x32xf32> -> vector<16x32xf32>
    %c640 = arith.constant 640 : index
    %c0_114 = arith.constant 0 : index
    %317 = vector.load %arg5[%c640, %c0_114] : memref<1296x64xf32, #tpu.memory_space<vmem>>, vector<1x32xf32>
    %318 = vector.broadcast %317 : vector<1x32xf32> to vector<16x32xf32>
    %319 = arith.addf %316, %318 : vector<16x32xf32>
    %320 = vector.extract_strided_slice %309 {offsets = [0, 0], sizes = [8, 8], strides = [1, 1]} : vector<8x32xf32> to vector<8x8xf32>
    %321 = vector.extract_strided_slice %314 {offsets = [0, 0], sizes = [16, 8], strides = [1, 1]} : vector<16x32xf32> to vector<16x8xf32>
    %cst_115 = arith.constant dense<0.000000e+00> : vector<8x16xf32>
    %322 = tpu.matmul %320, %321, %cst_115 {dimension_numbers = #tpu.dot_dimension_numbers<[1], [1], [0], [0], [0, 0, 1, 0], [], []>} : vector<8x8xf32>, vector<16x8xf32>, vector<8x16xf32> -> vector<8x16xf32>
    %323 = vector.broadcast %3 : vector<1x16xf32> to vector<8x16xf32>
    %324 = arith.addf %322, %323 : vector<8x16xf32>
    %cst_116 = arith.constant dense<0xFF800000> : vector<8xf32>
    %325 = vector.multi_reduction <maximumf>, %324, %cst_116 [1] : vector<8x16xf32> to vector<8xf32>
    %326 = vector.shape_cast %325 : vector<8xf32> to vector<8x1xf32>
    %327 = vector.broadcast %326 : vector<8x1xf32> to vector<8x16xf32>
    %328 = arith.subf %324, %327 : vector<8x16xf32>
    %329 = math.exp %328 : vector<8x16xf32>
    %cst_117 = arith.constant dense<0.000000e+00> : vector<8xf32>
    %330 = vector.multi_reduction <add>, %329, %cst_117 [1] : vector<8x16xf32> to vector<8xf32>
    %331 = vector.shape_cast %330 : vector<8xf32> to vector<8x1xf32>
    %332 = tpu.reciprocal %331 {approx = true} : vector<8x1xf32> -> vector<8x1xf32>
    %333 = vector.broadcast %332 : vector<8x1xf32> to vector<8x16xf32>
    %334 = arith.mulf %329, %333 : vector<8x16xf32>
    %335 = vector.extract_strided_slice %319 {offsets = [0, 0], sizes = [16, 8], strides = [1, 1]} : vector<16x32xf32> to vector<16x8xf32>
    %cst_118 = arith.constant dense<0.000000e+00> : vector<8x8xf32>
    %336 = tpu.matmul %334, %335, %cst_118 {dimension_numbers = #tpu.dot_dimension_numbers<[1], [0], [0], [1], [0, 0, 1, 1], [], []>} : vector<8x16xf32>, vector<16x8xf32>, vector<8x8xf32> -> vector<8x8xf32>
    %337 = vector.extract_strided_slice %309 {offsets = [0, 8], sizes = [8, 8], strides = [1, 1]} : vector<8x32xf32> to vector<8x8xf32>
    %338 = vector.extract_strided_slice %314 {offsets = [0, 8], sizes = [16, 8], strides = [1, 1]} : vector<16x32xf32> to vector<16x8xf32>
    %cst_119 = arith.constant dense<0.000000e+00> : vector<8x16xf32>
    %339 = tpu.matmul %337, %338, %cst_119 {dimension_numbers = #tpu.dot_dimension_numbers<[1], [1], [0], [0], [0, 0, 1, 0], [], []>} : vector<8x8xf32>, vector<16x8xf32>, vector<8x16xf32> -> vector<8x16xf32>
    %340 = vector.broadcast %3 : vector<1x16xf32> to vector<8x16xf32>
    %341 = arith.addf %339, %340 : vector<8x16xf32>
    %cst_120 = arith.constant dense<0xFF800000> : vector<8xf32>
    %342 = vector.multi_reduction <maximumf>, %341, %cst_120 [1] : vector<8x16xf32> to vector<8xf32>
    %343 = vector.shape_cast %342 : vector<8xf32> to vector<8x1xf32>
    %344 = vector.broadcast %343 : vector<8x1xf32> to vector<8x16xf32>
    %345 = arith.subf %341, %344 : vector<8x16xf32>
    %346 = math.exp %345 : vector<8x16xf32>
    %cst_121 = arith.constant dense<0.000000e+00> : vector<8xf32>
    %347 = vector.multi_reduction <add>, %346, %cst_121 [1] : vector<8x16xf32> to vector<8xf32>
    %348 = vector.shape_cast %347 : vector<8xf32> to vector<8x1xf32>
    %349 = tpu.reciprocal %348 {approx = true} : vector<8x1xf32> -> vector<8x1xf32>
    %350 = vector.broadcast %349 : vector<8x1xf32> to vector<8x16xf32>
    %351 = arith.mulf %346, %350 : vector<8x16xf32>
    %352 = vector.extract_strided_slice %319 {offsets = [0, 8], sizes = [16, 8], strides = [1, 1]} : vector<16x32xf32> to vector<16x8xf32>
    %cst_122 = arith.constant dense<0.000000e+00> : vector<8x8xf32>
    %353 = tpu.matmul %351, %352, %cst_122 {dimension_numbers = #tpu.dot_dimension_numbers<[1], [0], [0], [1], [0, 0, 1, 1], [], []>} : vector<8x16xf32>, vector<16x8xf32>, vector<8x8xf32> -> vector<8x8xf32>
    %354 = vector.extract_strided_slice %309 {offsets = [0, 16], sizes = [8, 8], strides = [1, 1]} : vector<8x32xf32> to vector<8x8xf32>
    %355 = vector.extract_strided_slice %314 {offsets = [0, 16], sizes = [16, 8], strides = [1, 1]} : vector<16x32xf32> to vector<16x8xf32>
    %cst_123 = arith.constant dense<0.000000e+00> : vector<8x16xf32>
    %356 = tpu.matmul %354, %355, %cst_123 {dimension_numbers = #tpu.dot_dimension_numbers<[1], [1], [0], [0], [0, 0, 1, 0], [], []>} : vector<8x8xf32>, vector<16x8xf32>, vector<8x16xf32> -> vector<8x16xf32>
    %357 = vector.broadcast %3 : vector<1x16xf32> to vector<8x16xf32>
    %358 = arith.addf %356, %357 : vector<8x16xf32>
    %cst_124 = arith.constant dense<0xFF800000> : vector<8xf32>
    %359 = vector.multi_reduction <maximumf>, %358, %cst_124 [1] : vector<8x16xf32> to vector<8xf32>
    %360 = vector.shape_cast %359 : vector<8xf32> to vector<8x1xf32>
    %361 = vector.broadcast %360 : vector<8x1xf32> to vector<8x16xf32>
    %362 = arith.subf %358, %361 : vector<8x16xf32>
    %363 = math.exp %362 : vector<8x16xf32>
    %cst_125 = arith.constant dense<0.000000e+00> : vector<8xf32>
    %364 = vector.multi_reduction <add>, %363, %cst_125 [1] : vector<8x16xf32> to vector<8xf32>
    %365 = vector.shape_cast %364 : vector<8xf32> to vector<8x1xf32>
    %366 = tpu.reciprocal %365 {approx = true} : vector<8x1xf32> -> vector<8x1xf32>
    %367 = vector.broadcast %366 : vector<8x1xf32> to vector<8x16xf32>
    %368 = arith.mulf %363, %367 : vector<8x16xf32>
    %369 = vector.extract_strided_slice %319 {offsets = [0, 16], sizes = [16, 8], strides = [1, 1]} : vector<16x32xf32> to vector<16x8xf32>
    %cst_126 = arith.constant dense<0.000000e+00> : vector<8x8xf32>
    %370 = tpu.matmul %368, %369, %cst_126 {dimension_numbers = #tpu.dot_dimension_numbers<[1], [0], [0], [1], [0, 0, 1, 1], [], []>} : vector<8x16xf32>, vector<16x8xf32>, vector<8x8xf32> -> vector<8x8xf32>
    %371 = vector.extract_strided_slice %309 {offsets = [0, 24], sizes = [8, 8], strides = [1, 1]} : vector<8x32xf32> to vector<8x8xf32>
    %372 = vector.extract_strided_slice %314 {offsets = [0, 24], sizes = [16, 8], strides = [1, 1]} : vector<16x32xf32> to vector<16x8xf32>
    %cst_127 = arith.constant dense<0.000000e+00> : vector<8x16xf32>
    %373 = tpu.matmul %371, %372, %cst_127 {dimension_numbers = #tpu.dot_dimension_numbers<[1], [1], [0], [0], [0, 0, 1, 0], [], []>} : vector<8x8xf32>, vector<16x8xf32>, vector<8x16xf32> -> vector<8x16xf32>
    %374 = vector.broadcast %3 : vector<1x16xf32> to vector<8x16xf32>
    %375 = arith.addf %373, %374 : vector<8x16xf32>
    %cst_128 = arith.constant dense<0xFF800000> : vector<8xf32>
    %376 = vector.multi_reduction <maximumf>, %375, %cst_128 [1] : vector<8x16xf32> to vector<8xf32>
    %377 = vector.shape_cast %376 : vector<8xf32> to vector<8x1xf32>
    %378 = vector.broadcast %377 : vector<8x1xf32> to vector<8x16xf32>
    %379 = arith.subf %375, %378 : vector<8x16xf32>
    %380 = math.exp %379 : vector<8x16xf32>
    %cst_129 = arith.constant dense<0.000000e+00> : vector<8xf32>
    %381 = vector.multi_reduction <add>, %380, %cst_129 [1] : vector<8x16xf32> to vector<8xf32>
    %382 = vector.shape_cast %381 : vector<8xf32> to vector<8x1xf32>
    %383 = tpu.reciprocal %382 {approx = true} : vector<8x1xf32> -> vector<8x1xf32>
    %384 = vector.broadcast %383 : vector<8x1xf32> to vector<8x16xf32>
    %385 = arith.mulf %380, %384 : vector<8x16xf32>
    %386 = vector.extract_strided_slice %319 {offsets = [0, 24], sizes = [16, 8], strides = [1, 1]} : vector<16x32xf32> to vector<16x8xf32>
    %cst_130 = arith.constant dense<0.000000e+00> : vector<8x8xf32>
    %387 = tpu.matmul %385, %386, %cst_130 {dimension_numbers = #tpu.dot_dimension_numbers<[1], [0], [0], [1], [0, 0, 1, 1], [], []>} : vector<8x16xf32>, vector<16x8xf32>, vector<8x8xf32> -> vector<8x8xf32>
    %388 = tpu.concatenate %336, %353, %370, %387 in 1 : vector<8x8xf32>, vector<8x8xf32>, vector<8x8xf32>, vector<8x8xf32> -> vector<8x32xf32>
    %c648 = arith.constant 648 : index
    %c0_131 = arith.constant 0 : index
    %389 = vector.load %arg5[%c648, %c0_131] : memref<1296x64xf32, #tpu.memory_space<vmem>>, vector<32x32xf32>
    %cst_132 = arith.constant dense<0.000000e+00> : vector<8x32xf32>
    %390 = tpu.matmul %388, %389, %cst_132 {dimension_numbers = #tpu.dot_dimension_numbers<[1], [0], [0], [1], [0, 0, 1, 1], [], []>} : vector<8x32xf32>, vector<32x32xf32>, vector<8x32xf32> -> vector<8x32xf32>
    %c680 = arith.constant 680 : index
    %c0_133 = arith.constant 0 : index
    %391 = vector.load %arg5[%c680, %c0_133] : memref<1296x64xf32, #tpu.memory_space<vmem>>, vector<1x32xf32>
    %392 = vector.broadcast %391 : vector<1x32xf32> to vector<8x32xf32>
    %393 = arith.addf %390, %392 : vector<8x32xf32>
    %394 = arith.addf %303, %393 : vector<8x32xf32>
    %c688 = arith.constant 688 : index
    %c0_134 = arith.constant 0 : index
    %395 = vector.load %arg5[%c688, %c0_134] : memref<1296x64xf32, #tpu.memory_space<vmem>>, vector<1x32xf32>
    %c696 = arith.constant 696 : index
    %c0_135 = arith.constant 0 : index
    %396 = vector.load %arg5[%c696, %c0_135] : memref<1296x64xf32, #tpu.memory_space<vmem>>, vector<1x32xf32>
    %cst_136 = arith.constant dense<0.000000e+00> : vector<8xf32>
    %397 = vector.multi_reduction <add>, %394, %cst_136 [1] : vector<8x32xf32> to vector<8xf32>
    %398 = vector.shape_cast %397 : vector<8xf32> to vector<8x1xf32>
    %cst_137 = arith.constant 3.200000e+01 : f32
    %399 = vector.broadcast %cst_137 : f32 to vector<8x1xf32>
    %400 = arith.divf %398, %399 : vector<8x1xf32>
    %401 = vector.broadcast %400 : vector<8x1xf32> to vector<8x32xf32>
    %402 = arith.subf %394, %401 : vector<8x32xf32>
    %403 = arith.mulf %402, %402 : vector<8x32xf32>
    %cst_138 = arith.constant dense<0.000000e+00> : vector<8xf32>
    %404 = vector.multi_reduction <add>, %403, %cst_138 [1] : vector<8x32xf32> to vector<8xf32>
    %405 = vector.shape_cast %404 : vector<8xf32> to vector<8x1xf32>
    %cst_139 = arith.constant 3.200000e+01 : f32
    %406 = vector.broadcast %cst_139 : f32 to vector<8x1xf32>
    %407 = arith.divf %405, %406 : vector<8x1xf32>
    %cst_140 = arith.constant 9.99999974E-6 : f32
    %408 = vector.broadcast %cst_140 : f32 to vector<8x1xf32>
    %409 = arith.addf %407, %408 : vector<8x1xf32>
    %410 = math.rsqrt %409 : vector<8x1xf32>
    %411 = vector.broadcast %410 : vector<8x1xf32> to vector<8x32xf32>
    %412 = arith.mulf %402, %411 : vector<8x32xf32>
    %413 = vector.broadcast %395 : vector<1x32xf32> to vector<8x32xf32>
    %414 = arith.mulf %412, %413 : vector<8x32xf32>
    %415 = vector.broadcast %396 : vector<1x32xf32> to vector<8x32xf32>
    %416 = arith.addf %414, %415 : vector<8x32xf32>
    %c704 = arith.constant 704 : index
    %c0_141 = arith.constant 0 : index
    %417 = vector.load %arg5[%c704, %c0_141] : memref<1296x64xf32, #tpu.memory_space<vmem>>, vector<32x64xf32>
    %cst_142 = arith.constant dense<0.000000e+00> : vector<8x64xf32>
    %418 = tpu.matmul %416, %417, %cst_142 {dimension_numbers = #tpu.dot_dimension_numbers<[1], [0], [0], [1], [0, 0, 1, 1], [], []>} : vector<8x32xf32>, vector<32x64xf32>, vector<8x64xf32> -> vector<8x64xf32>
    %c736 = arith.constant 736 : index
    %c0_143 = arith.constant 0 : index
    %419 = vector.load %arg5[%c736, %c0_143] : memref<1296x64xf32, #tpu.memory_space<vmem>>, vector<1x64xf32>
    %420 = vector.broadcast %419 : vector<1x64xf32> to vector<8x64xf32>
    %421 = arith.addf %418, %420 : vector<8x64xf32>
    %cst_144 = arith.constant 0.000000e+00 : f32
    %422 = vector.broadcast %cst_144 : f32 to vector<8x64xf32>
    %423 = arith.maximumf %421, %422 : vector<8x64xf32>
    %c744 = arith.constant 744 : index
    %c0_145 = arith.constant 0 : index
    %424 = vector.load %arg5[%c744, %c0_145] : memref<1296x64xf32, #tpu.memory_space<vmem>>, vector<64x32xf32>
    %cst_146 = arith.constant dense<0.000000e+00> : vector<8x32xf32>
    %425 = tpu.matmul %423, %424, %cst_146 {dimension_numbers = #tpu.dot_dimension_numbers<[1], [0], [0], [1], [0, 0, 1, 1], [], []>} : vector<8x64xf32>, vector<64x32xf32>, vector<8x32xf32> -> vector<8x32xf32>
    %c808 = arith.constant 808 : index
    %c0_147 = arith.constant 0 : index
    %426 = vector.load %arg5[%c808, %c0_147] : memref<1296x64xf32, #tpu.memory_space<vmem>>, vector<1x32xf32>
    %427 = vector.broadcast %426 : vector<1x32xf32> to vector<8x32xf32>
    %428 = arith.addf %425, %427 : vector<8x32xf32>
    %429 = arith.addf %416, %428 : vector<8x32xf32>
    %c816 = arith.constant 816 : index
    %c0_148 = arith.constant 0 : index
    %430 = vector.load %arg5[%c816, %c0_148] : memref<1296x64xf32, #tpu.memory_space<vmem>>, vector<1x32xf32>
    %c824 = arith.constant 824 : index
    %c0_149 = arith.constant 0 : index
    %431 = vector.load %arg5[%c824, %c0_149] : memref<1296x64xf32, #tpu.memory_space<vmem>>, vector<1x32xf32>
    %cst_150 = arith.constant dense<0.000000e+00> : vector<8xf32>
    %432 = vector.multi_reduction <add>, %429, %cst_150 [1] : vector<8x32xf32> to vector<8xf32>
    %433 = vector.shape_cast %432 : vector<8xf32> to vector<8x1xf32>
    %cst_151 = arith.constant 3.200000e+01 : f32
    %434 = vector.broadcast %cst_151 : f32 to vector<8x1xf32>
    %435 = arith.divf %433, %434 : vector<8x1xf32>
    %436 = vector.broadcast %435 : vector<8x1xf32> to vector<8x32xf32>
    %437 = arith.subf %429, %436 : vector<8x32xf32>
    %438 = arith.mulf %437, %437 : vector<8x32xf32>
    %cst_152 = arith.constant dense<0.000000e+00> : vector<8xf32>
    %439 = vector.multi_reduction <add>, %438, %cst_152 [1] : vector<8x32xf32> to vector<8xf32>
    %440 = vector.shape_cast %439 : vector<8xf32> to vector<8x1xf32>
    %cst_153 = arith.constant 3.200000e+01 : f32
    %441 = vector.broadcast %cst_153 : f32 to vector<8x1xf32>
    %442 = arith.divf %440, %441 : vector<8x1xf32>
    %cst_154 = arith.constant 9.99999974E-6 : f32
    %443 = vector.broadcast %cst_154 : f32 to vector<8x1xf32>
    %444 = arith.addf %442, %443 : vector<8x1xf32>
    %445 = math.rsqrt %444 : vector<8x1xf32>
    %446 = vector.broadcast %445 : vector<8x1xf32> to vector<8x32xf32>
    %447 = arith.mulf %437, %446 : vector<8x32xf32>
    %448 = vector.broadcast %430 : vector<1x32xf32> to vector<8x32xf32>
    %449 = arith.mulf %447, %448 : vector<8x32xf32>
    %450 = vector.broadcast %431 : vector<1x32xf32> to vector<8x32xf32>
    %451 = arith.addf %449, %450 : vector<8x32xf32>
    %452 = arith.addf %451, %299 : vector<8x32xf32>
    %c832 = arith.constant 832 : index
    %c0_155 = arith.constant 0 : index
    %453 = vector.load %arg5[%c832, %c0_155] : memref<1296x64xf32, #tpu.memory_space<vmem>>, vector<32x64xf32>
    %cst_156 = arith.constant dense<0.000000e+00> : vector<8x64xf32>
    %454 = tpu.matmul %452, %453, %cst_156 {dimension_numbers = #tpu.dot_dimension_numbers<[1], [0], [0], [1], [0, 0, 1, 1], [], []>} : vector<8x32xf32>, vector<32x64xf32>, vector<8x64xf32> -> vector<8x64xf32>
    %c864 = arith.constant 864 : index
    %c0_157 = arith.constant 0 : index
    %455 = vector.load %arg5[%c864, %c0_157] : memref<1296x64xf32, #tpu.memory_space<vmem>>, vector<1x64xf32>
    %456 = vector.broadcast %455 : vector<1x64xf32> to vector<8x64xf32>
    %457 = arith.addf %454, %456 : vector<8x64xf32>
    %c872 = arith.constant 872 : index
    %c0_158 = arith.constant 0 : index
    %458 = vector.load %arg5[%c872, %c0_158] : memref<1296x64xf32, #tpu.memory_space<vmem>>, vector<32x32xf32>
    %cst_159 = arith.constant dense<0.000000e+00> : vector<8x32xf32>
    %459 = tpu.matmul %451, %458, %cst_159 {dimension_numbers = #tpu.dot_dimension_numbers<[1], [0], [0], [1], [0, 0, 1, 1], [], []>} : vector<8x32xf32>, vector<32x32xf32>, vector<8x32xf32> -> vector<8x32xf32>
    %c904 = arith.constant 904 : index
    %c0_160 = arith.constant 0 : index
    %460 = vector.load %arg5[%c904, %c0_160] : memref<1296x64xf32, #tpu.memory_space<vmem>>, vector<1x32xf32>
    %461 = vector.broadcast %460 : vector<1x32xf32> to vector<8x32xf32>
    %462 = arith.addf %459, %461 : vector<8x32xf32>
    %463 = vector.extract_strided_slice %457 {offsets = [0, 0], sizes = [8, 32], strides = [1, 1]} : vector<8x64xf32> to vector<8x32xf32>
    %464 = vector.extract_strided_slice %457 {offsets = [0, 32], sizes = [8, 32], strides = [1, 1]} : vector<8x64xf32> to vector<8x32xf32>
    %465 = vector.extract_strided_slice %463 {offsets = [0, 0], sizes = [8, 8], strides = [1, 1]} : vector<8x32xf32> to vector<8x8xf32>
    %466 = vector.extract_strided_slice %464 {offsets = [0, 0], sizes = [8, 8], strides = [1, 1]} : vector<8x32xf32> to vector<8x8xf32>
    %cst_161 = arith.constant dense<0.000000e+00> : vector<8x8xf32>
    %467 = tpu.matmul %465, %466, %cst_161 {dimension_numbers = #tpu.dot_dimension_numbers<[1], [1], [0], [0], [0, 0, 1, 0], [], []>} : vector<8x8xf32>, vector<8x8xf32>, vector<8x8xf32> -> vector<8x8xf32>
    %cst_162 = arith.constant dense<0xFF800000> : vector<8xf32>
    %468 = vector.multi_reduction <maximumf>, %467, %cst_162 [1] : vector<8x8xf32> to vector<8xf32>
    %469 = vector.shape_cast %468 : vector<8xf32> to vector<8x1xf32>
    %470 = vector.broadcast %469 : vector<8x1xf32> to vector<8x8xf32>
    %471 = arith.subf %467, %470 : vector<8x8xf32>
    %472 = math.exp %471 : vector<8x8xf32>
    %cst_163 = arith.constant dense<0.000000e+00> : vector<8xf32>
    %473 = vector.multi_reduction <add>, %472, %cst_163 [1] : vector<8x8xf32> to vector<8xf32>
    %474 = vector.shape_cast %473 : vector<8xf32> to vector<8x1xf32>
    %475 = tpu.reciprocal %474 {approx = true} : vector<8x1xf32> -> vector<8x1xf32>
    %476 = vector.broadcast %475 : vector<8x1xf32> to vector<8x8xf32>
    %477 = arith.mulf %472, %476 : vector<8x8xf32>
    %478 = vector.extract_strided_slice %462 {offsets = [0, 0], sizes = [8, 8], strides = [1, 1]} : vector<8x32xf32> to vector<8x8xf32>
    %cst_164 = arith.constant dense<0.000000e+00> : vector<8x8xf32>
    %479 = tpu.matmul %477, %478, %cst_164 {dimension_numbers = #tpu.dot_dimension_numbers<[1], [0], [0], [1], [0, 0, 1, 1], [], []>} : vector<8x8xf32>, vector<8x8xf32>, vector<8x8xf32> -> vector<8x8xf32>
    %480 = vector.extract_strided_slice %463 {offsets = [0, 8], sizes = [8, 8], strides = [1, 1]} : vector<8x32xf32> to vector<8x8xf32>
    %481 = vector.extract_strided_slice %464 {offsets = [0, 8], sizes = [8, 8], strides = [1, 1]} : vector<8x32xf32> to vector<8x8xf32>
    %cst_165 = arith.constant dense<0.000000e+00> : vector<8x8xf32>
    %482 = tpu.matmul %480, %481, %cst_165 {dimension_numbers = #tpu.dot_dimension_numbers<[1], [1], [0], [0], [0, 0, 1, 0], [], []>} : vector<8x8xf32>, vector<8x8xf32>, vector<8x8xf32> -> vector<8x8xf32>
    %cst_166 = arith.constant dense<0xFF800000> : vector<8xf32>
    %483 = vector.multi_reduction <maximumf>, %482, %cst_166 [1] : vector<8x8xf32> to vector<8xf32>
    %484 = vector.shape_cast %483 : vector<8xf32> to vector<8x1xf32>
    %485 = vector.broadcast %484 : vector<8x1xf32> to vector<8x8xf32>
    %486 = arith.subf %482, %485 : vector<8x8xf32>
    %487 = math.exp %486 : vector<8x8xf32>
    %cst_167 = arith.constant dense<0.000000e+00> : vector<8xf32>
    %488 = vector.multi_reduction <add>, %487, %cst_167 [1] : vector<8x8xf32> to vector<8xf32>
    %489 = vector.shape_cast %488 : vector<8xf32> to vector<8x1xf32>
    %490 = tpu.reciprocal %489 {approx = true} : vector<8x1xf32> -> vector<8x1xf32>
    %491 = vector.broadcast %490 : vector<8x1xf32> to vector<8x8xf32>
    %492 = arith.mulf %487, %491 : vector<8x8xf32>
    %493 = vector.extract_strided_slice %462 {offsets = [0, 8], sizes = [8, 8], strides = [1, 1]} : vector<8x32xf32> to vector<8x8xf32>
    %cst_168 = arith.constant dense<0.000000e+00> : vector<8x8xf32>
    %494 = tpu.matmul %492, %493, %cst_168 {dimension_numbers = #tpu.dot_dimension_numbers<[1], [0], [0], [1], [0, 0, 1, 1], [], []>} : vector<8x8xf32>, vector<8x8xf32>, vector<8x8xf32> -> vector<8x8xf32>
    %495 = vector.extract_strided_slice %463 {offsets = [0, 16], sizes = [8, 8], strides = [1, 1]} : vector<8x32xf32> to vector<8x8xf32>
    %496 = vector.extract_strided_slice %464 {offsets = [0, 16], sizes = [8, 8], strides = [1, 1]} : vector<8x32xf32> to vector<8x8xf32>
    %cst_169 = arith.constant dense<0.000000e+00> : vector<8x8xf32>
    %497 = tpu.matmul %495, %496, %cst_169 {dimension_numbers = #tpu.dot_dimension_numbers<[1], [1], [0], [0], [0, 0, 1, 0], [], []>} : vector<8x8xf32>, vector<8x8xf32>, vector<8x8xf32> -> vector<8x8xf32>
    %cst_170 = arith.constant dense<0xFF800000> : vector<8xf32>
    %498 = vector.multi_reduction <maximumf>, %497, %cst_170 [1] : vector<8x8xf32> to vector<8xf32>
    %499 = vector.shape_cast %498 : vector<8xf32> to vector<8x1xf32>
    %500 = vector.broadcast %499 : vector<8x1xf32> to vector<8x8xf32>
    %501 = arith.subf %497, %500 : vector<8x8xf32>
    %502 = math.exp %501 : vector<8x8xf32>
    %cst_171 = arith.constant dense<0.000000e+00> : vector<8xf32>
    %503 = vector.multi_reduction <add>, %502, %cst_171 [1] : vector<8x8xf32> to vector<8xf32>
    %504 = vector.shape_cast %503 : vector<8xf32> to vector<8x1xf32>
    %505 = tpu.reciprocal %504 {approx = true} : vector<8x1xf32> -> vector<8x1xf32>
    %506 = vector.broadcast %505 : vector<8x1xf32> to vector<8x8xf32>
    %507 = arith.mulf %502, %506 : vector<8x8xf32>
    %508 = vector.extract_strided_slice %462 {offsets = [0, 16], sizes = [8, 8], strides = [1, 1]} : vector<8x32xf32> to vector<8x8xf32>
    %cst_172 = arith.constant dense<0.000000e+00> : vector<8x8xf32>
    %509 = tpu.matmul %507, %508, %cst_172 {dimension_numbers = #tpu.dot_dimension_numbers<[1], [0], [0], [1], [0, 0, 1, 1], [], []>} : vector<8x8xf32>, vector<8x8xf32>, vector<8x8xf32> -> vector<8x8xf32>
    %510 = vector.extract_strided_slice %463 {offsets = [0, 24], sizes = [8, 8], strides = [1, 1]} : vector<8x32xf32> to vector<8x8xf32>
    %511 = vector.extract_strided_slice %464 {offsets = [0, 24], sizes = [8, 8], strides = [1, 1]} : vector<8x32xf32> to vector<8x8xf32>
    %cst_173 = arith.constant dense<0.000000e+00> : vector<8x8xf32>
    %512 = tpu.matmul %510, %511, %cst_173 {dimension_numbers = #tpu.dot_dimension_numbers<[1], [1], [0], [0], [0, 0, 1, 0], [], []>} : vector<8x8xf32>, vector<8x8xf32>, vector<8x8xf32> -> vector<8x8xf32>
    %cst_174 = arith.constant dense<0xFF800000> : vector<8xf32>
    %513 = vector.multi_reduction <maximumf>, %512, %cst_174 [1] : vector<8x8xf32> to vector<8xf32>
    %514 = vector.shape_cast %513 : vector<8xf32> to vector<8x1xf32>
    %515 = vector.broadcast %514 : vector<8x1xf32> to vector<8x8xf32>
    %516 = arith.subf %512, %515 : vector<8x8xf32>
    %517 = math.exp %516 : vector<8x8xf32>
    %cst_175 = arith.constant dense<0.000000e+00> : vector<8xf32>
    %518 = vector.multi_reduction <add>, %517, %cst_175 [1] : vector<8x8xf32> to vector<8xf32>
    %519 = vector.shape_cast %518 : vector<8xf32> to vector<8x1xf32>
    %520 = tpu.reciprocal %519 {approx = true} : vector<8x1xf32> -> vector<8x1xf32>
    %521 = vector.broadcast %520 : vector<8x1xf32> to vector<8x8xf32>
    %522 = arith.mulf %517, %521 : vector<8x8xf32>
    %523 = vector.extract_strided_slice %462 {offsets = [0, 24], sizes = [8, 8], strides = [1, 1]} : vector<8x32xf32> to vector<8x8xf32>
    %cst_176 = arith.constant dense<0.000000e+00> : vector<8x8xf32>
    %524 = tpu.matmul %522, %523, %cst_176 {dimension_numbers = #tpu.dot_dimension_numbers<[1], [0], [0], [1], [0, 0, 1, 1], [], []>} : vector<8x8xf32>, vector<8x8xf32>, vector<8x8xf32> -> vector<8x8xf32>
    %525 = tpu.concatenate %479, %494, %509, %524 in 1 : vector<8x8xf32>, vector<8x8xf32>, vector<8x8xf32>, vector<8x8xf32> -> vector<8x32xf32>
    %c912 = arith.constant 912 : index
    %c0_177 = arith.constant 0 : index
    %526 = vector.load %arg5[%c912, %c0_177] : memref<1296x64xf32, #tpu.memory_space<vmem>>, vector<32x32xf32>
    %cst_178 = arith.constant dense<0.000000e+00> : vector<8x32xf32>
    %527 = tpu.matmul %525, %526, %cst_178 {dimension_numbers = #tpu.dot_dimension_numbers<[1], [0], [0], [1], [0, 0, 1, 1], [], []>} : vector<8x32xf32>, vector<32x32xf32>, vector<8x32xf32> -> vector<8x32xf32>
    %c944 = arith.constant 944 : index
    %c0_179 = arith.constant 0 : index
    %528 = vector.load %arg5[%c944, %c0_179] : memref<1296x64xf32, #tpu.memory_space<vmem>>, vector<1x32xf32>
    %529 = vector.broadcast %528 : vector<1x32xf32> to vector<8x32xf32>
    %530 = arith.addf %527, %529 : vector<8x32xf32>
    %531 = arith.addf %451, %530 : vector<8x32xf32>
    %c952 = arith.constant 952 : index
    %c0_180 = arith.constant 0 : index
    %532 = vector.load %arg5[%c952, %c0_180] : memref<1296x64xf32, #tpu.memory_space<vmem>>, vector<1x32xf32>
    %c960 = arith.constant 960 : index
    %c0_181 = arith.constant 0 : index
    %533 = vector.load %arg5[%c960, %c0_181] : memref<1296x64xf32, #tpu.memory_space<vmem>>, vector<1x32xf32>
    %cst_182 = arith.constant dense<0.000000e+00> : vector<8xf32>
    %534 = vector.multi_reduction <add>, %531, %cst_182 [1] : vector<8x32xf32> to vector<8xf32>
    %535 = vector.shape_cast %534 : vector<8xf32> to vector<8x1xf32>
    %cst_183 = arith.constant 3.200000e+01 : f32
    %536 = vector.broadcast %cst_183 : f32 to vector<8x1xf32>
    %537 = arith.divf %535, %536 : vector<8x1xf32>
    %538 = vector.broadcast %537 : vector<8x1xf32> to vector<8x32xf32>
    %539 = arith.subf %531, %538 : vector<8x32xf32>
    %540 = arith.mulf %539, %539 : vector<8x32xf32>
    %cst_184 = arith.constant dense<0.000000e+00> : vector<8xf32>
    %541 = vector.multi_reduction <add>, %540, %cst_184 [1] : vector<8x32xf32> to vector<8xf32>
    %542 = vector.shape_cast %541 : vector<8xf32> to vector<8x1xf32>
    %cst_185 = arith.constant 3.200000e+01 : f32
    %543 = vector.broadcast %cst_185 : f32 to vector<8x1xf32>
    %544 = arith.divf %542, %543 : vector<8x1xf32>
    %cst_186 = arith.constant 9.99999974E-6 : f32
    %545 = vector.broadcast %cst_186 : f32 to vector<8x1xf32>
    %546 = arith.addf %544, %545 : vector<8x1xf32>
    %547 = math.rsqrt %546 : vector<8x1xf32>
    %548 = vector.broadcast %547 : vector<8x1xf32> to vector<8x32xf32>
    %549 = arith.mulf %539, %548 : vector<8x32xf32>
    %550 = vector.broadcast %532 : vector<1x32xf32> to vector<8x32xf32>
    %551 = arith.mulf %549, %550 : vector<8x32xf32>
    %552 = vector.broadcast %533 : vector<1x32xf32> to vector<8x32xf32>
    %553 = arith.addf %551, %552 : vector<8x32xf32>
    %554 = arith.addf %553, %299 : vector<8x32xf32>
    %c968 = arith.constant 968 : index
    %c0_187 = arith.constant 0 : index
    %555 = vector.load %arg5[%c968, %c0_187] : memref<1296x64xf32, #tpu.memory_space<vmem>>, vector<32x32xf32>
    %cst_188 = arith.constant dense<0.000000e+00> : vector<8x32xf32>
    %556 = tpu.matmul %554, %555, %cst_188 {dimension_numbers = #tpu.dot_dimension_numbers<[1], [0], [0], [1], [0, 0, 1, 1], [], []>} : vector<8x32xf32>, vector<32x32xf32>, vector<8x32xf32> -> vector<8x32xf32>
    %c1000 = arith.constant 1000 : index
    %c0_189 = arith.constant 0 : index
    %557 = vector.load %arg5[%c1000, %c0_189] : memref<1296x64xf32, #tpu.memory_space<vmem>>, vector<1x32xf32>
    %558 = vector.broadcast %557 : vector<1x32xf32> to vector<8x32xf32>
    %559 = arith.addf %556, %558 : vector<8x32xf32>
    %c1008 = arith.constant 1008 : index
    %c0_190 = arith.constant 0 : index
    %560 = vector.load %arg5[%c1008, %c0_190] : memref<1296x64xf32, #tpu.memory_space<vmem>>, vector<32x32xf32>
    %cst_191 = arith.constant dense<0.000000e+00> : vector<16x32xf32>
    %561 = tpu.matmul %300, %560, %cst_191 {dimension_numbers = #tpu.dot_dimension_numbers<[1], [0], [0], [1], [0, 0, 1, 1], [], []>} : vector<16x32xf32>, vector<32x32xf32>, vector<16x32xf32> -> vector<16x32xf32>
    %c1040 = arith.constant 1040 : index
    %c0_192 = arith.constant 0 : index
    %562 = vector.load %arg5[%c1040, %c0_192] : memref<1296x64xf32, #tpu.memory_space<vmem>>, vector<1x32xf32>
    %563 = vector.broadcast %562 : vector<1x32xf32> to vector<16x32xf32>
    %564 = arith.addf %561, %563 : vector<16x32xf32>
    %c1048 = arith.constant 1048 : index
    %c0_193 = arith.constant 0 : index
    %565 = vector.load %arg5[%c1048, %c0_193] : memref<1296x64xf32, #tpu.memory_space<vmem>>, vector<32x32xf32>
    %cst_194 = arith.constant dense<0.000000e+00> : vector<16x32xf32>
    %566 = tpu.matmul %295, %565, %cst_194 {dimension_numbers = #tpu.dot_dimension_numbers<[1], [0], [0], [1], [0, 0, 1, 1], [], []>} : vector<16x32xf32>, vector<32x32xf32>, vector<16x32xf32> -> vector<16x32xf32>
    %c1080 = arith.constant 1080 : index
    %c0_195 = arith.constant 0 : index
    %567 = vector.load %arg5[%c1080, %c0_195] : memref<1296x64xf32, #tpu.memory_space<vmem>>, vector<1x32xf32>
    %568 = vector.broadcast %567 : vector<1x32xf32> to vector<16x32xf32>
    %569 = arith.addf %566, %568 : vector<16x32xf32>
    %570 = vector.extract_strided_slice %559 {offsets = [0, 0], sizes = [8, 8], strides = [1, 1]} : vector<8x32xf32> to vector<8x8xf32>
    %571 = vector.extract_strided_slice %564 {offsets = [0, 0], sizes = [16, 8], strides = [1, 1]} : vector<16x32xf32> to vector<16x8xf32>
    %cst_196 = arith.constant dense<0.000000e+00> : vector<8x16xf32>
    %572 = tpu.matmul %570, %571, %cst_196 {dimension_numbers = #tpu.dot_dimension_numbers<[1], [1], [0], [0], [0, 0, 1, 0], [], []>} : vector<8x8xf32>, vector<16x8xf32>, vector<8x16xf32> -> vector<8x16xf32>
    %573 = vector.broadcast %3 : vector<1x16xf32> to vector<8x16xf32>
    %574 = arith.addf %572, %573 : vector<8x16xf32>
    %cst_197 = arith.constant dense<0xFF800000> : vector<8xf32>
    %575 = vector.multi_reduction <maximumf>, %574, %cst_197 [1] : vector<8x16xf32> to vector<8xf32>
    %576 = vector.shape_cast %575 : vector<8xf32> to vector<8x1xf32>
    %577 = vector.broadcast %576 : vector<8x1xf32> to vector<8x16xf32>
    %578 = arith.subf %574, %577 : vector<8x16xf32>
    %579 = math.exp %578 : vector<8x16xf32>
    %cst_198 = arith.constant dense<0.000000e+00> : vector<8xf32>
    %580 = vector.multi_reduction <add>, %579, %cst_198 [1] : vector<8x16xf32> to vector<8xf32>
    %581 = vector.shape_cast %580 : vector<8xf32> to vector<8x1xf32>
    %582 = tpu.reciprocal %581 {approx = true} : vector<8x1xf32> -> vector<8x1xf32>
    %583 = vector.broadcast %582 : vector<8x1xf32> to vector<8x16xf32>
    %584 = arith.mulf %579, %583 : vector<8x16xf32>
    %585 = vector.extract_strided_slice %569 {offsets = [0, 0], sizes = [16, 8], strides = [1, 1]} : vector<16x32xf32> to vector<16x8xf32>
    %cst_199 = arith.constant dense<0.000000e+00> : vector<8x8xf32>
    %586 = tpu.matmul %584, %585, %cst_199 {dimension_numbers = #tpu.dot_dimension_numbers<[1], [0], [0], [1], [0, 0, 1, 1], [], []>} : vector<8x16xf32>, vector<16x8xf32>, vector<8x8xf32> -> vector<8x8xf32>
    %587 = vector.extract_strided_slice %559 {offsets = [0, 8], sizes = [8, 8], strides = [1, 1]} : vector<8x32xf32> to vector<8x8xf32>
    %588 = vector.extract_strided_slice %564 {offsets = [0, 8], sizes = [16, 8], strides = [1, 1]} : vector<16x32xf32> to vector<16x8xf32>
    %cst_200 = arith.constant dense<0.000000e+00> : vector<8x16xf32>
    %589 = tpu.matmul %587, %588, %cst_200 {dimension_numbers = #tpu.dot_dimension_numbers<[1], [1], [0], [0], [0, 0, 1, 0], [], []>} : vector<8x8xf32>, vector<16x8xf32>, vector<8x16xf32> -> vector<8x16xf32>
    %590 = vector.broadcast %3 : vector<1x16xf32> to vector<8x16xf32>
    %591 = arith.addf %589, %590 : vector<8x16xf32>
    %cst_201 = arith.constant dense<0xFF800000> : vector<8xf32>
    %592 = vector.multi_reduction <maximumf>, %591, %cst_201 [1] : vector<8x16xf32> to vector<8xf32>
    %593 = vector.shape_cast %592 : vector<8xf32> to vector<8x1xf32>
    %594 = vector.broadcast %593 : vector<8x1xf32> to vector<8x16xf32>
    %595 = arith.subf %591, %594 : vector<8x16xf32>
    %596 = math.exp %595 : vector<8x16xf32>
    %cst_202 = arith.constant dense<0.000000e+00> : vector<8xf32>
    %597 = vector.multi_reduction <add>, %596, %cst_202 [1] : vector<8x16xf32> to vector<8xf32>
    %598 = vector.shape_cast %597 : vector<8xf32> to vector<8x1xf32>
    %599 = tpu.reciprocal %598 {approx = true} : vector<8x1xf32> -> vector<8x1xf32>
    %600 = vector.broadcast %599 : vector<8x1xf32> to vector<8x16xf32>
    %601 = arith.mulf %596, %600 : vector<8x16xf32>
    %602 = vector.extract_strided_slice %569 {offsets = [0, 8], sizes = [16, 8], strides = [1, 1]} : vector<16x32xf32> to vector<16x8xf32>
    %cst_203 = arith.constant dense<0.000000e+00> : vector<8x8xf32>
    %603 = tpu.matmul %601, %602, %cst_203 {dimension_numbers = #tpu.dot_dimension_numbers<[1], [0], [0], [1], [0, 0, 1, 1], [], []>} : vector<8x16xf32>, vector<16x8xf32>, vector<8x8xf32> -> vector<8x8xf32>
    %604 = vector.extract_strided_slice %559 {offsets = [0, 16], sizes = [8, 8], strides = [1, 1]} : vector<8x32xf32> to vector<8x8xf32>
    %605 = vector.extract_strided_slice %564 {offsets = [0, 16], sizes = [16, 8], strides = [1, 1]} : vector<16x32xf32> to vector<16x8xf32>
    %cst_204 = arith.constant dense<0.000000e+00> : vector<8x16xf32>
    %606 = tpu.matmul %604, %605, %cst_204 {dimension_numbers = #tpu.dot_dimension_numbers<[1], [1], [0], [0], [0, 0, 1, 0], [], []>} : vector<8x8xf32>, vector<16x8xf32>, vector<8x16xf32> -> vector<8x16xf32>
    %607 = vector.broadcast %3 : vector<1x16xf32> to vector<8x16xf32>
    %608 = arith.addf %606, %607 : vector<8x16xf32>
    %cst_205 = arith.constant dense<0xFF800000> : vector<8xf32>
    %609 = vector.multi_reduction <maximumf>, %608, %cst_205 [1] : vector<8x16xf32> to vector<8xf32>
    %610 = vector.shape_cast %609 : vector<8xf32> to vector<8x1xf32>
    %611 = vector.broadcast %610 : vector<8x1xf32> to vector<8x16xf32>
    %612 = arith.subf %608, %611 : vector<8x16xf32>
    %613 = math.exp %612 : vector<8x16xf32>
    %cst_206 = arith.constant dense<0.000000e+00> : vector<8xf32>
    %614 = vector.multi_reduction <add>, %613, %cst_206 [1] : vector<8x16xf32> to vector<8xf32>
    %615 = vector.shape_cast %614 : vector<8xf32> to vector<8x1xf32>
    %616 = tpu.reciprocal %615 {approx = true} : vector<8x1xf32> -> vector<8x1xf32>
    %617 = vector.broadcast %616 : vector<8x1xf32> to vector<8x16xf32>
    %618 = arith.mulf %613, %617 : vector<8x16xf32>
    %619 = vector.extract_strided_slice %569 {offsets = [0, 16], sizes = [16, 8], strides = [1, 1]} : vector<16x32xf32> to vector<16x8xf32>
    %cst_207 = arith.constant dense<0.000000e+00> : vector<8x8xf32>
    %620 = tpu.matmul %618, %619, %cst_207 {dimension_numbers = #tpu.dot_dimension_numbers<[1], [0], [0], [1], [0, 0, 1, 1], [], []>} : vector<8x16xf32>, vector<16x8xf32>, vector<8x8xf32> -> vector<8x8xf32>
    %621 = vector.extract_strided_slice %559 {offsets = [0, 24], sizes = [8, 8], strides = [1, 1]} : vector<8x32xf32> to vector<8x8xf32>
    %622 = vector.extract_strided_slice %564 {offsets = [0, 24], sizes = [16, 8], strides = [1, 1]} : vector<16x32xf32> to vector<16x8xf32>
    %cst_208 = arith.constant dense<0.000000e+00> : vector<8x16xf32>
    %623 = tpu.matmul %621, %622, %cst_208 {dimension_numbers = #tpu.dot_dimension_numbers<[1], [1], [0], [0], [0, 0, 1, 0], [], []>} : vector<8x8xf32>, vector<16x8xf32>, vector<8x16xf32> -> vector<8x16xf32>
    %624 = vector.broadcast %3 : vector<1x16xf32> to vector<8x16xf32>
    %625 = arith.addf %623, %624 : vector<8x16xf32>
    %cst_209 = arith.constant dense<0xFF800000> : vector<8xf32>
    %626 = vector.multi_reduction <maximumf>, %625, %cst_209 [1] : vector<8x16xf32> to vector<8xf32>
    %627 = vector.shape_cast %626 : vector<8xf32> to vector<8x1xf32>
    %628 = vector.broadcast %627 : vector<8x1xf32> to vector<8x16xf32>
    %629 = arith.subf %625, %628 : vector<8x16xf32>
    %630 = math.exp %629 : vector<8x16xf32>
    %cst_210 = arith.constant dense<0.000000e+00> : vector<8xf32>
    %631 = vector.multi_reduction <add>, %630, %cst_210 [1] : vector<8x16xf32> to vector<8xf32>
    %632 = vector.shape_cast %631 : vector<8xf32> to vector<8x1xf32>
    %633 = tpu.reciprocal %632 {approx = true} : vector<8x1xf32> -> vector<8x1xf32>
    %634 = vector.broadcast %633 : vector<8x1xf32> to vector<8x16xf32>
    %635 = arith.mulf %630, %634 : vector<8x16xf32>
    %636 = vector.extract_strided_slice %569 {offsets = [0, 24], sizes = [16, 8], strides = [1, 1]} : vector<16x32xf32> to vector<16x8xf32>
    %cst_211 = arith.constant dense<0.000000e+00> : vector<8x8xf32>
    %637 = tpu.matmul %635, %636, %cst_211 {dimension_numbers = #tpu.dot_dimension_numbers<[1], [0], [0], [1], [0, 0, 1, 1], [], []>} : vector<8x16xf32>, vector<16x8xf32>, vector<8x8xf32> -> vector<8x8xf32>
    %638 = tpu.concatenate %586, %603, %620, %637 in 1 : vector<8x8xf32>, vector<8x8xf32>, vector<8x8xf32>, vector<8x8xf32> -> vector<8x32xf32>
    %c1088 = arith.constant 1088 : index
    %c0_212 = arith.constant 0 : index
    %639 = vector.load %arg5[%c1088, %c0_212] : memref<1296x64xf32, #tpu.memory_space<vmem>>, vector<32x32xf32>
    %cst_213 = arith.constant dense<0.000000e+00> : vector<8x32xf32>
    %640 = tpu.matmul %638, %639, %cst_213 {dimension_numbers = #tpu.dot_dimension_numbers<[1], [0], [0], [1], [0, 0, 1, 1], [], []>} : vector<8x32xf32>, vector<32x32xf32>, vector<8x32xf32> -> vector<8x32xf32>
    %c1120 = arith.constant 1120 : index
    %c0_214 = arith.constant 0 : index
    %641 = vector.load %arg5[%c1120, %c0_214] : memref<1296x64xf32, #tpu.memory_space<vmem>>, vector<1x32xf32>
    %642 = vector.broadcast %641 : vector<1x32xf32> to vector<8x32xf32>
    %643 = arith.addf %640, %642 : vector<8x32xf32>
    %644 = arith.addf %553, %643 : vector<8x32xf32>
    %c1128 = arith.constant 1128 : index
    %c0_215 = arith.constant 0 : index
    %645 = vector.load %arg5[%c1128, %c0_215] : memref<1296x64xf32, #tpu.memory_space<vmem>>, vector<1x32xf32>
    %c1136 = arith.constant 1136 : index
    %c0_216 = arith.constant 0 : index
    %646 = vector.load %arg5[%c1136, %c0_216] : memref<1296x64xf32, #tpu.memory_space<vmem>>, vector<1x32xf32>
    %cst_217 = arith.constant dense<0.000000e+00> : vector<8xf32>
    %647 = vector.multi_reduction <add>, %644, %cst_217 [1] : vector<8x32xf32> to vector<8xf32>
    %648 = vector.shape_cast %647 : vector<8xf32> to vector<8x1xf32>
    %cst_218 = arith.constant 3.200000e+01 : f32
    %649 = vector.broadcast %cst_218 : f32 to vector<8x1xf32>
    %650 = arith.divf %648, %649 : vector<8x1xf32>
    %651 = vector.broadcast %650 : vector<8x1xf32> to vector<8x32xf32>
    %652 = arith.subf %644, %651 : vector<8x32xf32>
    %653 = arith.mulf %652, %652 : vector<8x32xf32>
    %cst_219 = arith.constant dense<0.000000e+00> : vector<8xf32>
    %654 = vector.multi_reduction <add>, %653, %cst_219 [1] : vector<8x32xf32> to vector<8xf32>
    %655 = vector.shape_cast %654 : vector<8xf32> to vector<8x1xf32>
    %cst_220 = arith.constant 3.200000e+01 : f32
    %656 = vector.broadcast %cst_220 : f32 to vector<8x1xf32>
    %657 = arith.divf %655, %656 : vector<8x1xf32>
    %cst_221 = arith.constant 9.99999974E-6 : f32
    %658 = vector.broadcast %cst_221 : f32 to vector<8x1xf32>
    %659 = arith.addf %657, %658 : vector<8x1xf32>
    %660 = math.rsqrt %659 : vector<8x1xf32>
    %661 = vector.broadcast %660 : vector<8x1xf32> to vector<8x32xf32>
    %662 = arith.mulf %652, %661 : vector<8x32xf32>
    %663 = vector.broadcast %645 : vector<1x32xf32> to vector<8x32xf32>
    %664 = arith.mulf %662, %663 : vector<8x32xf32>
    %665 = vector.broadcast %646 : vector<1x32xf32> to vector<8x32xf32>
    %666 = arith.addf %664, %665 : vector<8x32xf32>
    %c1144 = arith.constant 1144 : index
    %c0_222 = arith.constant 0 : index
    %667 = vector.load %arg5[%c1144, %c0_222] : memref<1296x64xf32, #tpu.memory_space<vmem>>, vector<32x64xf32>
    %cst_223 = arith.constant dense<0.000000e+00> : vector<8x64xf32>
    %668 = tpu.matmul %666, %667, %cst_223 {dimension_numbers = #tpu.dot_dimension_numbers<[1], [0], [0], [1], [0, 0, 1, 1], [], []>} : vector<8x32xf32>, vector<32x64xf32>, vector<8x64xf32> -> vector<8x64xf32>
    %c1176 = arith.constant 1176 : index
    %c0_224 = arith.constant 0 : index
    %669 = vector.load %arg5[%c1176, %c0_224] : memref<1296x64xf32, #tpu.memory_space<vmem>>, vector<1x64xf32>
    %670 = vector.broadcast %669 : vector<1x64xf32> to vector<8x64xf32>
    %671 = arith.addf %668, %670 : vector<8x64xf32>
    %cst_225 = arith.constant 0.000000e+00 : f32
    %672 = vector.broadcast %cst_225 : f32 to vector<8x64xf32>
    %673 = arith.maximumf %671, %672 : vector<8x64xf32>
    %c1184 = arith.constant 1184 : index
    %c0_226 = arith.constant 0 : index
    %674 = vector.load %arg5[%c1184, %c0_226] : memref<1296x64xf32, #tpu.memory_space<vmem>>, vector<64x32xf32>
    %cst_227 = arith.constant dense<0.000000e+00> : vector<8x32xf32>
    %675 = tpu.matmul %673, %674, %cst_227 {dimension_numbers = #tpu.dot_dimension_numbers<[1], [0], [0], [1], [0, 0, 1, 1], [], []>} : vector<8x64xf32>, vector<64x32xf32>, vector<8x32xf32> -> vector<8x32xf32>
    %c1248 = arith.constant 1248 : index
    %c0_228 = arith.constant 0 : index
    %676 = vector.load %arg5[%c1248, %c0_228] : memref<1296x64xf32, #tpu.memory_space<vmem>>, vector<1x32xf32>
    %677 = vector.broadcast %676 : vector<1x32xf32> to vector<8x32xf32>
    %678 = arith.addf %675, %677 : vector<8x32xf32>
    %679 = arith.addf %666, %678 : vector<8x32xf32>
    %c1256 = arith.constant 1256 : index
    %c0_229 = arith.constant 0 : index
    %680 = vector.load %arg5[%c1256, %c0_229] : memref<1296x64xf32, #tpu.memory_space<vmem>>, vector<1x32xf32>
    %c1264 = arith.constant 1264 : index
    %c0_230 = arith.constant 0 : index
    %681 = vector.load %arg5[%c1264, %c0_230] : memref<1296x64xf32, #tpu.memory_space<vmem>>, vector<1x32xf32>
    %cst_231 = arith.constant dense<0.000000e+00> : vector<8xf32>
    %682 = vector.multi_reduction <add>, %679, %cst_231 [1] : vector<8x32xf32> to vector<8xf32>
    %683 = vector.shape_cast %682 : vector<8xf32> to vector<8x1xf32>
    %cst_232 = arith.constant 3.200000e+01 : f32
    %684 = vector.broadcast %cst_232 : f32 to vector<8x1xf32>
    %685 = arith.divf %683, %684 : vector<8x1xf32>
    %686 = vector.broadcast %685 : vector<8x1xf32> to vector<8x32xf32>
    %687 = arith.subf %679, %686 : vector<8x32xf32>
    %688 = arith.mulf %687, %687 : vector<8x32xf32>
    %cst_233 = arith.constant dense<0.000000e+00> : vector<8xf32>
    %689 = vector.multi_reduction <add>, %688, %cst_233 [1] : vector<8x32xf32> to vector<8xf32>
    %690 = vector.shape_cast %689 : vector<8xf32> to vector<8x1xf32>
    %cst_234 = arith.constant 3.200000e+01 : f32
    %691 = vector.broadcast %cst_234 : f32 to vector<8x1xf32>
    %692 = arith.divf %690, %691 : vector<8x1xf32>
    %cst_235 = arith.constant 9.99999974E-6 : f32
    %693 = vector.broadcast %cst_235 : f32 to vector<8x1xf32>
    %694 = arith.addf %692, %693 : vector<8x1xf32>
    %695 = math.rsqrt %694 : vector<8x1xf32>
    %696 = vector.broadcast %695 : vector<8x1xf32> to vector<8x32xf32>
    %697 = arith.mulf %687, %696 : vector<8x32xf32>
    %698 = vector.broadcast %680 : vector<1x32xf32> to vector<8x32xf32>
    %699 = arith.mulf %697, %698 : vector<8x32xf32>
    %700 = vector.broadcast %681 : vector<1x32xf32> to vector<8x32xf32>
    %701 = arith.addf %699, %700 : vector<8x32xf32>
    %c1280 = arith.constant 1280 : index
    %c0_236 = arith.constant 0 : index
    %702 = vector.load %arg5[%c1280, %c0_236] : memref<1296x64xf32, #tpu.memory_space<vmem>>, vector<1x32xf32>
    %c1288 = arith.constant 1288 : index
    %c0_237 = arith.constant 0 : index
    %703 = vector.load %arg5[%c1288, %c0_237] : memref<1296x64xf32, #tpu.memory_space<vmem>>, vector<1x32xf32>
    %cst_238 = arith.constant dense<0.000000e+00> : vector<8xf32>
    %704 = vector.multi_reduction <add>, %701, %cst_238 [1] : vector<8x32xf32> to vector<8xf32>
    %705 = vector.shape_cast %704 : vector<8xf32> to vector<8x1xf32>
    %cst_239 = arith.constant 3.200000e+01 : f32
    %706 = vector.broadcast %cst_239 : f32 to vector<8x1xf32>
    %707 = arith.divf %705, %706 : vector<8x1xf32>
    %708 = vector.broadcast %707 : vector<8x1xf32> to vector<8x32xf32>
    %709 = arith.subf %701, %708 : vector<8x32xf32>
    %710 = arith.mulf %709, %709 : vector<8x32xf32>
    %cst_240 = arith.constant dense<0.000000e+00> : vector<8xf32>
    %711 = vector.multi_reduction <add>, %710, %cst_240 [1] : vector<8x32xf32> to vector<8xf32>
    %712 = vector.shape_cast %711 : vector<8xf32> to vector<8x1xf32>
    %cst_241 = arith.constant 3.200000e+01 : f32
    %713 = vector.broadcast %cst_241 : f32 to vector<8x1xf32>
    %714 = arith.divf %712, %713 : vector<8x1xf32>
    %cst_242 = arith.constant 9.99999974E-6 : f32
    %715 = vector.broadcast %cst_242 : f32 to vector<8x1xf32>
    %716 = arith.addf %714, %715 : vector<8x1xf32>
    %717 = math.rsqrt %716 : vector<8x1xf32>
    %718 = vector.broadcast %717 : vector<8x1xf32> to vector<8x32xf32>
    %719 = arith.mulf %709, %718 : vector<8x32xf32>
    %720 = vector.broadcast %702 : vector<1x32xf32> to vector<8x32xf32>
    %721 = arith.mulf %719, %720 : vector<8x32xf32>
    %722 = vector.broadcast %703 : vector<1x32xf32> to vector<8x32xf32>
    %723 = arith.addf %721, %722 : vector<8x32xf32>
    %c0_243 = arith.constant 0 : index
    %c0_244 = arith.constant 0 : index
    %c0_245 = arith.constant 0 : index
    %724 = vector.load %arg7[%c0_243, %c0_244, %c0_245] : memref<1x8x32xf32, #tpu.memory_space<vmem>>, vector<1x8x32xf32>
    %725 = vector.shape_cast %724 : vector<1x8x32xf32> to vector<8x32xf32>
    %726 = vector.shape_cast %723 : vector<8x32xf32> to vector<1x8x32xf32>
    tpu.vector_store %arg7[%c0_243, %c0_244, %c0_245], %726 {strides = array<i32>} : memref<1x8x32xf32, #tpu.memory_space<vmem>>, vector<1x8x32xf32>,
    return
  }
  func.func @transform_0(%arg0: i32) -> (i32, i32, i32) {
    %c0_i32 = arith.constant 0 : i32
    %c0_i32_0 = arith.constant 0 : i32
    %c0_i32_1 = arith.constant 0 : i32
    return %arg0, %c0_i32, %c0_i32_0 : i32, i32, i32
  }
  func.func @transform_1(%arg0: i32) -> (i32, i32, i32) {
    %c0_i32 = arith.constant 0 : i32
    %c0_i32_0 = arith.constant 0 : i32
    %c0_i32_1 = arith.constant 0 : i32
    return %arg0, %c0_i32, %c0_i32_0 : i32, i32, i32
  }
  func.func @transform_2(%arg0: i32) -> (i32, i32, i32) {
    %c0_i32 = arith.constant 0 : i32
    %c0_i32_0 = arith.constant 0 : i32
    %c0_i32_1 = arith.constant 0 : i32
    return %arg0, %c0_i32, %c0_i32_0 : i32, i32, i32
  }
  func.func @transform_3(%arg0: i32) -> (i32, i32) {
    %c0_i32 = arith.constant 0 : i32
    %c0_i32_0 = arith.constant 0 : i32
    %c0_i32_1 = arith.constant 0 : i32
    return %c0_i32, %c0_i32_0 : i32, i32
  }
  func.func @transform_4(%arg0: i32) -> (i32, i32) {
    %c0_i32 = arith.constant 0 : i32
    %c0_i32_0 = arith.constant 0 : i32
    %c0_i32_1 = arith.constant 0 : i32
    return %c0_i32, %c0_i32_0 : i32, i32
  }
  func.func @transform_5(%arg0: i32) -> (i32, i32, i32) {
    %c0_i32 = arith.constant 0 : i32
    %c0_i32_0 = arith.constant 0 : i32
    %c0_i32_1 = arith.constant 0 : i32
    return %arg0, %c0_i32, %c0_i32_0 : i32, i32, i32
  }
  func.func @transform_6(%arg0: i32) -> (i32, i32, i32) {
    %c0_i32 = arith.constant 0 : i32
    %c0_i32_0 = arith.constant 0 : i32
    %c0_i32_1 = arith.constant 0 : i32
    return %arg0, %c0_i32, %c0_i32_0 : i32, i32, i32
  }
}

</mosaic_0001>

<llo_original>
// kernel: transformer_forward.1
$region0: #{transformer_forward.1}
  #allocation0 [shape = 'u32[]', space=smem, size = 0x4, offset = 0x4, fixed_abs, tag = 'smem constant byte address 0x4 - core index']
  #allocation1 [shape = 'u32[144,128]{1,0:T(1,128)}', space=vmem, size = 0x12000, scoped, tag = 'internal scratch']
  %s0 = inlined_call_operand.vmem [shape: f32[2,16,32], index: 0, kind: input, shape index: {}]
  %s1 = inlined_call_operand.vmem [shape: f32[2,16,32], index: 1, kind: input, shape index: {}]
  %s2 = inlined_call_operand.vmem [shape: f32[2,1,16], index: 2, kind: input, shape index: {}]
  %s3 = inlined_call_operand.vmem [shape: f32[8,32], index: 3, kind: input, shape index: {}]
  %s4 = inlined_call_operand.vmem [shape: f32[1296,64], index: 4, kind: input, shape index: {}]
  %s5 = inlined_call_operand.hbm [shape: f32[2,16,32], index: 5, kind: output, shape index: {0}]
  %s6 = inlined_call_operand.hbm [shape: f32[2,8,32], index: 6, kind: output, shape index: {1}]
  %7 = xla_tuple %s5, %s6
  %s8 = sld [smem:[#allocation0]]
  $region61: #{transformer_forward.1} parent=0
    _
  %s10 = ssub.s32 1, %s8
  %s11 = scalar_select 0, %s10, %s8
  $region1: #{transformer_forward.1} parent=0
    #allocation2 [shape = 'u8[16384]{0}', space=vmem, size = 0x4000, scoped, tag = 'output window, operand 0']
    #allocation3 [shape = 's32[2]{0}', space=sflag, size = 0x8, scoped, tag = 'scoped memory for transformer_forward.1']
    #allocation4 [shape = 'u8[8192]{0}', space=vmem, size = 0x2000, scoped, tag = 'output window, operand 1']
    #allocation5 [shape = 's32[2]{0}', space=sflag, size = 0x8, scoped, tag = 'scoped memory for transformer_forward.1']
    %12 = vsyncpa [#allocation3], 0
    %s13 = scalar_lea.sflag [#allocation3], 1
    %14 = vsyncpa %s13, 0
    %15 = vsyncpa [#allocation5], 0
    %s16 = scalar_lea.sflag [#allocation5], 1
    %17 = vsyncpa %s16, 0
    loop: start=0, step=1, limit=4
    $region2: #{transformer_forward.1} parent=1 // loop_pre_header
      _
    $region3: #{transformer_forward.1} parent=1 // loop_header
      %s19 = sphi 0, %s23
      %p20 = scmp.ge.s32.totalorder %s19, 4
      %s29 = sphi 0, %s31
      %s32 = sphi 0, %s29
      %s33 = sphi 0, %s32
      %s49 = sphi 0, %s33
      %s55 = sphi 0, %s57
      %s58 = sphi 0, %s55
      %s59 = sphi 0, %s58
      %s75 = sphi 0, %s59
      %s81 = sphi 0, %s83
      %s84 = sphi 0, %s81
      %s85 = sphi 0, %s84
      %s101 = sphi 0, %s85
      %s105 = sphi 0, %s105
      %s107 = sphi 0, %s105
      %s108 = sphi 0, %s107
      %s122 = sphi 0, %s108
      %s126 = sphi 0, %s126
      %s128 = sphi 0, %s126
      %s129 = sphi 0, %s128
      %s143 = sphi 0, %s129
      %s149 = sphi 0, %s151
      %s152 = sphi 0, %s149
      %s153 = sphi 0, %s152
      %s169 = sphi 0, %s153
      %s175 = sphi 0, %s177
      %s178 = sphi 0, %s175
      %s179 = sphi 0, %s178
      %s195 = sphi 0, %s179
    $region4: #{transformer_forward.1} parent=1 // loop_header_branch
      %22 = sbr.rel (%p20) target = $region8
    $region5: #{transformer_forward.1} parent=1 // loop_body
      %s24 = ssub.s32 %s19, 1
      %s25 = ssub.s32 %s19, 2
      %s26 = sadd.s32 %s19, 1
      %s27 = ssub.s32 %s19, %s26
      %p28 = scmp.eq.s32.totalorder %s27, 0
      %s30 = sadd.s32 %s29, 1
      %s31 = scalar_select %p28, %s29, %s30
      %p34 = pneg %p28
      %p35 = scmp.eq.s32.totalorder %s19, 1
      %p36 = por %p34, %p35
      %p37 = scmp.ne.s32.totalorder %s29, %s32
      %p38 = scmp.eq.s32.totalorder %s19, 0
      %p39 = por %p37, %p38
      %p40 = scmp.ne.s32.totalorder %s29, %s32
      %p41 = scmp.eq.s32.totalorder %s24, 1
      %p42 = por %p40, %p41
      %p43 = scmp.ne.s32.totalorder %s32, %s33
      %p44 = scmp.eq.s32.totalorder %s24, 0
      %p45 = por %p43, %p44
      %p46 = scmp.ne.s32.totalorder %s32, %s33
      %p47 = scmp.eq.s32.totalorder %s25, 1
      %p48 = por %p46, %p47
      %p50 = scmp.ne.s32.totalorder %s33, %s49
      %p51 = scmp.eq.s32.totalorder %s25, 0
      %p52 = por %p50, %p51
      %s53 = ssub.s32 %s19, %s26
      %p54 = scmp.eq.s32.totalorder %s53, 0
      %s56 = sadd.s32 %s55, 1
      %s57 = scalar_select %p54, %s55, %s56
      %p60 = pneg %p54
      %p61 = scmp.eq.s32.totalorder %s19, 1
      %p62 = por %p60, %p61
      %p63 = scmp.ne.s32.totalorder %s55, %s58
      %p64 = scmp.eq.s32.totalorder %s19, 0
      %p65 = por %p63, %p64
      %p66 = scmp.ne.s32.totalorder %s55, %s58
      %p67 = scmp.eq.s32.totalorder %s24, 1
      %p68 = por %p66, %p67
      %p69 = scmp.ne.s32.totalorder %s58, %s59
      %p70 = scmp.eq.s32.totalorder %s24, 0
      %p71 = por %p69, %p70
      %p72 = scmp.ne.s32.totalorder %s58, %s59
      %p73 = scmp.eq.s32.totalorder %s25, 1
      %p74 = por %p72, %p73
      %p76 = scmp.ne.s32.totalorder %s59, %s75
      %p77 = scmp.eq.s32.totalorder %s25, 0
      %p78 = por %p76, %p77
      %s79 = ssub.s32 %s19, %s26
      %p80 = scmp.eq.s32.totalorder %s79, 0
      %s82 = sadd.s32 %s81, 1
      %s83 = scalar_select %p80, %s81, %s82
      %p86 = pneg %p80
      %p87 = scmp.eq.s32.totalorder %s19, 1
      %p88 = por %p86, %p87
      %p89 = scmp.ne.s32.totalorder %s81, %s84
      %p90 = scmp.eq.s32.totalorder %s19, 0
      %p91 = por %p89, %p90
      %p92 = scmp.ne.s32.totalorder %s81, %s84
      %p93 = scmp.eq.s32.totalorder %s24, 1
      %p94 = por %p92, %p93
      %p95 = scmp.ne.s32.totalorder %s84, %s85
      %p96 = scmp.eq.s32.totalorder %s24, 0
      %p97 = por %p95, %p96
      %p98 = scmp.ne.s32.totalorder %s84, %s85
      %p99 = scmp.eq.s32.totalorder %s25, 1
      %p100 = por %p98, %p99
      %p102 = scmp.ne.s32.totalorder %s85, %s101
      %p103 = scmp.eq.s32.totalorder %s25, 0
      %p104 = por %p102, %p103
      %s106 = sadd.s32 %s105, 1
      %p109 = scmp.eq.s32.totalorder %s19, 1
      %p110 = scmp.ne.s32.totalorder %s105, %s107
      %p111 = scmp.eq.s32.totalorder %s19, 0
      %p112 = por %p110, %p111
      %p113 = scmp.ne.s32.totalorder %s105, %s107
      %p114 = scmp.eq.s32.totalorder %s24, 1
      %p115 = por %p113, %p114
      %p116 = scmp.ne.s32.totalorder %s107, %s108
      %p117 = scmp.eq.s32.totalorder %s24, 0
      %p118 = por %p116, %p117
      %p119 = scmp.ne.s32.totalorder %s107, %s108
      %p120 = scmp.eq.s32.totalorder %s25, 1
      %p121 = por %p119, %p120
      %p123 = scmp.ne.s32.totalorder %s108, %s122
      %p124 = scmp.eq.s32.totalorder %s25, 0
      %p125 = por %p123, %p124
      %s127 = sadd.s32 %s126, 1
      %p130 = scmp.eq.s32.totalorder %s19, 1
      %p131 = scmp.ne.s32.totalorder %s126, %s128
      %p132 = scmp.eq.s32.totalorder %s19, 0
      %p133 = por %p131, %p132
      %p134 = scmp.ne.s32.totalorder %s126, %s128
      %p135 = scmp.eq.s32.totalorder %s24, 1
      %p136 = por %p134, %p135
      %p137 = scmp.ne.s32.totalorder %s128, %s129
      %p138 = scmp.eq.s32.totalorder %s24, 0
      %p139 = por %p137, %p138
      %p140 = scmp.ne.s32.totalorder %s128, %s129
      %p141 = scmp.eq.s32.totalorder %s25, 1
      %p142 = por %p140, %p141
      %p144 = scmp.ne.s32.totalorder %s129, %s143
      %p145 = scmp.eq.s32.totalorder %s25, 0
      %p146 = por %p144, %p145
      %s147 = ssub.s32 %s19, %s26
      %p148 = scmp.eq.s32.totalorder %s147, 0
      %s150 = sadd.s32 %s149, 1
      %s151 = scalar_select %p148, %s149, %s150
      %p154 = pneg %p148
      %p155 = scmp.eq.s32.totalorder %s19, 1
      %p156 = por %p154, %p155
      %p157 = scmp.ne.s32.totalorder %s149, %s152
      %p158 = scmp.eq.s32.totalorder %s19, 0
      %p159 = por %p157, %p158
      %p160 = scmp.ne.s32.totalorder %s149, %s152
      %p161 = scmp.eq.s32.totalorder %s24, 1
      %p162 = por %p160, %p161
      %p163 = scmp.ne.s32.totalorder %s152, %s153
      %p164 = scmp.eq.s32.totalorder %s24, 0
      %p165 = por %p163, %p164
      %p166 = scmp.ne.s32.totalorder %s152, %s153
      %p167 = scmp.eq.s32.totalorder %s25, 1
      %p168 = por %p166, %p167
      %p170 = scmp.ne.s32.totalorder %s153, %s169
      %p171 = scmp.eq.s32.totalorder %s25, 0
      %p172 = por %p170, %p171
      %s173 = ssub.s32 %s19, %s26
      %p174 = scmp.eq.s32.totalorder %s173, 0
      %s176 = sadd.s32 %s175, 1
      %s177 = scalar_select %p174, %s175, %s176
      %p180 = pneg %p174
      %p181 = scmp.eq.s32.totalorder %s19, 1
      %p182 = por %p180, %p181
      %p183 = scmp.ne.s32.totalorder %s175, %s178
      %p184 = scmp.eq.s32.totalorder %s19, 0
      %p185 = por %p183, %p184
      %p186 = scmp.ne.s32.totalorder %s175, %s178
      %p187 = scmp.eq.s32.totalorder %s24, 1
      %p188 = por %p186, %p187
      %p189 = scmp.ne.s32.totalorder %s178, %s179
      %p190 = scmp.eq.s32.totalorder %s24, 0
      %p191 = por %p189, %p190
      %p192 = scmp.ne.s32.totalorder %s178, %s179
      %p193 = scmp.eq.s32.totalorder %s25, 1
      %p194 = por %p192, %p193
      %p196 = scmp.ne.s32.totalorder %s179, %s195
      %p197 = scmp.eq.s32.totalorder %s25, 0
      %p198 = por %p196, %p197
      %p199 = scmp.le.s32.totalorder 1, %s19
      %p200 = scmp.lt.s32.totalorder %s19, 3
      %p201 = pnand %p199, %p200
      %p202 = pneg %p201
      // Predicated region
      $region9: #{transformer_forward.1} parent=5 // pred_check
        _
      $region10: #{transformer_forward.1} parent=5 // pred_check_branch
        %204 = sbr.rel (%p201) target = $region12
      $region11: #{transformer_forward.1} parent=5 // pred_region
        %s205 = ssub.s32 %s19, 1
        // Predicated region
        $region13: #{transformer_forward.1} parent=11 // pred_check
          %p206 = pneg %p118
        $region14: #{transformer_forward.1} parent=11 // pred_check_branch
          %208 = sbr.rel (%p206) target = $region16
        $region15: #{transformer_forward.1} parent=11 // pred_region
          _
        $region16: #{transformer_forward.1} parent=11 // pred_fallthru
          _
        // Predicated region
        $region17: #{transformer_forward.1} parent=11 // pred_check
          %p209 = pneg %p139
        $region18: #{transformer_forward.1} parent=11 // pred_check_branch
          %211 = sbr.rel (%p209) target = $region20
        $region19: #{transformer_forward.1} parent=11 // pred_region
          _
        $region20: #{transformer_forward.1} parent=11 // pred_fallthru
          _
      $region12: #{transformer_forward.1} parent=5 // pred_fallthru
        _
      %p212 = scmp.lt.s32.totalorder %s19, 2
      // Predicated region
      $region21: #{transformer_forward.1} parent=5 // pred_check
        %p213 = pneg %p212
      $region22: #{transformer_forward.1} parent=5 // pred_check_branch
        %215 = sbr.rel (%p213) target = $region24
      $region23: #{transformer_forward.1} parent=5 // pred_region
        // Predicated region
        $region25: #{transformer_forward.1} parent=23 // pred_check
          %p216 = pneg %p39
        $region26: #{transformer_forward.1} parent=23 // pred_check_branch
          %218 = sbr.rel (%p216) target = $region28
        $region27: #{transformer_forward.1} parent=23 // pred_region
          %p219 = scmp.lt.s32.totalorder %s19, 1
          %s220 = scalar_select %p219, %s19, 1
          %s221 = smul.addr %s220, 2
          %s222 = smul.addr %s221, 8
          %s223 = scalar_lea.vmem %s0, %s222
        $region28: #{transformer_forward.1} parent=23 // pred_fallthru
          _
        // Predicated region
        $region29: #{transformer_forward.1} parent=23 // pred_check
          %p224 = pneg %p65
        $region30: #{transformer_forward.1} parent=23 // pred_check_branch
          %226 = sbr.rel (%p224) target = $region32
        $region31: #{transformer_forward.1} parent=23 // pred_region
          %p227 = scmp.lt.s32.totalorder %s19, 1
          %s228 = scalar_select %p227, %s19, 1
          %s229 = smul.addr %s228, 2
          %s230 = smul.addr %s229, 8
          %s231 = scalar_lea.vmem %s1, %s230
        $region32: #{transformer_forward.1} parent=23 // pred_fallthru
          _
        // Predicated region
        $region33: #{transformer_forward.1} parent=23 // pred_check
          %p232 = pneg %p91
        $region34: #{transformer_forward.1} parent=23 // pred_check_branch
          %234 = sbr.rel (%p232) target = $region36
        $region35: #{transformer_forward.1} parent=23 // pred_region
          %p235 = scmp.lt.s32.totalorder %s19, 1
          %s236 = scalar_select %p235, %s19, 1
          %s237 = scalar_lea.vmem %s2, %s236
        $region36: #{transformer_forward.1} parent=23 // pred_fallthru
          _
      $region24: #{transformer_forward.1} parent=5 // pred_fallthru
        _
      %p238 = scmp.le.s32.totalorder 1, %s19
      %p239 = scmp.lt.s32.totalorder %s19, 3
      %p240 = pnand %p238, %p239
      %p241 = pneg %p240
      // Predicated region
      $region37: #{transformer_forward.1} parent=5 // pred_check
        _
      $region38: #{transformer_forward.1} parent=5 // pred_check_branch
        %243 = sbr.rel (%p240) target = $region40
      $region39: #{transformer_forward.1} parent=5 // pred_region
        %s244 = ssub.s32 %s19, 1
        %p245 = scmp.lt.s32.totalorder %s24, 1
        %s246 = scalar_select %p245, %s24, 1
        %s247 = smul.addr %s246, 2
        %s248 = smul.addr %s247, 8
        %s249 = scalar_lea.vmem %s0, %s248
        %p250 = pneg %p45
        %p251 = pneg %p42
        %p252 = scmp.lt.s32.totalorder %s24, 1
        %s253 = scalar_select %p252, %s24, 1
        %s254 = smul.addr %s253, 2
        %s255 = smul.addr %s254, 8
        %s256 = scalar_lea.vmem %s1, %s255
        %p257 = pneg %p71
        %p258 = pneg %p68
        %p259 = scmp.lt.s32.totalorder %s24, 1
        %s260 = scalar_select %p259, %s24, 1
        %s261 = scalar_lea.vmem %s2, %s260
        %p262 = pneg %p97
        %p263 = pneg %p94
        %p264 = pneg %p118
        %p265 = pneg %p115
        %p266 = pneg %p139
        %p267 = pneg %p136
        %p268 = pneg %p165
        %p269 = pneg %p162
        %s270 = sand.u32 %s152, 1
        %s271 = scalar_lea.sflag [#allocation3], %s270
        %s272 = sand.u32 %s152, 1
        %s273 = smul.addr %s272, 16
        %s274 = scalar_lea.vmem [#allocation2], %s273
        %p275 = pneg %p191
        %p276 = pneg %p188
        %s277 = sand.u32 %s178, 1
        %s278 = scalar_lea.sflag [#allocation5], %s277
        %s279 = sand.u32 %s178, 1
        %s280 = smul.addr %s279, 8
        %s281 = scalar_lea.vmem [#allocation4], %s280
        %p282 = scmp.lt.s32.totalorder %s24, 1
        %s283 = scalar_select %p282, %s24, 1
        %s284 = smul.addr %s283, 2
        %s285 = smul.addr %s284, 8
        %s286 = scalar_lea.vmem %s0, %s285
        %p287 = scmp.lt.s32.totalorder %s24, 1
        %s288 = scalar_select %p287, %s24, 1
        %s289 = smul.addr %s288, 2
        %s290 = smul.addr %s289, 8
        %s291 = scalar_lea.vmem %s1, %s290
        %p292 = scmp.lt.s32.totalorder %s24, 1
        %s293 = scalar_select %p292, %s24, 1
        %s294 = scalar_lea.vmem %s2, %s293
        %v295 = vld [vmem:[%s291] sm:$0xff]
        %v296 = vld [vmem:[%s291 + $0x8] sm:$0xff]
        %v297 = vld [vmem:[%s294] sm:$0x1]
        %v298 = vld [vmem:[%s286] sm:$0xff]
        %v299 = vld [vmem:[%s286 + $0x8] sm:$0xff]
        %v300 = vadd.f32 %v298, %v295
        %v301 = vadd.f32 %v299, %v296
        %v302 = vld [vmem:[%s4] sm:$0xff]
        %v303 = vld [vmem:[%s4 + $0x8] sm:$0xff]
        %v304 = vld [vmem:[%s4 + $0x10] sm:$0xff]
        %v305 = vld [vmem:[%s4 + $0x18] sm:$0xff]
        %v306 = vld [vmem:[%s4 + $0x20] sm:$0x1]
        %v307 = vlaneseq
        %v308 = vshrl.u32 %v307, 7
        %v309 = vsub.s32 0, %v308
        %v310 = vrot.slane %v306, %v309
        %vm311 = vcmask 261120
        %v313 = vsel %vm311, %v300, 0
        %v316 = vsel %vm311, %v301, 0
        %318 = vmatprep.subr.mxu0 0.0
        %319 = vmatpush1.msra.mxu0 %v302
        %320 = vmatprep.subr.mxu0 0.0
        %321 = vmatpush1.msra.mxu0 %v303
        %322 = vmatprep.subr.mxu0 0.0
        %323 = vmatpush1.msra.mxu0 %v304
        %324 = vmatprep.subr.mxu0 0.0
        %325 = vmatpush1.msra.mxu0 %v305
        %326 = vmatprep.subr.mxu0 0.0
        %327 = vmatpush1.msra.mxu0 0.0
        %328 = vmatprep.subr.mxu0 0.0
        %329 = vmatpush1.msra.mxu0 0.0
        %330 = vmatprep.subr.mxu0 0.0
        %331 = vmatpush1.msra.mxu0 0.0
        %332 = vmatprep.subr.mxu0 0.0
        %333 = vmatpush1.msra.mxu0 0.0
        %334 = vmatprep.subr.mxu0 0.0
        %335 = vmatpush1.msra.mxu0 0.0
        %336 = vmatprep.subr.mxu0 0.0
        %337 = vmatpush1.msra.mxu0 0.0
        %338 = vmatprep.subr.mxu0 0.0
        %339 = vmatpush1.msra.mxu0 0.0
        %340 = vmatprep.subr.mxu0 0.0
        %341 = vmatpush1.msra.mxu0 0.0
        %342 = vmatprep.subr.mxu0 0.0
        %343 = vmatpush1.msra.mxu0 0.0
        %344 = vmatprep.subr.mxu0 0.0
        %345 = vmatpush1.msra.mxu0 0.0
        %346 = vmatprep.subr.mxu0 0.0
        %347 = vmatpush1.msra.mxu0 0.0
        %348 = vmatprep.subr.mxu0 0.0
        %349 = vmatpush1.msra.mxu0 0.0
        %350 = vmatprep.subr.mxu0 0.0
        %351 = vmatpush1.msra.mxu0 0.0
        %352 = vmatprep.subr.mxu0 0.0
        %353 = vmatpush1.msra.mxu0 0.0
        %354 = vmatprep.subr.mxu0 0.0
        %355 = vmatpush1.msra.mxu0 0.0
        %356 = vmatprep.subr.mxu0 0.0
        %357 = vmatpush1.msra.mxu0 0.0
        %358 = vmatprep.subr.mxu0 0.0
        %359 = vmatpush1.msra.mxu0 0.0
        %360 = vmatprep.subr.mxu0 0.0
        %361 = vmatpush1.msra.mxu0 0.0
        %362 = vmatprep.subr.mxu0 0.0
        %363 = vmatpush1.msra.mxu0 0.0
        %364 = vmatprep.subr.mxu0 0.0
        %365 = vmatpush1.msra.mxu0 0.0
        %366 = vmatprep.subr.mxu0 0.0
        %367 = vmatpush1.msra.mxu0 0.0
        %368 = vmatprep.subr.mxu0 0.0
        %369 = vmatpush1.msra.mxu0 0.0
        %370 = vmatprep.subr.mxu0 0.0
        %371 = vmatpush1.msra.mxu0 0.0
        %372 = vmatprep.subr.mxu0 0.0
        %373 = vmatpush1.msra.mxu0 0.0
        %374 = vmatprep.subr.mxu0 0.0
        %375 = vmatpush1.msra.mxu0 0.0
        %376 = vmatprep.subr.mxu0 0.0
        %377 = vmatpush1.msra.mxu0 0.0
        %378 = vmatprep.subr.mxu0 0.0
        %379 = vmatpush1.msra.mxu0 0.0
        %380 = vmatprep.subr.mxu0 0.0
        %381 = vmatpush1.msra.mxu0 0.0
        %382 = vmatprep.mubr.f32.mxu0 0.0
        %383 = vmatmul.mubr.f32.gmra.mrb[0].mxu0 %v313
        %v384 = vpop.f32.mrb[0].mxu0
        %v385 = vadd.f32 %v310, %v384
        %v386 = vpop.f32.mrb[0].mxu0
        %387 = vmatprep.mubr.f32.mxu0 0.0
        %388 = vmatmul.mubr.f32.gmra.mrb[0].mxu0 %v316
        %v389 = vpop.f32.mrb[0].mxu0
        %v390 = vadd.f32 %v310, %v389
        %v391 = vpop.f32.mrb[0].mxu0
        %392 = vdwg.mxu0
        %v393 = vld [vmem:[%s4 + $0x28] sm:$0xff]
        %v394 = vld [vmem:[%s4 + $0x30] sm:$0xff]
        %v395 = vld [vmem:[%s4 + $0x38] sm:$0xff]
        %v396 = vld [vmem:[%s4 + $0x40] sm:$0xff]
        %v397 = vld [vmem:[%s4 + $0x48] sm:$0x1]
        %v398 = vlaneseq
        %v399 = vshrl.u32 %v398, 7
        %v400 = vsub.s32 0, %v399
        %v401 = vrot.slane %v397, %v400
        %v403 = vsel %vm311, %v298, 0
        %v406 = vsel %vm311, %v299, 0
        %408 = vmatprep.subr.mxu0 0.0
        %409 = vmatpush1.msra.mxu0 %v393
        %410 = vmatprep.subr.mxu0 0.0
        %411 = vmatpush1.msra.mxu0 %v394
        %412 = vmatprep.subr.mxu0 0.0
        %413 = vmatpush1.msra.mxu0 %v395
        %414 = vmatprep.subr.mxu0 0.0
        %415 = vmatpush1.msra.mxu0 %v396
        %416 = vmatprep.subr.mxu0 0.0
        %417 = vmatpush1.msra.mxu0 0.0
        %418 = vmatprep.subr.mxu0 0.0
        %419 = vmatpush1.msra.mxu0 0.0
        %420 = vmatprep.subr.mxu0 0.0
        %421 = vmatpush1.msra.mxu0 0.0
        %422 = vmatprep.subr.mxu0 0.0
        %423 = vmatpush1.msra.mxu0 0.0
        %424 = vmatprep.subr.mxu0 0.0
        %425 = vmatpush1.msra.mxu0 0.0
        %426 = vmatprep.subr.mxu0 0.0
        %427 = vmatpush1.msra.mxu0 0.0
        %428 = vmatprep.subr.mxu0 0.0
        %429 = vmatpush1.msra.mxu0 0.0
        %430 = vmatprep.subr.mxu0 0.0
        %431 = vmatpush1.msra.mxu0 0.0
        %432 = vmatprep.subr.mxu0 0.0
        %433 = vmatpush1.msra.mxu0 0.0
        %434 = vmatprep.subr.mxu0 0.0
        %435 = vmatpush1.msra.mxu0 0.0
        %436 = vmatprep.subr.mxu0 0.0
        %437 = vmatpush1.msra.mxu0 0.0
        %438 = vmatprep.subr.mxu0 0.0
        %439 = vmatpush1.msra.mxu0 0.0
        %440 = vmatprep.subr.mxu0 0.0
        %441 = vmatpush1.msra.mxu0 0.0
        %442 = vmatprep.subr.mxu0 0.0
        %443 = vmatpush1.msra.mxu0 0.0
        %444 = vmatprep.subr.mxu0 0.0
        %445 = vmatpush1.msra.mxu0 0.0
        %446 = vmatprep.subr.mxu0 0.0
        %447 = vmatpush1.msra.mxu0 0.0
        %448 = vmatprep.subr.mxu0 0.0
        %449 = vmatpush1.msra.mxu0 0.0
        %450 = vmatprep.subr.mxu0 0.0
        %451 = vmatpush1.msra.mxu0 0.0
        %452 = vmatprep.subr.mxu0 0.0
        %453 = vmatpush1.msra.mxu0 0.0
        %454 = vmatprep.subr.mxu0 0.0
        %455 = vmatpush1.msra.mxu0 0.0
        %456 = vmatprep.subr.mxu0 0.0
        %457 = vmatpush1.msra.mxu0 0.0
        %458 = vmatprep.subr.mxu0 0.0
        %459 = vmatpush1.msra.mxu0 0.0
        %460 = vmatprep.subr.mxu0 0.0
        %461 = vmatpush1.msra.mxu0 0.0
        %462 = vmatprep.subr.mxu0 0.0
        %463 = vmatpush1.msra.mxu0 0.0
        %464 = vmatprep.subr.mxu0 0.0
        %465 = vmatpush1.msra.mxu0 0.0
        %466 = vmatprep.subr.mxu0 0.0
        %467 = vmatpush1.msra.mxu0 0.0
        %468 = vmatprep.subr.mxu0 0.0
        %469 = vmatpush1.msra.mxu0 0.0
        %470 = vmatprep.subr.mxu0 0.0
        %471 = vmatpush1.msra.mxu0 0.0
        %472 = vmatprep.mubr.f32.mxu0 0.0
        %473 = vmatmul.mubr.f32.gmra.mrb[0].mxu0 %v403
        %v474 = vpop.f32.mrb[0].mxu0
        %v475 = vadd.f32 %v401, %v474
        %v476 = vpop.f32.mrb[0].mxu0
        %477 = vmatprep.mubr.f32.mxu0 0.0
        %478 = vmatmul.mubr.f32.gmra.mrb[0].mxu0 %v406
        %v479 = vpop.f32.mrb[0].mxu0
        %v480 = vadd.f32 %v401, %v479
        %v481 = vpop.f32.mrb[0].mxu0
        %482 = vdwg.mxu0
        %v484 = vlaneseq
        %v485 = vshrl.u32 %v484, 7
        %v486 = vsub.s32 0, %v485
        %v487 = vrot.slane %v297, %v486
        %491 = vrot.lane.b32.xlu0 %v385, 96
        %v492 = vpop.permute.xlu0 %491
        %493 = vrot.lane.b32.xlu0 %v390, 96
        %v494 = vpop.permute.xlu0 %493
        %vm495 = vcmask 64512
        %v496 = vsel %vm495, %v385, 0
        %v498 = vsel %vm495, %v390, 0
        %v500 = vsel %vm495, %v492, 0
        %v502 = vsel %vm495, %v494, 0
        %504 = vmatprep.subr.mxu0 0.0
        %505 = vmatpush1.xpose.msra.mxu0 %v500
        %506 = vmatprep.subr.mxu0 0.0
        %507 = vmatpush1.xpose.msra.mxu0 %v502
        %508 = vmatprep.subr.mxu0 0.0
        %509 = vmatpush1.xpose.msra.mxu0 0.0
        %510 = vmatprep.subr.mxu0 0.0
        %511 = vmatpush1.xpose.msra.mxu0 0.0
        %512 = vmatprep.subr.mxu0 0.0
        %513 = vmatpush1.xpose.msra.mxu0 0.0
        %514 = vmatprep.subr.mxu0 0.0
        %515 = vmatpush1.xpose.msra.mxu0 0.0
        %516 = vmatprep.subr.mxu0 0.0
        %517 = vmatpush1.xpose.msra.mxu0 0.0
        %518 = vmatprep.subr.mxu0 0.0
        %519 = vmatpush1.xpose.msra.mxu0 0.0
        %520 = vmatprep.subr.mxu0 0.0
        %521 = vmatpush1.xpose.msra.mxu0 0.0
        %522 = vmatprep.subr.mxu0 0.0
        %523 = vmatpush1.xpose.msra.mxu0 0.0
        %524 = vmatprep.subr.mxu0 0.0
        %525 = vmatpush1.xpose.msra.mxu0 0.0
        %526 = vmatprep.subr.mxu0 0.0
        %527 = vmatpush1.xpose.msra.mxu0 0.0
        %528 = vmatprep.subr.mxu0 0.0
        %529 = vmatpush1.xpose.msra.mxu0 0.0
        %530 = vmatprep.subr.mxu0 0.0
        %531 = vmatpush1.xpose.msra.mxu0 0.0
        %532 = vmatprep.subr.mxu0 0.0
        %533 = vmatpush1.xpose.msra.mxu0 0.0
        %534 = vmatprep.subr.mxu0 0.0
        %535 = vmatpush1.xpose.msra.mxu0 0.0
        %536 = vmatprep.subr.mxu0 0.0
        %537 = vmatpush1.xpose.msra.mxu0 0.0
        %538 = vmatprep.subr.mxu0 0.0
        %539 = vmatpush1.xpose.msra.mxu0 0.0
        %540 = vmatprep.subr.mxu0 0.0
        %541 = vmatpush1.xpose.msra.mxu0 0.0
        %542 = vmatprep.subr.mxu0 0.0
        %543 = vmatpush1.xpose.msra.mxu0 0.0
        %544 = vmatprep.subr.mxu0 0.0
        %545 = vmatpush1.xpose.msra.mxu0 0.0
        %546 = vmatprep.subr.mxu0 0.0
        %547 = vmatpush1.xpose.msra.mxu0 0.0
        %548 = vmatprep.subr.mxu0 0.0
        %549 = vmatpush1.xpose.msra.mxu0 0.0
        %550 = vmatprep.subr.mxu0 0.0
        %551 = vmatpush1.xpose.msra.mxu0 0.0
        %552 = vmatprep.subr.mxu0 0.0
        %553 = vmatpush1.xpose.msra.mxu0 0.0
        %554 = vmatprep.subr.mxu0 0.0
        %555 = vmatpush1.xpose.msra.mxu0 0.0
        %556 = vmatprep.subr.mxu0 0.0
        %557 = vmatpush1.xpose.msra.mxu0 0.0
        %558 = vmatprep.subr.mxu0 0.0
        %559 = vmatpush1.xpose.msra.mxu0 0.0
        %560 = vmatprep.subr.mxu0 0.0
        %561 = vmatpush1.xpose.msra.mxu0 0.0
        %562 = vmatprep.subr.mxu0 0.0
        %563 = vmatpush1.xpose.msra.mxu0 0.0
        %564 = vmatprep.subr.mxu0 0.0
        %565 = vmatpush1.xpose.msra.mxu0 0.0
        %566 = vmatprep.subr.mxu0 0.0
        %567 = vmatpush1.xpose.msra.mxu0 0.0
        %568 = vmatprep.mubr.f32.mxu0 0.0
        %569 = vmatmul.mubr.f32.gmra.mrb[0].mxu0 %v496
        %v570 = vpop.f32.mrb[0].mxu0
        %v571 = vadd.f32 %v487, %v570
        %v572 = vpop.f32.mrb[0].mxu0
        %573 = vmatprep.mubr.f32.mxu0 0.0
        %574 = vmatmul.mubr.f32.gmra.mrb[0].mxu0 %v498
        %v575 = vpop.f32.mrb[0].mxu0
        %v576 = vadd.f32 %v487, %v575
        %v577 = vpop.f32.mrb[0].mxu0
        %578 = vdwg.mxu0
        %vm579 = vcmask 130048
        %v580 = vsel %vm579, %v571, -inf
        %581 = vmax.xlane.f32.xlu0 %v580
        %v582 = vpop.xlane.xlu0 %581
        %v583 = vsel %vm579, %v576, -inf
        %584 = vmax.xlane.f32.xlu0 %v583
        %v585 = vpop.xlane.xlu0 %584
        %v586 = vsub.f32 %v571, %v582
        %v587 = vsub.f32 %v576, %v585
        %v588 = vmul.f32 %v586, 1.442695
        %v589 = vpow.pop %v588
        %v590 = vmul.f32 %v587, 1.442695
        %v591 = vpow.pop %v590
        %v592 = vsel %vm579, %v589, 0.0
        %593 = vadd.xlane.f32.xlu0 %v592
        %v594 = vpop.xlane.xlu0 %593
        %v595 = vsel %vm579, %v591, 0.0
        %596 = vadd.xlane.f32.xlu0 %v595
        %v597 = vpop.xlane.xlu0 %596
        %v598 = vrcp.pop %v594
        %v599 = vrcp.pop %v597
        %v600 = vmul.f32 %v589, %v598
        %v601 = vmul.f32 %v591, %v599
        %v603 = vsel %vm579, %v600, 0
        %v606 = vsel %vm579, %v601, 0
        %608 = vmatprep.subr.mxu0 0.0
        %609 = vmatpush1.msra.mxu0 %v475
        %610 = vmatprep.subr.mxu0 0.0
        %611 = vmatpush1.msra.mxu0 %v480
        %612 = vmatprep.subr.mxu0 0.0
        %613 = vmatpush1.msra.mxu0 0.0
        %614 = vmatprep.subr.mxu0 0.0
        %615 = vmatpush1.msra.mxu0 0.0
        %616 = vmatprep.subr.mxu0 0.0
        %617 = vmatpush1.msra.mxu0 0.0
        %618 = vmatprep.subr.mxu0 0.0
        %619 = vmatpush1.msra.mxu0 0.0
        %620 = vmatprep.subr.mxu0 0.0
        %621 = vmatpush1.msra.mxu0 0.0
        %622 = vmatprep.subr.mxu0 0.0
        %623 = vmatpush1.msra.mxu0 0.0
        %624 = vmatprep.subr.mxu0 0.0
        %625 = vmatpush1.msra.mxu0 0.0
        %626 = vmatprep.subr.mxu0 0.0
        %627 = vmatpush1.msra.mxu0 0.0
        %628 = vmatprep.subr.mxu0 0.0
        %629 = vmatpush1.msra.mxu0 0.0
        %630 = vmatprep.subr.mxu0 0.0
        %631 = vmatpush1.msra.mxu0 0.0
        %632 = vmatprep.subr.mxu0 0.0
        %633 = vmatpush1.msra.mxu0 0.0
        %634 = vmatprep.subr.mxu0 0.0
        %635 = vmatpush1.msra.mxu0 0.0
        %636 = vmatprep.subr.mxu0 0.0
        %637 = vmatpush1.msra.mxu0 0.0
        %638 = vmatprep.subr.mxu0 0.0
        %639 = vmatpush1.msra.mxu0 0.0
        %640 = vmatprep.subr.mxu0 0.0
        %641 = vmatpush1.msra.mxu0 0.0
        %642 = vmatprep.subr.mxu0 0.0
        %643 = vmatpush1.msra.mxu0 0.0
        %644 = vmatprep.subr.mxu0 0.0
        %645 = vmatpush1.msra.mxu0 0.0
        %646 = vmatprep.subr.mxu0 0.0
        %647 = vmatpush1.msra.mxu0 0.0
        %648 = vmatprep.subr.mxu0 0.0
        %649 = vmatpush1.msra.mxu0 0.0
        %650 = vmatprep.subr.mxu0 0.0
        %651 = vmatpush1.msra.mxu0 0.0
        %652 = vmatprep.subr.mxu0 0.0
        %653 = vmatpush1.msra.mxu0 0.0
        %654 = vmatprep.subr.mxu0 0.0
        %655 = vmatpush1.msra.mxu0 0.0
        %656 = vmatprep.subr.mxu0 0.0
        %657 = vmatpush1.msra.mxu0 0.0
        %658 = vmatprep.subr.mxu0 0.0
        %659 = vmatpush1.msra.mxu0 0.0
        %660 = vmatprep.subr.mxu0 0.0
        %661 = vmatpush1.msra.mxu0 0.0
        %662 = vmatprep.subr.mxu0 0.0
        %663 = vmatpush1.msra.mxu0 0.0
        %664 = vmatprep.subr.mxu0 0.0
        %665 = vmatpush1.msra.mxu0 0.0
        %666 = vmatprep.subr.mxu0 0.0
        %667 = vmatpush1.msra.mxu0 0.0
        %668 = vmatprep.subr.mxu0 0.0
        %669 = vmatpush1.msra.mxu0 0.0
        %670 = vmatprep.subr.mxu0 0.0
        %671 = vmatpush1.msra.mxu0 0.0
        %672 = vmatprep.mubr.f32.mxu0 0.0
        %673 = vmatmul.mubr.f32.gmra.mrb[0].mxu0 %v603
        %v674 = vpop.f32.mrb[0].mxu0
        %v675 = vadd.f32 0.0, %v674
        %v676 = vpop.f32.mrb[0].mxu0
        %677 = vmatprep.mubr.f32.mxu0 0.0
        %678 = vmatmul.mubr.f32.gmra.mrb[0].mxu0 %v606
        %v679 = vpop.f32.mrb[0].mxu0
        %v680 = vadd.f32 0.0, %v679
        %v681 = vpop.f32.mrb[0].mxu0
        %682 = vdwg.mxu0
        %683 = vrot.lane.b32.xlu0 %v385, 120
        %v684 = vpop.permute.xlu0 %683
        %685 = vrot.lane.b32.xlu0 %v390, 120
        %v686 = vpop.permute.xlu0 %685
        %687 = vrot.lane.b32.xlu0 %v385, 88
        %v688 = vpop.permute.xlu0 %687
        %689 = vrot.lane.b32.xlu0 %v390, 88
        %v690 = vpop.permute.xlu0 %689
        %v691 = vsel %vm495, %v684, 0
        %v693 = vsel %vm495, %v686, 0
        %v695 = vsel %vm495, %v688, 0
        %v697 = vsel %vm495, %v690, 0
        %699 = vmatprep.subr.mxu0 0.0
        %700 = vmatpush1.xpose.msra.mxu0 %v695
        %701 = vmatprep.subr.mxu0 0.0
        %702 = vmatpush1.xpose.msra.mxu0 %v697
        %703 = vmatprep.subr.mxu0 0.0
        %704 = vmatpush1.xpose.msra.mxu0 0.0
        %705 = vmatprep.subr.mxu0 0.0
        %706 = vmatpush1.xpose.msra.mxu0 0.0
        %707 = vmatprep.subr.mxu0 0.0
        %708 = vmatpush1.xpose.msra.mxu0 0.0
        %709 = vmatprep.subr.mxu0 0.0
        %710 = vmatpush1.xpose.msra.mxu0 0.0
        %711 = vmatprep.subr.mxu0 0.0
        %712 = vmatpush1.xpose.msra.mxu0 0.0
        %713 = vmatprep.subr.mxu0 0.0
        %714 = vmatpush1.xpose.msra.mxu0 0.0
        %715 = vmatprep.subr.mxu0 0.0
        %716 = vmatpush1.xpose.msra.mxu0 0.0
        %717 = vmatprep.subr.mxu0 0.0
        %718 = vmatpush1.xpose.msra.mxu0 0.0
        %719 = vmatprep.subr.mxu0 0.0
        %720 = vmatpush1.xpose.msra.mxu0 0.0
        %721 = vmatprep.subr.mxu0 0.0
        %722 = vmatpush1.xpose.msra.mxu0 0.0
        %723 = vmatprep.subr.mxu0 0.0
        %724 = vmatpush1.xpose.msra.mxu0 0.0
        %725 = vmatprep.subr.mxu0 0.0
        %726 = vmatpush1.xpose.msra.mxu0 0.0
        %727 = vmatprep.subr.mxu0 0.0
        %728 = vmatpush1.xpose.msra.mxu0 0.0
        %729 = vmatprep.subr.mxu0 0.0
        %730 = vmatpush1.xpose.msra.mxu0 0.0
        %731 = vmatprep.subr.mxu0 0.0
        %732 = vmatpush1.xpose.msra.mxu0 0.0
        %733 = vmatprep.subr.mxu0 0.0
        %734 = vmatpush1.xpose.msra.mxu0 0.0
        %735 = vmatprep.subr.mxu0 0.0
        %736 = vmatpush1.xpose.msra.mxu0 0.0
        %737 = vmatprep.subr.mxu0 0.0
        %738 = vmatpush1.xpose.msra.mxu0 0.0
        %739 = vmatprep.subr.mxu0 0.0
        %740 = vmatpush1.xpose.msra.mxu0 0.0
        %741 = vmatprep.subr.mxu0 0.0
        %742 = vmatpush1.xpose.msra.mxu0 0.0
        %743 = vmatprep.subr.mxu0 0.0
        %744 = vmatpush1.xpose.msra.mxu0 0.0
        %745 = vmatprep.subr.mxu0 0.0
        %746 = vmatpush1.xpose.msra.mxu0 0.0
        %747 = vmatprep.subr.mxu0 0.0
        %748 = vmatpush1.xpose.msra.mxu0 0.0
        %749 = vmatprep.subr.mxu0 0.0
        %750 = vmatpush1.xpose.msra.mxu0 0.0
        %751 = vmatprep.subr.mxu0 0.0
        %752 = vmatpush1.xpose.msra.mxu0 0.0
        %753 = vmatprep.subr.mxu0 0.0
        %754 = vmatpush1.xpose.msra.mxu0 0.0
        %755 = vmatprep.subr.mxu0 0.0
        %756 = vmatpush1.xpose.msra.mxu0 0.0
        %757 = vmatprep.subr.mxu0 0.0
        %758 = vmatpush1.xpose.msra.mxu0 0.0
        %759 = vmatprep.subr.mxu0 0.0
        %760 = vmatpush1.xpose.msra.mxu0 0.0
        %761 = vmatprep.subr.mxu0 0.0
        %762 = vmatpush1.xpose.msra.mxu0 0.0
        %763 = vmatprep.mubr.f32.mxu0 0.0
        %764 = vmatmul.mubr.f32.gmra.mrb[0].mxu0 %v691
        %v765 = vpop.f32.mrb[0].mxu0
        %v766 = vadd.f32 %v487, %v765
        %v767 = vpop.f32.mrb[0].mxu0
        %768 = vmatprep.mubr.f32.mxu0 0.0
        %769 = vmatmul.mubr.f32.gmra.mrb[0].mxu0 %v693
        %v770 = vpop.f32.mrb[0].mxu0
        %v771 = vadd.f32 %v487, %v770
        %v772 = vpop.f32.mrb[0].mxu0
        %773 = vdwg.mxu0
        %v774 = vsel %vm579, %v766, -inf
        %775 = vmax.xlane.f32.xlu0 %v774
        %v776 = vpop.xlane.xlu0 %775
        %v777 = vsel %vm579, %v771, -inf
        %778 = vmax.xlane.f32.xlu0 %v777
        %v779 = vpop.xlane.xlu0 %778
        %v780 = vsub.f32 %v766, %v776
        %v781 = vsub.f32 %v771, %v779
        %v782 = vmul.f32 %v780, 1.442695
        %v783 = vpow.pop %v782
        %v784 = vmul.f32 %v781, 1.442695
        %v785 = vpow.pop %v784
        %v786 = vsel %vm579, %v783, 0.0
        %787 = vadd.xlane.f32.xlu0 %v786
        %v788 = vpop.xlane.xlu0 %787
        %v789 = vsel %vm579, %v785, 0.0
        %790 = vadd.xlane.f32.xlu0 %v789
        %v791 = vpop.xlane.xlu0 %790
        %v792 = vrcp.pop %v788
        %v793 = vrcp.pop %v791
        %v794 = vmul.f32 %v783, %v792
        %v795 = vmul.f32 %v785, %v793
        %798 = vrot.lane.b32.xlu0 %v475, 120
        %v799 = vpop.permute.xlu0 %798
        %800 = vrot.lane.b32.xlu0 %v480, 120
        %v801 = vpop.permute.xlu0 %800
        %v805 = vsel %vm579, %v794, 0
        %v808 = vsel %vm579, %v795, 0
        %810 = vmatprep.subr.mxu0 0.0
        %811 = vmatpush1.msra.mxu0 %v799
        %812 = vmatprep.subr.mxu0 0.0
        %813 = vmatpush1.msra.mxu0 %v801
        %814 = vmatprep.subr.mxu0 0.0
        %815 = vmatpush1.msra.mxu0 0.0
        %816 = vmatprep.subr.mxu0 0.0
        %817 = vmatpush1.msra.mxu0 0.0
        %818 = vmatprep.subr.mxu0 0.0
        %819 = vmatpush1.msra.mxu0 0.0
        %820 = vmatprep.subr.mxu0 0.0
        %821 = vmatpush1.msra.mxu0 0.0
        %822 = vmatprep.subr.mxu0 0.0
        %823 = vmatpush1.msra.mxu0 0.0
        %824 = vmatprep.subr.mxu0 0.0
        %825 = vmatpush1.msra.mxu0 0.0
        %826 = vmatprep.subr.mxu0 0.0
        %827 = vmatpush1.msra.mxu0 0.0
        %828 = vmatprep.subr.mxu0 0.0
        %829 = vmatpush1.msra.mxu0 0.0
        %830 = vmatprep.subr.mxu0 0.0
        %831 = vmatpush1.msra.mxu0 0.0
        %832 = vmatprep.subr.mxu0 0.0
        %833 = vmatpush1.msra.mxu0 0.0
        %834 = vmatprep.subr.mxu0 0.0
        %835 = vmatpush1.msra.mxu0 0.0
        %836 = vmatprep.subr.mxu0 0.0
        %837 = vmatpush1.msra.mxu0 0.0
        %838 = vmatprep.subr.mxu0 0.0
        %839 = vmatpush1.msra.mxu0 0.0
        %840 = vmatprep.subr.mxu0 0.0
        %841 = vmatpush1.msra.mxu0 0.0
        %842 = vmatprep.subr.mxu0 0.0
        %843 = vmatpush1.msra.mxu0 0.0
        %844 = vmatprep.subr.mxu0 0.0
        %845 = vmatpush1.msra.mxu0 0.0
        %846 = vmatprep.subr.mxu0 0.0
        %847 = vmatpush1.msra.mxu0 0.0
        %848 = vmatprep.subr.mxu0 0.0
        %849 = vmatpush1.msra.mxu0 0.0
        %850 = vmatprep.subr.mxu0 0.0
        %851 = vmatpush1.msra.mxu0 0.0
        %852 = vmatprep.subr.mxu0 0.0
        %853 = vmatpush1.msra.mxu0 0.0
        %854 = vmatprep.subr.mxu0 0.0
        %855 = vmatpush1.msra.mxu0 0.0
        %856 = vmatprep.subr.mxu0 0.0
        %857 = vmatpush1.msra.mxu0 0.0
        %858 = vmatprep.subr.mxu0 0.0
        %859 = vmatpush1.msra.mxu0 0.0
        %860 = vmatprep.subr.mxu0 0.0
        %861 = vmatpush1.msra.mxu0 0.0
        %862 = vmatprep.subr.mxu0 0.0
        %863 = vmatpush1.msra.mxu0 0.0
        %864 = vmatprep.subr.mxu0 0.0
        %865 = vmatpush1.msra.mxu0 0.0
        %866 = vmatprep.subr.mxu0 0.0
        %867 = vmatpush1.msra.mxu0 0.0
        %868 = vmatprep.subr.mxu0 0.0
        %869 = vmatpush1.msra.mxu0 0.0
        %870 = vmatprep.subr.mxu0 0.0
        %871 = vmatpush1.msra.mxu0 0.0
        %872 = vmatprep.subr.mxu0 0.0
        %873 = vmatpush1.msra.mxu0 0.0
        %874 = vmatprep.mubr.f32.mxu0 0.0
        %875 = vmatmul.mubr.f32.gmra.mrb[0].mxu0 %v805
        %v876 = vpop.f32.mrb[0].mxu0
        %v877 = vadd.f32 0.0, %v876
        %v878 = vpop.f32.mrb[0].mxu0
        %879 = vmatprep.mubr.f32.mxu0 0.0
        %880 = vmatmul.mubr.f32.gmra.mrb[0].mxu0 %v808
        %v881 = vpop.f32.mrb[0].mxu0
        %v882 = vadd.f32 0.0, %v881
        %v883 = vpop.f32.mrb[0].mxu0
        %884 = vdwg.mxu0
        %885 = vrot.lane.b32.xlu0 %v385, 112
        %v886 = vpop.permute.xlu0 %885
        %887 = vrot.lane.b32.xlu0 %v390, 112
        %v888 = vpop.permute.xlu0 %887
        %889 = vrot.lane.b32.xlu0 %v385, 80
        %v890 = vpop.permute.xlu0 %889
        %891 = vrot.lane.b32.xlu0 %v390, 80
        %v892 = vpop.permute.xlu0 %891
        %v893 = vsel %vm495, %v886, 0
        %v895 = vsel %vm495, %v888, 0
        %v897 = vsel %vm495, %v890, 0
        %v899 = vsel %vm495, %v892, 0
        %901 = vmatprep.subr.mxu0 0.0
        %902 = vmatpush1.xpose.msra.mxu0 %v897
        %903 = vmatprep.subr.mxu0 0.0
        %904 = vmatpush1.xpose.msra.mxu0 %v899
        %905 = vmatprep.subr.mxu0 0.0
        %906 = vmatpush1.xpose.msra.mxu0 0.0
        %907 = vmatprep.subr.mxu0 0.0
        %908 = vmatpush1.xpose.msra.mxu0 0.0
        %909 = vmatprep.subr.mxu0 0.0
        %910 = vmatpush1.xpose.msra.mxu0 0.0
        %911 = vmatprep.subr.mxu0 0.0
        %912 = vmatpush1.xpose.msra.mxu0 0.0
        %913 = vmatprep.subr.mxu0 0.0
        %914 = vmatpush1.xpose.msra.mxu0 0.0
        %915 = vmatprep.subr.mxu0 0.0
        %916 = vmatpush1.xpose.msra.mxu0 0.0
        %917 = vmatprep.subr.mxu0 0.0
        %918 = vmatpush1.xpose.msra.mxu0 0.0
        %919 = vmatprep.subr.mxu0 0.0
        %920 = vmatpush1.xpose.msra.mxu0 0.0
        %921 = vmatprep.subr.mxu0 0.0
        %922 = vmatpush1.xpose.msra.mxu0 0.0
        %923 = vmatprep.subr.mxu0 0.0
        %924 = vmatpush1.xpose.msra.mxu0 0.0
        %925 = vmatprep.subr.mxu0 0.0
        %926 = vmatpush1.xpose.msra.mxu0 0.0
        %927 = vmatprep.subr.mxu0 0.0
        %928 = vmatpush1.xpose.msra.mxu0 0.0
        %929 = vmatprep.subr.mxu0 0.0
        %930 = vmatpush1.xpose.msra.mxu0 0.0
        %931 = vmatprep.subr.mxu0 0.0
        %932 = vmatpush1.xpose.msra.mxu0 0.0
        %933 = vmatprep.subr.mxu0 0.0
        %934 = vmatpush1.xpose.msra.mxu0 0.0
        %935 = vmatprep.subr.mxu0 0.0
        %936 = vmatpush1.xpose.msra.mxu0 0.0
        %937 = vmatprep.subr.mxu0 0.0
        %938 = vmatpush1.xpose.msra.mxu0 0.0
        %939 = vmatprep.subr.mxu0 0.0
        %940 = vmatpush1.xpose.msra.mxu0 0.0
        %941 = vmatprep.subr.mxu0 0.0
        %942 = vmatpush1.xpose.msra.mxu0 0.0
        %943 = vmatprep.subr.mxu0 0.0
        %944 = vmatpush1.xpose.msra.mxu0 0.0
        %945 = vmatprep.subr.mxu0 0.0
        %946 = vmatpush1.xpose.msra.mxu0 0.0
        %947 = vmatprep.subr.mxu0 0.0
        %948 = vmatpush1.xpose.msra.mxu0 0.0
        %949 = vmatprep.subr.mxu0 0.0
        %950 = vmatpush1.xpose.msra.mxu0 0.0
        %951 = vmatprep.subr.mxu0 0.0
        %952 = vmatpush1.xpose.msra.mxu0 0.0
        %953 = vmatprep.subr.mxu0 0.0
        %954 = vmatpush1.xpose.msra.mxu0 0.0
        %955 = vmatprep.subr.mxu0 0.0
        %956 = vmatpush1.xpose.msra.mxu0 0.0
        %957 = vmatprep.subr.mxu0 0.0
        %958 = vmatpush1.xpose.msra.mxu0 0.0
        %959 = vmatprep.subr.mxu0 0.0
        %960 = vmatpush1.xpose.msra.mxu0 0.0
        %961 = vmatprep.subr.mxu0 0.0
        %962 = vmatpush1.xpose.msra.mxu0 0.0
        %963 = vmatprep.subr.mxu0 0.0
        %964 = vmatpush1.xpose.msra.mxu0 0.0
        %965 = vmatprep.mubr.f32.mxu0 0.0
        %966 = vmatmul.mubr.f32.gmra.mrb[0].mxu0 %v893
        %v967 = vpop.f32.mrb[0].mxu0
        %v968 = vadd.f32 %v487, %v967
        %v969 = vpop.f32.mrb[0].mxu0
        %970 = vmatprep.mubr.f32.mxu0 0.0
        %971 = vmatmul.mubr.f32.gmra.mrb[0].mxu0 %v895
        %v972 = vpop.f32.mrb[0].mxu0
        %v973 = vadd.f32 %v487, %v972
        %v974 = vpop.f32.mrb[0].mxu0
        %975 = vdwg.mxu0
        %v976 = vsel %vm579, %v968, -inf
        %977 = vmax.xlane.f32.xlu0 %v976
        %v978 = vpop.xlane.xlu0 %977
        %v979 = vsel %vm579, %v973, -inf
        %980 = vmax.xlane.f32.xlu0 %v979
        %v981 = vpop.xlane.xlu0 %980
        %v982 = vsub.f32 %v968, %v978
        %v983 = vsub.f32 %v973, %v981
        %v984 = vmul.f32 %v982, 1.442695
        %v985 = vpow.pop %v984
        %v986 = vmul.f32 %v983, 1.442695
        %v987 = vpow.pop %v986
        %v988 = vsel %vm579, %v985, 0.0
        %989 = vadd.xlane.f32.xlu0 %v988
        %v990 = vpop.xlane.xlu0 %989
        %v991 = vsel %vm579, %v987, 0.0
        %992 = vadd.xlane.f32.xlu0 %v991
        %v993 = vpop.xlane.xlu0 %992
        %v994 = vrcp.pop %v990
        %v995 = vrcp.pop %v993
        %v996 = vmul.f32 %v985, %v994
        %v997 = vmul.f32 %v987, %v995
        %998 = vrot.lane.b32.xlu0 %v475, 112
        %v999 = vpop.permute.xlu0 %998
        %1000 = vrot.lane.b32.xlu0 %v480, 112
        %v1001 = vpop.permute.xlu0 %1000
        %v1005 = vsel %vm579, %v996, 0
        %v1008 = vsel %vm579, %v997, 0
        %1010 = vmatprep.subr.mxu0 0.0
        %1011 = vmatpush1.msra.mxu0 %v999
        %1012 = vmatprep.subr.mxu0 0.0
        %1013 = vmatpush1.msra.mxu0 %v1001
        %1014 = vmatprep.subr.mxu0 0.0
        %1015 = vmatpush1.msra.mxu0 0.0
        %1016 = vmatprep.subr.mxu0 0.0
        %1017 = vmatpush1.msra.mxu0 0.0
        %1018 = vmatprep.subr.mxu0 0.0
        %1019 = vmatpush1.msra.mxu0 0.0
        %1020 = vmatprep.subr.mxu0 0.0
        %1021 = vmatpush1.msra.mxu0 0.0
        %1022 = vmatprep.subr.mxu0 0.0
        %1023 = vmatpush1.msra.mxu0 0.0
        %1024 = vmatprep.subr.mxu0 0.0
        %1025 = vmatpush1.msra.mxu0 0.0
        %1026 = vmatprep.subr.mxu0 0.0
        %1027 = vmatpush1.msra.mxu0 0.0
        %1028 = vmatprep.subr.mxu0 0.0
        %1029 = vmatpush1.msra.mxu0 0.0
        %1030 = vmatprep.subr.mxu0 0.0
        %1031 = vmatpush1.msra.mxu0 0.0
        %1032 = vmatprep.subr.mxu0 0.0
        %1033 = vmatpush1.msra.mxu0 0.0
        %1034 = vmatprep.subr.mxu0 0.0
        %1035 = vmatpush1.msra.mxu0 0.0
        %1036 = vmatprep.subr.mxu0 0.0
        %1037 = vmatpush1.msra.mxu0 0.0
        %1038 = vmatprep.subr.mxu0 0.0
        %1039 = vmatpush1.msra.mxu0 0.0
        %1040 = vmatprep.subr.mxu0 0.0
        %1041 = vmatpush1.msra.mxu0 0.0
        %1042 = vmatprep.subr.mxu0 0.0
        %1043 = vmatpush1.msra.mxu0 0.0
        %1044 = vmatprep.subr.mxu0 0.0
        %1045 = vmatpush1.msra.mxu0 0.0
        %1046 = vmatprep.subr.mxu0 0.0
        %1047 = vmatpush1.msra.mxu0 0.0
        %1048 = vmatprep.subr.mxu0 0.0
        %1049 = vmatpush1.msra.mxu0 0.0
        %1050 = vmatprep.subr.mxu0 0.0
        %1051 = vmatpush1.msra.mxu0 0.0
        %1052 = vmatprep.subr.mxu0 0.0
        %1053 = vmatpush1.msra.mxu0 0.0
        %1054 = vmatprep.subr.mxu0 0.0
        %1055 = vmatpush1.msra.mxu0 0.0
        %1056 = vmatprep.subr.mxu0 0.0
        %1057 = vmatpush1.msra.mxu0 0.0
        %1058 = vmatprep.subr.mxu0 0.0
        %1059 = vmatpush1.msra.mxu0 0.0
        %1060 = vmatprep.subr.mxu0 0.0
        %1061 = vmatpush1.msra.mxu0 0.0
        %1062 = vmatprep.subr.mxu0 0.0
        %1063 = vmatpush1.msra.mxu0 0.0
        %1064 = vmatprep.subr.mxu0 0.0
        %1065 = vmatpush1.msra.mxu0 0.0
        %1066 = vmatprep.subr.mxu0 0.0
        %1067 = vmatpush1.msra.mxu0 0.0
        %1068 = vmatprep.subr.mxu0 0.0
        %1069 = vmatpush1.msra.mxu0 0.0
        %1070 = vmatprep.subr.mxu0 0.0
        %1071 = vmatpush1.msra.mxu0 0.0
        %1072 = vmatprep.subr.mxu0 0.0
        %1073 = vmatpush1.msra.mxu0 0.0
        %1074 = vmatprep.mubr.f32.mxu0 0.0
        %1075 = vmatmul.mubr.f32.gmra.mrb[0].mxu0 %v1005
        %v1076 = vpop.f32.mrb[0].mxu0
        %v1077 = vadd.f32 0.0, %v1076
        %v1078 = vpop.f32.mrb[0].mxu0
        %1079 = vmatprep.mubr.f32.mxu0 0.0
        %1080 = vmatmul.mubr.f32.gmra.mrb[0].mxu0 %v1008
        %v1081 = vpop.f32.mrb[0].mxu0
        %v1082 = vadd.f32 0.0, %v1081
        %v1083 = vpop.f32.mrb[0].mxu0
        %1084 = vdwg.mxu0
        %1085 = vrot.lane.b32.xlu0 %v385, 104
        %v1086 = vpop.permute.xlu0 %1085
        %1087 = vrot.lane.b32.xlu0 %v390, 104
        %v1088 = vpop.permute.xlu0 %1087
        %1089 = vrot.lane.b32.xlu0 %v385, 72
        %v1090 = vpop.permute.xlu0 %1089
        %1091 = vrot.lane.b32.xlu0 %v390, 72
        %v1092 = vpop.permute.xlu0 %1091
        %v1093 = vsel %vm495, %v1086, 0
        %v1095 = vsel %vm495, %v1088, 0
        %v1097 = vsel %vm495, %v1090, 0
        %v1099 = vsel %vm495, %v1092, 0
        %1101 = vmatprep.subr.mxu0 0.0
        %1102 = vmatpush1.xpose.msra.mxu0 %v1097
        %1103 = vmatprep.subr.mxu0 0.0
        %1104 = vmatpush1.xpose.msra.mxu0 %v1099
        %1105 = vmatprep.subr.mxu0 0.0
        %1106 = vmatpush1.xpose.msra.mxu0 0.0
        %1107 = vmatprep.subr.mxu0 0.0
        %1108 = vmatpush1.xpose.msra.mxu0 0.0
        %1109 = vmatprep.subr.mxu0 0.0
        %1110 = vmatpush1.xpose.msra.mxu0 0.0
        %1111 = vmatprep.subr.mxu0 0.0
        %1112 = vmatpush1.xpose.msra.mxu0 0.0
        %1113 = vmatprep.subr.mxu0 0.0
        %1114 = vmatpush1.xpose.msra.mxu0 0.0
        %1115 = vmatprep.subr.mxu0 0.0
        %1116 = vmatpush1.xpose.msra.mxu0 0.0
        %1117 = vmatprep.subr.mxu0 0.0
        %1118 = vmatpush1.xpose.msra.mxu0 0.0
        %1119 = vmatprep.subr.mxu0 0.0
        %1120 = vmatpush1.xpose.msra.mxu0 0.0
        %1121 = vmatprep.subr.mxu0 0.0
        %1122 = vmatpush1.xpose.msra.mxu0 0.0
        %1123 = vmatprep.subr.mxu0 0.0
        %1124 = vmatpush1.xpose.msra.mxu0 0.0
        %1125 = vmatprep.subr.mxu0 0.0
        %1126 = vmatpush1.xpose.msra.mxu0 0.0
        %1127 = vmatprep.subr.mxu0 0.0
        %1128 = vmatpush1.xpose.msra.mxu0 0.0
        %1129 = vmatprep.subr.mxu0 0.0
        %1130 = vmatpush1.xpose.msra.mxu0 0.0
        %1131 = vmatprep.subr.mxu0 0.0
        %1132 = vmatpush1.xpose.msra.mxu0 0.0
        %1133 = vmatprep.subr.mxu0 0.0
        %1134 = vmatpush1.xpose.msra.mxu0 0.0
        %1135 = vmatprep.subr.mxu0 0.0
        %1136 = vmatpush1.xpose.msra.mxu0 0.0
        %1137 = vmatprep.subr.mxu0 0.0
        %1138 = vmatpush1.xpose.msra.mxu0 0.0
        %1139 = vmatprep.subr.mxu0 0.0
        %1140 = vmatpush1.xpose.msra.mxu0 0.0
        %1141 = vmatprep.subr.mxu0 0.0
        %1142 = vmatpush1.xpose.msra.mxu0 0.0
        %1143 = vmatprep.subr.mxu0 0.0
        %1144 = vmatpush1.xpose.msra.mxu0 0.0
        %1145 = vmatprep.subr.mxu0 0.0
        %1146 = vmatpush1.xpose.msra.mxu0 0.0
        %1147 = vmatprep.subr.mxu0 0.0
        %1148 = vmatpush1.xpose.msra.mxu0 0.0
        %1149 = vmatprep.subr.mxu0 0.0
        %1150 = vmatpush1.xpose.msra.mxu0 0.0
        %1151 = vmatprep.subr.mxu0 0.0
        %1152 = vmatpush1.xpose.msra.mxu0 0.0
        %1153 = vmatprep.subr.mxu0 0.0
        %1154 = vmatpush1.xpose.msra.mxu0 0.0
        %1155 = vmatprep.subr.mxu0 0.0
        %1156 = vmatpush1.xpose.msra.mxu0 0.0
        %1157 = vmatprep.subr.mxu0 0.0
        %1158 = vmatpush1.xpose.msra.mxu0 0.0
        %1159 = vmatprep.subr.mxu0 0.0
        %1160 = vmatpush1.xpose.msra.mxu0 0.0
        %1161 = vmatprep.subr.mxu0 0.0
        %1162 = vmatpush1.xpose.msra.mxu0 0.0
        %1163 = vmatprep.subr.mxu0 0.0
        %1164 = vmatpush1.xpose.msra.mxu0 0.0
        %1165 = vmatprep.mubr.f32.mxu0 0.0
        %1166 = vmatmul.mubr.f32.gmra.mrb[0].mxu0 %v1093
        %v1167 = vpop.f32.mrb[0].mxu0
        %v1168 = vadd.f32 %v487, %v1167
        %v1169 = vpop.f32.mrb[0].mxu0
        %1170 = vmatprep.mubr.f32.mxu0 0.0
        %1171 = vmatmul.mubr.f32.gmra.mrb[0].mxu0 %v1095
        %v1172 = vpop.f32.mrb[0].mxu0
        %v1173 = vadd.f32 %v487, %v1172
        %v1174 = vpop.f32.mrb[0].mxu0
        %1175 = vdwg.mxu0
        %v1176 = vsel %vm579, %v1168, -inf
        %1177 = vmax.xlane.f32.xlu0 %v1176
        %v1178 = vpop.xlane.xlu0 %1177
        %v1179 = vsel %vm579, %v1173, -inf
        %1180 = vmax.xlane.f32.xlu0 %v1179
        %v1181 = vpop.xlane.xlu0 %1180
        %v1182 = vsub.f32 %v1168, %v1178
        %v1183 = vsub.f32 %v1173, %v1181
        %v1184 = vmul.f32 %v1182, 1.442695
        %v1185 = vpow.pop %v1184
        %v1186 = vmul.f32 %v1183, 1.442695
        %v1187 = vpow.pop %v1186
        %v1188 = vsel %vm579, %v1185, 0.0
        %1189 = vadd.xlane.f32.xlu0 %v1188
        %v1190 = vpop.xlane.xlu0 %1189
        %v1191 = vsel %vm579, %v1187, 0.0
        %1192 = vadd.xlane.f32.xlu0 %v1191
        %v1193 = vpop.xlane.xlu0 %1192
        %v1194 = vrcp.pop %v1190
        %v1195 = vrcp.pop %v1193
        %v1196 = vmul.f32 %v1185, %v1194
        %v1197 = vmul.f32 %v1187, %v1195
        %1198 = vrot.lane.b32.xlu0 %v475, 104
        %v1199 = vpop.permute.xlu0 %1198
        %1200 = vrot.lane.b32.xlu0 %v480, 104
        %v1201 = vpop.permute.xlu0 %1200
        %v1205 = vsel %vm579, %v1196, 0
        %v1208 = vsel %vm579, %v1197, 0
        %1210 = vmatprep.subr.mxu0 0.0
        %1211 = vmatpush1.msra.mxu0 %v1199
        %1212 = vmatprep.subr.mxu0 0.0
        %1213 = vmatpush1.msra.mxu0 %v1201
        %1214 = vmatprep.subr.mxu0 0.0
        %1215 = vmatpush1.msra.mxu0 0.0
        %1216 = vmatprep.subr.mxu0 0.0
        %1217 = vmatpush1.msra.mxu0 0.0
        %1218 = vmatprep.subr.mxu0 0.0
        %1219 = vmatpush1.msra.mxu0 0.0
        %1220 = vmatprep.subr.mxu0 0.0
        %1221 = vmatpush1.msra.mxu0 0.0
        %1222 = vmatprep.subr.mxu0 0.0
        %1223 = vmatpush1.msra.mxu0 0.0
        %1224 = vmatprep.subr.mxu0 0.0
        %1225 = vmatpush1.msra.mxu0 0.0
        %1226 = vmatprep.subr.mxu0 0.0
        %1227 = vmatpush1.msra.mxu0 0.0
        %1228 = vmatprep.subr.mxu0 0.0
        %1229 = vmatpush1.msra.mxu0 0.0
        %1230 = vmatprep.subr.mxu0 0.0
        %1231 = vmatpush1.msra.mxu0 0.0
        %1232 = vmatprep.subr.mxu0 0.0
        %1233 = vmatpush1.msra.mxu0 0.0
        %1234 = vmatprep.subr.mxu0 0.0
        %1235 = vmatpush1.msra.mxu0 0.0
        %1236 = vmatprep.subr.mxu0 0.0
        %1237 = vmatpush1.msra.mxu0 0.0
        %1238 = vmatprep.subr.mxu0 0.0
        %1239 = vmatpush1.msra.mxu0 0.0
        %1240 = vmatprep.subr.mxu0 0.0
        %1241 = vmatpush1.msra.mxu0 0.0
        %1242 = vmatprep.subr.mxu0 0.0
        %1243 = vmatpush1.msra.mxu0 0.0
        %1244 = vmatprep.subr.mxu0 0.0
        %1245 = vmatpush1.msra.mxu0 0.0
        %1246 = vmatprep.subr.mxu0 0.0
        %1247 = vmatpush1.msra.mxu0 0.0
        %1248 = vmatprep.subr.mxu0 0.0
        %1249 = vmatpush1.msra.mxu0 0.0
        %1250 = vmatprep.subr.mxu0 0.0
        %1251 = vmatpush1.msra.mxu0 0.0
        %1252 = vmatprep.subr.mxu0 0.0
        %1253 = vmatpush1.msra.mxu0 0.0
        %1254 = vmatprep.subr.mxu0 0.0
        %1255 = vmatpush1.msra.mxu0 0.0
        %1256 = vmatprep.subr.mxu0 0.0
        %1257 = vmatpush1.msra.mxu0 0.0
        %1258 = vmatprep.subr.mxu0 0.0
        %1259 = vmatpush1.msra.mxu0 0.0
        %1260 = vmatprep.subr.mxu0 0.0
        %1261 = vmatpush1.msra.mxu0 0.0
        %1262 = vmatprep.subr.mxu0 0.0
        %1263 = vmatpush1.msra.mxu0 0.0
        %1264 = vmatprep.subr.mxu0 0.0
        %1265 = vmatpush1.msra.mxu0 0.0
        %1266 = vmatprep.subr.mxu0 0.0
        %1267 = vmatpush1.msra.mxu0 0.0
        %1268 = vmatprep.subr.mxu0 0.0
        %1269 = vmatpush1.msra.mxu0 0.0
        %1270 = vmatprep.subr.mxu0 0.0
        %1271 = vmatpush1.msra.mxu0 0.0
        %1272 = vmatprep.subr.mxu0 0.0
        %1273 = vmatpush1.msra.mxu0 0.0
        %1274 = vmatprep.mubr.f32.mxu0 0.0
        %1275 = vmatmul.mubr.f32.gmra.mrb[0].mxu0 %v1205
        %v1276 = vpop.f32.mrb[0].mxu0
        %v1277 = vadd.f32 0.0, %v1276
        %v1278 = vpop.f32.mrb[0].mxu0
        %1279 = vmatprep.mubr.f32.mxu0 0.0
        %1280 = vmatmul.mubr.f32.gmra.mrb[0].mxu0 %v1208
        %v1281 = vpop.f32.mrb[0].mxu0
        %v1282 = vadd.f32 0.0, %v1281
        %v1283 = vpop.f32.mrb[0].mxu0
        %1284 = vdwg.mxu0
        %1287 = vrot.lane.b32.xlu0 %v877, 8
        %v1288 = vpop.permute.xlu0 %1287
        %1289 = vrot.lane.b32.xlu0 %v882, 8
        %v1290 = vpop.permute.xlu0 %1289
        %1295 = vrot.lane.b32.xlu0 %v1077, 16
        %v1296 = vpop.permute.xlu0 %1295
        %1297 = vrot.lane.b32.xlu0 %v1082, 16
        %v1298 = vpop.permute.xlu0 %1297
        %1303 = vrot.lane.b32.xlu0 %v1277, 24
        %v1304 = vpop.permute.xlu0 %1303
        %1305 = vrot.lane.b32.xlu0 %v1282, 24
        %v1306 = vpop.permute.xlu0 %1305
        %v1309 = vsel %vm495, %v675, %v1288
        %v1310 = vsel %vm495, %v680, %v1290
        %v1311 = vsel %vm579, %v1309, %v1296
        %v1312 = vsel %vm579, %v1310, %v1298
        %vm1313 = vcmask 195584
        %v1314 = vsel %vm1313, %v1311, %v1304
        %v1315 = vsel %vm1313, %v1312, %v1306
        %v1316 = vld [vmem:[%s4 + $0x50] sm:$0xff]
        %v1317 = vld [vmem:[%s4 + $0x58] sm:$0xff]
        %v1318 = vld [vmem:[%s4 + $0x60] sm:$0xff]
        %v1319 = vld [vmem:[%s4 + $0x68] sm:$0xff]
        %v1320 = vld [vmem:[%s4 + $0x70] sm:$0x1]
        %v1321 = vlaneseq
        %v1322 = vshrl.u32 %v1321, 7
        %v1323 = vsub.s32 0, %v1322
        %v1324 = vrot.slane %v1320, %v1323
        %v1326 = vsel %vm311, %v1314, 0
        %v1329 = vsel %vm311, %v1315, 0
        %1331 = vmatprep.subr.mxu0 0.0
        %1332 = vmatpush1.msra.mxu0 %v1316
        %1333 = vmatprep.subr.mxu0 0.0
        %1334 = vmatpush1.msra.mxu0 %v1317
        %1335 = vmatprep.subr.mxu0 0.0
        %1336 = vmatpush1.msra.mxu0 %v1318
        %1337 = vmatprep.subr.mxu0 0.0
        %1338 = vmatpush1.msra.mxu0 %v1319
        %1339 = vmatprep.subr.mxu0 0.0
        %1340 = vmatpush1.msra.mxu0 0.0
        %1341 = vmatprep.subr.mxu0 0.0
        %1342 = vmatpush1.msra.mxu0 0.0
        %1343 = vmatprep.subr.mxu0 0.0
        %1344 = vmatpush1.msra.mxu0 0.0
        %1345 = vmatprep.subr.mxu0 0.0
        %1346 = vmatpush1.msra.mxu0 0.0
        %1347 = vmatprep.subr.mxu0 0.0
        %1348 = vmatpush1.msra.mxu0 0.0
        %1349 = vmatprep.subr.mxu0 0.0
        %1350 = vmatpush1.msra.mxu0 0.0
        %1351 = vmatprep.subr.mxu0 0.0
        %1352 = vmatpush1.msra.mxu0 0.0
        %1353 = vmatprep.subr.mxu0 0.0
        %1354 = vmatpush1.msra.mxu0 0.0
        %1355 = vmatprep.subr.mxu0 0.0
        %1356 = vmatpush1.msra.mxu0 0.0
        %1357 = vmatprep.subr.mxu0 0.0
        %1358 = vmatpush1.msra.mxu0 0.0
        %1359 = vmatprep.subr.mxu0 0.0
        %1360 = vmatpush1.msra.mxu0 0.0
        %1361 = vmatprep.subr.mxu0 0.0
        %1362 = vmatpush1.msra.mxu0 0.0
        %1363 = vmatprep.subr.mxu0 0.0
        %1364 = vmatpush1.msra.mxu0 0.0
        %1365 = vmatprep.subr.mxu0 0.0
        %1366 = vmatpush1.msra.mxu0 0.0
        %1367 = vmatprep.subr.mxu0 0.0
        %1368 = vmatpush1.msra.mxu0 0.0
        %1369 = vmatprep.subr.mxu0 0.0
        %1370 = vmatpush1.msra.mxu0 0.0
        %1371 = vmatprep.subr.mxu0 0.0
        %1372 = vmatpush1.msra.mxu0 0.0
        %1373 = vmatprep.subr.mxu0 0.0
        %1374 = vmatpush1.msra.mxu0 0.0
        %1375 = vmatprep.subr.mxu0 0.0
        %1376 = vmatpush1.msra.mxu0 0.0
        %1377 = vmatprep.subr.mxu0 0.0
        %1378 = vmatpush1.msra.mxu0 0.0
        %1379 = vmatprep.subr.mxu0 0.0
        %1380 = vmatpush1.msra.mxu0 0.0
        %1381 = vmatprep.subr.mxu0 0.0
        %1382 = vmatpush1.msra.mxu0 0.0
        %1383 = vmatprep.subr.mxu0 0.0
        %1384 = vmatpush1.msra.mxu0 0.0
        %1385 = vmatprep.subr.mxu0 0.0
        %1386 = vmatpush1.msra.mxu0 0.0
        %1387 = vmatprep.subr.mxu0 0.0
        %1388 = vmatpush1.msra.mxu0 0.0
        %1389 = vmatprep.subr.mxu0 0.0
        %1390 = vmatpush1.msra.mxu0 0.0
        %1391 = vmatprep.subr.mxu0 0.0
        %1392 = vmatpush1.msra.mxu0 0.0
        %1393 = vmatprep.subr.mxu0 0.0
        %1394 = vmatpush1.msra.mxu0 0.0
        %1395 = vmatprep.mubr.f32.mxu0 0.0
        %1396 = vmatmul.mubr.f32.gmra.mrb[0].mxu0 %v1326
        %v1397 = vpop.f32.mrb[0].mxu0
        %v1398 = vadd.f32 %v1324, %v1397
        %v1399 = vpop.f32.mrb[0].mxu0
        %1400 = vmatprep.mubr.f32.mxu0 0.0
        %1401 = vmatmul.mubr.f32.gmra.mrb[0].mxu0 %v1329
        %v1402 = vpop.f32.mrb[0].mxu0
        %v1403 = vadd.f32 %v1324, %v1402
        %v1404 = vpop.f32.mrb[0].mxu0
        %1405 = vdwg.mxu0
        %v1406 = vadd.f32 %v298, %v1398
        %v1407 = vadd.f32 %v299, %v1403
        %v1408 = vld [vmem:[%s4 + $0x78] sm:$0x1]
        %v1409 = vld [vmem:[%s4 + $0x80] sm:$0x1]
        %v1410 = vsel %vm311, %v1406, 0.0
        %1411 = vadd.xlane.f32.xlu0 %v1410
        %v1412 = vpop.xlane.xlu0 %1411
        %v1413 = vsel %vm311, %v1407, 0.0
        %1414 = vadd.xlane.f32.xlu0 %v1413
        %v1415 = vpop.xlane.xlu0 %1414
        %v1416 = vrcp.pop 32.0
        %v1417 = vmul.f32 %v1412, %v1416
        %v1418 = vmul.f32 %v1415, %v1416
        %v1419 = vsub.f32 %v1406, %v1417
        %v1420 = vsub.f32 %v1407, %v1418
        %v1421 = vmul.f32 %v1419, %v1419
        %v1422 = vmul.f32 %v1420, %v1420
        %v1423 = vsel %vm311, %v1421, 0.0
        %1424 = vadd.xlane.f32.xlu0 %v1423
        %v1425 = vpop.xlane.xlu0 %1424
        %v1426 = vsel %vm311, %v1422, 0.0
        %1427 = vadd.xlane.f32.xlu0 %v1426
        %v1428 = vpop.xlane.xlu0 %1427
        %v1429 = vmul.f32 %v1425, %v1416
        %v1430 = vmul.f32 %v1428, %v1416
        %v1431 = vadd.f32 %v1429, 1e-05
        %v1432 = vadd.f32 %v1430, 1e-05
        %v1433 = vrsqrt.pop %v1431
        %v1434 = vrsqrt.pop %v1432
        %v1435 = vmul.f32 %v1419, %v1433
        %v1436 = vmul.f32 %v1420, %v1434
        %v1437 = vlaneseq
        %v1438 = vshrl.u32 %v1437, 7
        %v1439 = vsub.s32 0, %v1438
        %v1440 = vrot.slane %v1408, %v1439
        %v1441 = vmul.f32 %v1435, %v1440
        %v1442 = vmul.f32 %v1436, %v1440
        %v1443 = vlaneseq
        %v1444 = vshrl.u32 %v1443, 7
        %v1445 = vsub.s32 0, %v1444
        %v1446 = vrot.slane %v1409, %v1445
        %v1447 = vadd.f32 %v1441, %v1446
        %v1448 = vadd.f32 %v1442, %v1446
        %v1449 = vld [vmem:[%s4 + $0x88] sm:$0xff]
        %v1450 = vld [vmem:[%s4 + $0x90] sm:$0xff]
        %v1451 = vld [vmem:[%s4 + $0x98] sm:$0xff]
        %v1452 = vld [vmem:[%s4 + $0xa0] sm:$0xff]
        %v1453 = vld [vmem:[%s4 + $0xa8] sm:$0x1]
        %v1454 = vlaneseq
        %v1455 = vshrl.u32 %v1454, 7
        %v1456 = vsub.s32 0, %v1455
        %v1457 = vrot.slane %v1453, %v1456
        %v1459 = vsel %vm311, %v1447, 0
        %v1462 = vsel %vm311, %v1448, 0
        %1464 = vmatprep.subr.mxu0 0.0
        %1465 = vmatpush1.msra.mxu0 %v1449
        %1466 = vmatprep.subr.mxu0 0.0
        %1467 = vmatpush1.msra.mxu0 %v1450
        %1468 = vmatprep.subr.mxu0 0.0
        %1469 = vmatpush1.msra.mxu0 %v1451
        %1470 = vmatprep.subr.mxu0 0.0
        %1471 = vmatpush1.msra.mxu0 %v1452
        %1472 = vmatprep.subr.mxu0 0.0
        %1473 = vmatpush1.msra.mxu0 0.0
        %1474 = vmatprep.subr.mxu0 0.0
        %1475 = vmatpush1.msra.mxu0 0.0
        %1476 = vmatprep.subr.mxu0 0.0
        %1477 = vmatpush1.msra.mxu0 0.0
        %1478 = vmatprep.subr.mxu0 0.0
        %1479 = vmatpush1.msra.mxu0 0.0
        %1480 = vmatprep.subr.mxu0 0.0
        %1481 = vmatpush1.msra.mxu0 0.0
        %1482 = vmatprep.subr.mxu0 0.0
        %1483 = vmatpush1.msra.mxu0 0.0
        %1484 = vmatprep.subr.mxu0 0.0
        %1485 = vmatpush1.msra.mxu0 0.0
        %1486 = vmatprep.subr.mxu0 0.0
        %1487 = vmatpush1.msra.mxu0 0.0
        %1488 = vmatprep.subr.mxu0 0.0
        %1489 = vmatpush1.msra.mxu0 0.0
        %1490 = vmatprep.subr.mxu0 0.0
        %1491 = vmatpush1.msra.mxu0 0.0
        %1492 = vmatprep.subr.mxu0 0.0
        %1493 = vmatpush1.msra.mxu0 0.0
        %1494 = vmatprep.subr.mxu0 0.0
        %1495 = vmatpush1.msra.mxu0 0.0
        %1496 = vmatprep.subr.mxu0 0.0
        %1497 = vmatpush1.msra.mxu0 0.0
        %1498 = vmatprep.subr.mxu0 0.0
        %1499 = vmatpush1.msra.mxu0 0.0
        %1500 = vmatprep.subr.mxu0 0.0
        %1501 = vmatpush1.msra.mxu0 0.0
        %1502 = vmatprep.subr.mxu0 0.0
        %1503 = vmatpush1.msra.mxu0 0.0
        %1504 = vmatprep.subr.mxu0 0.0
        %1505 = vmatpush1.msra.mxu0 0.0
        %1506 = vmatprep.subr.mxu0 0.0
        %1507 = vmatpush1.msra.mxu0 0.0
        %1508 = vmatprep.subr.mxu0 0.0
        %1509 = vmatpush1.msra.mxu0 0.0
        %1510 = vmatprep.subr.mxu0 0.0
        %1511 = vmatpush1.msra.mxu0 0.0
        %1512 = vmatprep.subr.mxu0 0.0
        %1513 = vmatpush1.msra.mxu0 0.0
        %1514 = vmatprep.subr.mxu0 0.0
        %1515 = vmatpush1.msra.mxu0 0.0
        %1516 = vmatprep.subr.mxu0 0.0
        %1517 = vmatpush1.msra.mxu0 0.0
        %1518 = vmatprep.subr.mxu0 0.0
        %1519 = vmatpush1.msra.mxu0 0.0
        %1520 = vmatprep.subr.mxu0 0.0
        %1521 = vmatpush1.msra.mxu0 0.0
        %1522 = vmatprep.subr.mxu0 0.0
        %1523 = vmatpush1.msra.mxu0 0.0
        %1524 = vmatprep.subr.mxu0 0.0
        %1525 = vmatpush1.msra.mxu0 0.0
        %1526 = vmatprep.subr.mxu0 0.0
        %1527 = vmatpush1.msra.mxu0 0.0
        %1528 = vmatprep.mubr.f32.mxu0 0.0
        %1529 = vmatmul.mubr.f32.gmra.mrb[0].mxu0 %v1459
        %v1530 = vpop.f32.mrb[0].mxu0
        %v1531 = vadd.f32 %v1457, %v1530
        %v1532 = vpop.f32.mrb[0].mxu0
        %1533 = vmatprep.mubr.f32.mxu0 0.0
        %1534 = vmatmul.mubr.f32.gmra.mrb[0].mxu0 %v1462
        %v1535 = vpop.f32.mrb[0].mxu0
        %v1536 = vadd.f32 %v1457, %v1535
        %v1537 = vpop.f32.mrb[0].mxu0
        %1538 = vdwg.mxu0
        %v1539 = vmax.f32 %v1531, 0.0
        %v1540 = vmax.f32 %v1536, 0.0
        %v1541 = vld [vmem:[%s4 + $0xb0] sm:$0xff]
        %v1542 = vld [vmem:[%s4 + $0xb8] sm:$0xff]
        %v1543 = vld [vmem:[%s4 + $0xc0] sm:$0xff]
        %v1544 = vld [vmem:[%s4 + $0xc8] sm:$0xff]
        %v1545 = vld [vmem:[%s4 + $0xd0] sm:$0xff]
        %v1546 = vld [vmem:[%s4 + $0xd8] sm:$0xff]
        %v1547 = vld [vmem:[%s4 + $0xe0] sm:$0xff]
        %v1548 = vld [vmem:[%s4 + $0xe8] sm:$0xff]
        %v1549 = vld [vmem:[%s4 + $0xf0] sm:$0x1]
        %v1550 = vlaneseq
        %v1551 = vshrl.u32 %v1550, 7
        %v1552 = vsub.s32 0, %v1551
        %v1553 = vrot.slane %v1549, %v1552
        %vm1554 = vcmask 523264
        %v1556 = vsel %vm1554, %v1539, 0
        %v1559 = vsel %vm1554, %v1540, 0
        %1561 = vmatprep.subr.mxu0 0.0
        %1562 = vmatpush1.msra.mxu0 %v1541
        %1563 = vmatprep.subr.mxu0 0.0
        %1564 = vmatpush1.msra.mxu0 %v1542
        %1565 = vmatprep.subr.mxu0 0.0
        %1566 = vmatpush1.msra.mxu0 %v1543
        %1567 = vmatprep.subr.mxu0 0.0
        %1568 = vmatpush1.msra.mxu0 %v1544
        %1569 = vmatprep.subr.mxu0 0.0
        %1570 = vmatpush1.msra.mxu0 %v1545
        %1571 = vmatprep.subr.mxu0 0.0
        %1572 = vmatpush1.msra.mxu0 %v1546
        %1573 = vmatprep.subr.mxu0 0.0
        %1574 = vmatpush1.msra.mxu0 %v1547
        %1575 = vmatprep.subr.mxu0 0.0
        %1576 = vmatpush1.msra.mxu0 %v1548
        %1577 = vmatprep.subr.mxu0 0.0
        %1578 = vmatpush1.msra.mxu0 0.0
        %1579 = vmatprep.subr.mxu0 0.0
        %1580 = vmatpush1.msra.mxu0 0.0
        %1581 = vmatprep.subr.mxu0 0.0
        %1582 = vmatpush1.msra.mxu0 0.0
        %1583 = vmatprep.subr.mxu0 0.0
        %1584 = vmatpush1.msra.mxu0 0.0
        %1585 = vmatprep.subr.mxu0 0.0
        %1586 = vmatpush1.msra.mxu0 0.0
        %1587 = vmatprep.subr.mxu0 0.0
        %1588 = vmatpush1.msra.mxu0 0.0
        %1589 = vmatprep.subr.mxu0 0.0
        %1590 = vmatpush1.msra.mxu0 0.0
        %1591 = vmatprep.subr.mxu0 0.0
        %1592 = vmatpush1.msra.mxu0 0.0
        %1593 = vmatprep.subr.mxu0 0.0
        %1594 = vmatpush1.msra.mxu0 0.0
        %1595 = vmatprep.subr.mxu0 0.0
        %1596 = vmatpush1.msra.mxu0 0.0
        %1597 = vmatprep.subr.mxu0 0.0
        %1598 = vmatpush1.msra.mxu0 0.0
        %1599 = vmatprep.subr.mxu0 0.0
        %1600 = vmatpush1.msra.mxu0 0.0
        %1601 = vmatprep.subr.mxu0 0.0
        %1602 = vmatpush1.msra.mxu0 0.0
        %1603 = vmatprep.subr.mxu0 0.0
        %1604 = vmatpush1.msra.mxu0 0.0
        %1605 = vmatprep.subr.mxu0 0.0
        %1606 = vmatpush1.msra.mxu0 0.0
        %1607 = vmatprep.subr.mxu0 0.0
        %1608 = vmatpush1.msra.mxu0 0.0
        %1609 = vmatprep.subr.mxu0 0.0
        %1610 = vmatpush1.msra.mxu0 0.0
        %1611 = vmatprep.subr.mxu0 0.0
        %1612 = vmatpush1.msra.mxu0 0.0
        %1613 = vmatprep.subr.mxu0 0.0
        %1614 = vmatpush1.msra.mxu0 0.0
        %1615 = vmatprep.subr.mxu0 0.0
        %1616 = vmatpush1.msra.mxu0 0.0
        %1617 = vmatprep.subr.mxu0 0.0
        %1618 = vmatpush1.msra.mxu0 0.0
        %1619 = vmatprep.subr.mxu0 0.0
        %1620 = vmatpush1.msra.mxu0 0.0
        %1621 = vmatprep.subr.mxu0 0.0
        %1622 = vmatpush1.msra.mxu0 0.0
        %1623 = vmatprep.subr.mxu0 0.0
        %1624 = vmatpush1.msra.mxu0 0.0
        %1625 = vmatprep.mubr.f32.mxu0 0.0
        %1626 = vmatmul.mubr.f32.gmra.mrb[0].mxu0 %v1556
        %v1627 = vpop.f32.mrb[0].mxu0
        %v1628 = vadd.f32 %v1553, %v1627
        %v1629 = vpop.f32.mrb[0].mxu0
        %1630 = vmatprep.mubr.f32.mxu0 0.0
        %1631 = vmatmul.mubr.f32.gmra.mrb[0].mxu0 %v1559
        %v1632 = vpop.f32.mrb[0].mxu0
        %v1633 = vadd.f32 %v1553, %v1632
        %v1634 = vpop.f32.mrb[0].mxu0
        %1635 = vdwg.mxu0
        %v1636 = vadd.f32 %v1447, %v1628
        %v1637 = vadd.f32 %v1448, %v1633
        %v1638 = vld [vmem:[%s4 + $0xf8] sm:$0x1]
        %v1639 = vld [vmem:[%s4 + $0x100] sm:$0x1]
        %v1640 = vsel %vm311, %v1636, 0.0
        %1641 = vadd.xlane.f32.xlu0 %v1640
        %v1642 = vpop.xlane.xlu0 %1641
        %v1643 = vsel %vm311, %v1637, 0.0
        %1644 = vadd.xlane.f32.xlu0 %v1643
        %v1645 = vpop.xlane.xlu0 %1644
        %v1646 = vmul.f32 %v1642, %v1416
        %v1647 = vmul.f32 %v1645, %v1416
        %v1648 = vsub.f32 %v1636, %v1646
        %v1649 = vsub.f32 %v1637, %v1647
        %v1650 = vmul.f32 %v1648, %v1648
        %v1651 = vmul.f32 %v1649, %v1649
        %v1652 = vsel %vm311, %v1650, 0.0
        %1653 = vadd.xlane.f32.xlu0 %v1652
        %v1654 = vpop.xlane.xlu0 %1653
        %v1655 = vsel %vm311, %v1651, 0.0
        %1656 = vadd.xlane.f32.xlu0 %v1655
        %v1657 = vpop.xlane.xlu0 %1656
        %v1658 = vmul.f32 %v1654, %v1416
        %v1659 = vmul.f32 %v1657, %v1416
        %v1660 = vadd.f32 %v1658, 1e-05
        %v1661 = vadd.f32 %v1659, 1e-05
        %v1662 = vrsqrt.pop %v1660
        %v1663 = vrsqrt.pop %v1661
        %v1664 = vmul.f32 %v1648, %v1662
        %v1665 = vmul.f32 %v1649, %v1663
        %v1666 = vlaneseq
        %v1667 = vshrl.u32 %v1666, 7
        %v1668 = vsub.s32 0, %v1667
        %v1669 = vrot.slane %v1638, %v1668
        %v1670 = vmul.f32 %v1664, %v1669
        %v1671 = vmul.f32 %v1665, %v1669
        %v1672 = vlaneseq
        %v1673 = vshrl.u32 %v1672, 7
        %v1674 = vsub.s32 0, %v1673
        %v1675 = vrot.slane %v1639, %v1674
        %v1676 = vadd.f32 %v1670, %v1675
        %v1677 = vadd.f32 %v1671, %v1675
        %v1678 = vadd.f32 %v1676, %v295
        %v1679 = vadd.f32 %v1677, %v296
        %v1680 = vld [vmem:[%s4 + $0x108] sm:$0xff]
        %v1681 = vld [vmem:[%s4 + $0x110] sm:$0xff]
        %v1682 = vld [vmem:[%s4 + $0x118] sm:$0xff]
        %v1683 = vld [vmem:[%s4 + $0x120] sm:$0xff]
        %v1684 = vld [vmem:[%s4 + $0x128] sm:$0x1]
        %v1685 = vlaneseq
        %v1686 = vshrl.u32 %v1685, 7
        %v1687 = vsub.s32 0, %v1686
        %v1688 = vrot.slane %v1684, %v1687
        %v1690 = vsel %vm311, %v1678, 0
        %v1693 = vsel %vm311, %v1679, 0
        %1695 = vmatprep.subr.mxu0 0.0
        %1696 = vmatpush1.msra.mxu0 %v1680
        %1697 = vmatprep.subr.mxu0 0.0
        %1698 = vmatpush1.msra.mxu0 %v1681
        %1699 = vmatprep.subr.mxu0 0.0
        %1700 = vmatpush1.msra.mxu0 %v1682
        %1701 = vmatprep.subr.mxu0 0.0
        %1702 = vmatpush1.msra.mxu0 %v1683
        %1703 = vmatprep.subr.mxu0 0.0
        %1704 = vmatpush1.msra.mxu0 0.0
        %1705 = vmatprep.subr.mxu0 0.0
        %1706 = vmatpush1.msra.mxu0 0.0
        %1707 = vmatprep.subr.mxu0 0.0
        %1708 = vmatpush1.msra.mxu0 0.0
        %1709 = vmatprep.subr.mxu0 0.0
        %1710 = vmatpush1.msra.mxu0 0.0
        %1711 = vmatprep.subr.mxu0 0.0
        %1712 = vmatpush1.msra.mxu0 0.0
        %1713 = vmatprep.subr.mxu0 0.0
        %1714 = vmatpush1.msra.mxu0 0.0
        %1715 = vmatprep.subr.mxu0 0.0
        %1716 = vmatpush1.msra.mxu0 0.0
        %1717 = vmatprep.subr.mxu0 0.0
        %1718 = vmatpush1.msra.mxu0 0.0
        %1719 = vmatprep.subr.mxu0 0.0
        %1720 = vmatpush1.msra.mxu0 0.0
        %1721 = vmatprep.subr.mxu0 0.0
        %1722 = vmatpush1.msra.mxu0 0.0
        %1723 = vmatprep.subr.mxu0 0.0
        %1724 = vmatpush1.msra.mxu0 0.0
        %1725 = vmatprep.subr.mxu0 0.0
        %1726 = vmatpush1.msra.mxu0 0.0
        %1727 = vmatprep.subr.mxu0 0.0
        %1728 = vmatpush1.msra.mxu0 0.0
        %1729 = vmatprep.subr.mxu0 0.0
        %1730 = vmatpush1.msra.mxu0 0.0
        %1731 = vmatprep.subr.mxu0 0.0
        %1732 = vmatpush1.msra.mxu0 0.0
        %1733 = vmatprep.subr.mxu0 0.0
        %1734 = vmatpush1.msra.mxu0 0.0
        %1735 = vmatprep.subr.mxu0 0.0
        %1736 = vmatpush1.msra.mxu0 0.0
        %1737 = vmatprep.subr.mxu0 0.0
        %1738 = vmatpush1.msra.mxu0 0.0
        %1739 = vmatprep.subr.mxu0 0.0
        %1740 = vmatpush1.msra.mxu0 0.0
        %1741 = vmatprep.subr.mxu0 0.0
        %1742 = vmatpush1.msra.mxu0 0.0
        %1743 = vmatprep.subr.mxu0 0.0
        %1744 = vmatpush1.msra.mxu0 0.0
        %1745 = vmatprep.subr.mxu0 0.0
        %1746 = vmatpush1.msra.mxu0 0.0
        %1747 = vmatprep.subr.mxu0 0.0
        %1748 = vmatpush1.msra.mxu0 0.0
        %1749 = vmatprep.subr.mxu0 0.0
        %1750 = vmatpush1.msra.mxu0 0.0
        %1751 = vmatprep.subr.mxu0 0.0
        %1752 = vmatpush1.msra.mxu0 0.0
        %1753 = vmatprep.subr.mxu0 0.0
        %1754 = vmatpush1.msra.mxu0 0.0
        %1755 = vmatprep.subr.mxu0 0.0
        %1756 = vmatpush1.msra.mxu0 0.0
        %1757 = vmatprep.subr.mxu0 0.0
        %1758 = vmatpush1.msra.mxu0 0.0
        %1759 = vmatprep.mubr.f32.mxu0 0.0
        %1760 = vmatmul.mubr.f32.gmra.mrb[0].mxu0 %v1690
        %v1761 = vpop.f32.mrb[0].mxu0
        %v1762 = vadd.f32 %v1688, %v1761
        %v1763 = vpop.f32.mrb[0].mxu0
        %1764 = vmatprep.mubr.f32.mxu0 0.0
        %1765 = vmatmul.mubr.f32.gmra.mrb[0].mxu0 %v1693
        %v1766 = vpop.f32.mrb[0].mxu0
        %v1767 = vadd.f32 %v1688, %v1766
        %v1768 = vpop.f32.mrb[0].mxu0
        %1769 = vdwg.mxu0
        %v1770 = vld [vmem:[%s4 + $0x130] sm:$0xff]
        %v1771 = vld [vmem:[%s4 + $0x138] sm:$0xff]
        %v1772 = vld [vmem:[%s4 + $0x140] sm:$0xff]
        %v1773 = vld [vmem:[%s4 + $0x148] sm:$0xff]
        %v1774 = vld [vmem:[%s4 + $0x150] sm:$0x1]
        %v1775 = vlaneseq
        %v1776 = vshrl.u32 %v1775, 7
        %v1777 = vsub.s32 0, %v1776
        %v1778 = vrot.slane %v1774, %v1777
        %v1780 = vsel %vm311, %v1676, 0
        %v1783 = vsel %vm311, %v1677, 0
        %1785 = vmatprep.subr.mxu0 0.0
        %1786 = vmatpush1.msra.mxu0 %v1770
        %1787 = vmatprep.subr.mxu0 0.0
        %1788 = vmatpush1.msra.mxu0 %v1771
        %1789 = vmatprep.subr.mxu0 0.0
        %1790 = vmatpush1.msra.mxu0 %v1772
        %1791 = vmatprep.subr.mxu0 0.0
        %1792 = vmatpush1.msra.mxu0 %v1773
        %1793 = vmatprep.subr.mxu0 0.0
        %1794 = vmatpush1.msra.mxu0 0.0
        %1795 = vmatprep.subr.mxu0 0.0
        %1796 = vmatpush1.msra.mxu0 0.0
        %1797 = vmatprep.subr.mxu0 0.0
        %1798 = vmatpush1.msra.mxu0 0.0
        %1799 = vmatprep.subr.mxu0 0.0
        %1800 = vmatpush1.msra.mxu0 0.0
        %1801 = vmatprep.subr.mxu0 0.0
        %1802 = vmatpush1.msra.mxu0 0.0
        %1803 = vmatprep.subr.mxu0 0.0
        %1804 = vmatpush1.msra.mxu0 0.0
        %1805 = vmatprep.subr.mxu0 0.0
        %1806 = vmatpush1.msra.mxu0 0.0
        %1807 = vmatprep.subr.mxu0 0.0
        %1808 = vmatpush1.msra.mxu0 0.0
        %1809 = vmatprep.subr.mxu0 0.0
        %1810 = vmatpush1.msra.mxu0 0.0
        %1811 = vmatprep.subr.mxu0 0.0
        %1812 = vmatpush1.msra.mxu0 0.0
        %1813 = vmatprep.subr.mxu0 0.0
        %1814 = vmatpush1.msra.mxu0 0.0
        %1815 = vmatprep.subr.mxu0 0.0
        %1816 = vmatpush1.msra.mxu0 0.0
        %1817 = vmatprep.subr.mxu0 0.0
        %1818 = vmatpush1.msra.mxu0 0.0
        %1819 = vmatprep.subr.mxu0 0.0
        %1820 = vmatpush1.msra.mxu0 0.0
        %1821 = vmatprep.subr.mxu0 0.0
        %1822 = vmatpush1.msra.mxu0 0.0
        %1823 = vmatprep.subr.mxu0 0.0
        %1824 = vmatpush1.msra.mxu0 0.0
        %1825 = vmatprep.subr.mxu0 0.0
        %1826 = vmatpush1.msra.mxu0 0.0
        %1827 = vmatprep.subr.mxu0 0.0
        %1828 = vmatpush1.msra.mxu0 0.0
        %1829 = vmatprep.subr.mxu0 0.0
        %1830 = vmatpush1.msra.mxu0 0.0
        %1831 = vmatprep.subr.mxu0 0.0
        %1832 = vmatpush1.msra.mxu0 0.0
        %1833 = vmatprep.subr.mxu0 0.0
        %1834 = vmatpush1.msra.mxu0 0.0
        %1835 = vmatprep.subr.mxu0 0.0
        %1836 = vmatpush1.msra.mxu0 0.0
        %1837 = vmatprep.subr.mxu0 0.0
        %1838 = vmatpush1.msra.mxu0 0.0
        %1839 = vmatprep.subr.mxu0 0.0
        %1840 = vmatpush1.msra.mxu0 0.0
        %1841 = vmatprep.subr.mxu0 0.0
        %1842 = vmatpush1.msra.mxu0 0.0
        %1843 = vmatprep.subr.mxu0 0.0
        %1844 = vmatpush1.msra.mxu0 0.0
        %1845 = vmatprep.subr.mxu0 0.0
        %1846 = vmatpush1.msra.mxu0 0.0
        %1847 = vmatprep.subr.mxu0 0.0
        %1848 = vmatpush1.msra.mxu0 0.0
        %1849 = vmatprep.mubr.f32.mxu0 0.0
        %1850 = vmatmul.mubr.f32.gmra.mrb[0].mxu0 %v1780
        %v1851 = vpop.f32.mrb[0].mxu0
        %v1852 = vadd.f32 %v1778, %v1851
        %v1853 = vpop.f32.mrb[0].mxu0
        %1854 = vmatprep.mubr.f32.mxu0 0.0
        %1855 = vmatmul.mubr.f32.gmra.mrb[0].mxu0 %v1783
        %v1856 = vpop.f32.mrb[0].mxu0
        %v1857 = vadd.f32 %v1778, %v1856
        %v1858 = vpop.f32.mrb[0].mxu0
        %1859 = vdwg.mxu0
        %1862 = vrot.lane.b32.xlu0 %v1762, 96
        %v1863 = vpop.permute.xlu0 %1862
        %1864 = vrot.lane.b32.xlu0 %v1767, 96
        %v1865 = vpop.permute.xlu0 %1864
        %v1866 = vsel %vm495, %v1762, 0
        %v1868 = vsel %vm495, %v1767, 0
        %v1870 = vsel %vm495, %v1863, 0
        %v1872 = vsel %vm495, %v1865, 0
        %1874 = vmatprep.subr.mxu0 0.0
        %1875 = vmatpush1.xpose.msra.mxu0 %v1870
        %1876 = vmatprep.subr.mxu0 0.0
        %1877 = vmatpush1.xpose.msra.mxu0 %v1872
        %1878 = vmatprep.subr.mxu0 0.0
        %1879 = vmatpush1.xpose.msra.mxu0 0.0
        %1880 = vmatprep.subr.mxu0 0.0
        %1881 = vmatpush1.xpose.msra.mxu0 0.0
        %1882 = vmatprep.subr.mxu0 0.0
        %1883 = vmatpush1.xpose.msra.mxu0 0.0
        %1884 = vmatprep.subr.mxu0 0.0
        %1885 = vmatpush1.xpose.msra.mxu0 0.0
        %1886 = vmatprep.subr.mxu0 0.0
        %1887 = vmatpush1.xpose.msra.mxu0 0.0
        %1888 = vmatprep.subr.mxu0 0.0
        %1889 = vmatpush1.xpose.msra.mxu0 0.0
        %1890 = vmatprep.subr.mxu0 0.0
        %1891 = vmatpush1.xpose.msra.mxu0 0.0
        %1892 = vmatprep.subr.mxu0 0.0
        %1893 = vmatpush1.xpose.msra.mxu0 0.0
        %1894 = vmatprep.subr.mxu0 0.0
        %1895 = vmatpush1.xpose.msra.mxu0 0.0
        %1896 = vmatprep.subr.mxu0 0.0
        %1897 = vmatpush1.xpose.msra.mxu0 0.0
        %1898 = vmatprep.subr.mxu0 0.0
        %1899 = vmatpush1.xpose.msra.mxu0 0.0
        %1900 = vmatprep.subr.mxu0 0.0
        %1901 = vmatpush1.xpose.msra.mxu0 0.0
        %1902 = vmatprep.subr.mxu0 0.0
        %1903 = vmatpush1.xpose.msra.mxu0 0.0
        %1904 = vmatprep.subr.mxu0 0.0
        %1905 = vmatpush1.xpose.msra.mxu0 0.0
        %1906 = vmatprep.subr.mxu0 0.0
        %1907 = vmatpush1.xpose.msra.mxu0 0.0
        %1908 = vmatprep.subr.mxu0 0.0
        %1909 = vmatpush1.xpose.msra.mxu0 0.0
        %1910 = vmatprep.subr.mxu0 0.0
        %1911 = vmatpush1.xpose.msra.mxu0 0.0
        %1912 = vmatprep.subr.mxu0 0.0
        %1913 = vmatpush1.xpose.msra.mxu0 0.0
        %1914 = vmatprep.subr.mxu0 0.0
        %1915 = vmatpush1.xpose.msra.mxu0 0.0
        %1916 = vmatprep.subr.mxu0 0.0
        %1917 = vmatpush1.xpose.msra.mxu0 0.0
        %1918 = vmatprep.subr.mxu0 0.0
        %1919 = vmatpush1.xpose.msra.mxu0 0.0
        %1920 = vmatprep.subr.mxu0 0.0
        %1921 = vmatpush1.xpose.msra.mxu0 0.0
        %1922 = vmatprep.subr.mxu0 0.0
        %1923 = vmatpush1.xpose.msra.mxu0 0.0
        %1924 = vmatprep.subr.mxu0 0.0
        %1925 = vmatpush1.xpose.msra.mxu0 0.0
        %1926 = vmatprep.subr.mxu0 0.0
        %1927 = vmatpush1.xpose.msra.mxu0 0.0
        %1928 = vmatprep.subr.mxu0 0.0
        %1929 = vmatpush1.xpose.msra.mxu0 0.0
        %1930 = vmatprep.subr.mxu0 0.0
        %1931 = vmatpush1.xpose.msra.mxu0 0.0
        %1932 = vmatprep.subr.mxu0 0.0
        %1933 = vmatpush1.xpose.msra.mxu0 0.0
        %1934 = vmatprep.subr.mxu0 0.0
        %1935 = vmatpush1.xpose.msra.mxu0 0.0
        %1936 = vmatprep.subr.mxu0 0.0
        %1937 = vmatpush1.xpose.msra.mxu0 0.0
        %1938 = vmatprep.mubr.f32.mxu0 0.0
        %1939 = vmatmul.mubr.f32.gmra.mrb[0].mxu0 %v1866
        %v1940 = vpop.f32.mrb[0].mxu0
        %v1941 = vadd.f32 %v487, %v1940
        %v1942 = vpop.f32.mrb[0].mxu0
        %1943 = vmatprep.mubr.f32.mxu0 0.0
        %1944 = vmatmul.mubr.f32.gmra.mrb[0].mxu0 %v1868
        %v1945 = vpop.f32.mrb[0].mxu0
        %v1946 = vadd.f32 %v487, %v1945
        %v1947 = vpop.f32.mrb[0].mxu0
        %1948 = vdwg.mxu0
        %v1949 = vsel %vm579, %v1941, -inf
        %1950 = vmax.xlane.f32.xlu0 %v1949
        %v1951 = vpop.xlane.xlu0 %1950
        %v1952 = vsel %vm579, %v1946, -inf
        %1953 = vmax.xlane.f32.xlu0 %v1952
        %v1954 = vpop.xlane.xlu0 %1953
        %v1955 = vsub.f32 %v1941, %v1951
        %v1956 = vsub.f32 %v1946, %v1954
        %v1957 = vmul.f32 %v1955, 1.442695
        %v1958 = vpow.pop %v1957
        %v1959 = vmul.f32 %v1956, 1.442695
        %v1960 = vpow.pop %v1959
        %v1961 = vsel %vm579, %v1958, 0.0
        %1962 = vadd.xlane.f32.xlu0 %v1961
        %v1963 = vpop.xlane.xlu0 %1962
        %v1964 = vsel %vm579, %v1960, 0.0
        %1965 = vadd.xlane.f32.xlu0 %v1964
        %v1966 = vpop.xlane.xlu0 %1965
        %v1967 = vrcp.pop %v1963
        %v1968 = vrcp.pop %v1966
        %v1969 = vmul.f32 %v1958, %v1967
        %v1970 = vmul.f32 %v1960, %v1968
        %v1972 = vsel %vm579, %v1969, 0
        %v1975 = vsel %vm579, %v1970, 0
        %1977 = vmatprep.subr.mxu0 0.0
        %1978 = vmatpush1.msra.mxu0 %v1852
        %1979 = vmatprep.subr.mxu0 0.0
        %1980 = vmatpush1.msra.mxu0 %v1857
        %1981 = vmatprep.subr.mxu0 0.0
        %1982 = vmatpush1.msra.mxu0 0.0
        %1983 = vmatprep.subr.mxu0 0.0
        %1984 = vmatpush1.msra.mxu0 0.0
        %1985 = vmatprep.subr.mxu0 0.0
        %1986 = vmatpush1.msra.mxu0 0.0
        %1987 = vmatprep.subr.mxu0 0.0
        %1988 = vmatpush1.msra.mxu0 0.0
        %1989 = vmatprep.subr.mxu0 0.0
        %1990 = vmatpush1.msra.mxu0 0.0
        %1991 = vmatprep.subr.mxu0 0.0
        %1992 = vmatpush1.msra.mxu0 0.0
        %1993 = vmatprep.subr.mxu0 0.0
        %1994 = vmatpush1.msra.mxu0 0.0
        %1995 = vmatprep.subr.mxu0 0.0
        %1996 = vmatpush1.msra.mxu0 0.0
        %1997 = vmatprep.subr.mxu0 0.0
        %1998 = vmatpush1.msra.mxu0 0.0
        %1999 = vmatprep.subr.mxu0 0.0
        %2000 = vmatpush1.msra.mxu0 0.0
        %2001 = vmatprep.subr.mxu0 0.0
        %2002 = vmatpush1.msra.mxu0 0.0
        %2003 = vmatprep.subr.mxu0 0.0
        %2004 = vmatpush1.msra.mxu0 0.0
        %2005 = vmatprep.subr.mxu0 0.0
        %2006 = vmatpush1.msra.mxu0 0.0
        %2007 = vmatprep.subr.mxu0 0.0
        %2008 = vmatpush1.msra.mxu0 0.0
        %2009 = vmatprep.subr.mxu0 0.0
        %2010 = vmatpush1.msra.mxu0 0.0
        %2011 = vmatprep.subr.mxu0 0.0
        %2012 = vmatpush1.msra.mxu0 0.0
        %2013 = vmatprep.subr.mxu0 0.0
        %2014 = vmatpush1.msra.mxu0 0.0
        %2015 = vmatprep.subr.mxu0 0.0
        %2016 = vmatpush1.msra.mxu0 0.0
        %2017 = vmatprep.subr.mxu0 0.0
        %2018 = vmatpush1.msra.mxu0 0.0
        %2019 = vmatprep.subr.mxu0 0.0
        %2020 = vmatpush1.msra.mxu0 0.0
        %2021 = vmatprep.subr.mxu0 0.0
        %2022 = vmatpush1.msra.mxu0 0.0
        %2023 = vmatprep.subr.mxu0 0.0
        %2024 = vmatpush1.msra.mxu0 0.0
        %2025 = vmatprep.subr.mxu0 0.0
        %2026 = vmatpush1.msra.mxu0 0.0
        %2027 = vmatprep.subr.mxu0 0.0
        %2028 = vmatpush1.msra.mxu0 0.0
        %2029 = vmatprep.subr.mxu0 0.0
        %2030 = vmatpush1.msra.mxu0 0.0
        %2031 = vmatprep.subr.mxu0 0.0
        %2032 = vmatpush1.msra.mxu0 0.0
        %2033 = vmatprep.subr.mxu0 0.0
        %2034 = vmatpush1.msra.mxu0 0.0
        %2035 = vmatprep.subr.mxu0 0.0
        %2036 = vmatpush1.msra.mxu0 0.0
        %2037 = vmatprep.subr.mxu0 0.0
        %2038 = vmatpush1.msra.mxu0 0.0
        %2039 = vmatprep.subr.mxu0 0.0
        %2040 = vmatpush1.msra.mxu0 0.0
        %2041 = vmatprep.mubr.f32.mxu0 0.0
        %2042 = vmatmul.mubr.f32.gmra.mrb[0].mxu0 %v1972
        %v2043 = vpop.f32.mrb[0].mxu0
        %v2044 = vadd.f32 0.0, %v2043
        %v2045 = vpop.f32.mrb[0].mxu0
        %2046 = vmatprep.mubr.f32.mxu0 0.0
        %2047 = vmatmul.mubr.f32.gmra.mrb[0].mxu0 %v1975
        %v2048 = vpop.f32.mrb[0].mxu0
        %v2049 = vadd.f32 0.0, %v2048
        %v2050 = vpop.f32.mrb[0].mxu0
        %2051 = vdwg.mxu0
        %2052 = vrot.lane.b32.xlu0 %v1762, 120
        %v2053 = vpop.permute.xlu0 %2052
        %2054 = vrot.lane.b32.xlu0 %v1767, 120
        %v2055 = vpop.permute.xlu0 %2054
        %2056 = vrot.lane.b32.xlu0 %v1762, 88
        %v2057 = vpop.permute.xlu0 %2056
        %2058 = vrot.lane.b32.xlu0 %v1767, 88
        %v2059 = vpop.permute.xlu0 %2058
        %v2060 = vsel %vm495, %v2053, 0
        %v2062 = vsel %vm495, %v2055, 0
        %v2064 = vsel %vm495, %v2057, 0
        %v2066 = vsel %vm495, %v2059, 0
        %2068 = vmatprep.subr.mxu0 0.0
        %2069 = vmatpush1.xpose.msra.mxu0 %v2064
        %2070 = vmatprep.subr.mxu0 0.0
        %2071 = vmatpush1.xpose.msra.mxu0 %v2066
        %2072 = vmatprep.subr.mxu0 0.0
        %2073 = vmatpush1.xpose.msra.mxu0 0.0
        %2074 = vmatprep.subr.mxu0 0.0
        %2075 = vmatpush1.xpose.msra.mxu0 0.0
        %2076 = vmatprep.subr.mxu0 0.0
        %2077 = vmatpush1.xpose.msra.mxu0 0.0
        %2078 = vmatprep.subr.mxu0 0.0
        %2079 = vmatpush1.xpose.msra.mxu0 0.0
        %2080 = vmatprep.subr.mxu0 0.0
        %2081 = vmatpush1.xpose.msra.mxu0 0.0
        %2082 = vmatprep.subr.mxu0 0.0
        %2083 = vmatpush1.xpose.msra.mxu0 0.0
        %2084 = vmatprep.subr.mxu0 0.0
        %2085 = vmatpush1.xpose.msra.mxu0 0.0
        %2086 = vmatprep.subr.mxu0 0.0
        %2087 = vmatpush1.xpose.msra.mxu0 0.0
        %2088 = vmatprep.subr.mxu0 0.0
        %2089 = vmatpush1.xpose.msra.mxu0 0.0
        %2090 = vmatprep.subr.mxu0 0.0
        %2091 = vmatpush1.xpose.msra.mxu0 0.0
        %2092 = vmatprep.subr.mxu0 0.0
        %2093 = vmatpush1.xpose.msra.mxu0 0.0
        %2094 = vmatprep.subr.mxu0 0.0
        %2095 = vmatpush1.xpose.msra.mxu0 0.0
        %2096 = vmatprep.subr.mxu0 0.0
        %2097 = vmatpush1.xpose.msra.mxu0 0.0
        %2098 = vmatprep.subr.mxu0 0.0
        %2099 = vmatpush1.xpose.msra.mxu0 0.0
        %2100 = vmatprep.subr.mxu0 0.0
        %2101 = vmatpush1.xpose.msra.mxu0 0.0
        %2102 = vmatprep.subr.mxu0 0.0
        %2103 = vmatpush1.xpose.msra.mxu0 0.0
        %2104 = vmatprep.subr.mxu0 0.0
        %2105 = vmatpush1.xpose.msra.mxu0 0.0
        %2106 = vmatprep.subr.mxu0 0.0
        %2107 = vmatpush1.xpose.msra.mxu0 0.0
        %2108 = vmatprep.subr.mxu0 0.0
        %2109 = vmatpush1.xpose.msra.mxu0 0.0
        %2110 = vmatprep.subr.mxu0 0.0
        %2111 = vmatpush1.xpose.msra.mxu0 0.0
        %2112 = vmatprep.subr.mxu0 0.0
        %2113 = vmatpush1.xpose.msra.mxu0 0.0
        %2114 = vmatprep.subr.mxu0 0.0
        %2115 = vmatpush1.xpose.msra.mxu0 0.0
        %2116 = vmatprep.subr.mxu0 0.0
        %2117 = vmatpush1.xpose.msra.mxu0 0.0
        %2118 = vmatprep.subr.mxu0 0.0
        %2119 = vmatpush1.xpose.msra.mxu0 0.0
        %2120 = vmatprep.subr.mxu0 0.0
        %2121 = vmatpush1.xpose.msra.mxu0 0.0
        %2122 = vmatprep.subr.mxu0 0.0
        %2123 = vmatpush1.xpose.msra.mxu0 0.0
        %2124 = vmatprep.subr.mxu0 0.0
        %2125 = vmatpush1.xpose.msra.mxu0 0.0
        %2126 = vmatprep.subr.mxu0 0.0
        %2127 = vmatpush1.xpose.msra.mxu0 0.0
        %2128 = vmatprep.subr.mxu0 0.0
        %2129 = vmatpush1.xpose.msra.mxu0 0.0
        %2130 = vmatprep.subr.mxu0 0.0
        %2131 = vmatpush1.xpose.msra.mxu0 0.0
        %2132 = vmatprep.mubr.f32.mxu0 0.0
        %2133 = vmatmul.mubr.f32.gmra.mrb[0].mxu0 %v2060
        %v2134 = vpop.f32.mrb[0].mxu0
        %v2135 = vadd.f32 %v487, %v2134
        %v2136 = vpop.f32.mrb[0].mxu0
        %2137 = vmatprep.mubr.f32.mxu0 0.0
        %2138 = vmatmul.mubr.f32.gmra.mrb[0].mxu0 %v2062
        %v2139 = vpop.f32.mrb[0].mxu0
        %v2140 = vadd.f32 %v487, %v2139
        %v2141 = vpop.f32.mrb[0].mxu0
        %2142 = vdwg.mxu0
        %v2143 = vsel %vm579, %v2135, -inf
        %2144 = vmax.xlane.f32.xlu0 %v2143
        %v2145 = vpop.xlane.xlu0 %2144
        %v2146 = vsel %vm579, %v2140, -inf
        %2147 = vmax.xlane.f32.xlu0 %v2146
        %v2148 = vpop.xlane.xlu0 %2147
        %v2149 = vsub.f32 %v2135, %v2145
        %v2150 = vsub.f32 %v2140, %v2148
        %v2151 = vmul.f32 %v2149, 1.442695
        %v2152 = vpow.pop %v2151
        %v2153 = vmul.f32 %v2150, 1.442695
        %v2154 = vpow.pop %v2153
        %v2155 = vsel %vm579, %v2152, 0.0
        %2156 = vadd.xlane.f32.xlu0 %v2155
        %v2157 = vpop.xlane.xlu0 %2156
        %v2158 = vsel %vm579, %v2154, 0.0
        %2159 = vadd.xlane.f32.xlu0 %v2158
        %v2160 = vpop.xlane.xlu0 %2159
        %v2161 = vrcp.pop %v2157
        %v2162 = vrcp.pop %v2160
        %v2163 = vmul.f32 %v2152, %v2161
        %v2164 = vmul.f32 %v2154, %v2162
        %2167 = vrot.lane.b32.xlu0 %v1852, 120
        %v2168 = vpop.permute.xlu0 %2167
        %2169 = vrot.lane.b32.xlu0 %v1857, 120
        %v2170 = vpop.permute.xlu0 %2169
        %v2174 = vsel %vm579, %v2163, 0
        %v2177 = vsel %vm579, %v2164, 0
        %2179 = vmatprep.subr.mxu0 0.0
        %2180 = vmatpush1.msra.mxu0 %v2168
        %2181 = vmatprep.subr.mxu0 0.0
        %2182 = vmatpush1.msra.mxu0 %v2170
        %2183 = vmatprep.subr.mxu0 0.0
        %2184 = vmatpush1.msra.mxu0 0.0
        %2185 = vmatprep.subr.mxu0 0.0
        %2186 = vmatpush1.msra.mxu0 0.0
        %2187 = vmatprep.subr.mxu0 0.0
        %2188 = vmatpush1.msra.mxu0 0.0
        %2189 = vmatprep.subr.mxu0 0.0
        %2190 = vmatpush1.msra.mxu0 0.0
        %2191 = vmatprep.subr.mxu0 0.0
        %2192 = vmatpush1.msra.mxu0 0.0
        %2193 = vmatprep.subr.mxu0 0.0
        %2194 = vmatpush1.msra.mxu0 0.0
        %2195 = vmatprep.subr.mxu0 0.0
        %2196 = vmatpush1.msra.mxu0 0.0
        %2197 = vmatprep.subr.mxu0 0.0
        %2198 = vmatpush1.msra.mxu0 0.0
        %2199 = vmatprep.subr.mxu0 0.0
        %2200 = vmatpush1.msra.mxu0 0.0
        %2201 = vmatprep.subr.mxu0 0.0
        %2202 = vmatpush1.msra.mxu0 0.0
        %2203 = vmatprep.subr.mxu0 0.0
        %2204 = vmatpush1.msra.mxu0 0.0
        %2205 = vmatprep.subr.mxu0 0.0
        %2206 = vmatpush1.msra.mxu0 0.0
        %2207 = vmatprep.subr.mxu0 0.0
        %2208 = vmatpush1.msra.mxu0 0.0
        %2209 = vmatprep.subr.mxu0 0.0
        %2210 = vmatpush1.msra.mxu0 0.0
        %2211 = vmatprep.subr.mxu0 0.0
        %2212 = vmatpush1.msra.mxu0 0.0
        %2213 = vmatprep.subr.mxu0 0.0
        %2214 = vmatpush1.msra.mxu0 0.0
        %2215 = vmatprep.subr.mxu0 0.0
        %2216 = vmatpush1.msra.mxu0 0.0
        %2217 = vmatprep.subr.mxu0 0.0
        %2218 = vmatpush1.msra.mxu0 0.0
        %2219 = vmatprep.subr.mxu0 0.0
        %2220 = vmatpush1.msra.mxu0 0.0
        %2221 = vmatprep.subr.mxu0 0.0
        %2222 = vmatpush1.msra.mxu0 0.0
        %2223 = vmatprep.subr.mxu0 0.0
        %2224 = vmatpush1.msra.mxu0 0.0
        %2225 = vmatprep.subr.mxu0 0.0
        %2226 = vmatpush1.msra.mxu0 0.0
        %2227 = vmatprep.subr.mxu0 0.0
        %2228 = vmatpush1.msra.mxu0 0.0
        %2229 = vmatprep.subr.mxu0 0.0
        %2230 = vmatpush1.msra.mxu0 0.0
        %2231 = vmatprep.subr.mxu0 0.0
        %2232 = vmatpush1.msra.mxu0 0.0
        %2233 = vmatprep.subr.mxu0 0.0
        %2234 = vmatpush1.msra.mxu0 0.0
        %2235 = vmatprep.subr.mxu0 0.0
        %2236 = vmatpush1.msra.mxu0 0.0
        %2237 = vmatprep.subr.mxu0 0.0
        %2238 = vmatpush1.msra.mxu0 0.0
        %2239 = vmatprep.subr.mxu0 0.0
        %2240 = vmatpush1.msra.mxu0 0.0
        %2241 = vmatprep.subr.mxu0 0.0
        %2242 = vmatpush1.msra.mxu0 0.0
        %2243 = vmatprep.mubr.f32.mxu0 0.0
        %2244 = vmatmul.mubr.f32.gmra.mrb[0].mxu0 %v2174
        %v2245 = vpop.f32.mrb[0].mxu0
        %v2246 = vadd.f32 0.0, %v2245
        %v2247 = vpop.f32.mrb[0].mxu0
        %2248 = vmatprep.mubr.f32.mxu0 0.0
        %2249 = vmatmul.mubr.f32.gmra.mrb[0].mxu0 %v2177
        %v2250 = vpop.f32.mrb[0].mxu0
        %v2251 = vadd.f32 0.0, %v2250
        %v2252 = vpop.f32.mrb[0].mxu0
        %2253 = vdwg.mxu0
        %2254 = vrot.lane.b32.xlu0 %v1762, 112
        %v2255 = vpop.permute.xlu0 %2254
        %2256 = vrot.lane.b32.xlu0 %v1767, 112
        %v2257 = vpop.permute.xlu0 %2256
        %2258 = vrot.lane.b32.xlu0 %v1762, 80
        %v2259 = vpop.permute.xlu0 %2258
        %2260 = vrot.lane.b32.xlu0 %v1767, 80
        %v2261 = vpop.permute.xlu0 %2260
        %v2262 = vsel %vm495, %v2255, 0
        %v2264 = vsel %vm495, %v2257, 0
        %v2266 = vsel %vm495, %v2259, 0
        %v2268 = vsel %vm495, %v2261, 0
        %2270 = vmatprep.subr.mxu0 0.0
        %2271 = vmatpush1.xpose.msra.mxu0 %v2266
        %2272 = vmatprep.subr.mxu0 0.0
        %2273 = vmatpush1.xpose.msra.mxu0 %v2268
        %2274 = vmatprep.subr.mxu0 0.0
        %2275 = vmatpush1.xpose.msra.mxu0 0.0
        %2276 = vmatprep.subr.mxu0 0.0
        %2277 = vmatpush1.xpose.msra.mxu0 0.0
        %2278 = vmatprep.subr.mxu0 0.0
        %2279 = vmatpush1.xpose.msra.mxu0 0.0
        %2280 = vmatprep.subr.mxu0 0.0
        %2281 = vmatpush1.xpose.msra.mxu0 0.0
        %2282 = vmatprep.subr.mxu0 0.0
        %2283 = vmatpush1.xpose.msra.mxu0 0.0
        %2284 = vmatprep.subr.mxu0 0.0
        %2285 = vmatpush1.xpose.msra.mxu0 0.0
        %2286 = vmatprep.subr.mxu0 0.0
        %2287 = vmatpush1.xpose.msra.mxu0 0.0
        %2288 = vmatprep.subr.mxu0 0.0
        %2289 = vmatpush1.xpose.msra.mxu0 0.0
        %2290 = vmatprep.subr.mxu0 0.0
        %2291 = vmatpush1.xpose.msra.mxu0 0.0
        %2292 = vmatprep.subr.mxu0 0.0
        %2293 = vmatpush1.xpose.msra.mxu0 0.0
        %2294 = vmatprep.subr.mxu0 0.0
        %2295 = vmatpush1.xpose.msra.mxu0 0.0
        %2296 = vmatprep.subr.mxu0 0.0
        %2297 = vmatpush1.xpose.msra.mxu0 0.0
        %2298 = vmatprep.subr.mxu0 0.0
        %2299 = vmatpush1.xpose.msra.mxu0 0.0
        %2300 = vmatprep.subr.mxu0 0.0
        %2301 = vmatpush1.xpose.msra.mxu0 0.0
        %2302 = vmatprep.subr.mxu0 0.0
        %2303 = vmatpush1.xpose.msra.mxu0 0.0
        %2304 = vmatprep.subr.mxu0 0.0
        %2305 = vmatpush1.xpose.msra.mxu0 0.0
        %2306 = vmatprep.subr.mxu0 0.0
        %2307 = vmatpush1.xpose.msra.mxu0 0.0
        %2308 = vmatprep.subr.mxu0 0.0
        %2309 = vmatpush1.xpose.msra.mxu0 0.0
        %2310 = vmatprep.subr.mxu0 0.0
        %2311 = vmatpush1.xpose.msra.mxu0 0.0
        %2312 = vmatprep.subr.mxu0 0.0
        %2313 = vmatpush1.xpose.msra.mxu0 0.0
        %2314 = vmatprep.subr.mxu0 0.0
        %2315 = vmatpush1.xpose.msra.mxu0 0.0
        %2316 = vmatprep.subr.mxu0 0.0
        %2317 = vmatpush1.xpose.msra.mxu0 0.0
        %2318 = vmatprep.subr.mxu0 0.0
        %2319 = vmatpush1.xpose.msra.mxu0 0.0
        %2320 = vmatprep.subr.mxu0 0.0
        %2321 = vmatpush1.xpose.msra.mxu0 0.0
        %2322 = vmatprep.subr.mxu0 0.0
        %2323 = vmatpush1.xpose.msra.mxu0 0.0
        %2324 = vmatprep.subr.mxu0 0.0
        %2325 = vmatpush1.xpose.msra.mxu0 0.0
        %2326 = vmatprep.subr.mxu0 0.0
        %2327 = vmatpush1.xpose.msra.mxu0 0.0
        %2328 = vmatprep.subr.mxu0 0.0
        %2329 = vmatpush1.xpose.msra.mxu0 0.0
        %2330 = vmatprep.subr.mxu0 0.0
        %2331 = vmatpush1.xpose.msra.mxu0 0.0
        %2332 = vmatprep.subr.mxu0 0.0
        %2333 = vmatpush1.xpose.msra.mxu0 0.0
        %2334 = vmatprep.mubr.f32.mxu0 0.0
        %2335 = vmatmul.mubr.f32.gmra.mrb[0].mxu0 %v2262
        %v2336 = vpop.f32.mrb[0].mxu0
        %v2337 = vadd.f32 %v487, %v2336
        %v2338 = vpop.f32.mrb[0].mxu0
        %2339 = vmatprep.mubr.f32.mxu0 0.0
        %2340 = vmatmul.mubr.f32.gmra.mrb[0].mxu0 %v2264
        %v2341 = vpop.f32.mrb[0].mxu0
        %v2342 = vadd.f32 %v487, %v2341
        %v2343 = vpop.f32.mrb[0].mxu0
        %2344 = vdwg.mxu0
        %v2345 = vsel %vm579, %v2337, -inf
        %2346 = vmax.xlane.f32.xlu0 %v2345
        %v2347 = vpop.xlane.xlu0 %2346
        %v2348 = vsel %vm579, %v2342, -inf
        %2349 = vmax.xlane.f32.xlu0 %v2348
        %v2350 = vpop.xlane.xlu0 %2349
        %v2351 = vsub.f32 %v2337, %v2347
        %v2352 = vsub.f32 %v2342, %v2350
        %v2353 = vmul.f32 %v2351, 1.442695
        %v2354 = vpow.pop %v2353
        %v2355 = vmul.f32 %v2352, 1.442695
        %v2356 = vpow.pop %v2355
        %v2357 = vsel %vm579, %v2354, 0.0
        %2358 = vadd.xlane.f32.xlu0 %v2357
        %v2359 = vpop.xlane.xlu0 %2358
        %v2360 = vsel %vm579, %v2356, 0.0
        %2361 = vadd.xlane.f32.xlu0 %v2360
        %v2362 = vpop.xlane.xlu0 %2361
        %v2363 = vrcp.pop %v2359
        %v2364 = vrcp.pop %v2362
        %v2365 = vmul.f32 %v2354, %v2363
        %v2366 = vmul.f32 %v2356, %v2364
        %2367 = vrot.lane.b32.xlu0 %v1852, 112
        %v2368 = vpop.permute.xlu0 %2367
        %2369 = vrot.lane.b32.xlu0 %v1857, 112
        %v2370 = vpop.permute.xlu0 %2369
        %v2374 = vsel %vm579, %v2365, 0
        %v2377 = vsel %vm579, %v2366, 0
        %2379 = vmatprep.subr.mxu0 0.0
        %2380 = vmatpush1.msra.mxu0 %v2368
        %2381 = vmatprep.subr.mxu0 0.0
        %2382 = vmatpush1.msra.mxu0 %v2370
        %2383 = vmatprep.subr.mxu0 0.0
        %2384 = vmatpush1.msra.mxu0 0.0
        %2385 = vmatprep.subr.mxu0 0.0
        %2386 = vmatpush1.msra.mxu0 0.0
        %2387 = vmatprep.subr.mxu0 0.0
        %2388 = vmatpush1.msra.mxu0 0.0
        %2389 = vmatprep.subr.mxu0 0.0
        %2390 = vmatpush1.msra.mxu0 0.0
        %2391 = vmatprep.subr.mxu0 0.0
        %2392 = vmatpush1.msra.mxu0 0.0
        %2393 = vmatprep.subr.mxu0 0.0
        %2394 = vmatpush1.msra.mxu0 0.0
        %2395 = vmatprep.subr.mxu0 0.0
        %2396 = vmatpush1.msra.mxu0 0.0
        %2397 = vmatprep.subr.mxu0 0.0
        %2398 = vmatpush1.msra.mxu0 0.0
        %2399 = vmatprep.subr.mxu0 0.0
        %2400 = vmatpush1.msra.mxu0 0.0
        %2401 = vmatprep.subr.mxu0 0.0
        %2402 = vmatpush1.msra.mxu0 0.0
        %2403 = vmatprep.subr.mxu0 0.0
        %2404 = vmatpush1.msra.mxu0 0.0
        %2405 = vmatprep.subr.mxu0 0.0
        %2406 = vmatpush1.msra.mxu0 0.0
        %2407 = vmatprep.subr.mxu0 0.0
        %2408 = vmatpush1.msra.mxu0 0.0
        %2409 = vmatprep.subr.mxu0 0.0
        %2410 = vmatpush1.msra.mxu0 0.0
        %2411 = vmatprep.subr.mxu0 0.0
        %2412 = vmatpush1.msra.mxu0 0.0
        %2413 = vmatprep.subr.mxu0 0.0
        %2414 = vmatpush1.msra.mxu0 0.0
        %2415 = vmatprep.subr.mxu0 0.0
        %2416 = vmatpush1.msra.mxu0 0.0
        %2417 = vmatprep.subr.mxu0 0.0
        %2418 = vmatpush1.msra.mxu0 0.0
        %2419 = vmatprep.subr.mxu0 0.0
        %2420 = vmatpush1.msra.mxu0 0.0
        %2421 = vmatprep.subr.mxu0 0.0
        %2422 = vmatpush1.msra.mxu0 0.0
        %2423 = vmatprep.subr.mxu0 0.0
        %2424 = vmatpush1.msra.mxu0 0.0
        %2425 = vmatprep.subr.mxu0 0.0
        %2426 = vmatpush1.msra.mxu0 0.0
        %2427 = vmatprep.subr.mxu0 0.0
        %2428 = vmatpush1.msra.mxu0 0.0
        %2429 = vmatprep.subr.mxu0 0.0
        %2430 = vmatpush1.msra.mxu0 0.0
        %2431 = vmatprep.subr.mxu0 0.0
        %2432 = vmatpush1.msra.mxu0 0.0
        %2433 = vmatprep.subr.mxu0 0.0
        %2434 = vmatpush1.msra.mxu0 0.0
        %2435 = vmatprep.subr.mxu0 0.0
        %2436 = vmatpush1.msra.mxu0 0.0
        %2437 = vmatprep.subr.mxu0 0.0
        %2438 = vmatpush1.msra.mxu0 0.0
        %2439 = vmatprep.subr.mxu0 0.0
        %2440 = vmatpush1.msra.mxu0 0.0
        %2441 = vmatprep.subr.mxu0 0.0
        %2442 = vmatpush1.msra.mxu0 0.0
        %2443 = vmatprep.mubr.f32.mxu0 0.0
        %2444 = vmatmul.mubr.f32.gmra.mrb[0].mxu0 %v2374
        %v2445 = vpop.f32.mrb[0].mxu0
        %v2446 = vadd.f32 0.0, %v2445
        %v2447 = vpop.f32.mrb[0].mxu0
        %2448 = vmatprep.mubr.f32.mxu0 0.0
        %2449 = vmatmul.mubr.f32.gmra.mrb[0].mxu0 %v2377
        %v2450 = vpop.f32.mrb[0].mxu0
        %v2451 = vadd.f32 0.0, %v2450
        %v2452 = vpop.f32.mrb[0].mxu0
        %2453 = vdwg.mxu0
        %2454 = vrot.lane.b32.xlu0 %v1762, 104
        %v2455 = vpop.permute.xlu0 %2454
        %2456 = vrot.lane.b32.xlu0 %v1767, 104
        %v2457 = vpop.permute.xlu0 %2456
        %2458 = vrot.lane.b32.xlu0 %v1762, 72
        %v2459 = vpop.permute.xlu0 %2458
        %2460 = vrot.lane.b32.xlu0 %v1767, 72
        %v2461 = vpop.permute.xlu0 %2460
        %v2462 = vsel %vm495, %v2455, 0
        %v2464 = vsel %vm495, %v2457, 0
        %v2466 = vsel %vm495, %v2459, 0
        %v2468 = vsel %vm495, %v2461, 0
        %2470 = vmatprep.subr.mxu0 0.0
        %2471 = vmatpush1.xpose.msra.mxu0 %v2466
        %2472 = vmatprep.subr.mxu0 0.0
        %2473 = vmatpush1.xpose.msra.mxu0 %v2468
        %2474 = vmatprep.subr.mxu0 0.0
        %2475 = vmatpush1.xpose.msra.mxu0 0.0
        %2476 = vmatprep.subr.mxu0 0.0
        %2477 = vmatpush1.xpose.msra.mxu0 0.0
        %2478 = vmatprep.subr.mxu0 0.0
        %2479 = vmatpush1.xpose.msra.mxu0 0.0
        %2480 = vmatprep.subr.mxu0 0.0
        %2481 = vmatpush1.xpose.msra.mxu0 0.0
        %2482 = vmatprep.subr.mxu0 0.0
        %2483 = vmatpush1.xpose.msra.mxu0 0.0
        %2484 = vmatprep.subr.mxu0 0.0
        %2485 = vmatpush1.xpose.msra.mxu0 0.0
        %2486 = vmatprep.subr.mxu0 0.0
        %2487 = vmatpush1.xpose.msra.mxu0 0.0
        %2488 = vmatprep.subr.mxu0 0.0
        %2489 = vmatpush1.xpose.msra.mxu0 0.0
        %2490 = vmatprep.subr.mxu0 0.0
        %2491 = vmatpush1.xpose.msra.mxu0 0.0
        %2492 = vmatprep.subr.mxu0 0.0
        %2493 = vmatpush1.xpose.msra.mxu0 0.0
        %2494 = vmatprep.subr.mxu0 0.0
        %2495 = vmatpush1.xpose.msra.mxu0 0.0
        %2496 = vmatprep.subr.mxu0 0.0
        %2497 = vmatpush1.xpose.msra.mxu0 0.0
        %2498 = vmatprep.subr.mxu0 0.0
        %2499 = vmatpush1.xpose.msra.mxu0 0.0
        %2500 = vmatprep.subr.mxu0 0.0
        %2501 = vmatpush1.xpose.msra.mxu0 0.0
        %2502 = vmatprep.subr.mxu0 0.0
        %2503 = vmatpush1.xpose.msra.mxu0 0.0
        %2504 = vmatprep.subr.mxu0 0.0
        %2505 = vmatpush1.xpose.msra.mxu0 0.0
        %2506 = vmatprep.subr.mxu0 0.0
        %2507 = vmatpush1.xpose.msra.mxu0 0.0
        %2508 = vmatprep.subr.mxu0 0.0
        %2509 = vmatpush1.xpose.msra.mxu0 0.0
        %2510 = vmatprep.subr.mxu0 0.0
        %2511 = vmatpush1.xpose.msra.mxu0 0.0
        %2512 = vmatprep.subr.mxu0 0.0
        %2513 = vmatpush1.xpose.msra.mxu0 0.0
        %2514 = vmatprep.subr.mxu0 0.0
        %2515 = vmatpush1.xpose.msra.mxu0 0.0
        %2516 = vmatprep.subr.mxu0 0.0
        %2517 = vmatpush1.xpose.msra.mxu0 0.0
        %2518 = vmatprep.subr.mxu0 0.0
        %2519 = vmatpush1.xpose.msra.mxu0 0.0
        %2520 = vmatprep.subr.mxu0 0.0
        %2521 = vmatpush1.xpose.msra.mxu0 0.0
        %2522 = vmatprep.subr.mxu0 0.0
        %2523 = vmatpush1.xpose.msra.mxu0 0.0
        %2524 = vmatprep.subr.mxu0 0.0
        %2525 = vmatpush1.xpose.msra.mxu0 0.0
        %2526 = vmatprep.subr.mxu0 0.0
        %2527 = vmatpush1.xpose.msra.mxu0 0.0
        %2528 = vmatprep.subr.mxu0 0.0
        %2529 = vmatpush1.xpose.msra.mxu0 0.0
        %2530 = vmatprep.subr.mxu0 0.0
        %2531 = vmatpush1.xpose.msra.mxu0 0.0
        %2532 = vmatprep.subr.mxu0 0.0
        %2533 = vmatpush1.xpose.msra.mxu0 0.0
        %2534 = vmatprep.mubr.f32.mxu0 0.0
        %2535 = vmatmul.mubr.f32.gmra.mrb[0].mxu0 %v2462
        %v2536 = vpop.f32.mrb[0].mxu0
        %v2537 = vadd.f32 %v487, %v2536
        %v2538 = vpop.f32.mrb[0].mxu0
        %2539 = vmatprep.mubr.f32.mxu0 0.0
        %2540 = vmatmul.mubr.f32.gmra.mrb[0].mxu0 %v2464
        %v2541 = vpop.f32.mrb[0].mxu0
        %v2542 = vadd.f32 %v487, %v2541
        %v2543 = vpop.f32.mrb[0].mxu0
        %2544 = vdwg.mxu0
        %v2545 = vsel %vm579, %v2537, -inf
        %2546 = vmax.xlane.f32.xlu0 %v2545
        %v2547 = vpop.xlane.xlu0 %2546
        %v2548 = vsel %vm579, %v2542, -inf
        %2549 = vmax.xlane.f32.xlu0 %v2548
        %v2550 = vpop.xlane.xlu0 %2549
        %v2551 = vsub.f32 %v2537, %v2547
        %v2552 = vsub.f32 %v2542, %v2550
        %v2553 = vmul.f32 %v2551, 1.442695
        %v2554 = vpow.pop %v2553
        %v2555 = vmul.f32 %v2552, 1.442695
        %v2556 = vpow.pop %v2555
        %v2557 = vsel %vm579, %v2554, 0.0
        %2558 = vadd.xlane.f32.xlu0 %v2557
        %v2559 = vpop.xlane.xlu0 %2558
        %v2560 = vsel %vm579, %v2556, 0.0
        %2561 = vadd.xlane.f32.xlu0 %v2560
        %v2562 = vpop.xlane.xlu0 %2561
        %v2563 = vrcp.pop %v2559
        %v2564 = vrcp.pop %v2562
        %v2565 = vmul.f32 %v2554, %v2563
        %v2566 = vmul.f32 %v2556, %v2564
        %2567 = vrot.lane.b32.xlu0 %v1852, 104
        %v2568 = vpop.permute.xlu0 %2567
        %2569 = vrot.lane.b32.xlu0 %v1857, 104
        %v2570 = vpop.permute.xlu0 %2569
        %v2574 = vsel %vm579, %v2565, 0
        %v2577 = vsel %vm579, %v2566, 0
        %2579 = vmatprep.subr.mxu0 0.0
        %2580 = vmatpush1.msra.mxu0 %v2568
        %2581 = vmatprep.subr.mxu0 0.0
        %2582 = vmatpush1.msra.mxu0 %v2570
        %2583 = vmatprep.subr.mxu0 0.0
        %2584 = vmatpush1.msra.mxu0 0.0
        %2585 = vmatprep.subr.mxu0 0.0
        %2586 = vmatpush1.msra.mxu0 0.0
        %2587 = vmatprep.subr.mxu0 0.0
        %2588 = vmatpush1.msra.mxu0 0.0
        %2589 = vmatprep.subr.mxu0 0.0
        %2590 = vmatpush1.msra.mxu0 0.0
        %2591 = vmatprep.subr.mxu0 0.0
        %2592 = vmatpush1.msra.mxu0 0.0
        %2593 = vmatprep.subr.mxu0 0.0
        %2594 = vmatpush1.msra.mxu0 0.0
        %2595 = vmatprep.subr.mxu0 0.0
        %2596 = vmatpush1.msra.mxu0 0.0
        %2597 = vmatprep.subr.mxu0 0.0
        %2598 = vmatpush1.msra.mxu0 0.0
        %2599 = vmatprep.subr.mxu0 0.0
        %2600 = vmatpush1.msra.mxu0 0.0
        %2601 = vmatprep.subr.mxu0 0.0
        %2602 = vmatpush1.msra.mxu0 0.0
        %2603 = vmatprep.subr.mxu0 0.0
        %2604 = vmatpush1.msra.mxu0 0.0
        %2605 = vmatprep.subr.mxu0 0.0
        %2606 = vmatpush1.msra.mxu0 0.0
        %2607 = vmatprep.subr.mxu0 0.0
        %2608 = vmatpush1.msra.mxu0 0.0
        %2609 = vmatprep.subr.mxu0 0.0
        %2610 = vmatpush1.msra.mxu0 0.0
        %2611 = vmatprep.subr.mxu0 0.0
        %2612 = vmatpush1.msra.mxu0 0.0
        %2613 = vmatprep.subr.mxu0 0.0
        %2614 = vmatpush1.msra.mxu0 0.0
        %2615 = vmatprep.subr.mxu0 0.0
        %2616 = vmatpush1.msra.mxu0 0.0
        %2617 = vmatprep.subr.mxu0 0.0
        %2618 = vmatpush1.msra.mxu0 0.0
        %2619 = vmatprep.subr.mxu0 0.0
        %2620 = vmatpush1.msra.mxu0 0.0
        %2621 = vmatprep.subr.mxu0 0.0
        %2622 = vmatpush1.msra.mxu0 0.0
        %2623 = vmatprep.subr.mxu0 0.0
        %2624 = vmatpush1.msra.mxu0 0.0
        %2625 = vmatprep.subr.mxu0 0.0
        %2626 = vmatpush1.msra.mxu0 0.0
        %2627 = vmatprep.subr.mxu0 0.0
        %2628 = vmatpush1.msra.mxu0 0.0
        %2629 = vmatprep.subr.mxu0 0.0
        %2630 = vmatpush1.msra.mxu0 0.0
        %2631 = vmatprep.subr.mxu0 0.0
        %2632 = vmatpush1.msra.mxu0 0.0
        %2633 = vmatprep.subr.mxu0 0.0
        %2634 = vmatpush1.msra.mxu0 0.0
        %2635 = vmatprep.subr.mxu0 0.0
        %2636 = vmatpush1.msra.mxu0 0.0
        %2637 = vmatprep.subr.mxu0 0.0
        %2638 = vmatpush1.msra.mxu0 0.0
        %2639 = vmatprep.subr.mxu0 0.0
        %2640 = vmatpush1.msra.mxu0 0.0
        %2641 = vmatprep.subr.mxu0 0.0
        %2642 = vmatpush1.msra.mxu0 0.0
        %2643 = vmatprep.mubr.f32.mxu0 0.0
        %2644 = vmatmul.mubr.f32.gmra.mrb[0].mxu0 %v2574
        %v2645 = vpop.f32.mrb[0].mxu0
        %v2646 = vadd.f32 0.0, %v2645
        %v2647 = vpop.f32.mrb[0].mxu0
        %2648 = vmatprep.mubr.f32.mxu0 0.0
        %2649 = vmatmul.mubr.f32.gmra.mrb[0].mxu0 %v2577
        %v2650 = vpop.f32.mrb[0].mxu0
        %v2651 = vadd.f32 0.0, %v2650
        %v2652 = vpop.f32.mrb[0].mxu0
        %2653 = vdwg.mxu0
        %2656 = vrot.lane.b32.xlu0 %v2246, 8
        %v2657 = vpop.permute.xlu0 %2656
        %2658 = vrot.lane.b32.xlu0 %v2251, 8
        %v2659 = vpop.permute.xlu0 %2658
        %2664 = vrot.lane.b32.xlu0 %v2446, 16
        %v2665 = vpop.permute.xlu0 %2664
        %2666 = vrot.lane.b32.xlu0 %v2451, 16
        %v2667 = vpop.permute.xlu0 %2666
        %2672 = vrot.lane.b32.xlu0 %v2646, 24
        %v2673 = vpop.permute.xlu0 %2672
        %2674 = vrot.lane.b32.xlu0 %v2651, 24
        %v2675 = vpop.permute.xlu0 %2674
        %v2678 = vsel %vm495, %v2044, %v2657
        %v2679 = vsel %vm495, %v2049, %v2659
        %v2680 = vsel %vm579, %v2678, %v2665
        %v2681 = vsel %vm579, %v2679, %v2667
        %v2682 = vsel %vm1313, %v2680, %v2673
        %v2683 = vsel %vm1313, %v2681, %v2675
        %v2684 = vld [vmem:[%s4 + $0x158] sm:$0xff]
        %v2685 = vld [vmem:[%s4 + $0x160] sm:$0xff]
        %v2686 = vld [vmem:[%s4 + $0x168] sm:$0xff]
        %v2687 = vld [vmem:[%s4 + $0x170] sm:$0xff]
        %v2688 = vld [vmem:[%s4 + $0x178] sm:$0x1]
        %v2689 = vlaneseq
        %v2690 = vshrl.u32 %v2689, 7
        %v2691 = vsub.s32 0, %v2690
        %v2692 = vrot.slane %v2688, %v2691
        %v2694 = vsel %vm311, %v2682, 0
        %v2697 = vsel %vm311, %v2683, 0
        %2699 = vmatprep.subr.mxu0 0.0
        %2700 = vmatpush1.msra.mxu0 %v2684
        %2701 = vmatprep.subr.mxu0 0.0
        %2702 = vmatpush1.msra.mxu0 %v2685
        %2703 = vmatprep.subr.mxu0 0.0
        %2704 = vmatpush1.msra.mxu0 %v2686
        %2705 = vmatprep.subr.mxu0 0.0
        %2706 = vmatpush1.msra.mxu0 %v2687
        %2707 = vmatprep.subr.mxu0 0.0
        %2708 = vmatpush1.msra.mxu0 0.0
        %2709 = vmatprep.subr.mxu0 0.0
        %2710 = vmatpush1.msra.mxu0 0.0
        %2711 = vmatprep.subr.mxu0 0.0
        %2712 = vmatpush1.msra.mxu0 0.0
        %2713 = vmatprep.subr.mxu0 0.0
        %2714 = vmatpush1.msra.mxu0 0.0
        %2715 = vmatprep.subr.mxu0 0.0
        %2716 = vmatpush1.msra.mxu0 0.0
        %2717 = vmatprep.subr.mxu0 0.0
        %2718 = vmatpush1.msra.mxu0 0.0
        %2719 = vmatprep.subr.mxu0 0.0
        %2720 = vmatpush1.msra.mxu0 0.0
        %2721 = vmatprep.subr.mxu0 0.0
        %2722 = vmatpush1.msra.mxu0 0.0
        %2723 = vmatprep.subr.mxu0 0.0
        %2724 = vmatpush1.msra.mxu0 0.0
        %2725 = vmatprep.subr.mxu0 0.0
        %2726 = vmatpush1.msra.mxu0 0.0
        %2727 = vmatprep.subr.mxu0 0.0
        %2728 = vmatpush1.msra.mxu0 0.0
        %2729 = vmatprep.subr.mxu0 0.0
        %2730 = vmatpush1.msra.mxu0 0.0
        %2731 = vmatprep.subr.mxu0 0.0
        %2732 = vmatpush1.msra.mxu0 0.0
        %2733 = vmatprep.subr.mxu0 0.0
        %2734 = vmatpush1.msra.mxu0 0.0
        %2735 = vmatprep.subr.mxu0 0.0
        %2736 = vmatpush1.msra.mxu0 0.0
        %2737 = vmatprep.subr.mxu0 0.0
        %2738 = vmatpush1.msra.mxu0 0.0
        %2739 = vmatprep.subr.mxu0 0.0
        %2740 = vmatpush1.msra.mxu0 0.0
        %2741 = vmatprep.subr.mxu0 0.0
        %2742 = vmatpush1.msra.mxu0 0.0
        %2743 = vmatprep.subr.mxu0 0.0
        %2744 = vmatpush1.msra.mxu0 0.0
        %2745 = vmatprep.subr.mxu0 0.0
        %2746 = vmatpush1.msra.mxu0 0.0
        %2747 = vmatprep.subr.mxu0 0.0
        %2748 = vmatpush1.msra.mxu0 0.0
        %2749 = vmatprep.subr.mxu0 0.0
        %2750 = vmatpush1.msra.mxu0 0.0
        %2751 = vmatprep.subr.mxu0 0.0
        %2752 = vmatpush1.msra.mxu0 0.0
        %2753 = vmatprep.subr.mxu0 0.0
        %2754 = vmatpush1.msra.mxu0 0.0
        %2755 = vmatprep.subr.mxu0 0.0
        %2756 = vmatpush1.msra.mxu0 0.0
        %2757 = vmatprep.subr.mxu0 0.0
        %2758 = vmatpush1.msra.mxu0 0.0
        %2759 = vmatprep.subr.mxu0 0.0
        %2760 = vmatpush1.msra.mxu0 0.0
        %2761 = vmatprep.subr.mxu0 0.0
        %2762 = vmatpush1.msra.mxu0 0.0
        %2763 = vmatprep.mubr.f32.mxu0 0.0
        %2764 = vmatmul.mubr.f32.gmra.mrb[0].mxu0 %v2694
        %v2765 = vpop.f32.mrb[0].mxu0
        %v2766 = vadd.f32 %v2692, %v2765
        %v2767 = vpop.f32.mrb[0].mxu0
        %2768 = vmatprep.mubr.f32.mxu0 0.0
        %2769 = vmatmul.mubr.f32.gmra.mrb[0].mxu0 %v2697
        %v2770 = vpop.f32.mrb[0].mxu0
        %v2771 = vadd.f32 %v2692, %v2770
        %v2772 = vpop.f32.mrb[0].mxu0
        %2773 = vdwg.mxu0
        %v2774 = vadd.f32 %v1676, %v2766
        %v2775 = vadd.f32 %v1677, %v2771
        %v2776 = vld [vmem:[%s4 + $0x180] sm:$0x1]
        %v2777 = vld [vmem:[%s4 + $0x188] sm:$0x1]
        %v2778 = vsel %vm311, %v2774, 0.0
        %2779 = vadd.xlane.f32.xlu0 %v2778
        %v2780 = vpop.xlane.xlu0 %2779
        %v2781 = vsel %vm311, %v2775, 0.0
        %2782 = vadd.xlane.f32.xlu0 %v2781
        %v2783 = vpop.xlane.xlu0 %2782
        %v2784 = vmul.f32 %v2780, %v1416
        %v2785 = vmul.f32 %v2783, %v1416
        %v2786 = vsub.f32 %v2774, %v2784
        %v2787 = vsub.f32 %v2775, %v2785
        %v2788 = vmul.f32 %v2786, %v2786
        %v2789 = vmul.f32 %v2787, %v2787
        %v2790 = vsel %vm311, %v2788, 0.0
        %2791 = vadd.xlane.f32.xlu0 %v2790
        %v2792 = vpop.xlane.xlu0 %2791
        %v2793 = vsel %vm311, %v2789, 0.0
        %2794 = vadd.xlane.f32.xlu0 %v2793
        %v2795 = vpop.xlane.xlu0 %2794
        %v2796 = vmul.f32 %v2792, %v1416
        %v2797 = vmul.f32 %v2795, %v1416
        %v2798 = vadd.f32 %v2796, 1e-05
        %v2799 = vadd.f32 %v2797, 1e-05
        %v2800 = vrsqrt.pop %v2798
        %v2801 = vrsqrt.pop %v2799
        %v2802 = vmul.f32 %v2786, %v2800
        %v2803 = vmul.f32 %v2787, %v2801
        %v2804 = vlaneseq
        %v2805 = vshrl.u32 %v2804, 7
        %v2806 = vsub.s32 0, %v2805
        %v2807 = vrot.slane %v2776, %v2806
        %v2808 = vmul.f32 %v2802, %v2807
        %v2809 = vmul.f32 %v2803, %v2807
        %v2810 = vlaneseq
        %v2811 = vshrl.u32 %v2810, 7
        %v2812 = vsub.s32 0, %v2811
        %v2813 = vrot.slane %v2777, %v2812
        %v2814 = vadd.f32 %v2808, %v2813
        %v2815 = vadd.f32 %v2809, %v2813
        %v2816 = vld [vmem:[%s4 + $0x190] sm:$0xff]
        %v2817 = vld [vmem:[%s4 + $0x198] sm:$0xff]
        %v2818 = vld [vmem:[%s4 + $0x1a0] sm:$0xff]
        %v2819 = vld [vmem:[%s4 + $0x1a8] sm:$0xff]
        %v2820 = vld [vmem:[%s4 + $0x1b0] sm:$0x1]
        %v2821 = vlaneseq
        %v2822 = vshrl.u32 %v2821, 7
        %v2823 = vsub.s32 0, %v2822
        %v2824 = vrot.slane %v2820, %v2823
        %v2826 = vsel %vm311, %v2814, 0
        %v2829 = vsel %vm311, %v2815, 0
        %2831 = vmatprep.subr.mxu0 0.0
        %2832 = vmatpush1.msra.mxu0 %v2816
        %2833 = vmatprep.subr.mxu0 0.0
        %2834 = vmatpush1.msra.mxu0 %v2817
        %2835 = vmatprep.subr.mxu0 0.0
        %2836 = vmatpush1.msra.mxu0 %v2818
        %2837 = vmatprep.subr.mxu0 0.0
        %2838 = vmatpush1.msra.mxu0 %v2819
        %2839 = vmatprep.subr.mxu0 0.0
        %2840 = vmatpush1.msra.mxu0 0.0
        %2841 = vmatprep.subr.mxu0 0.0
        %2842 = vmatpush1.msra.mxu0 0.0
        %2843 = vmatprep.subr.mxu0 0.0
        %2844 = vmatpush1.msra.mxu0 0.0
        %2845 = vmatprep.subr.mxu0 0.0
        %2846 = vmatpush1.msra.mxu0 0.0
        %2847 = vmatprep.subr.mxu0 0.0
        %2848 = vmatpush1.msra.mxu0 0.0
        %2849 = vmatprep.subr.mxu0 0.0
        %2850 = vmatpush1.msra.mxu0 0.0
        %2851 = vmatprep.subr.mxu0 0.0
        %2852 = vmatpush1.msra.mxu0 0.0
        %2853 = vmatprep.subr.mxu0 0.0
        %2854 = vmatpush1.msra.mxu0 0.0
        %2855 = vmatprep.subr.mxu0 0.0
        %2856 = vmatpush1.msra.mxu0 0.0
        %2857 = vmatprep.subr.mxu0 0.0
        %2858 = vmatpush1.msra.mxu0 0.0
        %2859 = vmatprep.subr.mxu0 0.0
        %2860 = vmatpush1.msra.mxu0 0.0
        %2861 = vmatprep.subr.mxu0 0.0
        %2862 = vmatpush1.msra.mxu0 0.0
        %2863 = vmatprep.subr.mxu0 0.0
        %2864 = vmatpush1.msra.mxu0 0.0
        %2865 = vmatprep.subr.mxu0 0.0
        %2866 = vmatpush1.msra.mxu0 0.0
        %2867 = vmatprep.subr.mxu0 0.0
        %2868 = vmatpush1.msra.mxu0 0.0
        %2869 = vmatprep.subr.mxu0 0.0
        %2870 = vmatpush1.msra.mxu0 0.0
        %2871 = vmatprep.subr.mxu0 0.0
        %2872 = vmatpush1.msra.mxu0 0.0
        %2873 = vmatprep.subr.mxu0 0.0
        %2874 = vmatpush1.msra.mxu0 0.0
        %2875 = vmatprep.subr.mxu0 0.0
        %2876 = vmatpush1.msra.mxu0 0.0
        %2877 = vmatprep.subr.mxu0 0.0
        %2878 = vmatpush1.msra.mxu0 0.0
        %2879 = vmatprep.subr.mxu0 0.0
        %2880 = vmatpush1.msra.mxu0 0.0
        %2881 = vmatprep.subr.mxu0 0.0
        %2882 = vmatpush1.msra.mxu0 0.0
        %2883 = vmatprep.subr.mxu0 0.0
        %2884 = vmatpush1.msra.mxu0 0.0
        %2885 = vmatprep.subr.mxu0 0.0
        %2886 = vmatpush1.msra.mxu0 0.0
        %2887 = vmatprep.subr.mxu0 0.0
        %2888 = vmatpush1.msra.mxu0 0.0
        %2889 = vmatprep.subr.mxu0 0.0
        %2890 = vmatpush1.msra.mxu0 0.0
        %2891 = vmatprep.subr.mxu0 0.0
        %2892 = vmatpush1.msra.mxu0 0.0
        %2893 = vmatprep.subr.mxu0 0.0
        %2894 = vmatpush1.msra.mxu0 0.0
        %2895 = vmatprep.mubr.f32.mxu0 0.0
        %2896 = vmatmul.mubr.f32.gmra.mrb[0].mxu0 %v2826
        %v2897 = vpop.f32.mrb[0].mxu0
        %v2898 = vadd.f32 %v2824, %v2897
        %v2899 = vpop.f32.mrb[0].mxu0
        %2900 = vmatprep.mubr.f32.mxu0 0.0
        %2901 = vmatmul.mubr.f32.gmra.mrb[0].mxu0 %v2829
        %v2902 = vpop.f32.mrb[0].mxu0
        %v2903 = vadd.f32 %v2824, %v2902
        %v2904 = vpop.f32.mrb[0].mxu0
        %2905 = vdwg.mxu0
        %v2906 = vmax.f32 %v2898, 0.0
        %v2907 = vmax.f32 %v2903, 0.0
        %v2908 = vld [vmem:[%s4 + $0x1b8] sm:$0xff]
        %v2909 = vld [vmem:[%s4 + $0x1c0] sm:$0xff]
        %v2910 = vld [vmem:[%s4 + $0x1c8] sm:$0xff]
        %v2911 = vld [vmem:[%s4 + $0x1d0] sm:$0xff]
        %v2912 = vld [vmem:[%s4 + $0x1d8] sm:$0xff]
        %v2913 = vld [vmem:[%s4 + $0x1e0] sm:$0xff]
        %v2914 = vld [vmem:[%s4 + $0x1e8] sm:$0xff]
        %v2915 = vld [vmem:[%s4 + $0x1f0] sm:$0xff]
        %v2916 = vld [vmem:[%s4 + $0x1f8] sm:$0x1]
        %v2917 = vlaneseq
        %v2918 = vshrl.u32 %v2917, 7
        %v2919 = vsub.s32 0, %v2918
        %v2920 = vrot.slane %v2916, %v2919
        %v2922 = vsel %vm1554, %v2906, 0
        %v2925 = vsel %vm1554, %v2907, 0
        %2927 = vmatprep.subr.mxu0 0.0
        %2928 = vmatpush1.msra.mxu0 %v2908
        %2929 = vmatprep.subr.mxu0 0.0
        %2930 = vmatpush1.msra.mxu0 %v2909
        %2931 = vmatprep.subr.mxu0 0.0
        %2932 = vmatpush1.msra.mxu0 %v2910
        %2933 = vmatprep.subr.mxu0 0.0
        %2934 = vmatpush1.msra.mxu0 %v2911
        %2935 = vmatprep.subr.mxu0 0.0
        %2936 = vmatpush1.msra.mxu0 %v2912
        %2937 = vmatprep.subr.mxu0 0.0
        %2938 = vmatpush1.msra.mxu0 %v2913
        %2939 = vmatprep.subr.mxu0 0.0
        %2940 = vmatpush1.msra.mxu0 %v2914
        %2941 = vmatprep.subr.mxu0 0.0
        %2942 = vmatpush1.msra.mxu0 %v2915
        %2943 = vmatprep.subr.mxu0 0.0
        %2944 = vmatpush1.msra.mxu0 0.0
        %2945 = vmatprep.subr.mxu0 0.0
        %2946 = vmatpush1.msra.mxu0 0.0
        %2947 = vmatprep.subr.mxu0 0.0
        %2948 = vmatpush1.msra.mxu0 0.0
        %2949 = vmatprep.subr.mxu0 0.0
        %2950 = vmatpush1.msra.mxu0 0.0
        %2951 = vmatprep.subr.mxu0 0.0
        %2952 = vmatpush1.msra.mxu0 0.0
        %2953 = vmatprep.subr.mxu0 0.0
        %2954 = vmatpush1.msra.mxu0 0.0
        %2955 = vmatprep.subr.mxu0 0.0
        %2956 = vmatpush1.msra.mxu0 0.0
        %2957 = vmatprep.subr.mxu0 0.0
        %2958 = vmatpush1.msra.mxu0 0.0
        %2959 = vmatprep.subr.mxu0 0.0
        %2960 = vmatpush1.msra.mxu0 0.0
        %2961 = vmatprep.subr.mxu0 0.0
        %2962 = vmatpush1.msra.mxu0 0.0
        %2963 = vmatprep.subr.mxu0 0.0
        %2964 = vmatpush1.msra.mxu0 0.0
        %2965 = vmatprep.subr.mxu0 0.0
        %2966 = vmatpush1.msra.mxu0 0.0
        %2967 = vmatprep.subr.mxu0 0.0
        %2968 = vmatpush1.msra.mxu0 0.0
        %2969 = vmatprep.subr.mxu0 0.0
        %2970 = vmatpush1.msra.mxu0 0.0
        %2971 = vmatprep.subr.mxu0 0.0
        %2972 = vmatpush1.msra.mxu0 0.0
        %2973 = vmatprep.subr.mxu0 0.0
        %2974 = vmatpush1.msra.mxu0 0.0
        %2975 = vmatprep.subr.mxu0 0.0
        %2976 = vmatpush1.msra.mxu0 0.0
        %2977 = vmatprep.subr.mxu0 0.0
        %2978 = vmatpush1.msra.mxu0 0.0
        %2979 = vmatprep.subr.mxu0 0.0
        %2980 = vmatpush1.msra.mxu0 0.0
        %2981 = vmatprep.subr.mxu0 0.0
        %2982 = vmatpush1.msra.mxu0 0.0
        %2983 = vmatprep.subr.mxu0 0.0
        %2984 = vmatpush1.msra.mxu0 0.0
        %2985 = vmatprep.subr.mxu0 0.0
        %2986 = vmatpush1.msra.mxu0 0.0
        %2987 = vmatprep.subr.mxu0 0.0
        %2988 = vmatpush1.msra.mxu0 0.0
        %2989 = vmatprep.subr.mxu0 0.0
        %2990 = vmatpush1.msra.mxu0 0.0
        %2991 = vmatprep.mubr.f32.mxu0 0.0
        %2992 = vmatmul.mubr.f32.gmra.mrb[0].mxu0 %v2922
        %v2993 = vpop.f32.mrb[0].mxu0
        %v2994 = vadd.f32 %v2920, %v2993
        %v2995 = vpop.f32.mrb[0].mxu0
        %2996 = vmatprep.mubr.f32.mxu0 0.0
        %2997 = vmatmul.mubr.f32.gmra.mrb[0].mxu0 %v2925
        %v2998 = vpop.f32.mrb[0].mxu0
        %v2999 = vadd.f32 %v2920, %v2998
        %v3000 = vpop.f32.mrb[0].mxu0
        %3001 = vdwg.mxu0
        %v3002 = vadd.f32 %v2814, %v2994
        %v3003 = vadd.f32 %v2815, %v2999
        %v3004 = vld [vmem:[%s4 + $0x200] sm:$0x1]
        %v3005 = vld [vmem:[%s4 + $0x208] sm:$0x1]
        %v3006 = vsel %vm311, %v3002, 0.0
        %3007 = vadd.xlane.f32.xlu0 %v3006
        %v3008 = vpop.xlane.xlu0 %3007
        %v3009 = vsel %vm311, %v3003, 0.0
        %3010 = vadd.xlane.f32.xlu0 %v3009
        %v3011 = vpop.xlane.xlu0 %3010
        %v3012 = vmul.f32 %v3008, %v1416
        %v3013 = vmul.f32 %v3011, %v1416
        %v3014 = vsub.f32 %v3002, %v3012
        %v3015 = vsub.f32 %v3003, %v3013
        %v3016 = vmul.f32 %v3014, %v3014
        %v3017 = vmul.f32 %v3015, %v3015
        %v3018 = vsel %vm311, %v3016, 0.0
        %3019 = vadd.xlane.f32.xlu0 %v3018
        %v3020 = vpop.xlane.xlu0 %3019
        %v3021 = vsel %vm311, %v3017, 0.0
        %3022 = vadd.xlane.f32.xlu0 %v3021
        %v3023 = vpop.xlane.xlu0 %3022
        %v3024 = vmul.f32 %v3020, %v1416
        %v3025 = vmul.f32 %v3023, %v1416
        %v3026 = vadd.f32 %v3024, 1e-05
        %v3027 = vadd.f32 %v3025, 1e-05
        %v3028 = vrsqrt.pop %v3026
        %v3029 = vrsqrt.pop %v3027
        %v3030 = vmul.f32 %v3014, %v3028
        %v3031 = vmul.f32 %v3015, %v3029
        %v3032 = vlaneseq
        %v3033 = vshrl.u32 %v3032, 7
        %v3034 = vsub.s32 0, %v3033
        %v3035 = vrot.slane %v3004, %v3034
        %v3036 = vmul.f32 %v3030, %v3035
        %v3037 = vmul.f32 %v3031, %v3035
        %v3038 = vlaneseq
        %v3039 = vshrl.u32 %v3038, 7
        %v3040 = vsub.s32 0, %v3039
        %v3041 = vrot.slane %v3005, %v3040
        %v3042 = vadd.f32 %v3036, %v3041
        %v3043 = vadd.f32 %v3037, %v3041
        %3044 = vst.msk [vmem:[%s274] sm:$0xff] %vm311, %v3042
        %3045 = vst.msk [vmem:[%s274 + $0x8] sm:$0xff] %vm311, %v3043
        %v3046 = vld [vmem:[%s3] sm:$0xff]
        %v3047 = vadd.f32 %v3042, %v295
        %v3048 = vadd.f32 %v3043, %v296
        %v3049 = vld [vmem:[%s4 + $0x4f8] sm:$0x1]
        %v3050 = vlaneseq
        %v3051 = vshrl.u32 %v3050, 7
        %v3052 = vsub.s32 0, %v3051
        %v3053 = vrot.slane %v3049, %v3052
        %v3054 = vadd.f32 %v3053, %v3046
        %v3055 = vld [vmem:[%s4 + $0x210] sm:$0xff]
        %v3056 = vld [vmem:[%s4 + $0x218] sm:$0xff]
        %v3057 = vld [vmem:[%s4 + $0x220] sm:$0xff]
        %v3058 = vld [vmem:[%s4 + $0x228] sm:$0xff]
        %v3059 = vld [vmem:[%s4 + $0x230] sm:$0x1]
        %v3060 = vlaneseq
        %v3061 = vshrl.u32 %v3060, 7
        %v3062 = vsub.s32 0, %v3061
        %v3063 = vrot.slane %v3059, %v3062
        %v3065 = vsel %vm311, %v3054, 0
        %3067 = vmatprep.subr.mxu0 0.0
        %3068 = vmatpush1.msra.mxu0 %v3055
        %3069 = vmatprep.subr.mxu0 0.0
        %3070 = vmatpush1.msra.mxu0 %v3056
        %3071 = vmatprep.subr.mxu0 0.0
        %3072 = vmatpush1.msra.mxu0 %v3057
        %3073 = vmatprep.subr.mxu0 0.0
        %3074 = vmatpush1.msra.mxu0 %v3058
        %3075 = vmatprep.subr.mxu0 0.0
        %3076 = vmatpush1.msra.mxu0 0.0
        %3077 = vmatprep.subr.mxu0 0.0
        %3078 = vmatpush1.msra.mxu0 0.0
        %3079 = vmatprep.subr.mxu0 0.0
        %3080 = vmatpush1.msra.mxu0 0.0
        %3081 = vmatprep.subr.mxu0 0.0
        %3082 = vmatpush1.msra.mxu0 0.0
        %3083 = vmatprep.subr.mxu0 0.0
        %3084 = vmatpush1.msra.mxu0 0.0
        %3085 = vmatprep.subr.mxu0 0.0
        %3086 = vmatpush1.msra.mxu0 0.0
        %3087 = vmatprep.subr.mxu0 0.0
        %3088 = vmatpush1.msra.mxu0 0.0
        %3089 = vmatprep.subr.mxu0 0.0
        %3090 = vmatpush1.msra.mxu0 0.0
        %3091 = vmatprep.subr.mxu0 0.0
        %3092 = vmatpush1.msra.mxu0 0.0
        %3093 = vmatprep.subr.mxu0 0.0
        %3094 = vmatpush1.msra.mxu0 0.0
        %3095 = vmatprep.subr.mxu0 0.0
        %3096 = vmatpush1.msra.mxu0 0.0
        %3097 = vmatprep.subr.mxu0 0.0
        %3098 = vmatpush1.msra.mxu0 0.0
        %3099 = vmatprep.subr.mxu0 0.0
        %3100 = vmatpush1.msra.mxu0 0.0
        %3101 = vmatprep.subr.mxu0 0.0
        %3102 = vmatpush1.msra.mxu0 0.0
        %3103 = vmatprep.subr.mxu0 0.0
        %3104 = vmatpush1.msra.mxu0 0.0
        %3105 = vmatprep.subr.mxu0 0.0
        %3106 = vmatpush1.msra.mxu0 0.0
        %3107 = vmatprep.subr.mxu0 0.0
        %3108 = vmatpush1.msra.mxu0 0.0
        %3109 = vmatprep.subr.mxu0 0.0
        %3110 = vmatpush1.msra.mxu0 0.0
        %3111 = vmatprep.subr.mxu0 0.0
        %3112 = vmatpush1.msra.mxu0 0.0
        %3113 = vmatprep.subr.mxu0 0.0
        %3114 = vmatpush1.msra.mxu0 0.0
        %3115 = vmatprep.subr.mxu0 0.0
        %3116 = vmatpush1.msra.mxu0 0.0
        %3117 = vmatprep.subr.mxu0 0.0
        %3118 = vmatpush1.msra.mxu0 0.0
        %3119 = vmatprep.subr.mxu0 0.0
        %3120 = vmatpush1.msra.mxu0 0.0
        %3121 = vmatprep.subr.mxu0 0.0
        %3122 = vmatpush1.msra.mxu0 0.0
        %3123 = vmatprep.subr.mxu0 0.0
        %3124 = vmatpush1.msra.mxu0 0.0
        %3125 = vmatprep.subr.mxu0 0.0
        %3126 = vmatpush1.msra.mxu0 0.0
        %3127 = vmatprep.subr.mxu0 0.0
        %3128 = vmatpush1.msra.mxu0 0.0
        %3129 = vmatprep.subr.mxu0 0.0
        %3130 = vmatpush1.msra.mxu0 0.0
        %3131 = vmatprep.mubr.f32.mxu0 0.0
        %3132 = vmatmul.mubr.f32.gmra.mrb[0].mxu0 %v3065
        %v3133 = vpop.f32.mrb[0].mxu0
        %v3134 = vadd.f32 %v3063, %v3133
        %v3135 = vpop.f32.mrb[0].mxu0
        %3136 = vdwg.mxu0
        %v3137 = vld [vmem:[%s4 + $0x238] sm:$0xff]
        %v3138 = vld [vmem:[%s4 + $0x240] sm:$0xff]
        %v3139 = vld [vmem:[%s4 + $0x248] sm:$0xff]
        %v3140 = vld [vmem:[%s4 + $0x250] sm:$0xff]
        %v3141 = vld [vmem:[%s4 + $0x258] sm:$0x1]
        %v3142 = vlaneseq
        %v3143 = vshrl.u32 %v3142, 7
        %v3144 = vsub.s32 0, %v3143
        %v3145 = vrot.slane %v3141, %v3144
        %v3147 = vsel %vm311, %v3047, 0
        %v3150 = vsel %vm311, %v3048, 0
        %3152 = vmatprep.subr.mxu0 0.0
        %3153 = vmatpush1.msra.mxu0 %v3137
        %3154 = vmatprep.subr.mxu0 0.0
        %3155 = vmatpush1.msra.mxu0 %v3138
        %3156 = vmatprep.subr.mxu0 0.0
        %3157 = vmatpush1.msra.mxu0 %v3139
        %3158 = vmatprep.subr.mxu0 0.0
        %3159 = vmatpush1.msra.mxu0 %v3140
        %3160 = vmatprep.subr.mxu0 0.0
        %3161 = vmatpush1.msra.mxu0 0.0
        %3162 = vmatprep.subr.mxu0 0.0
        %3163 = vmatpush1.msra.mxu0 0.0
        %3164 = vmatprep.subr.mxu0 0.0
        %3165 = vmatpush1.msra.mxu0 0.0
        %3166 = vmatprep.subr.mxu0 0.0
        %3167 = vmatpush1.msra.mxu0 0.0
        %3168 = vmatprep.subr.mxu0 0.0
        %3169 = vmatpush1.msra.mxu0 0.0
        %3170 = vmatprep.subr.mxu0 0.0
        %3171 = vmatpush1.msra.mxu0 0.0
        %3172 = vmatprep.subr.mxu0 0.0
        %3173 = vmatpush1.msra.mxu0 0.0
        %3174 = vmatprep.subr.mxu0 0.0
        %3175 = vmatpush1.msra.mxu0 0.0
        %3176 = vmatprep.subr.mxu0 0.0
        %3177 = vmatpush1.msra.mxu0 0.0
        %3178 = vmatprep.subr.mxu0 0.0
        %3179 = vmatpush1.msra.mxu0 0.0
        %3180 = vmatprep.subr.mxu0 0.0
        %3181 = vmatpush1.msra.mxu0 0.0
        %3182 = vmatprep.subr.mxu0 0.0
        %3183 = vmatpush1.msra.mxu0 0.0
        %3184 = vmatprep.subr.mxu0 0.0
        %3185 = vmatpush1.msra.mxu0 0.0
        %3186 = vmatprep.subr.mxu0 0.0
        %3187 = vmatpush1.msra.mxu0 0.0
        %3188 = vmatprep.subr.mxu0 0.0
        %3189 = vmatpush1.msra.mxu0 0.0
        %3190 = vmatprep.subr.mxu0 0.0
        %3191 = vmatpush1.msra.mxu0 0.0
        %3192 = vmatprep.subr.mxu0 0.0
        %3193 = vmatpush1.msra.mxu0 0.0
        %3194 = vmatprep.subr.mxu0 0.0
        %3195 = vmatpush1.msra.mxu0 0.0
        %3196 = vmatprep.subr.mxu0 0.0
        %3197 = vmatpush1.msra.mxu0 0.0
        %3198 = vmatprep.subr.mxu0 0.0
        %3199 = vmatpush1.msra.mxu0 0.0
        %3200 = vmatprep.subr.mxu0 0.0
        %3201 = vmatpush1.msra.mxu0 0.0
        %3202 = vmatprep.subr.mxu0 0.0
        %3203 = vmatpush1.msra.mxu0 0.0
        %3204 = vmatprep.subr.mxu0 0.0
        %3205 = vmatpush1.msra.mxu0 0.0
        %3206 = vmatprep.subr.mxu0 0.0
        %3207 = vmatpush1.msra.mxu0 0.0
        %3208 = vmatprep.subr.mxu0 0.0
        %3209 = vmatpush1.msra.mxu0 0.0
        %3210 = vmatprep.subr.mxu0 0.0
        %3211 = vmatpush1.msra.mxu0 0.0
        %3212 = vmatprep.subr.mxu0 0.0
        %3213 = vmatpush1.msra.mxu0 0.0
        %3214 = vmatprep.subr.mxu0 0.0
        %3215 = vmatpush1.msra.mxu0 0.0
        %3216 = vmatprep.mubr.f32.mxu0 0.0
        %3217 = vmatmul.mubr.f32.gmra.mrb[0].mxu0 %v3147
        %v3218 = vpop.f32.mrb[0].mxu0
        %v3219 = vadd.f32 %v3145, %v3218
        %v3220 = vpop.f32.mrb[0].mxu0
        %3221 = vmatprep.mubr.f32.mxu0 0.0
        %3222 = vmatmul.mubr.f32.gmra.mrb[0].mxu0 %v3150
        %v3223 = vpop.f32.mrb[0].mxu0
        %v3224 = vadd.f32 %v3145, %v3223
        %v3225 = vpop.f32.mrb[0].mxu0
        %3226 = vdwg.mxu0
        %v3227 = vld [vmem:[%s4 + $0x260] sm:$0xff]
        %v3228 = vld [vmem:[%s4 + $0x268] sm:$0xff]
        %v3229 = vld [vmem:[%s4 + $0x270] sm:$0xff]
        %v3230 = vld [vmem:[%s4 + $0x278] sm:$0xff]
        %v3231 = vld [vmem:[%s4 + $0x280] sm:$0x1]
        %v3232 = vlaneseq
        %v3233 = vshrl.u32 %v3232, 7
        %v3234 = vsub.s32 0, %v3233
        %v3235 = vrot.slane %v3231, %v3234
        %v3237 = vsel %vm311, %v3042, 0
        %v3240 = vsel %vm311, %v3043, 0
        %3242 = vmatprep.subr.mxu0 0.0
        %3243 = vmatpush1.msra.mxu0 %v3227
        %3244 = vmatprep.subr.mxu0 0.0
        %3245 = vmatpush1.msra.mxu0 %v3228
        %3246 = vmatprep.subr.mxu0 0.0
        %3247 = vmatpush1.msra.mxu0 %v3229
        %3248 = vmatprep.subr.mxu0 0.0
        %3249 = vmatpush1.msra.mxu0 %v3230
        %3250 = vmatprep.subr.mxu0 0.0
        %3251 = vmatpush1.msra.mxu0 0.0
        %3252 = vmatprep.subr.mxu0 0.0
        %3253 = vmatpush1.msra.mxu0 0.0
        %3254 = vmatprep.subr.mxu0 0.0
        %3255 = vmatpush1.msra.mxu0 0.0
        %3256 = vmatprep.subr.mxu0 0.0
        %3257 = vmatpush1.msra.mxu0 0.0
        %3258 = vmatprep.subr.mxu0 0.0
        %3259 = vmatpush1.msra.mxu0 0.0
        %3260 = vmatprep.subr.mxu0 0.0
        %3261 = vmatpush1.msra.mxu0 0.0
        %3262 = vmatprep.subr.mxu0 0.0
        %3263 = vmatpush1.msra.mxu0 0.0
        %3264 = vmatprep.subr.mxu0 0.0
        %3265 = vmatpush1.msra.mxu0 0.0
        %3266 = vmatprep.subr.mxu0 0.0
        %3267 = vmatpush1.msra.mxu0 0.0
        %3268 = vmatprep.subr.mxu0 0.0
        %3269 = vmatpush1.msra.mxu0 0.0
        %3270 = vmatprep.subr.mxu0 0.0
        %3271 = vmatpush1.msra.mxu0 0.0
        %3272 = vmatprep.subr.mxu0 0.0
        %3273 = vmatpush1.msra.mxu0 0.0
        %3274 = vmatprep.subr.mxu0 0.0
        %3275 = vmatpush1.msra.mxu0 0.0
        %3276 = vmatprep.subr.mxu0 0.0
        %3277 = vmatpush1.msra.mxu0 0.0
        %3278 = vmatprep.subr.mxu0 0.0
        %3279 = vmatpush1.msra.mxu0 0.0
        %3280 = vmatprep.subr.mxu0 0.0
        %3281 = vmatpush1.msra.mxu0 0.0
        %3282 = vmatprep.subr.mxu0 0.0
        %3283 = vmatpush1.msra.mxu0 0.0
        %3284 = vmatprep.subr.mxu0 0.0
        %3285 = vmatpush1.msra.mxu0 0.0
        %3286 = vmatprep.subr.mxu0 0.0
        %3287 = vmatpush1.msra.mxu0 0.0
        %3288 = vmatprep.subr.mxu0 0.0
        %3289 = vmatpush1.msra.mxu0 0.0
        %3290 = vmatprep.subr.mxu0 0.0
        %3291 = vmatpush1.msra.mxu0 0.0
        %3292 = vmatprep.subr.mxu0 0.0
        %3293 = vmatpush1.msra.mxu0 0.0
        %3294 = vmatprep.subr.mxu0 0.0
        %3295 = vmatpush1.msra.mxu0 0.0
        %3296 = vmatprep.subr.mxu0 0.0
        %3297 = vmatpush1.msra.mxu0 0.0
        %3298 = vmatprep.subr.mxu0 0.0
        %3299 = vmatpush1.msra.mxu0 0.0
        %3300 = vmatprep.subr.mxu0 0.0
        %3301 = vmatpush1.msra.mxu0 0.0
        %3302 = vmatprep.subr.mxu0 0.0
        %3303 = vmatpush1.msra.mxu0 0.0
        %3304 = vmatprep.subr.mxu0 0.0
        %3305 = vmatpush1.msra.mxu0 0.0
        %3306 = vmatprep.mubr.f32.mxu0 0.0
        %3307 = vmatmul.mubr.f32.gmra.mrb[0].mxu0 %v3237
        %v3308 = vpop.f32.mrb[0].mxu0
        %v3309 = vadd.f32 %v3235, %v3308
        %v3310 = vpop.f32.mrb[0].mxu0
        %3311 = vmatprep.mubr.f32.mxu0 0.0
        %3312 = vmatmul.mubr.f32.gmra.mrb[0].mxu0 %v3240
        %v3313 = vpop.f32.mrb[0].mxu0
        %v3314 = vadd.f32 %v3235, %v3313
        %v3315 = vpop.f32.mrb[0].mxu0
        %3316 = vdwg.mxu0
        %v3318 = vsel %vm495, %v3134, 0
        %v3321 = vsel %vm495, %v3219, 0
        %v3324 = vsel %vm495, %v3224, 0
        %3326 = vmatprep.subr.mxu0 0.0
        %3327 = vmatpush1.xpose.msra.mxu0 %v3321
        %3328 = vmatprep.subr.mxu0 0.0
        %3329 = vmatpush1.xpose.msra.mxu0 %v3324
        %3330 = vmatprep.subr.mxu0 0.0
        %3331 = vmatpush1.xpose.msra.mxu0 0.0
        %3332 = vmatprep.subr.mxu0 0.0
        %3333 = vmatpush1.xpose.msra.mxu0 0.0
        %3334 = vmatprep.subr.mxu0 0.0
        %3335 = vmatpush1.xpose.msra.mxu0 0.0
        %3336 = vmatprep.subr.mxu0 0.0
        %3337 = vmatpush1.xpose.msra.mxu0 0.0
        %3338 = vmatprep.subr.mxu0 0.0
        %3339 = vmatpush1.xpose.msra.mxu0 0.0
        %3340 = vmatprep.subr.mxu0 0.0
        %3341 = vmatpush1.xpose.msra.mxu0 0.0
        %3342 = vmatprep.subr.mxu0 0.0
        %3343 = vmatpush1.xpose.msra.mxu0 0.0
        %3344 = vmatprep.subr.mxu0 0.0
        %3345 = vmatpush1.xpose.msra.mxu0 0.0
        %3346 = vmatprep.subr.mxu0 0.0
        %3347 = vmatpush1.xpose.msra.mxu0 0.0
        %3348 = vmatprep.subr.mxu0 0.0
        %3349 = vmatpush1.xpose.msra.mxu0 0.0
        %3350 = vmatprep.subr.mxu0 0.0
        %3351 = vmatpush1.xpose.msra.mxu0 0.0
        %3352 = vmatprep.subr.mxu0 0.0
        %3353 = vmatpush1.xpose.msra.mxu0 0.0
        %3354 = vmatprep.subr.mxu0 0.0
        %3355 = vmatpush1.xpose.msra.mxu0 0.0
        %3356 = vmatprep.subr.mxu0 0.0
        %3357 = vmatpush1.xpose.msra.mxu0 0.0
        %3358 = vmatprep.subr.mxu0 0.0
        %3359 = vmatpush1.xpose.msra.mxu0 0.0
        %3360 = vmatprep.subr.mxu0 0.0
        %3361 = vmatpush1.xpose.msra.mxu0 0.0
        %3362 = vmatprep.subr.mxu0 0.0
        %3363 = vmatpush1.xpose.msra.mxu0 0.0
        %3364 = vmatprep.subr.mxu0 0.0
        %3365 = vmatpush1.xpose.msra.mxu0 0.0
        %3366 = vmatprep.subr.mxu0 0.0
        %3367 = vmatpush1.xpose.msra.mxu0 0.0
        %3368 = vmatprep.subr.mxu0 0.0
        %3369 = vmatpush1.xpose.msra.mxu0 0.0
        %3370 = vmatprep.subr.mxu0 0.0
        %3371 = vmatpush1.xpose.msra.mxu0 0.0
        %3372 = vmatprep.subr.mxu0 0.0
        %3373 = vmatpush1.xpose.msra.mxu0 0.0
        %3374 = vmatprep.subr.mxu0 0.0
        %3375 = vmatpush1.xpose.msra.mxu0 0.0
        %3376 = vmatprep.subr.mxu0 0.0
        %3377 = vmatpush1.xpose.msra.mxu0 0.0
        %3378 = vmatprep.subr.mxu0 0.0
        %3379 = vmatpush1.xpose.msra.mxu0 0.0
        %3380 = vmatprep.subr.mxu0 0.0
        %3381 = vmatpush1.xpose.msra.mxu0 0.0
        %3382 = vmatprep.subr.mxu0 0.0
        %3383 = vmatpush1.xpose.msra.mxu0 0.0
        %3384 = vmatprep.subr.mxu0 0.0
        %3385 = vmatpush1.xpose.msra.mxu0 0.0
        %3386 = vmatprep.subr.mxu0 0.0
        %3387 = vmatpush1.xpose.msra.mxu0 0.0
        %3388 = vmatprep.subr.mxu0 0.0
        %3389 = vmatpush1.xpose.msra.mxu0 0.0
        %3390 = vmatprep.mubr.f32.mxu0 0.0
        %3391 = vmatmul.mubr.f32.gmra.mrb[0].mxu0 %v3318
        %v3392 = vpop.f32.mrb[0].mxu0
        %v3393 = vadd.f32 %v487, %v3392
        %v3394 = vpop.f32.mrb[0].mxu0
        %3395 = vdwg.mxu0
        %v3396 = vsel %vm579, %v3393, -inf
        %3397 = vmax.xlane.f32.xlu0 %v3396
        %v3398 = vpop.xlane.xlu0 %3397
        %v3399 = vsub.f32 %v3393, %v3398
        %v3400 = vmul.f32 %v3399, 1.442695
        %v3401 = vpow.pop %v3400
        %v3402 = vsel %vm579, %v3401, 0.0
        %3403 = vadd.xlane.f32.xlu0 %v3402
        %v3404 = vpop.xlane.xlu0 %3403
        %v3405 = vrcp.pop %v3404
        %v3406 = vmul.f32 %v3401, %v3405
        %v3408 = vsel %vm579, %v3406, 0
        %3410 = vmatprep.subr.mxu0 0.0
        %3411 = vmatpush1.msra.mxu0 %v3309
        %3412 = vmatprep.subr.mxu0 0.0
        %3413 = vmatpush1.msra.mxu0 %v3314
        %3414 = vmatprep.subr.mxu0 0.0
        %3415 = vmatpush1.msra.mxu0 0.0
        %3416 = vmatprep.subr.mxu0 0.0
        %3417 = vmatpush1.msra.mxu0 0.0
        %3418 = vmatprep.subr.mxu0 0.0
        %3419 = vmatpush1.msra.mxu0 0.0
        %3420 = vmatprep.subr.mxu0 0.0
        %3421 = vmatpush1.msra.mxu0 0.0
        %3422 = vmatprep.subr.mxu0 0.0
        %3423 = vmatpush1.msra.mxu0 0.0
        %3424 = vmatprep.subr.mxu0 0.0
        %3425 = vmatpush1.msra.mxu0 0.0
        %3426 = vmatprep.subr.mxu0 0.0
        %3427 = vmatpush1.msra.mxu0 0.0
        %3428 = vmatprep.subr.mxu0 0.0
        %3429 = vmatpush1.msra.mxu0 0.0
        %3430 = vmatprep.subr.mxu0 0.0
        %3431 = vmatpush1.msra.mxu0 0.0
        %3432 = vmatprep.subr.mxu0 0.0
        %3433 = vmatpush1.msra.mxu0 0.0
        %3434 = vmatprep.subr.mxu0 0.0
        %3435 = vmatpush1.msra.mxu0 0.0
        %3436 = vmatprep.subr.mxu0 0.0
        %3437 = vmatpush1.msra.mxu0 0.0
        %3438 = vmatprep.subr.mxu0 0.0
        %3439 = vmatpush1.msra.mxu0 0.0
        %3440 = vmatprep.subr.mxu0 0.0
        %3441 = vmatpush1.msra.mxu0 0.0
        %3442 = vmatprep.subr.mxu0 0.0
        %3443 = vmatpush1.msra.mxu0 0.0
        %3444 = vmatprep.subr.mxu0 0.0
        %3445 = vmatpush1.msra.mxu0 0.0
        %3446 = vmatprep.subr.mxu0 0.0
        %3447 = vmatpush1.msra.mxu0 0.0
        %3448 = vmatprep.subr.mxu0 0.0
        %3449 = vmatpush1.msra.mxu0 0.0
        %3450 = vmatprep.subr.mxu0 0.0
        %3451 = vmatpush1.msra.mxu0 0.0
        %3452 = vmatprep.subr.mxu0 0.0
        %3453 = vmatpush1.msra.mxu0 0.0
        %3454 = vmatprep.subr.mxu0 0.0
        %3455 = vmatpush1.msra.mxu0 0.0
        %3456 = vmatprep.subr.mxu0 0.0
        %3457 = vmatpush1.msra.mxu0 0.0
        %3458 = vmatprep.subr.mxu0 0.0
        %3459 = vmatpush1.msra.mxu0 0.0
        %3460 = vmatprep.subr.mxu0 0.0
        %3461 = vmatpush1.msra.mxu0 0.0
        %3462 = vmatprep.subr.mxu0 0.0
        %3463 = vmatpush1.msra.mxu0 0.0
        %3464 = vmatprep.subr.mxu0 0.0
        %3465 = vmatpush1.msra.mxu0 0.0
        %3466 = vmatprep.subr.mxu0 0.0
        %3467 = vmatpush1.msra.mxu0 0.0
        %3468 = vmatprep.subr.mxu0 0.0
        %3469 = vmatpush1.msra.mxu0 0.0
        %3470 = vmatprep.subr.mxu0 0.0
        %3471 = vmatpush1.msra.mxu0 0.0
        %3472 = vmatprep.subr.mxu0 0.0
        %3473 = vmatpush1.msra.mxu0 0.0
        %3474 = vmatprep.mubr.f32.mxu0 0.0
        %3475 = vmatmul.mubr.f32.gmra.mrb[0].mxu0 %v3408
        %v3476 = vpop.f32.mrb[0].mxu0
        %v3477 = vadd.f32 0.0, %v3476
        %v3478 = vpop.f32.mrb[0].mxu0
        %3479 = vdwg.mxu0
        %3480 = vrot.lane.b32.xlu0 %v3134, 120
        %v3481 = vpop.permute.xlu0 %3480
        %3482 = vrot.lane.b32.xlu0 %v3219, 120
        %v3483 = vpop.permute.xlu0 %3482
        %3484 = vrot.lane.b32.xlu0 %v3224, 120
        %v3485 = vpop.permute.xlu0 %3484
        %v3486 = vsel %vm495, %v3481, 0
        %v3488 = vsel %vm495, %v3483, 0
        %v3490 = vsel %vm495, %v3485, 0
        %3492 = vmatprep.subr.mxu0 0.0
        %3493 = vmatpush1.xpose.msra.mxu0 %v3488
        %3494 = vmatprep.subr.mxu0 0.0
        %3495 = vmatpush1.xpose.msra.mxu0 %v3490
        %3496 = vmatprep.subr.mxu0 0.0
        %3497 = vmatpush1.xpose.msra.mxu0 0.0
        %3498 = vmatprep.subr.mxu0 0.0
        %3499 = vmatpush1.xpose.msra.mxu0 0.0
        %3500 = vmatprep.subr.mxu0 0.0
        %3501 = vmatpush1.xpose.msra.mxu0 0.0
        %3502 = vmatprep.subr.mxu0 0.0
        %3503 = vmatpush1.xpose.msra.mxu0 0.0
        %3504 = vmatprep.subr.mxu0 0.0
        %3505 = vmatpush1.xpose.msra.mxu0 0.0
        %3506 = vmatprep.subr.mxu0 0.0
        %3507 = vmatpush1.xpose.msra.mxu0 0.0
        %3508 = vmatprep.subr.mxu0 0.0
        %3509 = vmatpush1.xpose.msra.mxu0 0.0
        %3510 = vmatprep.subr.mxu0 0.0
        %3511 = vmatpush1.xpose.msra.mxu0 0.0
        %3512 = vmatprep.subr.mxu0 0.0
        %3513 = vmatpush1.xpose.msra.mxu0 0.0
        %3514 = vmatprep.subr.mxu0 0.0
        %3515 = vmatpush1.xpose.msra.mxu0 0.0
        %3516 = vmatprep.subr.mxu0 0.0
        %3517 = vmatpush1.xpose.msra.mxu0 0.0
        %3518 = vmatprep.subr.mxu0 0.0
        %3519 = vmatpush1.xpose.msra.mxu0 0.0
        %3520 = vmatprep.subr.mxu0 0.0
        %3521 = vmatpush1.xpose.msra.mxu0 0.0
        %3522 = vmatprep.subr.mxu0 0.0
        %3523 = vmatpush1.xpose.msra.mxu0 0.0
        %3524 = vmatprep.subr.mxu0 0.0
        %3525 = vmatpush1.xpose.msra.mxu0 0.0
        %3526 = vmatprep.subr.mxu0 0.0
        %3527 = vmatpush1.xpose.msra.mxu0 0.0
        %3528 = vmatprep.subr.mxu0 0.0
        %3529 = vmatpush1.xpose.msra.mxu0 0.0
        %3530 = vmatprep.subr.mxu0 0.0
        %3531 = vmatpush1.xpose.msra.mxu0 0.0
        %3532 = vmatprep.subr.mxu0 0.0
        %3533 = vmatpush1.xpose.msra.mxu0 0.0
        %3534 = vmatprep.subr.mxu0 0.0
        %3535 = vmatpush1.xpose.msra.mxu0 0.0
        %3536 = vmatprep.subr.mxu0 0.0
        %3537 = vmatpush1.xpose.msra.mxu0 0.0
        %3538 = vmatprep.subr.mxu0 0.0
        %3539 = vmatpush1.xpose.msra.mxu0 0.0
        %3540 = vmatprep.subr.mxu0 0.0
        %3541 = vmatpush1.xpose.msra.mxu0 0.0
        %3542 = vmatprep.subr.mxu0 0.0
        %3543 = vmatpush1.xpose.msra.mxu0 0.0
        %3544 = vmatprep.subr.mxu0 0.0
        %3545 = vmatpush1.xpose.msra.mxu0 0.0
        %3546 = vmatprep.subr.mxu0 0.0
        %3547 = vmatpush1.xpose.msra.mxu0 0.0
        %3548 = vmatprep.subr.mxu0 0.0
        %3549 = vmatpush1.xpose.msra.mxu0 0.0
        %3550 = vmatprep.subr.mxu0 0.0
        %3551 = vmatpush1.xpose.msra.mxu0 0.0
        %3552 = vmatprep.subr.mxu0 0.0
        %3553 = vmatpush1.xpose.msra.mxu0 0.0
        %3554 = vmatprep.subr.mxu0 0.0
        %3555 = vmatpush1.xpose.msra.mxu0 0.0
        %3556 = vmatprep.mubr.f32.mxu0 0.0
        %3557 = vmatmul.mubr.f32.gmra.mrb[0].mxu0 %v3486
        %v3558 = vpop.f32.mrb[0].mxu0
        %v3559 = vadd.f32 %v487, %v3558
        %v3560 = vpop.f32.mrb[0].mxu0
        %3561 = vdwg.mxu0
        %v3562 = vsel %vm579, %v3559, -inf
        %3563 = vmax.xlane.f32.xlu0 %v3562
        %v3564 = vpop.xlane.xlu0 %3563
        %v3565 = vsub.f32 %v3559, %v3564
        %v3566 = vmul.f32 %v3565, 1.442695
        %v3567 = vpow.pop %v3566
        %v3568 = vsel %vm579, %v3567, 0.0
        %3569 = vadd.xlane.f32.xlu0 %v3568
        %v3570 = vpop.xlane.xlu0 %3569
        %v3571 = vrcp.pop %v3570
        %v3572 = vmul.f32 %v3567, %v3571
        %3575 = vrot.lane.b32.xlu0 %v3309, 120
        %v3576 = vpop.permute.xlu0 %3575
        %3577 = vrot.lane.b32.xlu0 %v3314, 120
        %v3578 = vpop.permute.xlu0 %3577
        %v3582 = vsel %vm579, %v3572, 0
        %3584 = vmatprep.subr.mxu0 0.0
        %3585 = vmatpush1.msra.mxu0 %v3576
        %3586 = vmatprep.subr.mxu0 0.0
        %3587 = vmatpush1.msra.mxu0 %v3578
        %3588 = vmatprep.subr.mxu0 0.0
        %3589 = vmatpush1.msra.mxu0 0.0
        %3590 = vmatprep.subr.mxu0 0.0
        %3591 = vmatpush1.msra.mxu0 0.0
        %3592 = vmatprep.subr.mxu0 0.0
        %3593 = vmatpush1.msra.mxu0 0.0
        %3594 = vmatprep.subr.mxu0 0.0
        %3595 = vmatpush1.msra.mxu0 0.0
        %3596 = vmatprep.subr.mxu0 0.0
        %3597 = vmatpush1.msra.mxu0 0.0
        %3598 = vmatprep.subr.mxu0 0.0
        %3599 = vmatpush1.msra.mxu0 0.0
        %3600 = vmatprep.subr.mxu0 0.0
        %3601 = vmatpush1.msra.mxu0 0.0
        %3602 = vmatprep.subr.mxu0 0.0
        %3603 = vmatpush1.msra.mxu0 0.0
        %3604 = vmatprep.subr.mxu0 0.0
        %3605 = vmatpush1.msra.mxu0 0.0
        %3606 = vmatprep.subr.mxu0 0.0
        %3607 = vmatpush1.msra.mxu0 0.0
        %3608 = vmatprep.subr.mxu0 0.0
        %3609 = vmatpush1.msra.mxu0 0.0
        %3610 = vmatprep.subr.mxu0 0.0
        %3611 = vmatpush1.msra.mxu0 0.0
        %3612 = vmatprep.subr.mxu0 0.0
        %3613 = vmatpush1.msra.mxu0 0.0
        %3614 = vmatprep.subr.mxu0 0.0
        %3615 = vmatpush1.msra.mxu0 0.0
        %3616 = vmatprep.subr.mxu0 0.0
        %3617 = vmatpush1.msra.mxu0 0.0
        %3618 = vmatprep.subr.mxu0 0.0
        %3619 = vmatpush1.msra.mxu0 0.0
        %3620 = vmatprep.subr.mxu0 0.0
        %3621 = vmatpush1.msra.mxu0 0.0
        %3622 = vmatprep.subr.mxu0 0.0
        %3623 = vmatpush1.msra.mxu0 0.0
        %3624 = vmatprep.subr.mxu0 0.0
        %3625 = vmatpush1.msra.mxu0 0.0
        %3626 = vmatprep.subr.mxu0 0.0
        %3627 = vmatpush1.msra.mxu0 0.0
        %3628 = vmatprep.subr.mxu0 0.0
        %3629 = vmatpush1.msra.mxu0 0.0
        %3630 = vmatprep.subr.mxu0 0.0
        %3631 = vmatpush1.msra.mxu0 0.0
        %3632 = vmatprep.subr.mxu0 0.0
        %3633 = vmatpush1.msra.mxu0 0.0
        %3634 = vmatprep.subr.mxu0 0.0
        %3635 = vmatpush1.msra.mxu0 0.0
        %3636 = vmatprep.subr.mxu0 0.0
        %3637 = vmatpush1.msra.mxu0 0.0
        %3638 = vmatprep.subr.mxu0 0.0
        %3639 = vmatpush1.msra.mxu0 0.0
        %3640 = vmatprep.subr.mxu0 0.0
        %3641 = vmatpush1.msra.mxu0 0.0
        %3642 = vmatprep.subr.mxu0 0.0
        %3643 = vmatpush1.msra.mxu0 0.0
        %3644 = vmatprep.subr.mxu0 0.0
        %3645 = vmatpush1.msra.mxu0 0.0
        %3646 = vmatprep.subr.mxu0 0.0
        %3647 = vmatpush1.msra.mxu0 0.0
        %3648 = vmatprep.mubr.f32.mxu0 0.0
        %3649 = vmatmul.mubr.f32.gmra.mrb[0].mxu0 %v3582
        %v3650 = vpop.f32.mrb[0].mxu0
        %v3651 = vadd.f32 0.0, %v3650
        %v3652 = vpop.f32.mrb[0].mxu0
        %3653 = vdwg.mxu0
        %3654 = vrot.lane.b32.xlu0 %v3134, 112
        %v3655 = vpop.permute.xlu0 %3654
        %3656 = vrot.lane.b32.xlu0 %v3219, 112
        %v3657 = vpop.permute.xlu0 %3656
        %3658 = vrot.lane.b32.xlu0 %v3224, 112
        %v3659 = vpop.permute.xlu0 %3658
        %v3660 = vsel %vm495, %v3655, 0
        %v3662 = vsel %vm495, %v3657, 0
        %v3664 = vsel %vm495, %v3659, 0
        %3666 = vmatprep.subr.mxu0 0.0
        %3667 = vmatpush1.xpose.msra.mxu0 %v3662
        %3668 = vmatprep.subr.mxu0 0.0
        %3669 = vmatpush1.xpose.msra.mxu0 %v3664
        %3670 = vmatprep.subr.mxu0 0.0
        %3671 = vmatpush1.xpose.msra.mxu0 0.0
        %3672 = vmatprep.subr.mxu0 0.0
        %3673 = vmatpush1.xpose.msra.mxu0 0.0
        %3674 = vmatprep.subr.mxu0 0.0
        %3675 = vmatpush1.xpose.msra.mxu0 0.0
        %3676 = vmatprep.subr.mxu0 0.0
        %3677 = vmatpush1.xpose.msra.mxu0 0.0
        %3678 = vmatprep.subr.mxu0 0.0
        %3679 = vmatpush1.xpose.msra.mxu0 0.0
        %3680 = vmatprep.subr.mxu0 0.0
        %3681 = vmatpush1.xpose.msra.mxu0 0.0
        %3682 = vmatprep.subr.mxu0 0.0
        %3683 = vmatpush1.xpose.msra.mxu0 0.0
        %3684 = vmatprep.subr.mxu0 0.0
        %3685 = vmatpush1.xpose.msra.mxu0 0.0
        %3686 = vmatprep.subr.mxu0 0.0
        %3687 = vmatpush1.xpose.msra.mxu0 0.0
        %3688 = vmatprep.subr.mxu0 0.0
        %3689 = vmatpush1.xpose.msra.mxu0 0.0
        %3690 = vmatprep.subr.mxu0 0.0
        %3691 = vmatpush1.xpose.msra.mxu0 0.0
        %3692 = vmatprep.subr.mxu0 0.0
        %3693 = vmatpush1.xpose.msra.mxu0 0.0
        %3694 = vmatprep.subr.mxu0 0.0
        %3695 = vmatpush1.xpose.msra.mxu0 0.0
        %3696 = vmatprep.subr.mxu0 0.0
        %3697 = vmatpush1.xpose.msra.mxu0 0.0
        %3698 = vmatprep.subr.mxu0 0.0
        %3699 = vmatpush1.xpose.msra.mxu0 0.0
        %3700 = vmatprep.subr.mxu0 0.0
        %3701 = vmatpush1.xpose.msra.mxu0 0.0
        %3702 = vmatprep.subr.mxu0 0.0
        %3703 = vmatpush1.xpose.msra.mxu0 0.0
        %3704 = vmatprep.subr.mxu0 0.0
        %3705 = vmatpush1.xpose.msra.mxu0 0.0
        %3706 = vmatprep.subr.mxu0 0.0
        %3707 = vmatpush1.xpose.msra.mxu0 0.0
        %3708 = vmatprep.subr.mxu0 0.0
        %3709 = vmatpush1.xpose.msra.mxu0 0.0
        %3710 = vmatprep.subr.mxu0 0.0
        %3711 = vmatpush1.xpose.msra.mxu0 0.0
        %3712 = vmatprep.subr.mxu0 0.0
        %3713 = vmatpush1.xpose.msra.mxu0 0.0
        %3714 = vmatprep.subr.mxu0 0.0
        %3715 = vmatpush1.xpose.msra.mxu0 0.0
        %3716 = vmatprep.subr.mxu0 0.0
        %3717 = vmatpush1.xpose.msra.mxu0 0.0
        %3718 = vmatprep.subr.mxu0 0.0
        %3719 = vmatpush1.xpose.msra.mxu0 0.0
        %3720 = vmatprep.subr.mxu0 0.0
        %3721 = vmatpush1.xpose.msra.mxu0 0.0
        %3722 = vmatprep.subr.mxu0 0.0
        %3723 = vmatpush1.xpose.msra.mxu0 0.0
        %3724 = vmatprep.subr.mxu0 0.0
        %3725 = vmatpush1.xpose.msra.mxu0 0.0
        %3726 = vmatprep.subr.mxu0 0.0
        %3727 = vmatpush1.xpose.msra.mxu0 0.0
        %3728 = vmatprep.subr.mxu0 0.0
        %3729 = vmatpush1.xpose.msra.mxu0 0.0
        %3730 = vmatprep.mubr.f32.mxu0 0.0
        %3731 = vmatmul.mubr.f32.gmra.mrb[0].mxu0 %v3660
        %v3732 = vpop.f32.mrb[0].mxu0
        %v3733 = vadd.f32 %v487, %v3732
        %v3734 = vpop.f32.mrb[0].mxu0
        %3735 = vdwg.mxu0
        %v3736 = vsel %vm579, %v3733, -inf
        %3737 = vmax.xlane.f32.xlu0 %v3736
        %v3738 = vpop.xlane.xlu0 %3737
        %v3739 = vsub.f32 %v3733, %v3738
        %v3740 = vmul.f32 %v3739, 1.442695
        %v3741 = vpow.pop %v3740
        %v3742 = vsel %vm579, %v3741, 0.0
        %3743 = vadd.xlane.f32.xlu0 %v3742
        %v3744 = vpop.xlane.xlu0 %3743
        %v3745 = vrcp.pop %v3744
        %v3746 = vmul.f32 %v3741, %v3745
        %3747 = vrot.lane.b32.xlu0 %v3309, 112
        %v3748 = vpop.permute.xlu0 %3747
        %3749 = vrot.lane.b32.xlu0 %v3314, 112
        %v3750 = vpop.permute.xlu0 %3749
        %v3754 = vsel %vm579, %v3746, 0
        %3756 = vmatprep.subr.mxu0 0.0
        %3757 = vmatpush1.msra.mxu0 %v3748
        %3758 = vmatprep.subr.mxu0 0.0
        %3759 = vmatpush1.msra.mxu0 %v3750
        %3760 = vmatprep.subr.mxu0 0.0
        %3761 = vmatpush1.msra.mxu0 0.0
        %3762 = vmatprep.subr.mxu0 0.0
        %3763 = vmatpush1.msra.mxu0 0.0
        %3764 = vmatprep.subr.mxu0 0.0
        %3765 = vmatpush1.msra.mxu0 0.0
        %3766 = vmatprep.subr.mxu0 0.0
        %3767 = vmatpush1.msra.mxu0 0.0
        %3768 = vmatprep.subr.mxu0 0.0
        %3769 = vmatpush1.msra.mxu0 0.0
        %3770 = vmatprep.subr.mxu0 0.0
        %3771 = vmatpush1.msra.mxu0 0.0
        %3772 = vmatprep.subr.mxu0 0.0
        %3773 = vmatpush1.msra.mxu0 0.0
        %3774 = vmatprep.subr.mxu0 0.0
        %3775 = vmatpush1.msra.mxu0 0.0
        %3776 = vmatprep.subr.mxu0 0.0
        %3777 = vmatpush1.msra.mxu0 0.0
        %3778 = vmatprep.subr.mxu0 0.0
        %3779 = vmatpush1.msra.mxu0 0.0
        %3780 = vmatprep.subr.mxu0 0.0
        %3781 = vmatpush1.msra.mxu0 0.0
        %3782 = vmatprep.subr.mxu0 0.0
        %3783 = vmatpush1.msra.mxu0 0.0
        %3784 = vmatprep.subr.mxu0 0.0
        %3785 = vmatpush1.msra.mxu0 0.0
        %3786 = vmatprep.subr.mxu0 0.0
        %3787 = vmatpush1.msra.mxu0 0.0
        %3788 = vmatprep.subr.mxu0 0.0
        %3789 = vmatpush1.msra.mxu0 0.0
        %3790 = vmatprep.subr.mxu0 0.0
        %3791 = vmatpush1.msra.mxu0 0.0
        %3792 = vmatprep.subr.mxu0 0.0
        %3793 = vmatpush1.msra.mxu0 0.0
        %3794 = vmatprep.subr.mxu0 0.0
        %3795 = vmatpush1.msra.mxu0 0.0
        %3796 = vmatprep.subr.mxu0 0.0
        %3797 = vmatpush1.msra.mxu0 0.0
        %3798 = vmatprep.subr.mxu0 0.0
        %3799 = vmatpush1.msra.mxu0 0.0
        %3800 = vmatprep.subr.mxu0 0.0
        %3801 = vmatpush1.msra.mxu0 0.0
        %3802 = vmatprep.subr.mxu0 0.0
        %3803 = vmatpush1.msra.mxu0 0.0
        %3804 = vmatprep.subr.mxu0 0.0
        %3805 = vmatpush1.msra.mxu0 0.0
        %3806 = vmatprep.subr.mxu0 0.0
        %3807 = vmatpush1.msra.mxu0 0.0
        %3808 = vmatprep.subr.mxu0 0.0
        %3809 = vmatpush1.msra.mxu0 0.0
        %3810 = vmatprep.subr.mxu0 0.0
        %3811 = vmatpush1.msra.mxu0 0.0
        %3812 = vmatprep.subr.mxu0 0.0
        %3813 = vmatpush1.msra.mxu0 0.0
        %3814 = vmatprep.subr.mxu0 0.0
        %3815 = vmatpush1.msra.mxu0 0.0
        %3816 = vmatprep.subr.mxu0 0.0
        %3817 = vmatpush1.msra.mxu0 0.0
        %3818 = vmatprep.subr.mxu0 0.0
        %3819 = vmatpush1.msra.mxu0 0.0
        %3820 = vmatprep.mubr.f32.mxu0 0.0
        %3821 = vmatmul.mubr.f32.gmra.mrb[0].mxu0 %v3754
        %v3822 = vpop.f32.mrb[0].mxu0
        %v3823 = vadd.f32 0.0, %v3822
        %v3824 = vpop.f32.mrb[0].mxu0
        %3825 = vdwg.mxu0
        %3826 = vrot.lane.b32.xlu0 %v3134, 104
        %v3827 = vpop.permute.xlu0 %3826
        %3828 = vrot.lane.b32.xlu0 %v3219, 104
        %v3829 = vpop.permute.xlu0 %3828
        %3830 = vrot.lane.b32.xlu0 %v3224, 104
        %v3831 = vpop.permute.xlu0 %3830
        %v3832 = vsel %vm495, %v3827, 0
        %v3834 = vsel %vm495, %v3829, 0
        %v3836 = vsel %vm495, %v3831, 0
        %3838 = vmatprep.subr.mxu0 0.0
        %3839 = vmatpush1.xpose.msra.mxu0 %v3834
        %3840 = vmatprep.subr.mxu0 0.0
        %3841 = vmatpush1.xpose.msra.mxu0 %v3836
        %3842 = vmatprep.subr.mxu0 0.0
        %3843 = vmatpush1.xpose.msra.mxu0 0.0
        %3844 = vmatprep.subr.mxu0 0.0
        %3845 = vmatpush1.xpose.msra.mxu0 0.0
        %3846 = vmatprep.subr.mxu0 0.0
        %3847 = vmatpush1.xpose.msra.mxu0 0.0
        %3848 = vmatprep.subr.mxu0 0.0
        %3849 = vmatpush1.xpose.msra.mxu0 0.0
        %3850 = vmatprep.subr.mxu0 0.0
        %3851 = vmatpush1.xpose.msra.mxu0 0.0
        %3852 = vmatprep.subr.mxu0 0.0
        %3853 = vmatpush1.xpose.msra.mxu0 0.0
        %3854 = vmatprep.subr.mxu0 0.0
        %3855 = vmatpush1.xpose.msra.mxu0 0.0
        %3856 = vmatprep.subr.mxu0 0.0
        %3857 = vmatpush1.xpose.msra.mxu0 0.0
        %3858 = vmatprep.subr.mxu0 0.0
        %3859 = vmatpush1.xpose.msra.mxu0 0.0
        %3860 = vmatprep.subr.mxu0 0.0
        %3861 = vmatpush1.xpose.msra.mxu0 0.0
        %3862 = vmatprep.subr.mxu0 0.0
        %3863 = vmatpush1.xpose.msra.mxu0 0.0
        %3864 = vmatprep.subr.mxu0 0.0
        %3865 = vmatpush1.xpose.msra.mxu0 0.0
        %3866 = vmatprep.subr.mxu0 0.0
        %3867 = vmatpush1.xpose.msra.mxu0 0.0
        %3868 = vmatprep.subr.mxu0 0.0
        %3869 = vmatpush1.xpose.msra.mxu0 0.0
        %3870 = vmatprep.subr.mxu0 0.0
        %3871 = vmatpush1.xpose.msra.mxu0 0.0
        %3872 = vmatprep.subr.mxu0 0.0
        %3873 = vmatpush1.xpose.msra.mxu0 0.0
        %3874 = vmatprep.subr.mxu0 0.0
        %3875 = vmatpush1.xpose.msra.mxu0 0.0
        %3876 = vmatprep.subr.mxu0 0.0
        %3877 = vmatpush1.xpose.msra.mxu0 0.0
        %3878 = vmatprep.subr.mxu0 0.0
        %3879 = vmatpush1.xpose.msra.mxu0 0.0
        %3880 = vmatprep.subr.mxu0 0.0
        %3881 = vmatpush1.xpose.msra.mxu0 0.0
        %3882 = vmatprep.subr.mxu0 0.0
        %3883 = vmatpush1.xpose.msra.mxu0 0.0
        %3884 = vmatprep.subr.mxu0 0.0
        %3885 = vmatpush1.xpose.msra.mxu0 0.0
        %3886 = vmatprep.subr.mxu0 0.0
        %3887 = vmatpush1.xpose.msra.mxu0 0.0
        %3888 = vmatprep.subr.mxu0 0.0
        %3889 = vmatpush1.xpose.msra.mxu0 0.0
        %3890 = vmatprep.subr.mxu0 0.0
        %3891 = vmatpush1.xpose.msra.mxu0 0.0
        %3892 = vmatprep.subr.mxu0 0.0
        %3893 = vmatpush1.xpose.msra.mxu0 0.0
        %3894 = vmatprep.subr.mxu0 0.0
        %3895 = vmatpush1.xpose.msra.mxu0 0.0
        %3896 = vmatprep.subr.mxu0 0.0
        %3897 = vmatpush1.xpose.msra.mxu0 0.0
        %3898 = vmatprep.subr.mxu0 0.0
        %3899 = vmatpush1.xpose.msra.mxu0 0.0
        %3900 = vmatprep.subr.mxu0 0.0
        %3901 = vmatpush1.xpose.msra.mxu0 0.0
        %3902 = vmatprep.mubr.f32.mxu0 0.0
        %3903 = vmatmul.mubr.f32.gmra.mrb[0].mxu0 %v3832
        %v3904 = vpop.f32.mrb[0].mxu0
        %v3905 = vadd.f32 %v487, %v3904
        %v3906 = vpop.f32.mrb[0].mxu0
        %3907 = vdwg.mxu0
        %v3908 = vsel %vm579, %v3905, -inf
        %3909 = vmax.xlane.f32.xlu0 %v3908
        %v3910 = vpop.xlane.xlu0 %3909
        %v3911 = vsub.f32 %v3905, %v3910
        %v3912 = vmul.f32 %v3911, 1.442695
        %v3913 = vpow.pop %v3912
        %v3914 = vsel %vm579, %v3913, 0.0
        %3915 = vadd.xlane.f32.xlu0 %v3914
        %v3916 = vpop.xlane.xlu0 %3915
        %v3917 = vrcp.pop %v3916
        %v3918 = vmul.f32 %v3913, %v3917
        %3919 = vrot.lane.b32.xlu0 %v3309, 104
        %v3920 = vpop.permute.xlu0 %3919
        %3921 = vrot.lane.b32.xlu0 %v3314, 104
        %v3922 = vpop.permute.xlu0 %3921
        %v3926 = vsel %vm579, %v3918, 0
        %3928 = vmatprep.subr.mxu0 0.0
        %3929 = vmatpush1.msra.mxu0 %v3920
        %3930 = vmatprep.subr.mxu0 0.0
        %3931 = vmatpush1.msra.mxu0 %v3922
        %3932 = vmatprep.subr.mxu0 0.0
        %3933 = vmatpush1.msra.mxu0 0.0
        %3934 = vmatprep.subr.mxu0 0.0
        %3935 = vmatpush1.msra.mxu0 0.0
        %3936 = vmatprep.subr.mxu0 0.0
        %3937 = vmatpush1.msra.mxu0 0.0
        %3938 = vmatprep.subr.mxu0 0.0
        %3939 = vmatpush1.msra.mxu0 0.0
        %3940 = vmatprep.subr.mxu0 0.0
        %3941 = vmatpush1.msra.mxu0 0.0
        %3942 = vmatprep.subr.mxu0 0.0
        %3943 = vmatpush1.msra.mxu0 0.0
        %3944 = vmatprep.subr.mxu0 0.0
        %3945 = vmatpush1.msra.mxu0 0.0
        %3946 = vmatprep.subr.mxu0 0.0
        %3947 = vmatpush1.msra.mxu0 0.0
        %3948 = vmatprep.subr.mxu0 0.0
        %3949 = vmatpush1.msra.mxu0 0.0
        %3950 = vmatprep.subr.mxu0 0.0
        %3951 = vmatpush1.msra.mxu0 0.0
        %3952 = vmatprep.subr.mxu0 0.0
        %3953 = vmatpush1.msra.mxu0 0.0
        %3954 = vmatprep.subr.mxu0 0.0
        %3955 = vmatpush1.msra.mxu0 0.0
        %3956 = vmatprep.subr.mxu0 0.0
        %3957 = vmatpush1.msra.mxu0 0.0
        %3958 = vmatprep.subr.mxu0 0.0
        %3959 = vmatpush1.msra.mxu0 0.0
        %3960 = vmatprep.subr.mxu0 0.0
        %3961 = vmatpush1.msra.mxu0 0.0
        %3962 = vmatprep.subr.mxu0 0.0
        %3963 = vmatpush1.msra.mxu0 0.0
        %3964 = vmatprep.subr.mxu0 0.0
        %3965 = vmatpush1.msra.mxu0 0.0
        %3966 = vmatprep.subr.mxu0 0.0
        %3967 = vmatpush1.msra.mxu0 0.0
        %3968 = vmatprep.subr.mxu0 0.0
        %3969 = vmatpush1.msra.mxu0 0.0
        %3970 = vmatprep.subr.mxu0 0.0
        %3971 = vmatpush1.msra.mxu0 0.0
        %3972 = vmatprep.subr.mxu0 0.0
        %3973 = vmatpush1.msra.mxu0 0.0
        %3974 = vmatprep.subr.mxu0 0.0
        %3975 = vmatpush1.msra.mxu0 0.0
        %3976 = vmatprep.subr.mxu0 0.0
        %3977 = vmatpush1.msra.mxu0 0.0
        %3978 = vmatprep.subr.mxu0 0.0
        %3979 = vmatpush1.msra.mxu0 0.0
        %3980 = vmatprep.subr.mxu0 0.0
        %3981 = vmatpush1.msra.mxu0 0.0
        %3982 = vmatprep.subr.mxu0 0.0
        %3983 = vmatpush1.msra.mxu0 0.0
        %3984 = vmatprep.subr.mxu0 0.0
        %3985 = vmatpush1.msra.mxu0 0.0
        %3986 = vmatprep.subr.mxu0 0.0
        %3987 = vmatpush1.msra.mxu0 0.0
        %3988 = vmatprep.subr.mxu0 0.0
        %3989 = vmatpush1.msra.mxu0 0.0
        %3990 = vmatprep.subr.mxu0 0.0
        %3991 = vmatpush1.msra.mxu0 0.0
        %3992 = vmatprep.mubr.f32.mxu0 0.0
        %3993 = vmatmul.mubr.f32.gmra.mrb[0].mxu0 %v3926
        %v3994 = vpop.f32.mrb[0].mxu0
        %v3995 = vadd.f32 0.0, %v3994
        %v3996 = vpop.f32.mrb[0].mxu0
        %3997 = vdwg.mxu0
        %3999 = vrot.lane.b32.xlu0 %v3651, 8
        %v4000 = vpop.permute.xlu0 %3999
        %4003 = vrot.lane.b32.xlu0 %v3823, 16
        %v4004 = vpop.permute.xlu0 %4003
        %4007 = vrot.lane.b32.xlu0 %v3995, 24
        %v4008 = vpop.permute.xlu0 %4007
        %v4010 = vsel %vm495, %v3477, %v4000
        %v4011 = vsel %vm579, %v4010, %v4004
        %v4012 = vsel %vm1313, %v4011, %v4008
        %v4013 = vld [vmem:[%s4 + $0x288] sm:$0xff]
        %v4014 = vld [vmem:[%s4 + $0x290] sm:$0xff]
        %v4015 = vld [vmem:[%s4 + $0x298] sm:$0xff]
        %v4016 = vld [vmem:[%s4 + $0x2a0] sm:$0xff]
        %v4017 = vld [vmem:[%s4 + $0x2a8] sm:$0x1]
        %v4018 = vlaneseq
        %v4019 = vshrl.u32 %v4018, 7
        %v4020 = vsub.s32 0, %v4019
        %v4021 = vrot.slane %v4017, %v4020
        %v4023 = vsel %vm311, %v4012, 0
        %4025 = vmatprep.subr.mxu0 0.0
        %4026 = vmatpush1.msra.mxu0 %v4013
        %4027 = vmatprep.subr.mxu0 0.0
        %4028 = vmatpush1.msra.mxu0 %v4014
        %4029 = vmatprep.subr.mxu0 0.0
        %4030 = vmatpush1.msra.mxu0 %v4015
        %4031 = vmatprep.subr.mxu0 0.0
        %4032 = vmatpush1.msra.mxu0 %v4016
        %4033 = vmatprep.subr.mxu0 0.0
        %4034 = vmatpush1.msra.mxu0 0.0
        %4035 = vmatprep.subr.mxu0 0.0
        %4036 = vmatpush1.msra.mxu0 0.0
        %4037 = vmatprep.subr.mxu0 0.0
        %4038 = vmatpush1.msra.mxu0 0.0
        %4039 = vmatprep.subr.mxu0 0.0
        %4040 = vmatpush1.msra.mxu0 0.0
        %4041 = vmatprep.subr.mxu0 0.0
        %4042 = vmatpush1.msra.mxu0 0.0
        %4043 = vmatprep.subr.mxu0 0.0
        %4044 = vmatpush1.msra.mxu0 0.0
        %4045 = vmatprep.subr.mxu0 0.0
        %4046 = vmatpush1.msra.mxu0 0.0
        %4047 = vmatprep.subr.mxu0 0.0
        %4048 = vmatpush1.msra.mxu0 0.0
        %4049 = vmatprep.subr.mxu0 0.0
        %4050 = vmatpush1.msra.mxu0 0.0
        %4051 = vmatprep.subr.mxu0 0.0
        %4052 = vmatpush1.msra.mxu0 0.0
        %4053 = vmatprep.subr.mxu0 0.0
        %4054 = vmatpush1.msra.mxu0 0.0
        %4055 = vmatprep.subr.mxu0 0.0
        %4056 = vmatpush1.msra.mxu0 0.0
        %4057 = vmatprep.subr.mxu0 0.0
        %4058 = vmatpush1.msra.mxu0 0.0
        %4059 = vmatprep.subr.mxu0 0.0
        %4060 = vmatpush1.msra.mxu0 0.0
        %4061 = vmatprep.subr.mxu0 0.0
        %4062 = vmatpush1.msra.mxu0 0.0
        %4063 = vmatprep.subr.mxu0 0.0
        %4064 = vmatpush1.msra.mxu0 0.0
        %4065 = vmatprep.subr.mxu0 0.0
        %4066 = vmatpush1.msra.mxu0 0.0
        %4067 = vmatprep.subr.mxu0 0.0
        %4068 = vmatpush1.msra.mxu0 0.0
        %4069 = vmatprep.subr.mxu0 0.0
        %4070 = vmatpush1.msra.mxu0 0.0
        %4071 = vmatprep.subr.mxu0 0.0
        %4072 = vmatpush1.msra.mxu0 0.0
        %4073 = vmatprep.subr.mxu0 0.0
        %4074 = vmatpush1.msra.mxu0 0.0
        %4075 = vmatprep.subr.mxu0 0.0
        %4076 = vmatpush1.msra.mxu0 0.0
        %4077 = vmatprep.subr.mxu0 0.0
        %4078 = vmatpush1.msra.mxu0 0.0
        %4079 = vmatprep.subr.mxu0 0.0
        %4080 = vmatpush1.msra.mxu0 0.0
        %4081 = vmatprep.subr.mxu0 0.0
        %4082 = vmatpush1.msra.mxu0 0.0
        %4083 = vmatprep.subr.mxu0 0.0
        %4084 = vmatpush1.msra.mxu0 0.0
        %4085 = vmatprep.subr.mxu0 0.0
        %4086 = vmatpush1.msra.mxu0 0.0
        %4087 = vmatprep.subr.mxu0 0.0
        %4088 = vmatpush1.msra.mxu0 0.0
        %4089 = vmatprep.mubr.f32.mxu0 0.0
        %4090 = vmatmul.mubr.f32.gmra.mrb[0].mxu0 %v4023
        %v4091 = vpop.f32.mrb[0].mxu0
        %v4092 = vadd.f32 %v4021, %v4091
        %v4093 = vpop.f32.mrb[0].mxu0
        %4094 = vdwg.mxu0
        %v4095 = vadd.f32 %v3053, %v4092
        %v4096 = vld [vmem:[%s4 + $0x2b0] sm:$0x1]
        %v4097 = vld [vmem:[%s4 + $0x2b8] sm:$0x1]
        %v4098 = vsel %vm311, %v4095, 0.0
        %4099 = vadd.xlane.f32.xlu0 %v4098
        %v4100 = vpop.xlane.xlu0 %4099
        %v4101 = vmul.f32 %v4100, %v1416
        %v4102 = vsub.f32 %v4095, %v4101
        %v4103 = vmul.f32 %v4102, %v4102
        %v4104 = vsel %vm311, %v4103, 0.0
        %4105 = vadd.xlane.f32.xlu0 %v4104
        %v4106 = vpop.xlane.xlu0 %4105
        %v4107 = vmul.f32 %v4106, %v1416
        %v4108 = vadd.f32 %v4107, 1e-05
        %v4109 = vrsqrt.pop %v4108
        %v4110 = vmul.f32 %v4102, %v4109
        %v4111 = vlaneseq
        %v4112 = vshrl.u32 %v4111, 7
        %v4113 = vsub.s32 0, %v4112
        %v4114 = vrot.slane %v4096, %v4113
        %v4115 = vmul.f32 %v4110, %v4114
        %v4116 = vlaneseq
        %v4117 = vshrl.u32 %v4116, 7
        %v4118 = vsub.s32 0, %v4117
        %v4119 = vrot.slane %v4097, %v4118
        %v4120 = vadd.f32 %v4115, %v4119
        %v4121 = vld [vmem:[%s4 + $0x2c0] sm:$0xff]
        %v4122 = vld [vmem:[%s4 + $0x2c8] sm:$0xff]
        %v4123 = vld [vmem:[%s4 + $0x2d0] sm:$0xff]
        %v4124 = vld [vmem:[%s4 + $0x2d8] sm:$0xff]
        %v4125 = vld [vmem:[%s4 + $0x2e0] sm:$0x1]
        %v4126 = vlaneseq
        %v4127 = vshrl.u32 %v4126, 7
        %v4128 = vsub.s32 0, %v4127
        %v4129 = vrot.slane %v4125, %v4128
        %v4131 = vsel %vm311, %v4120, 0
        %4133 = vmatprep.subr.mxu0 0.0
        %4134 = vmatpush1.msra.mxu0 %v4121
        %4135 = vmatprep.subr.mxu0 0.0
        %4136 = vmatpush1.msra.mxu0 %v4122
        %4137 = vmatprep.subr.mxu0 0.0
        %4138 = vmatpush1.msra.mxu0 %v4123
        %4139 = vmatprep.subr.mxu0 0.0
        %4140 = vmatpush1.msra.mxu0 %v4124
        %4141 = vmatprep.subr.mxu0 0.0
        %4142 = vmatpush1.msra.mxu0 0.0
        %4143 = vmatprep.subr.mxu0 0.0
        %4144 = vmatpush1.msra.mxu0 0.0
        %4145 = vmatprep.subr.mxu0 0.0
        %4146 = vmatpush1.msra.mxu0 0.0
        %4147 = vmatprep.subr.mxu0 0.0
        %4148 = vmatpush1.msra.mxu0 0.0
        %4149 = vmatprep.subr.mxu0 0.0
        %4150 = vmatpush1.msra.mxu0 0.0
        %4151 = vmatprep.subr.mxu0 0.0
        %4152 = vmatpush1.msra.mxu0 0.0
        %4153 = vmatprep.subr.mxu0 0.0
        %4154 = vmatpush1.msra.mxu0 0.0
        %4155 = vmatprep.subr.mxu0 0.0
        %4156 = vmatpush1.msra.mxu0 0.0
        %4157 = vmatprep.subr.mxu0 0.0
        %4158 = vmatpush1.msra.mxu0 0.0
        %4159 = vmatprep.subr.mxu0 0.0
        %4160 = vmatpush1.msra.mxu0 0.0
        %4161 = vmatprep.subr.mxu0 0.0
        %4162 = vmatpush1.msra.mxu0 0.0
        %4163 = vmatprep.subr.mxu0 0.0
        %4164 = vmatpush1.msra.mxu0 0.0
        %4165 = vmatprep.subr.mxu0 0.0
        %4166 = vmatpush1.msra.mxu0 0.0
        %4167 = vmatprep.subr.mxu0 0.0
        %4168 = vmatpush1.msra.mxu0 0.0
        %4169 = vmatprep.subr.mxu0 0.0
        %4170 = vmatpush1.msra.mxu0 0.0
        %4171 = vmatprep.subr.mxu0 0.0
        %4172 = vmatpush1.msra.mxu0 0.0
        %4173 = vmatprep.subr.mxu0 0.0
        %4174 = vmatpush1.msra.mxu0 0.0
        %4175 = vmatprep.subr.mxu0 0.0
        %4176 = vmatpush1.msra.mxu0 0.0
        %4177 = vmatprep.subr.mxu0 0.0
        %4178 = vmatpush1.msra.mxu0 0.0
        %4179 = vmatprep.subr.mxu0 0.0
        %4180 = vmatpush1.msra.mxu0 0.0
        %4181 = vmatprep.subr.mxu0 0.0
        %4182 = vmatpush1.msra.mxu0 0.0
        %4183 = vmatprep.subr.mxu0 0.0
        %4184 = vmatpush1.msra.mxu0 0.0
        %4185 = vmatprep.subr.mxu0 0.0
        %4186 = vmatpush1.msra.mxu0 0.0
        %4187 = vmatprep.subr.mxu0 0.0
        %4188 = vmatpush1.msra.mxu0 0.0
        %4189 = vmatprep.subr.mxu0 0.0
        %4190 = vmatpush1.msra.mxu0 0.0
        %4191 = vmatprep.subr.mxu0 0.0
        %4192 = vmatpush1.msra.mxu0 0.0
        %4193 = vmatprep.subr.mxu0 0.0
        %4194 = vmatpush1.msra.mxu0 0.0
        %4195 = vmatprep.subr.mxu0 0.0
        %4196 = vmatpush1.msra.mxu0 0.0
        %4197 = vmatprep.mubr.f32.mxu0 0.0
        %4198 = vmatmul.mubr.f32.gmra.mrb[0].mxu0 %v4131
        %v4199 = vpop.f32.mrb[0].mxu0
        %v4200 = vadd.f32 %v4129, %v4199
        %v4201 = vpop.f32.mrb[0].mxu0
        %4202 = vdwg.mxu0
        %v4203 = vmax.f32 %v4200, 0.0
        %v4204 = vld [vmem:[%s4 + $0x2e8] sm:$0xff]
        %v4205 = vld [vmem:[%s4 + $0x2f0] sm:$0xff]
        %v4206 = vld [vmem:[%s4 + $0x2f8] sm:$0xff]
        %v4207 = vld [vmem:[%s4 + $0x300] sm:$0xff]
        %v4208 = vld [vmem:[%s4 + $0x308] sm:$0xff]
        %v4209 = vld [vmem:[%s4 + $0x310] sm:$0xff]
        %v4210 = vld [vmem:[%s4 + $0x318] sm:$0xff]
        %v4211 = vld [vmem:[%s4 + $0x320] sm:$0xff]
        %v4212 = vld [vmem:[%s4 + $0x328] sm:$0x1]
        %v4213 = vlaneseq
        %v4214 = vshrl.u32 %v4213, 7
        %v4215 = vsub.s32 0, %v4214
        %v4216 = vrot.slane %v4212, %v4215
        %v4218 = vsel %vm1554, %v4203, 0
        %4220 = vmatprep.subr.mxu0 0.0
        %4221 = vmatpush1.msra.mxu0 %v4204
        %4222 = vmatprep.subr.mxu0 0.0
        %4223 = vmatpush1.msra.mxu0 %v4205
        %4224 = vmatprep.subr.mxu0 0.0
        %4225 = vmatpush1.msra.mxu0 %v4206
        %4226 = vmatprep.subr.mxu0 0.0
        %4227 = vmatpush1.msra.mxu0 %v4207
        %4228 = vmatprep.subr.mxu0 0.0
        %4229 = vmatpush1.msra.mxu0 %v4208
        %4230 = vmatprep.subr.mxu0 0.0
        %4231 = vmatpush1.msra.mxu0 %v4209
        %4232 = vmatprep.subr.mxu0 0.0
        %4233 = vmatpush1.msra.mxu0 %v4210
        %4234 = vmatprep.subr.mxu0 0.0
        %4235 = vmatpush1.msra.mxu0 %v4211
        %4236 = vmatprep.subr.mxu0 0.0
        %4237 = vmatpush1.msra.mxu0 0.0
        %4238 = vmatprep.subr.mxu0 0.0
        %4239 = vmatpush1.msra.mxu0 0.0
        %4240 = vmatprep.subr.mxu0 0.0
        %4241 = vmatpush1.msra.mxu0 0.0
        %4242 = vmatprep.subr.mxu0 0.0
        %4243 = vmatpush1.msra.mxu0 0.0
        %4244 = vmatprep.subr.mxu0 0.0
        %4245 = vmatpush1.msra.mxu0 0.0
        %4246 = vmatprep.subr.mxu0 0.0
        %4247 = vmatpush1.msra.mxu0 0.0
        %4248 = vmatprep.subr.mxu0 0.0
        %4249 = vmatpush1.msra.mxu0 0.0
        %4250 = vmatprep.subr.mxu0 0.0
        %4251 = vmatpush1.msra.mxu0 0.0
        %4252 = vmatprep.subr.mxu0 0.0
        %4253 = vmatpush1.msra.mxu0 0.0
        %4254 = vmatprep.subr.mxu0 0.0
        %4255 = vmatpush1.msra.mxu0 0.0
        %4256 = vmatprep.subr.mxu0 0.0
        %4257 = vmatpush1.msra.mxu0 0.0
        %4258 = vmatprep.subr.mxu0 0.0
        %4259 = vmatpush1.msra.mxu0 0.0
        %4260 = vmatprep.subr.mxu0 0.0
        %4261 = vmatpush1.msra.mxu0 0.0
        %4262 = vmatprep.subr.mxu0 0.0
        %4263 = vmatpush1.msra.mxu0 0.0
        %4264 = vmatprep.subr.mxu0 0.0
        %4265 = vmatpush1.msra.mxu0 0.0
        %4266 = vmatprep.subr.mxu0 0.0
        %4267 = vmatpush1.msra.mxu0 0.0
        %4268 = vmatprep.subr.mxu0 0.0
        %4269 = vmatpush1.msra.mxu0 0.0
        %4270 = vmatprep.subr.mxu0 0.0
        %4271 = vmatpush1.msra.mxu0 0.0
        %4272 = vmatprep.subr.mxu0 0.0
        %4273 = vmatpush1.msra.mxu0 0.0
        %4274 = vmatprep.subr.mxu0 0.0
        %4275 = vmatpush1.msra.mxu0 0.0
        %4276 = vmatprep.subr.mxu0 0.0
        %4277 = vmatpush1.msra.mxu0 0.0
        %4278 = vmatprep.subr.mxu0 0.0
        %4279 = vmatpush1.msra.mxu0 0.0
        %4280 = vmatprep.subr.mxu0 0.0
        %4281 = vmatpush1.msra.mxu0 0.0
        %4282 = vmatprep.subr.mxu0 0.0
        %4283 = vmatpush1.msra.mxu0 0.0
        %4284 = vmatprep.mubr.f32.mxu0 0.0
        %4285 = vmatmul.mubr.f32.gmra.mrb[0].mxu0 %v4218
        %v4286 = vpop.f32.mrb[0].mxu0
        %v4287 = vadd.f32 %v4216, %v4286
        %v4288 = vpop.f32.mrb[0].mxu0
        %4289 = vdwg.mxu0
        %v4290 = vadd.f32 %v4120, %v4287
        %v4291 = vld [vmem:[%s4 + $0x330] sm:$0x1]
        %v4292 = vld [vmem:[%s4 + $0x338] sm:$0x1]
        %v4293 = vsel %vm311, %v4290, 0.0
        %4294 = vadd.xlane.f32.xlu0 %v4293
        %v4295 = vpop.xlane.xlu0 %4294
        %v4296 = vmul.f32 %v4295, %v1416
        %v4297 = vsub.f32 %v4290, %v4296
        %v4298 = vmul.f32 %v4297, %v4297
        %v4299 = vsel %vm311, %v4298, 0.0
        %4300 = vadd.xlane.f32.xlu0 %v4299
        %v4301 = vpop.xlane.xlu0 %4300
        %v4302 = vmul.f32 %v4301, %v1416
        %v4303 = vadd.f32 %v4302, 1e-05
        %v4304 = vrsqrt.pop %v4303
        %v4305 = vmul.f32 %v4297, %v4304
        %v4306 = vlaneseq
        %v4307 = vshrl.u32 %v4306, 7
        %v4308 = vsub.s32 0, %v4307
        %v4309 = vrot.slane %v4291, %v4308
        %v4310 = vmul.f32 %v4305, %v4309
        %v4311 = vlaneseq
        %v4312 = vshrl.u32 %v4311, 7
        %v4313 = vsub.s32 0, %v4312
        %v4314 = vrot.slane %v4292, %v4313
        %v4315 = vadd.f32 %v4310, %v4314
        %v4316 = vadd.f32 %v4315, %v3046
        %v4317 = vld [vmem:[%s4 + $0x340] sm:$0xff]
        %v4318 = vld [vmem:[%s4 + $0x348] sm:$0xff]
        %v4319 = vld [vmem:[%s4 + $0x350] sm:$0xff]
        %v4320 = vld [vmem:[%s4 + $0x358] sm:$0xff]
        %v4321 = vld [vmem:[%s4 + $0x360] sm:$0x1]
        %v4322 = vlaneseq
        %v4323 = vshrl.u32 %v4322, 7
        %v4324 = vsub.s32 0, %v4323
        %v4325 = vrot.slane %v4321, %v4324
        %v4327 = vsel %vm311, %v4316, 0
        %4329 = vmatprep.subr.mxu0 0.0
        %4330 = vmatpush1.msra.mxu0 %v4317
        %4331 = vmatprep.subr.mxu0 0.0
        %4332 = vmatpush1.msra.mxu0 %v4318
        %4333 = vmatprep.subr.mxu0 0.0
        %4334 = vmatpush1.msra.mxu0 %v4319
        %4335 = vmatprep.subr.mxu0 0.0
        %4336 = vmatpush1.msra.mxu0 %v4320
        %4337 = vmatprep.subr.mxu0 0.0
        %4338 = vmatpush1.msra.mxu0 0.0
        %4339 = vmatprep.subr.mxu0 0.0
        %4340 = vmatpush1.msra.mxu0 0.0
        %4341 = vmatprep.subr.mxu0 0.0
        %4342 = vmatpush1.msra.mxu0 0.0
        %4343 = vmatprep.subr.mxu0 0.0
        %4344 = vmatpush1.msra.mxu0 0.0
        %4345 = vmatprep.subr.mxu0 0.0
        %4346 = vmatpush1.msra.mxu0 0.0
        %4347 = vmatprep.subr.mxu0 0.0
        %4348 = vmatpush1.msra.mxu0 0.0
        %4349 = vmatprep.subr.mxu0 0.0
        %4350 = vmatpush1.msra.mxu0 0.0
        %4351 = vmatprep.subr.mxu0 0.0
        %4352 = vmatpush1.msra.mxu0 0.0
        %4353 = vmatprep.subr.mxu0 0.0
        %4354 = vmatpush1.msra.mxu0 0.0
        %4355 = vmatprep.subr.mxu0 0.0
        %4356 = vmatpush1.msra.mxu0 0.0
        %4357 = vmatprep.subr.mxu0 0.0
        %4358 = vmatpush1.msra.mxu0 0.0
        %4359 = vmatprep.subr.mxu0 0.0
        %4360 = vmatpush1.msra.mxu0 0.0
        %4361 = vmatprep.subr.mxu0 0.0
        %4362 = vmatpush1.msra.mxu0 0.0
        %4363 = vmatprep.subr.mxu0 0.0
        %4364 = vmatpush1.msra.mxu0 0.0
        %4365 = vmatprep.subr.mxu0 0.0
        %4366 = vmatpush1.msra.mxu0 0.0
        %4367 = vmatprep.subr.mxu0 0.0
        %4368 = vmatpush1.msra.mxu0 0.0
        %4369 = vmatprep.subr.mxu0 0.0
        %4370 = vmatpush1.msra.mxu0 0.0
        %4371 = vmatprep.subr.mxu0 0.0
        %4372 = vmatpush1.msra.mxu0 0.0
        %4373 = vmatprep.subr.mxu0 0.0
        %4374 = vmatpush1.msra.mxu0 0.0
        %4375 = vmatprep.subr.mxu0 0.0
        %4376 = vmatpush1.msra.mxu0 0.0
        %4377 = vmatprep.subr.mxu0 0.0
        %4378 = vmatpush1.msra.mxu0 0.0
        %4379 = vmatprep.subr.mxu0 0.0
        %4380 = vmatpush1.msra.mxu0 0.0
        %4381 = vmatprep.subr.mxu0 0.0
        %4382 = vmatpush1.msra.mxu0 0.0
        %4383 = vmatprep.subr.mxu0 0.0
        %4384 = vmatpush1.msra.mxu0 0.0
        %4385 = vmatprep.subr.mxu0 0.0
        %4386 = vmatpush1.msra.mxu0 0.0
        %4387 = vmatprep.subr.mxu0 0.0
        %4388 = vmatpush1.msra.mxu0 0.0
        %4389 = vmatprep.subr.mxu0 0.0
        %4390 = vmatpush1.msra.mxu0 0.0
        %4391 = vmatprep.subr.mxu0 0.0
        %4392 = vmatpush1.msra.mxu0 0.0
        %4393 = vmatprep.mubr.f32.mxu0 0.0
        %4394 = vmatmul.mubr.f32.gmra.mrb[0].mxu0 %v4327
        %v4395 = vpop.f32.mrb[0].mxu0
        %v4396 = vadd.f32 %v4325, %v4395
        %v4397 = vpop.f32.mrb[0].mxu0
        %4398 = vdwg.mxu0
        %v4399 = vld [vmem:[%s4 + $0x368] sm:$0xff]
        %v4400 = vld [vmem:[%s4 + $0x370] sm:$0xff]
        %v4401 = vld [vmem:[%s4 + $0x378] sm:$0xff]
        %v4402 = vld [vmem:[%s4 + $0x380] sm:$0xff]
        %v4403 = vld [vmem:[%s4 + $0x388] sm:$0x1]
        %v4404 = vlaneseq
        %v4405 = vshrl.u32 %v4404, 7
        %v4406 = vsub.s32 0, %v4405
        %v4407 = vrot.slane %v4403, %v4406
        %v4409 = vsel %vm311, %v4315, 0
        %4411 = vmatprep.subr.mxu0 0.0
        %4412 = vmatpush1.msra.mxu0 %v4399
        %4413 = vmatprep.subr.mxu0 0.0
        %4414 = vmatpush1.msra.mxu0 %v4400
        %4415 = vmatprep.subr.mxu0 0.0
        %4416 = vmatpush1.msra.mxu0 %v4401
        %4417 = vmatprep.subr.mxu0 0.0
        %4418 = vmatpush1.msra.mxu0 %v4402
        %4419 = vmatprep.subr.mxu0 0.0
        %4420 = vmatpush1.msra.mxu0 0.0
        %4421 = vmatprep.subr.mxu0 0.0
        %4422 = vmatpush1.msra.mxu0 0.0
        %4423 = vmatprep.subr.mxu0 0.0
        %4424 = vmatpush1.msra.mxu0 0.0
        %4425 = vmatprep.subr.mxu0 0.0
        %4426 = vmatpush1.msra.mxu0 0.0
        %4427 = vmatprep.subr.mxu0 0.0
        %4428 = vmatpush1.msra.mxu0 0.0
        %4429 = vmatprep.subr.mxu0 0.0
        %4430 = vmatpush1.msra.mxu0 0.0
        %4431 = vmatprep.subr.mxu0 0.0
        %4432 = vmatpush1.msra.mxu0 0.0
        %4433 = vmatprep.subr.mxu0 0.0
        %4434 = vmatpush1.msra.mxu0 0.0
        %4435 = vmatprep.subr.mxu0 0.0
        %4436 = vmatpush1.msra.mxu0 0.0
        %4437 = vmatprep.subr.mxu0 0.0
        %4438 = vmatpush1.msra.mxu0 0.0
        %4439 = vmatprep.subr.mxu0 0.0
        %4440 = vmatpush1.msra.mxu0 0.0
        %4441 = vmatprep.subr.mxu0 0.0
        %4442 = vmatpush1.msra.mxu0 0.0
        %4443 = vmatprep.subr.mxu0 0.0
        %4444 = vmatpush1.msra.mxu0 0.0
        %4445 = vmatprep.subr.mxu0 0.0
        %4446 = vmatpush1.msra.mxu0 0.0
        %4447 = vmatprep.subr.mxu0 0.0
        %4448 = vmatpush1.msra.mxu0 0.0
        %4449 = vmatprep.subr.mxu0 0.0
        %4450 = vmatpush1.msra.mxu0 0.0
        %4451 = vmatprep.subr.mxu0 0.0
        %4452 = vmatpush1.msra.mxu0 0.0
        %4453 = vmatprep.subr.mxu0 0.0
        %4454 = vmatpush1.msra.mxu0 0.0
        %4455 = vmatprep.subr.mxu0 0.0
        %4456 = vmatpush1.msra.mxu0 0.0
        %4457 = vmatprep.subr.mxu0 0.0
        %4458 = vmatpush1.msra.mxu0 0.0
        %4459 = vmatprep.subr.mxu0 0.0
        %4460 = vmatpush1.msra.mxu0 0.0
        %4461 = vmatprep.subr.mxu0 0.0
        %4462 = vmatpush1.msra.mxu0 0.0
        %4463 = vmatprep.subr.mxu0 0.0
        %4464 = vmatpush1.msra.mxu0 0.0
        %4465 = vmatprep.subr.mxu0 0.0
        %4466 = vmatpush1.msra.mxu0 0.0
        %4467 = vmatprep.subr.mxu0 0.0
        %4468 = vmatpush1.msra.mxu0 0.0
        %4469 = vmatprep.subr.mxu0 0.0
        %4470 = vmatpush1.msra.mxu0 0.0
        %4471 = vmatprep.subr.mxu0 0.0
        %4472 = vmatpush1.msra.mxu0 0.0
        %4473 = vmatprep.subr.mxu0 0.0
        %4474 = vmatpush1.msra.mxu0 0.0
        %4475 = vmatprep.mubr.f32.mxu0 0.0
        %4476 = vmatmul.mubr.f32.gmra.mrb[0].mxu0 %v4409
        %v4477 = vpop.f32.mrb[0].mxu0
        %v4478 = vadd.f32 %v4407, %v4477
        %v4479 = vpop.f32.mrb[0].mxu0
        %4480 = vdwg.mxu0
        %4482 = vrot.lane.b32.xlu0 %v4396, 96
        %v4483 = vpop.permute.xlu0 %4482
        %v4484 = vsel %vm495, %v4396, 0
        %v4486 = vsel %vm495, %v4483, 0
        %4488 = vmatprep.subr.mxu0 0.0
        %4489 = vmatpush1.xpose.msra.mxu0 %v4486
        %4490 = vmatprep.subr.mxu0 0.0
        %4491 = vmatpush1.xpose.msra.mxu0 0.0
        %4492 = vmatprep.subr.mxu0 0.0
        %4493 = vmatpush1.xpose.msra.mxu0 0.0
        %4494 = vmatprep.subr.mxu0 0.0
        %4495 = vmatpush1.xpose.msra.mxu0 0.0
        %4496 = vmatprep.subr.mxu0 0.0
        %4497 = vmatpush1.xpose.msra.mxu0 0.0
        %4498 = vmatprep.subr.mxu0 0.0
        %4499 = vmatpush1.xpose.msra.mxu0 0.0
        %4500 = vmatprep.subr.mxu0 0.0
        %4501 = vmatpush1.xpose.msra.mxu0 0.0
        %4502 = vmatprep.subr.mxu0 0.0
        %4503 = vmatpush1.xpose.msra.mxu0 0.0
        %4504 = vmatprep.subr.mxu0 0.0
        %4505 = vmatpush1.xpose.msra.mxu0 0.0
        %4506 = vmatprep.subr.mxu0 0.0
        %4507 = vmatpush1.xpose.msra.mxu0 0.0
        %4508 = vmatprep.subr.mxu0 0.0
        %4509 = vmatpush1.xpose.msra.mxu0 0.0
        %4510 = vmatprep.subr.mxu0 0.0
        %4511 = vmatpush1.xpose.msra.mxu0 0.0
        %4512 = vmatprep.subr.mxu0 0.0
        %4513 = vmatpush1.xpose.msra.mxu0 0.0
        %4514 = vmatprep.subr.mxu0 0.0
        %4515 = vmatpush1.xpose.msra.mxu0 0.0
        %4516 = vmatprep.subr.mxu0 0.0
        %4517 = vmatpush1.xpose.msra.mxu0 0.0
        %4518 = vmatprep.subr.mxu0 0.0
        %4519 = vmatpush1.xpose.msra.mxu0 0.0
        %4520 = vmatprep.subr.mxu0 0.0
        %4521 = vmatpush1.xpose.msra.mxu0 0.0
        %4522 = vmatprep.subr.mxu0 0.0
        %4523 = vmatpush1.xpose.msra.mxu0 0.0
        %4524 = vmatprep.subr.mxu0 0.0
        %4525 = vmatpush1.xpose.msra.mxu0 0.0
        %4526 = vmatprep.subr.mxu0 0.0
        %4527 = vmatpush1.xpose.msra.mxu0 0.0
        %4528 = vmatprep.subr.mxu0 0.0
        %4529 = vmatpush1.xpose.msra.mxu0 0.0
        %4530 = vmatprep.subr.mxu0 0.0
        %4531 = vmatpush1.xpose.msra.mxu0 0.0
        %4532 = vmatprep.subr.mxu0 0.0
        %4533 = vmatpush1.xpose.msra.mxu0 0.0
        %4534 = vmatprep.subr.mxu0 0.0
        %4535 = vmatpush1.xpose.msra.mxu0 0.0
        %4536 = vmatprep.subr.mxu0 0.0
        %4537 = vmatpush1.xpose.msra.mxu0 0.0
        %4538 = vmatprep.subr.mxu0 0.0
        %4539 = vmatpush1.xpose.msra.mxu0 0.0
        %4540 = vmatprep.subr.mxu0 0.0
        %4541 = vmatpush1.xpose.msra.mxu0 0.0
        %4542 = vmatprep.subr.mxu0 0.0
        %4543 = vmatpush1.xpose.msra.mxu0 0.0
        %4544 = vmatprep.subr.mxu0 0.0
        %4545 = vmatpush1.xpose.msra.mxu0 0.0
        %4546 = vmatprep.subr.mxu0 0.0
        %4547 = vmatpush1.xpose.msra.mxu0 0.0
        %4548 = vmatprep.subr.mxu0 0.0
        %4549 = vmatpush1.xpose.msra.mxu0 0.0
        %4550 = vmatprep.subr.mxu0 0.0
        %4551 = vmatpush1.xpose.msra.mxu0 0.0
        %4552 = vmatprep.mubr.f32.mxu0 0.0
        %4553 = vmatmul.mubr.f32.gmra.mrb[0].mxu0 %v4484
        %v4554 = vpop.f32.mrb[0].mxu0
        %v4555 = vadd.f32 0.0, %v4554
        %v4556 = vpop.f32.mrb[0].mxu0
        %4557 = vdwg.mxu0
        %v4558 = vsel %vm495, %v4555, -inf
        %4559 = vmax.xlane.f32.xlu0 %v4558
        %v4560 = vpop.xlane.xlu0 %4559
        %v4561 = vsub.f32 %v4555, %v4560
        %v4562 = vmul.f32 %v4561, 1.442695
        %v4563 = vpow.pop %v4562
        %v4564 = vsel %vm495, %v4563, 0.0
        %4565 = vadd.xlane.f32.xlu0 %v4564
        %v4566 = vpop.xlane.xlu0 %4565
        %v4567 = vrcp.pop %v4566
        %v4568 = vmul.f32 %v4563, %v4567
        %v4570 = vsel %vm495, %v4568, 0
        %4572 = vmatprep.subr.mxu0 0.0
        %4573 = vmatpush1.msra.mxu0 %v4478
        %4574 = vmatprep.subr.mxu0 0.0
        %4575 = vmatpush1.msra.mxu0 0.0
        %4576 = vmatprep.subr.mxu0 0.0
        %4577 = vmatpush1.msra.mxu0 0.0
        %4578 = vmatprep.subr.mxu0 0.0
        %4579 = vmatpush1.msra.mxu0 0.0
        %4580 = vmatprep.subr.mxu0 0.0
        %4581 = vmatpush1.msra.mxu0 0.0
        %4582 = vmatprep.subr.mxu0 0.0
        %4583 = vmatpush1.msra.mxu0 0.0
        %4584 = vmatprep.subr.mxu0 0.0
        %4585 = vmatpush1.msra.mxu0 0.0
        %4586 = vmatprep.subr.mxu0 0.0
        %4587 = vmatpush1.msra.mxu0 0.0
        %4588 = vmatprep.subr.mxu0 0.0
        %4589 = vmatpush1.msra.mxu0 0.0
        %4590 = vmatprep.subr.mxu0 0.0
        %4591 = vmatpush1.msra.mxu0 0.0
        %4592 = vmatprep.subr.mxu0 0.0
        %4593 = vmatpush1.msra.mxu0 0.0
        %4594 = vmatprep.subr.mxu0 0.0
        %4595 = vmatpush1.msra.mxu0 0.0
        %4596 = vmatprep.subr.mxu0 0.0
        %4597 = vmatpush1.msra.mxu0 0.0
        %4598 = vmatprep.subr.mxu0 0.0
        %4599 = vmatpush1.msra.mxu0 0.0
        %4600 = vmatprep.subr.mxu0 0.0
        %4601 = vmatpush1.msra.mxu0 0.0
        %4602 = vmatprep.subr.mxu0 0.0
        %4603 = vmatpush1.msra.mxu0 0.0
        %4604 = vmatprep.subr.mxu0 0.0
        %4605 = vmatpush1.msra.mxu0 0.0
        %4606 = vmatprep.subr.mxu0 0.0
        %4607 = vmatpush1.msra.mxu0 0.0
        %4608 = vmatprep.subr.mxu0 0.0
        %4609 = vmatpush1.msra.mxu0 0.0
        %4610 = vmatprep.subr.mxu0 0.0
        %4611 = vmatpush1.msra.mxu0 0.0
        %4612 = vmatprep.subr.mxu0 0.0
        %4613 = vmatpush1.msra.mxu0 0.0
        %4614 = vmatprep.subr.mxu0 0.0
        %4615 = vmatpush1.msra.mxu0 0.0
        %4616 = vmatprep.subr.mxu0 0.0
        %4617 = vmatpush1.msra.mxu0 0.0
        %4618 = vmatprep.subr.mxu0 0.0
        %4619 = vmatpush1.msra.mxu0 0.0
        %4620 = vmatprep.subr.mxu0 0.0
        %4621 = vmatpush1.msra.mxu0 0.0
        %4622 = vmatprep.subr.mxu0 0.0
        %4623 = vmatpush1.msra.mxu0 0.0
        %4624 = vmatprep.subr.mxu0 0.0
        %4625 = vmatpush1.msra.mxu0 0.0
        %4626 = vmatprep.subr.mxu0 0.0
        %4627 = vmatpush1.msra.mxu0 0.0
        %4628 = vmatprep.subr.mxu0 0.0
        %4629 = vmatpush1.msra.mxu0 0.0
        %4630 = vmatprep.subr.mxu0 0.0
        %4631 = vmatpush1.msra.mxu0 0.0
        %4632 = vmatprep.subr.mxu0 0.0
        %4633 = vmatpush1.msra.mxu0 0.0
        %4634 = vmatprep.subr.mxu0 0.0
        %4635 = vmatpush1.msra.mxu0 0.0
        %4636 = vmatprep.mubr.f32.mxu0 0.0
        %4637 = vmatmul.mubr.f32.gmra.mrb[0].mxu0 %v4570
        %v4638 = vpop.f32.mrb[0].mxu0
        %v4639 = vadd.f32 0.0, %v4638
        %v4640 = vpop.f32.mrb[0].mxu0
        %4641 = vdwg.mxu0
        %4642 = vrot.lane.b32.xlu0 %v4396, 120
        %v4643 = vpop.permute.xlu0 %4642
        %4644 = vrot.lane.b32.xlu0 %v4396, 88
        %v4645 = vpop.permute.xlu0 %4644
        %v4646 = vsel %vm495, %v4643, 0
        %v4648 = vsel %vm495, %v4645, 0
        %4650 = vmatprep.subr.mxu0 0.0
        %4651 = vmatpush1.xpose.msra.mxu0 %v4648
        %4652 = vmatprep.subr.mxu0 0.0
        %4653 = vmatpush1.xpose.msra.mxu0 0.0
        %4654 = vmatprep.subr.mxu0 0.0
        %4655 = vmatpush1.xpose.msra.mxu0 0.0
        %4656 = vmatprep.subr.mxu0 0.0
        %4657 = vmatpush1.xpose.msra.mxu0 0.0
        %4658 = vmatprep.subr.mxu0 0.0
        %4659 = vmatpush1.xpose.msra.mxu0 0.0
        %4660 = vmatprep.subr.mxu0 0.0
        %4661 = vmatpush1.xpose.msra.mxu0 0.0
        %4662 = vmatprep.subr.mxu0 0.0
        %4663 = vmatpush1.xpose.msra.mxu0 0.0
        %4664 = vmatprep.subr.mxu0 0.0
        %4665 = vmatpush1.xpose.msra.mxu0 0.0
        %4666 = vmatprep.subr.mxu0 0.0
        %4667 = vmatpush1.xpose.msra.mxu0 0.0
        %4668 = vmatprep.subr.mxu0 0.0
        %4669 = vmatpush1.xpose.msra.mxu0 0.0
        %4670 = vmatprep.subr.mxu0 0.0
        %4671 = vmatpush1.xpose.msra.mxu0 0.0
        %4672 = vmatprep.subr.mxu0 0.0
        %4673 = vmatpush1.xpose.msra.mxu0 0.0
        %4674 = vmatprep.subr.mxu0 0.0
        %4675 = vmatpush1.xpose.msra.mxu0 0.0
        %4676 = vmatprep.subr.mxu0 0.0
        %4677 = vmatpush1.xpose.msra.mxu0 0.0
        %4678 = vmatprep.subr.mxu0 0.0
        %4679 = vmatpush1.xpose.msra.mxu0 0.0
        %4680 = vmatprep.subr.mxu0 0.0
        %4681 = vmatpush1.xpose.msra.mxu0 0.0
        %4682 = vmatprep.subr.mxu0 0.0
        %4683 = vmatpush1.xpose.msra.mxu0 0.0
        %4684 = vmatprep.subr.mxu0 0.0
        %4685 = vmatpush1.xpose.msra.mxu0 0.0
        %4686 = vmatprep.subr.mxu0 0.0
        %4687 = vmatpush1.xpose.msra.mxu0 0.0
        %4688 = vmatprep.subr.mxu0 0.0
        %4689 = vmatpush1.xpose.msra.mxu0 0.0
        %4690 = vmatprep.subr.mxu0 0.0
        %4691 = vmatpush1.xpose.msra.mxu0 0.0
        %4692 = vmatprep.subr.mxu0 0.0
        %4693 = vmatpush1.xpose.msra.mxu0 0.0
        %4694 = vmatprep.subr.mxu0 0.0
        %4695 = vmatpush1.xpose.msra.mxu0 0.0
        %4696 = vmatprep.subr.mxu0 0.0
        %4697 = vmatpush1.xpose.msra.mxu0 0.0
        %4698 = vmatprep.subr.mxu0 0.0
        %4699 = vmatpush1.xpose.msra.mxu0 0.0
        %4700 = vmatprep.subr.mxu0 0.0
        %4701 = vmatpush1.xpose.msra.mxu0 0.0
        %4702 = vmatprep.subr.mxu0 0.0
        %4703 = vmatpush1.xpose.msra.mxu0 0.0
        %4704 = vmatprep.subr.mxu0 0.0
        %4705 = vmatpush1.xpose.msra.mxu0 0.0
        %4706 = vmatprep.subr.mxu0 0.0
        %4707 = vmatpush1.xpose.msra.mxu0 0.0
        %4708 = vmatprep.subr.mxu0 0.0
        %4709 = vmatpush1.xpose.msra.mxu0 0.0
        %4710 = vmatprep.subr.mxu0 0.0
        %4711 = vmatpush1.xpose.msra.mxu0 0.0
        %4712 = vmatprep.subr.mxu0 0.0
        %4713 = vmatpush1.xpose.msra.mxu0 0.0
        %4714 = vmatprep.mubr.f32.mxu0 0.0
        %4715 = vmatmul.mubr.f32.gmra.mrb[0].mxu0 %v4646
        %v4716 = vpop.f32.mrb[0].mxu0
        %v4717 = vadd.f32 0.0, %v4716
        %v4718 = vpop.f32.mrb[0].mxu0
        %4719 = vdwg.mxu0
        %v4720 = vsel %vm495, %v4717, -inf
        %4721 = vmax.xlane.f32.xlu0 %v4720
        %v4722 = vpop.xlane.xlu0 %4721
        %v4723 = vsub.f32 %v4717, %v4722
        %v4724 = vmul.f32 %v4723, 1.442695
        %v4725 = vpow.pop %v4724
        %v4726 = vsel %vm495, %v4725, 0.0
        %4727 = vadd.xlane.f32.xlu0 %v4726
        %v4728 = vpop.xlane.xlu0 %4727
        %v4729 = vrcp.pop %v4728
        %v4730 = vmul.f32 %v4725, %v4729
        %4732 = vrot.lane.b32.xlu0 %v4478, 120
        %v4733 = vpop.permute.xlu0 %4732
        %v4736 = vsel %vm495, %v4730, 0
        %4738 = vmatprep.subr.mxu0 0.0
        %4739 = vmatpush1.msra.mxu0 %v4733
        %4740 = vmatprep.subr.mxu0 0.0
        %4741 = vmatpush1.msra.mxu0 0.0
        %4742 = vmatprep.subr.mxu0 0.0
        %4743 = vmatpush1.msra.mxu0 0.0
        %4744 = vmatprep.subr.mxu0 0.0
        %4745 = vmatpush1.msra.mxu0 0.0
        %4746 = vmatprep.subr.mxu0 0.0
        %4747 = vmatpush1.msra.mxu0 0.0
        %4748 = vmatprep.subr.mxu0 0.0
        %4749 = vmatpush1.msra.mxu0 0.0
        %4750 = vmatprep.subr.mxu0 0.0
        %4751 = vmatpush1.msra.mxu0 0.0
        %4752 = vmatprep.subr.mxu0 0.0
        %4753 = vmatpush1.msra.mxu0 0.0
        %4754 = vmatprep.subr.mxu0 0.0
        %4755 = vmatpush1.msra.mxu0 0.0
        %4756 = vmatprep.subr.mxu0 0.0
        %4757 = vmatpush1.msra.mxu0 0.0
        %4758 = vmatprep.subr.mxu0 0.0
        %4759 = vmatpush1.msra.mxu0 0.0
        %4760 = vmatprep.subr.mxu0 0.0
        %4761 = vmatpush1.msra.mxu0 0.0
        %4762 = vmatprep.subr.mxu0 0.0
        %4763 = vmatpush1.msra.mxu0 0.0
        %4764 = vmatprep.subr.mxu0 0.0
        %4765 = vmatpush1.msra.mxu0 0.0
        %4766 = vmatprep.subr.mxu0 0.0
        %4767 = vmatpush1.msra.mxu0 0.0
        %4768 = vmatprep.subr.mxu0 0.0
        %4769 = vmatpush1.msra.mxu0 0.0
        %4770 = vmatprep.subr.mxu0 0.0
        %4771 = vmatpush1.msra.mxu0 0.0
        %4772 = vmatprep.subr.mxu0 0.0
        %4773 = vmatpush1.msra.mxu0 0.0
        %4774 = vmatprep.subr.mxu0 0.0
        %4775 = vmatpush1.msra.mxu0 0.0
        %4776 = vmatprep.subr.mxu0 0.0
        %4777 = vmatpush1.msra.mxu0 0.0
        %4778 = vmatprep.subr.mxu0 0.0
        %4779 = vmatpush1.msra.mxu0 0.0
        %4780 = vmatprep.subr.mxu0 0.0
        %4781 = vmatpush1.msra.mxu0 0.0
        %4782 = vmatprep.subr.mxu0 0.0
        %4783 = vmatpush1.msra.mxu0 0.0
        %4784 = vmatprep.subr.mxu0 0.0
        %4785 = vmatpush1.msra.mxu0 0.0
        %4786 = vmatprep.subr.mxu0 0.0
        %4787 = vmatpush1.msra.mxu0 0.0
        %4788 = vmatprep.subr.mxu0 0.0
        %4789 = vmatpush1.msra.mxu0 0.0
        %4790 = vmatprep.subr.mxu0 0.0
        %4791 = vmatpush1.msra.mxu0 0.0
        %4792 = vmatprep.subr.mxu0 0.0
        %4793 = vmatpush1.msra.mxu0 0.0
        %4794 = vmatprep.subr.mxu0 0.0
        %4795 = vmatpush1.msra.mxu0 0.0
        %4796 = vmatprep.subr.mxu0 0.0
        %4797 = vmatpush1.msra.mxu0 0.0
        %4798 = vmatprep.subr.mxu0 0.0
        %4799 = vmatpush1.msra.mxu0 0.0
        %4800 = vmatprep.subr.mxu0 0.0
        %4801 = vmatpush1.msra.mxu0 0.0
        %4802 = vmatprep.mubr.f32.mxu0 0.0
        %4803 = vmatmul.mubr.f32.gmra.mrb[0].mxu0 %v4736
        %v4804 = vpop.f32.mrb[0].mxu0
        %v4805 = vadd.f32 0.0, %v4804
        %v4806 = vpop.f32.mrb[0].mxu0
        %4807 = vdwg.mxu0
        %4808 = vrot.lane.b32.xlu0 %v4396, 112
        %v4809 = vpop.permute.xlu0 %4808
        %4810 = vrot.lane.b32.xlu0 %v4396, 80
        %v4811 = vpop.permute.xlu0 %4810
        %v4812 = vsel %vm495, %v4809, 0
        %v4814 = vsel %vm495, %v4811, 0
        %4816 = vmatprep.subr.mxu0 0.0
        %4817 = vmatpush1.xpose.msra.mxu0 %v4814
        %4818 = vmatprep.subr.mxu0 0.0
        %4819 = vmatpush1.xpose.msra.mxu0 0.0
        %4820 = vmatprep.subr.mxu0 0.0
        %4821 = vmatpush1.xpose.msra.mxu0 0.0
        %4822 = vmatprep.subr.mxu0 0.0
        %4823 = vmatpush1.xpose.msra.mxu0 0.0
        %4824 = vmatprep.subr.mxu0 0.0
        %4825 = vmatpush1.xpose.msra.mxu0 0.0
        %4826 = vmatprep.subr.mxu0 0.0
        %4827 = vmatpush1.xpose.msra.mxu0 0.0
        %4828 = vmatprep.subr.mxu0 0.0
        %4829 = vmatpush1.xpose.msra.mxu0 0.0
        %4830 = vmatprep.subr.mxu0 0.0
        %4831 = vmatpush1.xpose.msra.mxu0 0.0
        %4832 = vmatprep.subr.mxu0 0.0
        %4833 = vmatpush1.xpose.msra.mxu0 0.0
        %4834 = vmatprep.subr.mxu0 0.0
        %4835 = vmatpush1.xpose.msra.mxu0 0.0
        %4836 = vmatprep.subr.mxu0 0.0
        %4837 = vmatpush1.xpose.msra.mxu0 0.0
        %4838 = vmatprep.subr.mxu0 0.0
        %4839 = vmatpush1.xpose.msra.mxu0 0.0
        %4840 = vmatprep.subr.mxu0 0.0
        %4841 = vmatpush1.xpose.msra.mxu0 0.0
        %4842 = vmatprep.subr.mxu0 0.0
        %4843 = vmatpush1.xpose.msra.mxu0 0.0
        %4844 = vmatprep.subr.mxu0 0.0
        %4845 = vmatpush1.xpose.msra.mxu0 0.0
        %4846 = vmatprep.subr.mxu0 0.0
        %4847 = vmatpush1.xpose.msra.mxu0 0.0
        %4848 = vmatprep.subr.mxu0 0.0
        %4849 = vmatpush1.xpose.msra.mxu0 0.0
        %4850 = vmatprep.subr.mxu0 0.0
        %4851 = vmatpush1.xpose.msra.mxu0 0.0
        %4852 = vmatprep.subr.mxu0 0.0
        %4853 = vmatpush1.xpose.msra.mxu0 0.0
        %4854 = vmatprep.subr.mxu0 0.0
        %4855 = vmatpush1.xpose.msra.mxu0 0.0
        %4856 = vmatprep.subr.mxu0 0.0
        %4857 = vmatpush1.xpose.msra.mxu0 0.0
        %4858 = vmatprep.subr.mxu0 0.0
        %4859 = vmatpush1.xpose.msra.mxu0 0.0
        %4860 = vmatprep.subr.mxu0 0.0
        %4861 = vmatpush1.xpose.msra.mxu0 0.0
        %4862 = vmatprep.subr.mxu0 0.0
        %4863 = vmatpush1.xpose.msra.mxu0 0.0
        %4864 = vmatprep.subr.mxu0 0.0
        %4865 = vmatpush1.xpose.msra.mxu0 0.0
        %4866 = vmatprep.subr.mxu0 0.0
        %4867 = vmatpush1.xpose.msra.mxu0 0.0
        %4868 = vmatprep.subr.mxu0 0.0
        %4869 = vmatpush1.xpose.msra.mxu0 0.0
        %4870 = vmatprep.subr.mxu0 0.0
        %4871 = vmatpush1.xpose.msra.mxu0 0.0
        %4872 = vmatprep.subr.mxu0 0.0
        %4873 = vmatpush1.xpose.msra.mxu0 0.0
        %4874 = vmatprep.subr.mxu0 0.0
        %4875 = vmatpush1.xpose.msra.mxu0 0.0
        %4876 = vmatprep.subr.mxu0 0.0
        %4877 = vmatpush1.xpose.msra.mxu0 0.0
        %4878 = vmatprep.subr.mxu0 0.0
        %4879 = vmatpush1.xpose.msra.mxu0 0.0
        %4880 = vmatprep.mubr.f32.mxu0 0.0
        %4881 = vmatmul.mubr.f32.gmra.mrb[0].mxu0 %v4812
        %v4882 = vpop.f32.mrb[0].mxu0
        %v4883 = vadd.f32 0.0, %v4882
        %v4884 = vpop.f32.mrb[0].mxu0
        %4885 = vdwg.mxu0
        %v4886 = vsel %vm495, %v4883, -inf
        %4887 = vmax.xlane.f32.xlu0 %v4886
        %v4888 = vpop.xlane.xlu0 %4887
        %v4889 = vsub.f32 %v4883, %v4888
        %v4890 = vmul.f32 %v4889, 1.442695
        %v4891 = vpow.pop %v4890
        %v4892 = vsel %vm495, %v4891, 0.0
        %4893 = vadd.xlane.f32.xlu0 %v4892
        %v4894 = vpop.xlane.xlu0 %4893
        %v4895 = vrcp.pop %v4894
        %v4896 = vmul.f32 %v4891, %v4895
        %4897 = vrot.lane.b32.xlu0 %v4478, 112
        %v4898 = vpop.permute.xlu0 %4897
        %v4901 = vsel %vm495, %v4896, 0
        %4903 = vmatprep.subr.mxu0 0.0
        %4904 = vmatpush1.msra.mxu0 %v4898
        %4905 = vmatprep.subr.mxu0 0.0
        %4906 = vmatpush1.msra.mxu0 0.0
        %4907 = vmatprep.subr.mxu0 0.0
        %4908 = vmatpush1.msra.mxu0 0.0
        %4909 = vmatprep.subr.mxu0 0.0
        %4910 = vmatpush1.msra.mxu0 0.0
        %4911 = vmatprep.subr.mxu0 0.0
        %4912 = vmatpush1.msra.mxu0 0.0
        %4913 = vmatprep.subr.mxu0 0.0
        %4914 = vmatpush1.msra.mxu0 0.0
        %4915 = vmatprep.subr.mxu0 0.0
        %4916 = vmatpush1.msra.mxu0 0.0
        %4917 = vmatprep.subr.mxu0 0.0
        %4918 = vmatpush1.msra.mxu0 0.0
        %4919 = vmatprep.subr.mxu0 0.0
        %4920 = vmatpush1.msra.mxu0 0.0
        %4921 = vmatprep.subr.mxu0 0.0
        %4922 = vmatpush1.msra.mxu0 0.0
        %4923 = vmatprep.subr.mxu0 0.0
        %4924 = vmatpush1.msra.mxu0 0.0
        %4925 = vmatprep.subr.mxu0 0.0
        %4926 = vmatpush1.msra.mxu0 0.0
        %4927 = vmatprep.subr.mxu0 0.0
        %4928 = vmatpush1.msra.mxu0 0.0
        %4929 = vmatprep.subr.mxu0 0.0
        %4930 = vmatpush1.msra.mxu0 0.0
        %4931 = vmatprep.subr.mxu0 0.0
        %4932 = vmatpush1.msra.mxu0 0.0
        %4933 = vmatprep.subr.mxu0 0.0
        %4934 = vmatpush1.msra.mxu0 0.0
        %4935 = vmatprep.subr.mxu0 0.0
        %4936 = vmatpush1.msra.mxu0 0.0
        %4937 = vmatprep.subr.mxu0 0.0
        %4938 = vmatpush1.msra.mxu0 0.0
        %4939 = vmatprep.subr.mxu0 0.0
        %4940 = vmatpush1.msra.mxu0 0.0
        %4941 = vmatprep.subr.mxu0 0.0
        %4942 = vmatpush1.msra.mxu0 0.0
        %4943 = vmatprep.subr.mxu0 0.0
        %4944 = vmatpush1.msra.mxu0 0.0
        %4945 = vmatprep.subr.mxu0 0.0
        %4946 = vmatpush1.msra.mxu0 0.0
        %4947 = vmatprep.subr.mxu0 0.0
        %4948 = vmatpush1.msra.mxu0 0.0
        %4949 = vmatprep.subr.mxu0 0.0
        %4950 = vmatpush1.msra.mxu0 0.0
        %4951 = vmatprep.subr.mxu0 0.0
        %4952 = vmatpush1.msra.mxu0 0.0
        %4953 = vmatprep.subr.mxu0 0.0
        %4954 = vmatpush1.msra.mxu0 0.0
        %4955 = vmatprep.subr.mxu0 0.0
        %4956 = vmatpush1.msra.mxu0 0.0
        %4957 = vmatprep.subr.mxu0 0.0
        %4958 = vmatpush1.msra.mxu0 0.0
        %4959 = vmatprep.subr.mxu0 0.0
        %4960 = vmatpush1.msra.mxu0 0.0
        %4961 = vmatprep.subr.mxu0 0.0
        %4962 = vmatpush1.msra.mxu0 0.0
        %4963 = vmatprep.subr.mxu0 0.0
        %4964 = vmatpush1.msra.mxu0 0.0
        %4965 = vmatprep.subr.mxu0 0.0
        %4966 = vmatpush1.msra.mxu0 0.0
        %4967 = vmatprep.mubr.f32.mxu0 0.0
        %4968 = vmatmul.mubr.f32.gmra.mrb[0].mxu0 %v4901
        %v4969 = vpop.f32.mrb[0].mxu0
        %v4970 = vadd.f32 0.0, %v4969
        %v4971 = vpop.f32.mrb[0].mxu0
        %4972 = vdwg.mxu0
        %4973 = vrot.lane.b32.xlu0 %v4396, 104
        %v4974 = vpop.permute.xlu0 %4973
        %4975 = vrot.lane.b32.xlu0 %v4396, 72
        %v4976 = vpop.permute.xlu0 %4975
        %v4977 = vsel %vm495, %v4974, 0
        %v4979 = vsel %vm495, %v4976, 0
        %4981 = vmatprep.subr.mxu0 0.0
        %4982 = vmatpush1.xpose.msra.mxu0 %v4979
        %4983 = vmatprep.subr.mxu0 0.0
        %4984 = vmatpush1.xpose.msra.mxu0 0.0
        %4985 = vmatprep.subr.mxu0 0.0
        %4986 = vmatpush1.xpose.msra.mxu0 0.0
        %4987 = vmatprep.subr.mxu0 0.0
        %4988 = vmatpush1.xpose.msra.mxu0 0.0
        %4989 = vmatprep.subr.mxu0 0.0
        %4990 = vmatpush1.xpose.msra.mxu0 0.0
        %4991 = vmatprep.subr.mxu0 0.0
        %4992 = vmatpush1.xpose.msra.mxu0 0.0
        %4993 = vmatprep.subr.mxu0 0.0
        %4994 = vmatpush1.xpose.msra.mxu0 0.0
        %4995 = vmatprep.subr.mxu0 0.0
        %4996 = vmatpush1.xpose.msra.mxu0 0.0
        %4997 = vmatprep.subr.mxu0 0.0
        %4998 = vmatpush1.xpose.msra.mxu0 0.0
        %4999 = vmatprep.subr.mxu0 0.0
        %5000 = vmatpush1.xpose.msra.mxu0 0.0
        %5001 = vmatprep.subr.mxu0 0.0
        %5002 = vmatpush1.xpose.msra.mxu0 0.0
        %5003 = vmatprep.subr.mxu0 0.0
        %5004 = vmatpush1.xpose.msra.mxu0 0.0
        %5005 = vmatprep.subr.mxu0 0.0
        %5006 = vmatpush1.xpose.msra.mxu0 0.0
        %5007 = vmatprep.subr.mxu0 0.0
        %5008 = vmatpush1.xpose.msra.mxu0 0.0
        %5009 = vmatprep.subr.mxu0 0.0
        %5010 = vmatpush1.xpose.msra.mxu0 0.0
        %5011 = vmatprep.subr.mxu0 0.0
        %5012 = vmatpush1.xpose.msra.mxu0 0.0
        %5013 = vmatprep.subr.mxu0 0.0
        %5014 = vmatpush1.xpose.msra.mxu0 0.0
        %5015 = vmatprep.subr.mxu0 0.0
        %5016 = vmatpush1.xpose.msra.mxu0 0.0
        %5017 = vmatprep.subr.mxu0 0.0
        %5018 = vmatpush1.xpose.msra.mxu0 0.0
        %5019 = vmatprep.subr.mxu0 0.0
        %5020 = vmatpush1.xpose.msra.mxu0 0.0
        %5021 = vmatprep.subr.mxu0 0.0
        %5022 = vmatpush1.xpose.msra.mxu0 0.0
        %5023 = vmatprep.subr.mxu0 0.0
        %5024 = vmatpush1.xpose.msra.mxu0 0.0
        %5025 = vmatprep.subr.mxu0 0.0
        %5026 = vmatpush1.xpose.msra.mxu0 0.0
        %5027 = vmatprep.subr.mxu0 0.0
        %5028 = vmatpush1.xpose.msra.mxu0 0.0
        %5029 = vmatprep.subr.mxu0 0.0
        %5030 = vmatpush1.xpose.msra.mxu0 0.0
        %5031 = vmatprep.subr.mxu0 0.0
        %5032 = vmatpush1.xpose.msra.mxu0 0.0
        %5033 = vmatprep.subr.mxu0 0.0
        %5034 = vmatpush1.xpose.msra.mxu0 0.0
        %5035 = vmatprep.subr.mxu0 0.0
        %5036 = vmatpush1.xpose.msra.mxu0 0.0
        %5037 = vmatprep.subr.mxu0 0.0
        %5038 = vmatpush1.xpose.msra.mxu0 0.0
        %5039 = vmatprep.subr.mxu0 0.0
        %5040 = vmatpush1.xpose.msra.mxu0 0.0
        %5041 = vmatprep.subr.mxu0 0.0
        %5042 = vmatpush1.xpose.msra.mxu0 0.0
        %5043 = vmatprep.subr.mxu0 0.0
        %5044 = vmatpush1.xpose.msra.mxu0 0.0
        %5045 = vmatprep.mubr.f32.mxu0 0.0
        %5046 = vmatmul.mubr.f32.gmra.mrb[0].mxu0 %v4977
        %v5047 = vpop.f32.mrb[0].mxu0
        %v5048 = vadd.f32 0.0, %v5047
        %v5049 = vpop.f32.mrb[0].mxu0
        %5050 = vdwg.mxu0
        %v5051 = vsel %vm495, %v5048, -inf
        %5052 = vmax.xlane.f32.xlu0 %v5051
        %v5053 = vpop.xlane.xlu0 %5052
        %v5054 = vsub.f32 %v5048, %v5053
        %v5055 = vmul.f32 %v5054, 1.442695
        %v5056 = vpow.pop %v5055
        %v5057 = vsel %vm495, %v5056, 0.0
        %5058 = vadd.xlane.f32.xlu0 %v5057
        %v5059 = vpop.xlane.xlu0 %5058
        %v5060 = vrcp.pop %v5059
        %v5061 = vmul.f32 %v5056, %v5060
        %5062 = vrot.lane.b32.xlu0 %v4478, 104
        %v5063 = vpop.permute.xlu0 %5062
        %v5066 = vsel %vm495, %v5061, 0
        %5068 = vmatprep.subr.mxu0 0.0
        %5069 = vmatpush1.msra.mxu0 %v5063
        %5070 = vmatprep.subr.mxu0 0.0
        %5071 = vmatpush1.msra.mxu0 0.0
        %5072 = vmatprep.subr.mxu0 0.0
        %5073 = vmatpush1.msra.mxu0 0.0
        %5074 = vmatprep.subr.mxu0 0.0
        %5075 = vmatpush1.msra.mxu0 0.0
        %5076 = vmatprep.subr.mxu0 0.0
        %5077 = vmatpush1.msra.mxu0 0.0
        %5078 = vmatprep.subr.mxu0 0.0
        %5079 = vmatpush1.msra.mxu0 0.0
        %5080 = vmatprep.subr.mxu0 0.0
        %5081 = vmatpush1.msra.mxu0 0.0
        %5082 = vmatprep.subr.mxu0 0.0
        %5083 = vmatpush1.msra.mxu0 0.0
        %5084 = vmatprep.subr.mxu0 0.0
        %5085 = vmatpush1.msra.mxu0 0.0
        %5086 = vmatprep.subr.mxu0 0.0
        %5087 = vmatpush1.msra.mxu0 0.0
        %5088 = vmatprep.subr.mxu0 0.0
        %5089 = vmatpush1.msra.mxu0 0.0
        %5090 = vmatprep.subr.mxu0 0.0
        %5091 = vmatpush1.msra.mxu0 0.0
        %5092 = vmatprep.subr.mxu0 0.0
        %5093 = vmatpush1.msra.mxu0 0.0
        %5094 = vmatprep.subr.mxu0 0.0
        %5095 = vmatpush1.msra.mxu0 0.0
        %5096 = vmatprep.subr.mxu0 0.0
        %5097 = vmatpush1.msra.mxu0 0.0
        %5098 = vmatprep.subr.mxu0 0.0
        %5099 = vmatpush1.msra.mxu0 0.0
        %5100 = vmatprep.subr.mxu0 0.0
        %5101 = vmatpush1.msra.mxu0 0.0
        %5102 = vmatprep.subr.mxu0 0.0
        %5103 = vmatpush1.msra.mxu0 0.0
        %5104 = vmatprep.subr.mxu0 0.0
        %5105 = vmatpush1.msra.mxu0 0.0
        %5106 = vmatprep.subr.mxu0 0.0
        %5107 = vmatpush1.msra.mxu0 0.0
        %5108 = vmatprep.subr.mxu0 0.0
        %5109 = vmatpush1.msra.mxu0 0.0
        %5110 = vmatprep.subr.mxu0 0.0
        %5111 = vmatpush1.msra.mxu0 0.0
        %5112 = vmatprep.subr.mxu0 0.0
        %5113 = vmatpush1.msra.mxu0 0.0
        %5114 = vmatprep.subr.mxu0 0.0
        %5115 = vmatpush1.msra.mxu0 0.0
        %5116 = vmatprep.subr.mxu0 0.0
        %5117 = vmatpush1.msra.mxu0 0.0
        %5118 = vmatprep.subr.mxu0 0.0
        %5119 = vmatpush1.msra.mxu0 0.0
        %5120 = vmatprep.subr.mxu0 0.0
        %5121 = vmatpush1.msra.mxu0 0.0
        %5122 = vmatprep.subr.mxu0 0.0
        %5123 = vmatpush1.msra.mxu0 0.0
        %5124 = vmatprep.subr.mxu0 0.0
        %5125 = vmatpush1.msra.mxu0 0.0
        %5126 = vmatprep.subr.mxu0 0.0
        %5127 = vmatpush1.msra.mxu0 0.0
        %5128 = vmatprep.subr.mxu0 0.0
        %5129 = vmatpush1.msra.mxu0 0.0
        %5130 = vmatprep.subr.mxu0 0.0
        %5131 = vmatpush1.msra.mxu0 0.0
        %5132 = vmatprep.mubr.f32.mxu0 0.0
        %5133 = vmatmul.mubr.f32.gmra.mrb[0].mxu0 %v5066
        %v5134 = vpop.f32.mrb[0].mxu0
        %v5135 = vadd.f32 0.0, %v5134
        %v5136 = vpop.f32.mrb[0].mxu0
        %5137 = vdwg.mxu0
        %5139 = vrot.lane.b32.xlu0 %v4805, 8
        %v5140 = vpop.permute.xlu0 %5139
        %5143 = vrot.lane.b32.xlu0 %v4970, 16
        %v5144 = vpop.permute.xlu0 %5143
        %5147 = vrot.lane.b32.xlu0 %v5135, 24
        %v5148 = vpop.permute.xlu0 %5147
        %v5150 = vsel %vm495, %v4639, %v5140
        %v5151 = vsel %vm579, %v5150, %v5144
        %v5152 = vsel %vm1313, %v5151, %v5148
        %v5153 = vld [vmem:[%s4 + $0x390] sm:$0xff]
        %v5154 = vld [vmem:[%s4 + $0x398] sm:$0xff]
        %v5155 = vld [vmem:[%s4 + $0x3a0] sm:$0xff]
        %v5156 = vld [vmem:[%s4 + $0x3a8] sm:$0xff]
        %v5157 = vld [vmem:[%s4 + $0x3b0] sm:$0x1]
        %v5158 = vlaneseq
        %v5159 = vshrl.u32 %v5158, 7
        %v5160 = vsub.s32 0, %v5159
        %v5161 = vrot.slane %v5157, %v5160
        %v5163 = vsel %vm311, %v5152, 0
        %5165 = vmatprep.subr.mxu0 0.0
        %5166 = vmatpush1.msra.mxu0 %v5153
        %5167 = vmatprep.subr.mxu0 0.0
        %5168 = vmatpush1.msra.mxu0 %v5154
        %5169 = vmatprep.subr.mxu0 0.0
        %5170 = vmatpush1.msra.mxu0 %v5155
        %5171 = vmatprep.subr.mxu0 0.0
        %5172 = vmatpush1.msra.mxu0 %v5156
        %5173 = vmatprep.subr.mxu0 0.0
        %5174 = vmatpush1.msra.mxu0 0.0
        %5175 = vmatprep.subr.mxu0 0.0
        %5176 = vmatpush1.msra.mxu0 0.0
        %5177 = vmatprep.subr.mxu0 0.0
        %5178 = vmatpush1.msra.mxu0 0.0
        %5179 = vmatprep.subr.mxu0 0.0
        %5180 = vmatpush1.msra.mxu0 0.0
        %5181 = vmatprep.subr.mxu0 0.0
        %5182 = vmatpush1.msra.mxu0 0.0
        %5183 = vmatprep.subr.mxu0 0.0
        %5184 = vmatpush1.msra.mxu0 0.0
        %5185 = vmatprep.subr.mxu0 0.0
        %5186 = vmatpush1.msra.mxu0 0.0
        %5187 = vmatprep.subr.mxu0 0.0
        %5188 = vmatpush1.msra.mxu0 0.0
        %5189 = vmatprep.subr.mxu0 0.0
        %5190 = vmatpush1.msra.mxu0 0.0
        %5191 = vmatprep.subr.mxu0 0.0
        %5192 = vmatpush1.msra.mxu0 0.0
        %5193 = vmatprep.subr.mxu0 0.0
        %5194 = vmatpush1.msra.mxu0 0.0
        %5195 = vmatprep.subr.mxu0 0.0
        %5196 = vmatpush1.msra.mxu0 0.0
        %5197 = vmatprep.subr.mxu0 0.0
        %5198 = vmatpush1.msra.mxu0 0.0
        %5199 = vmatprep.subr.mxu0 0.0
        %5200 = vmatpush1.msra.mxu0 0.0
        %5201 = vmatprep.subr.mxu0 0.0
        %5202 = vmatpush1.msra.mxu0 0.0
        %5203 = vmatprep.subr.mxu0 0.0
        %5204 = vmatpush1.msra.mxu0 0.0
        %5205 = vmatprep.subr.mxu0 0.0
        %5206 = vmatpush1.msra.mxu0 0.0
        %5207 = vmatprep.subr.mxu0 0.0
        %5208 = vmatpush1.msra.mxu0 0.0
        %5209 = vmatprep.subr.mxu0 0.0
        %5210 = vmatpush1.msra.mxu0 0.0
        %5211 = vmatprep.subr.mxu0 0.0
        %5212 = vmatpush1.msra.mxu0 0.0
        %5213 = vmatprep.subr.mxu0 0.0
        %5214 = vmatpush1.msra.mxu0 0.0
        %5215 = vmatprep.subr.mxu0 0.0
        %5216 = vmatpush1.msra.mxu0 0.0
        %5217 = vmatprep.subr.mxu0 0.0
        %5218 = vmatpush1.msra.mxu0 0.0
        %5219 = vmatprep.subr.mxu0 0.0
        %5220 = vmatpush1.msra.mxu0 0.0
        %5221 = vmatprep.subr.mxu0 0.0
        %5222 = vmatpush1.msra.mxu0 0.0
        %5223 = vmatprep.subr.mxu0 0.0
        %5224 = vmatpush1.msra.mxu0 0.0
        %5225 = vmatprep.subr.mxu0 0.0
        %5226 = vmatpush1.msra.mxu0 0.0
        %5227 = vmatprep.subr.mxu0 0.0
        %5228 = vmatpush1.msra.mxu0 0.0
        %5229 = vmatprep.mubr.f32.mxu0 0.0
        %5230 = vmatmul.mubr.f32.gmra.mrb[0].mxu0 %v5163
        %v5231 = vpop.f32.mrb[0].mxu0
        %v5232 = vadd.f32 %v5161, %v5231
        %v5233 = vpop.f32.mrb[0].mxu0
        %5234 = vdwg.mxu0
        %v5235 = vadd.f32 %v4315, %v5232
        %v5236 = vld [vmem:[%s4 + $0x3b8] sm:$0x1]
        %v5237 = vld [vmem:[%s4 + $0x3c0] sm:$0x1]
        %v5238 = vsel %vm311, %v5235, 0.0
        %5239 = vadd.xlane.f32.xlu0 %v5238
        %v5240 = vpop.xlane.xlu0 %5239
        %v5241 = vmul.f32 %v5240, %v1416
        %v5242 = vsub.f32 %v5235, %v5241
        %v5243 = vmul.f32 %v5242, %v5242
        %v5244 = vsel %vm311, %v5243, 0.0
        %5245 = vadd.xlane.f32.xlu0 %v5244
        %v5246 = vpop.xlane.xlu0 %5245
        %v5247 = vmul.f32 %v5246, %v1416
        %v5248 = vadd.f32 %v5247, 1e-05
        %v5249 = vrsqrt.pop %v5248
        %v5250 = vmul.f32 %v5242, %v5249
        %v5251 = vlaneseq
        %v5252 = vshrl.u32 %v5251, 7
        %v5253 = vsub.s32 0, %v5252
        %v5254 = vrot.slane %v5236, %v5253
        %v5255 = vmul.f32 %v5250, %v5254
        %v5256 = vlaneseq
        %v5257 = vshrl.u32 %v5256, 7
        %v5258 = vsub.s32 0, %v5257
        %v5259 = vrot.slane %v5237, %v5258
        %v5260 = vadd.f32 %v5255, %v5259
        %v5261 = vadd.f32 %v5260, %v3046
        %v5262 = vld [vmem:[%s4 + $0x3c8] sm:$0xff]
        %v5263 = vld [vmem:[%s4 + $0x3d0] sm:$0xff]
        %v5264 = vld [vmem:[%s4 + $0x3d8] sm:$0xff]
        %v5265 = vld [vmem:[%s4 + $0x3e0] sm:$0xff]
        %v5266 = vld [vmem:[%s4 + $0x3e8] sm:$0x1]
        %v5267 = vlaneseq
        %v5268 = vshrl.u32 %v5267, 7
        %v5269 = vsub.s32 0, %v5268
        %v5270 = vrot.slane %v5266, %v5269
        %v5272 = vsel %vm311, %v5261, 0
        %5274 = vmatprep.subr.mxu0 0.0
        %5275 = vmatpush1.msra.mxu0 %v5262
        %5276 = vmatprep.subr.mxu0 0.0
        %5277 = vmatpush1.msra.mxu0 %v5263
        %5278 = vmatprep.subr.mxu0 0.0
        %5279 = vmatpush1.msra.mxu0 %v5264
        %5280 = vmatprep.subr.mxu0 0.0
        %5281 = vmatpush1.msra.mxu0 %v5265
        %5282 = vmatprep.subr.mxu0 0.0
        %5283 = vmatpush1.msra.mxu0 0.0
        %5284 = vmatprep.subr.mxu0 0.0
        %5285 = vmatpush1.msra.mxu0 0.0
        %5286 = vmatprep.subr.mxu0 0.0
        %5287 = vmatpush1.msra.mxu0 0.0
        %5288 = vmatprep.subr.mxu0 0.0
        %5289 = vmatpush1.msra.mxu0 0.0
        %5290 = vmatprep.subr.mxu0 0.0
        %5291 = vmatpush1.msra.mxu0 0.0
        %5292 = vmatprep.subr.mxu0 0.0
        %5293 = vmatpush1.msra.mxu0 0.0
        %5294 = vmatprep.subr.mxu0 0.0
        %5295 = vmatpush1.msra.mxu0 0.0
        %5296 = vmatprep.subr.mxu0 0.0
        %5297 = vmatpush1.msra.mxu0 0.0
        %5298 = vmatprep.subr.mxu0 0.0
        %5299 = vmatpush1.msra.mxu0 0.0
        %5300 = vmatprep.subr.mxu0 0.0
        %5301 = vmatpush1.msra.mxu0 0.0
        %5302 = vmatprep.subr.mxu0 0.0
        %5303 = vmatpush1.msra.mxu0 0.0
        %5304 = vmatprep.subr.mxu0 0.0
        %5305 = vmatpush1.msra.mxu0 0.0
        %5306 = vmatprep.subr.mxu0 0.0
        %5307 = vmatpush1.msra.mxu0 0.0
        %5308 = vmatprep.subr.mxu0 0.0
        %5309 = vmatpush1.msra.mxu0 0.0
        %5310 = vmatprep.subr.mxu0 0.0
        %5311 = vmatpush1.msra.mxu0 0.0
        %5312 = vmatprep.subr.mxu0 0.0
        %5313 = vmatpush1.msra.mxu0 0.0
        %5314 = vmatprep.subr.mxu0 0.0
        %5315 = vmatpush1.msra.mxu0 0.0
        %5316 = vmatprep.subr.mxu0 0.0
        %5317 = vmatpush1.msra.mxu0 0.0
        %5318 = vmatprep.subr.mxu0 0.0
        %5319 = vmatpush1.msra.mxu0 0.0
        %5320 = vmatprep.subr.mxu0 0.0
        %5321 = vmatpush1.msra.mxu0 0.0
        %5322 = vmatprep.subr.mxu0 0.0
        %5323 = vmatpush1.msra.mxu0 0.0
        %5324 = vmatprep.subr.mxu0 0.0
        %5325 = vmatpush1.msra.mxu0 0.0
        %5326 = vmatprep.subr.mxu0 0.0
        %5327 = vmatpush1.msra.mxu0 0.0
        %5328 = vmatprep.subr.mxu0 0.0
        %5329 = vmatpush1.msra.mxu0 0.0
        %5330 = vmatprep.subr.mxu0 0.0
        %5331 = vmatpush1.msra.mxu0 0.0
        %5332 = vmatprep.subr.mxu0 0.0
        %5333 = vmatpush1.msra.mxu0 0.0
        %5334 = vmatprep.subr.mxu0 0.0
        %5335 = vmatpush1.msra.mxu0 0.0
        %5336 = vmatprep.subr.mxu0 0.0
        %5337 = vmatpush1.msra.mxu0 0.0
        %5338 = vmatprep.mubr.f32.mxu0 0.0
        %5339 = vmatmul.mubr.f32.gmra.mrb[0].mxu0 %v5272
        %v5340 = vpop.f32.mrb[0].mxu0
        %v5341 = vadd.f32 %v5270, %v5340
        %v5342 = vpop.f32.mrb[0].mxu0
        %5343 = vdwg.mxu0
        %v5344 = vld [vmem:[%s4 + $0x3f0] sm:$0xff]
        %v5345 = vld [vmem:[%s4 + $0x3f8] sm:$0xff]
        %v5346 = vld [vmem:[%s4 + $0x400] sm:$0xff]
        %v5347 = vld [vmem:[%s4 + $0x408] sm:$0xff]
        %v5348 = vld [vmem:[%s4 + $0x410] sm:$0x1]
        %v5349 = vlaneseq
        %v5350 = vshrl.u32 %v5349, 7
        %v5351 = vsub.s32 0, %v5350
        %v5352 = vrot.slane %v5348, %v5351
        %5353 = vmatprep.subr.mxu0 0.0
        %5354 = vmatpush1.msra.mxu0 %v5344
        %5355 = vmatprep.subr.mxu0 0.0
        %5356 = vmatpush1.msra.mxu0 %v5345
        %5357 = vmatprep.subr.mxu0 0.0
        %5358 = vmatpush1.msra.mxu0 %v5346
        %5359 = vmatprep.subr.mxu0 0.0
        %5360 = vmatpush1.msra.mxu0 %v5347
        %5361 = vmatprep.subr.mxu0 0.0
        %5362 = vmatpush1.msra.mxu0 0.0
        %5363 = vmatprep.subr.mxu0 0.0
        %5364 = vmatpush1.msra.mxu0 0.0
        %5365 = vmatprep.subr.mxu0 0.0
        %5366 = vmatpush1.msra.mxu0 0.0
        %5367 = vmatprep.subr.mxu0 0.0
        %5368 = vmatpush1.msra.mxu0 0.0
        %5369 = vmatprep.subr.mxu0 0.0
        %5370 = vmatpush1.msra.mxu0 0.0
        %5371 = vmatprep.subr.mxu0 0.0
        %5372 = vmatpush1.msra.mxu0 0.0
        %5373 = vmatprep.subr.mxu0 0.0
        %5374 = vmatpush1.msra.mxu0 0.0
        %5375 = vmatprep.subr.mxu0 0.0
        %5376 = vmatpush1.msra.mxu0 0.0
        %5377 = vmatprep.subr.mxu0 0.0
        %5378 = vmatpush1.msra.mxu0 0.0
        %5379 = vmatprep.subr.mxu0 0.0
        %5380 = vmatpush1.msra.mxu0 0.0
        %5381 = vmatprep.subr.mxu0 0.0
        %5382 = vmatpush1.msra.mxu0 0.0
        %5383 = vmatprep.subr.mxu0 0.0
        %5384 = vmatpush1.msra.mxu0 0.0
        %5385 = vmatprep.subr.mxu0 0.0
        %5386 = vmatpush1.msra.mxu0 0.0
        %5387 = vmatprep.subr.mxu0 0.0
        %5388 = vmatpush1.msra.mxu0 0.0
        %5389 = vmatprep.subr.mxu0 0.0
        %5390 = vmatpush1.msra.mxu0 0.0
        %5391 = vmatprep.subr.mxu0 0.0
        %5392 = vmatpush1.msra.mxu0 0.0
        %5393 = vmatprep.subr.mxu0 0.0
        %5394 = vmatpush1.msra.mxu0 0.0
        %5395 = vmatprep.subr.mxu0 0.0
        %5396 = vmatpush1.msra.mxu0 0.0
        %5397 = vmatprep.subr.mxu0 0.0
        %5398 = vmatpush1.msra.mxu0 0.0
        %5399 = vmatprep.subr.mxu0 0.0
        %5400 = vmatpush1.msra.mxu0 0.0
        %5401 = vmatprep.subr.mxu0 0.0
        %5402 = vmatpush1.msra.mxu0 0.0
        %5403 = vmatprep.subr.mxu0 0.0
        %5404 = vmatpush1.msra.mxu0 0.0
        %5405 = vmatprep.subr.mxu0 0.0
        %5406 = vmatpush1.msra.mxu0 0.0
        %5407 = vmatprep.subr.mxu0 0.0
        %5408 = vmatpush1.msra.mxu0 0.0
        %5409 = vmatprep.subr.mxu0 0.0
        %5410 = vmatpush1.msra.mxu0 0.0
        %5411 = vmatprep.subr.mxu0 0.0
        %5412 = vmatpush1.msra.mxu0 0.0
        %5413 = vmatprep.subr.mxu0 0.0
        %5414 = vmatpush1.msra.mxu0 0.0
        %5415 = vmatprep.subr.mxu0 0.0
        %5416 = vmatpush1.msra.mxu0 0.0
        %5417 = vmatprep.mubr.f32.mxu0 0.0
        %5418 = vmatmul.mubr.f32.gmra.mrb[0].mxu0 %v3147
        %v5419 = vpop.f32.mrb[0].mxu0
        %v5420 = vadd.f32 %v5352, %v5419
        %v5421 = vpop.f32.mrb[0].mxu0
        %5422 = vmatprep.mubr.f32.mxu0 0.0
        %5423 = vmatmul.mubr.f32.gmra.mrb[0].mxu0 %v3150
        %v5424 = vpop.f32.mrb[0].mxu0
        %v5425 = vadd.f32 %v5352, %v5424
        %v5426 = vpop.f32.mrb[0].mxu0
        %5427 = vdwg.mxu0
        %v5428 = vld [vmem:[%s4 + $0x418] sm:$0xff]
        %v5429 = vld [vmem:[%s4 + $0x420] sm:$0xff]
        %v5430 = vld [vmem:[%s4 + $0x428] sm:$0xff]
        %v5431 = vld [vmem:[%s4 + $0x430] sm:$0xff]
        %v5432 = vld [vmem:[%s4 + $0x438] sm:$0x1]
        %v5433 = vlaneseq
        %v5434 = vshrl.u32 %v5433, 7
        %v5435 = vsub.s32 0, %v5434
        %v5436 = vrot.slane %v5432, %v5435
        %5437 = vmatprep.subr.mxu0 0.0
        %5438 = vmatpush1.msra.mxu0 %v5428
        %5439 = vmatprep.subr.mxu0 0.0
        %5440 = vmatpush1.msra.mxu0 %v5429
        %5441 = vmatprep.subr.mxu0 0.0
        %5442 = vmatpush1.msra.mxu0 %v5430
        %5443 = vmatprep.subr.mxu0 0.0
        %5444 = vmatpush1.msra.mxu0 %v5431
        %5445 = vmatprep.subr.mxu0 0.0
        %5446 = vmatpush1.msra.mxu0 0.0
        %5447 = vmatprep.subr.mxu0 0.0
        %5448 = vmatpush1.msra.mxu0 0.0
        %5449 = vmatprep.subr.mxu0 0.0
        %5450 = vmatpush1.msra.mxu0 0.0
        %5451 = vmatprep.subr.mxu0 0.0
        %5452 = vmatpush1.msra.mxu0 0.0
        %5453 = vmatprep.subr.mxu0 0.0
        %5454 = vmatpush1.msra.mxu0 0.0
        %5455 = vmatprep.subr.mxu0 0.0
        %5456 = vmatpush1.msra.mxu0 0.0
        %5457 = vmatprep.subr.mxu0 0.0
        %5458 = vmatpush1.msra.mxu0 0.0
        %5459 = vmatprep.subr.mxu0 0.0
        %5460 = vmatpush1.msra.mxu0 0.0
        %5461 = vmatprep.subr.mxu0 0.0
        %5462 = vmatpush1.msra.mxu0 0.0
        %5463 = vmatprep.subr.mxu0 0.0
        %5464 = vmatpush1.msra.mxu0 0.0
        %5465 = vmatprep.subr.mxu0 0.0
        %5466 = vmatpush1.msra.mxu0 0.0
        %5467 = vmatprep.subr.mxu0 0.0
        %5468 = vmatpush1.msra.mxu0 0.0
        %5469 = vmatprep.subr.mxu0 0.0
        %5470 = vmatpush1.msra.mxu0 0.0
        %5471 = vmatprep.subr.mxu0 0.0
        %5472 = vmatpush1.msra.mxu0 0.0
        %5473 = vmatprep.subr.mxu0 0.0
        %5474 = vmatpush1.msra.mxu0 0.0
        %5475 = vmatprep.subr.mxu0 0.0
        %5476 = vmatpush1.msra.mxu0 0.0
        %5477 = vmatprep.subr.mxu0 0.0
        %5478 = vmatpush1.msra.mxu0 0.0
        %5479 = vmatprep.subr.mxu0 0.0
        %5480 = vmatpush1.msra.mxu0 0.0
        %5481 = vmatprep.subr.mxu0 0.0
        %5482 = vmatpush1.msra.mxu0 0.0
        %5483 = vmatprep.subr.mxu0 0.0
        %5484 = vmatpush1.msra.mxu0 0.0
        %5485 = vmatprep.subr.mxu0 0.0
        %5486 = vmatpush1.msra.mxu0 0.0
        %5487 = vmatprep.subr.mxu0 0.0
        %5488 = vmatpush1.msra.mxu0 0.0
        %5489 = vmatprep.subr.mxu0 0.0
        %5490 = vmatpush1.msra.mxu0 0.0
        %5491 = vmatprep.subr.mxu0 0.0
        %5492 = vmatpush1.msra.mxu0 0.0
        %5493 = vmatprep.subr.mxu0 0.0
        %5494 = vmatpush1.msra.mxu0 0.0
        %5495 = vmatprep.subr.mxu0 0.0
        %5496 = vmatpush1.msra.mxu0 0.0
        %5497 = vmatprep.subr.mxu0 0.0
        %5498 = vmatpush1.msra.mxu0 0.0
        %5499 = vmatprep.subr.mxu0 0.0
        %5500 = vmatpush1.msra.mxu0 0.0
        %5501 = vmatprep.mubr.f32.mxu0 0.0
        %5502 = vmatmul.mubr.f32.gmra.mrb[0].mxu0 %v3237
        %v5503 = vpop.f32.mrb[0].mxu0
        %v5504 = vadd.f32 %v5436, %v5503
        %v5505 = vpop.f32.mrb[0].mxu0
        %5506 = vmatprep.mubr.f32.mxu0 0.0
        %5507 = vmatmul.mubr.f32.gmra.mrb[0].mxu0 %v3240
        %v5508 = vpop.f32.mrb[0].mxu0
        %v5509 = vadd.f32 %v5436, %v5508
        %v5510 = vpop.f32.mrb[0].mxu0
        %5511 = vdwg.mxu0
        %v5513 = vsel %vm495, %v5341, 0
        %v5516 = vsel %vm495, %v5420, 0
        %v5519 = vsel %vm495, %v5425, 0
        %5521 = vmatprep.subr.mxu0 0.0
        %5522 = vmatpush1.xpose.msra.mxu0 %v5516
        %5523 = vmatprep.subr.mxu0 0.0
        %5524 = vmatpush1.xpose.msra.mxu0 %v5519
        %5525 = vmatprep.subr.mxu0 0.0
        %5526 = vmatpush1.xpose.msra.mxu0 0.0
        %5527 = vmatprep.subr.mxu0 0.0
        %5528 = vmatpush1.xpose.msra.mxu0 0.0
        %5529 = vmatprep.subr.mxu0 0.0
        %5530 = vmatpush1.xpose.msra.mxu0 0.0
        %5531 = vmatprep.subr.mxu0 0.0
        %5532 = vmatpush1.xpose.msra.mxu0 0.0
        %5533 = vmatprep.subr.mxu0 0.0
        %5534 = vmatpush1.xpose.msra.mxu0 0.0
        %5535 = vmatprep.subr.mxu0 0.0
        %5536 = vmatpush1.xpose.msra.mxu0 0.0
        %5537 = vmatprep.subr.mxu0 0.0
        %5538 = vmatpush1.xpose.msra.mxu0 0.0
        %5539 = vmatprep.subr.mxu0 0.0
        %5540 = vmatpush1.xpose.msra.mxu0 0.0
        %5541 = vmatprep.subr.mxu0 0.0
        %5542 = vmatpush1.xpose.msra.mxu0 0.0
        %5543 = vmatprep.subr.mxu0 0.0
        %5544 = vmatpush1.xpose.msra.mxu0 0.0
        %5545 = vmatprep.subr.mxu0 0.0
        %5546 = vmatpush1.xpose.msra.mxu0 0.0
        %5547 = vmatprep.subr.mxu0 0.0
        %5548 = vmatpush1.xpose.msra.mxu0 0.0
        %5549 = vmatprep.subr.mxu0 0.0
        %5550 = vmatpush1.xpose.msra.mxu0 0.0
        %5551 = vmatprep.subr.mxu0 0.0
        %5552 = vmatpush1.xpose.msra.mxu0 0.0
        %5553 = vmatprep.subr.mxu0 0.0
        %5554 = vmatpush1.xpose.msra.mxu0 0.0
        %5555 = vmatprep.subr.mxu0 0.0
        %5556 = vmatpush1.xpose.msra.mxu0 0.0
        %5557 = vmatprep.subr.mxu0 0.0
        %5558 = vmatpush1.xpose.msra.mxu0 0.0
        %5559 = vmatprep.subr.mxu0 0.0
        %5560 = vmatpush1.xpose.msra.mxu0 0.0
        %5561 = vmatprep.subr.mxu0 0.0
        %5562 = vmatpush1.xpose.msra.mxu0 0.0
        %5563 = vmatprep.subr.mxu0 0.0
        %5564 = vmatpush1.xpose.msra.mxu0 0.0
        %5565 = vmatprep.subr.mxu0 0.0
        %5566 = vmatpush1.xpose.msra.mxu0 0.0
        %5567 = vmatprep.subr.mxu0 0.0
        %5568 = vmatpush1.xpose.msra.mxu0 0.0
        %5569 = vmatprep.subr.mxu0 0.0
        %5570 = vmatpush1.xpose.msra.mxu0 0.0
        %5571 = vmatprep.subr.mxu0 0.0
        %5572 = vmatpush1.xpose.msra.mxu0 0.0
        %5573 = vmatprep.subr.mxu0 0.0
        %5574 = vmatpush1.xpose.msra.mxu0 0.0
        %5575 = vmatprep.subr.mxu0 0.0
        %5576 = vmatpush1.xpose.msra.mxu0 0.0
        %5577 = vmatprep.subr.mxu0 0.0
        %5578 = vmatpush1.xpose.msra.mxu0 0.0
        %5579 = vmatprep.subr.mxu0 0.0
        %5580 = vmatpush1.xpose.msra.mxu0 0.0
        %5581 = vmatprep.subr.mxu0 0.0
        %5582 = vmatpush1.xpose.msra.mxu0 0.0
        %5583 = vmatprep.subr.mxu0 0.0
        %5584 = vmatpush1.xpose.msra.mxu0 0.0
        %5585 = vmatprep.mubr.f32.mxu0 0.0
        %5586 = vmatmul.mubr.f32.gmra.mrb[0].mxu0 %v5513
        %v5587 = vpop.f32.mrb[0].mxu0
        %v5588 = vadd.f32 %v487, %v5587
        %v5589 = vpop.f32.mrb[0].mxu0
        %5590 = vdwg.mxu0
        %v5591 = vsel %vm579, %v5588, -inf
        %5592 = vmax.xlane.f32.xlu0 %v5591
        %v5593 = vpop.xlane.xlu0 %5592
        %v5594 = vsub.f32 %v5588, %v5593
        %v5595 = vmul.f32 %v5594, 1.442695
        %v5596 = vpow.pop %v5595
        %v5597 = vsel %vm579, %v5596, 0.0
        %5598 = vadd.xlane.f32.xlu0 %v5597
        %v5599 = vpop.xlane.xlu0 %5598
        %v5600 = vrcp.pop %v5599
        %v5601 = vmul.f32 %v5596, %v5600
        %v5603 = vsel %vm579, %v5601, 0
        %5605 = vmatprep.subr.mxu0 0.0
        %5606 = vmatpush1.msra.mxu0 %v5504
        %5607 = vmatprep.subr.mxu0 0.0
        %5608 = vmatpush1.msra.mxu0 %v5509
        %5609 = vmatprep.subr.mxu0 0.0
        %5610 = vmatpush1.msra.mxu0 0.0
        %5611 = vmatprep.subr.mxu0 0.0
        %5612 = vmatpush1.msra.mxu0 0.0
        %5613 = vmatprep.subr.mxu0 0.0
        %5614 = vmatpush1.msra.mxu0 0.0
        %5615 = vmatprep.subr.mxu0 0.0
        %5616 = vmatpush1.msra.mxu0 0.0
        %5617 = vmatprep.subr.mxu0 0.0
        %5618 = vmatpush1.msra.mxu0 0.0
        %5619 = vmatprep.subr.mxu0 0.0
        %5620 = vmatpush1.msra.mxu0 0.0
        %5621 = vmatprep.subr.mxu0 0.0
        %5622 = vmatpush1.msra.mxu0 0.0
        %5623 = vmatprep.subr.mxu0 0.0
        %5624 = vmatpush1.msra.mxu0 0.0
        %5625 = vmatprep.subr.mxu0 0.0
        %5626 = vmatpush1.msra.mxu0 0.0
        %5627 = vmatprep.subr.mxu0 0.0
        %5628 = vmatpush1.msra.mxu0 0.0
        %5629 = vmatprep.subr.mxu0 0.0
        %5630 = vmatpush1.msra.mxu0 0.0
        %5631 = vmatprep.subr.mxu0 0.0
        %5632 = vmatpush1.msra.mxu0 0.0
        %5633 = vmatprep.subr.mxu0 0.0
        %5634 = vmatpush1.msra.mxu0 0.0
        %5635 = vmatprep.subr.mxu0 0.0
        %5636 = vmatpush1.msra.mxu0 0.0
        %5637 = vmatprep.subr.mxu0 0.0
        %5638 = vmatpush1.msra.mxu0 0.0
        %5639 = vmatprep.subr.mxu0 0.0
        %5640 = vmatpush1.msra.mxu0 0.0
        %5641 = vmatprep.subr.mxu0 0.0
        %5642 = vmatpush1.msra.mxu0 0.0
        %5643 = vmatprep.subr.mxu0 0.0
        %5644 = vmatpush1.msra.mxu0 0.0
        %5645 = vmatprep.subr.mxu0 0.0
        %5646 = vmatpush1.msra.mxu0 0.0
        %5647 = vmatprep.subr.mxu0 0.0
        %5648 = vmatpush1.msra.mxu0 0.0
        %5649 = vmatprep.subr.mxu0 0.0
        %5650 = vmatpush1.msra.mxu0 0.0
        %5651 = vmatprep.subr.mxu0 0.0
        %5652 = vmatpush1.msra.mxu0 0.0
        %5653 = vmatprep.subr.mxu0 0.0
        %5654 = vmatpush1.msra.mxu0 0.0
        %5655 = vmatprep.subr.mxu0 0.0
        %5656 = vmatpush1.msra.mxu0 0.0
        %5657 = vmatprep.subr.mxu0 0.0
        %5658 = vmatpush1.msra.mxu0 0.0
        %5659 = vmatprep.subr.mxu0 0.0
        %5660 = vmatpush1.msra.mxu0 0.0
        %5661 = vmatprep.subr.mxu0 0.0
        %5662 = vmatpush1.msra.mxu0 0.0
        %5663 = vmatprep.subr.mxu0 0.0
        %5664 = vmatpush1.msra.mxu0 0.0
        %5665 = vmatprep.subr.mxu0 0.0
        %5666 = vmatpush1.msra.mxu0 0.0
        %5667 = vmatprep.subr.mxu0 0.0
        %5668 = vmatpush1.msra.mxu0 0.0
        %5669 = vmatprep.mubr.f32.mxu0 0.0
        %5670 = vmatmul.mubr.f32.gmra.mrb[0].mxu0 %v5603
        %v5671 = vpop.f32.mrb[0].mxu0
        %v5672 = vadd.f32 0.0, %v5671
        %v5673 = vpop.f32.mrb[0].mxu0
        %5674 = vdwg.mxu0
        %5675 = vrot.lane.b32.xlu0 %v5341, 120
        %v5676 = vpop.permute.xlu0 %5675
        %5677 = vrot.lane.b32.xlu0 %v5420, 120
        %v5678 = vpop.permute.xlu0 %5677
        %5679 = vrot.lane.b32.xlu0 %v5425, 120
        %v5680 = vpop.permute.xlu0 %5679
        %v5681 = vsel %vm495, %v5676, 0
        %v5683 = vsel %vm495, %v5678, 0
        %v5685 = vsel %vm495, %v5680, 0
        %5687 = vmatprep.subr.mxu0 0.0
        %5688 = vmatpush1.xpose.msra.mxu0 %v5683
        %5689 = vmatprep.subr.mxu0 0.0
        %5690 = vmatpush1.xpose.msra.mxu0 %v5685
        %5691 = vmatprep.subr.mxu0 0.0
        %5692 = vmatpush1.xpose.msra.mxu0 0.0
        %5693 = vmatprep.subr.mxu0 0.0
        %5694 = vmatpush1.xpose.msra.mxu0 0.0
        %5695 = vmatprep.subr.mxu0 0.0
        %5696 = vmatpush1.xpose.msra.mxu0 0.0
        %5697 = vmatprep.subr.mxu0 0.0
        %5698 = vmatpush1.xpose.msra.mxu0 0.0
        %5699 = vmatprep.subr.mxu0 0.0
        %5700 = vmatpush1.xpose.msra.mxu0 0.0
        %5701 = vmatprep.subr.mxu0 0.0
        %5702 = vmatpush1.xpose.msra.mxu0 0.0
        %5703 = vmatprep.subr.mxu0 0.0
        %5704 = vmatpush1.xpose.msra.mxu0 0.0
        %5705 = vmatprep.subr.mxu0 0.0
        %5706 = vmatpush1.xpose.msra.mxu0 0.0
        %5707 = vmatprep.subr.mxu0 0.0
        %5708 = vmatpush1.xpose.msra.mxu0 0.0
        %5709 = vmatprep.subr.mxu0 0.0
        %5710 = vmatpush1.xpose.msra.mxu0 0.0
        %5711 = vmatprep.subr.mxu0 0.0
        %5712 = vmatpush1.xpose.msra.mxu0 0.0
        %5713 = vmatprep.subr.mxu0 0.0
        %5714 = vmatpush1.xpose.msra.mxu0 0.0
        %5715 = vmatprep.subr.mxu0 0.0
        %5716 = vmatpush1.xpose.msra.mxu0 0.0
        %5717 = vmatprep.subr.mxu0 0.0
        %5718 = vmatpush1.xpose.msra.mxu0 0.0
        %5719 = vmatprep.subr.mxu0 0.0
        %5720 = vmatpush1.xpose.msra.mxu0 0.0
        %5721 = vmatprep.subr.mxu0 0.0
        %5722 = vmatpush1.xpose.msra.mxu0 0.0
        %5723 = vmatprep.subr.mxu0 0.0
        %5724 = vmatpush1.xpose.msra.mxu0 0.0
        %5725 = vmatprep.subr.mxu0 0.0
        %5726 = vmatpush1.xpose.msra.mxu0 0.0
        %5727 = vmatprep.subr.mxu0 0.0
        %5728 = vmatpush1.xpose.msra.mxu0 0.0
        %5729 = vmatprep.subr.mxu0 0.0
        %5730 = vmatpush1.xpose.msra.mxu0 0.0
        %5731 = vmatprep.subr.mxu0 0.0
        %5732 = vmatpush1.xpose.msra.mxu0 0.0
        %5733 = vmatprep.subr.mxu0 0.0
        %5734 = vmatpush1.xpose.msra.mxu0 0.0
        %5735 = vmatprep.subr.mxu0 0.0
        %5736 = vmatpush1.xpose.msra.mxu0 0.0
        %5737 = vmatprep.subr.mxu0 0.0
        %5738 = vmatpush1.xpose.msra.mxu0 0.0
        %5739 = vmatprep.subr.mxu0 0.0
        %5740 = vmatpush1.xpose.msra.mxu0 0.0
        %5741 = vmatprep.subr.mxu0 0.0
        %5742 = vmatpush1.xpose.msra.mxu0 0.0
        %5743 = vmatprep.subr.mxu0 0.0
        %5744 = vmatpush1.xpose.msra.mxu0 0.0
        %5745 = vmatprep.subr.mxu0 0.0
        %5746 = vmatpush1.xpose.msra.mxu0 0.0
        %5747 = vmatprep.subr.mxu0 0.0
        %5748 = vmatpush1.xpose.msra.mxu0 0.0
        %5749 = vmatprep.subr.mxu0 0.0
        %5750 = vmatpush1.xpose.msra.mxu0 0.0
        %5751 = vmatprep.mubr.f32.mxu0 0.0
        %5752 = vmatmul.mubr.f32.gmra.mrb[0].mxu0 %v5681
        %v5753 = vpop.f32.mrb[0].mxu0
        %v5754 = vadd.f32 %v487, %v5753
        %v5755 = vpop.f32.mrb[0].mxu0
        %5756 = vdwg.mxu0
        %v5757 = vsel %vm579, %v5754, -inf
        %5758 = vmax.xlane.f32.xlu0 %v5757
        %v5759 = vpop.xlane.xlu0 %5758
        %v5760 = vsub.f32 %v5754, %v5759
        %v5761 = vmul.f32 %v5760, 1.442695
        %v5762 = vpow.pop %v5761
        %v5763 = vsel %vm579, %v5762, 0.0
        %5764 = vadd.xlane.f32.xlu0 %v5763
        %v5765 = vpop.xlane.xlu0 %5764
        %v5766 = vrcp.pop %v5765
        %v5767 = vmul.f32 %v5762, %v5766
        %5770 = vrot.lane.b32.xlu0 %v5504, 120
        %v5771 = vpop.permute.xlu0 %5770
        %5772 = vrot.lane.b32.xlu0 %v5509, 120
        %v5773 = vpop.permute.xlu0 %5772
        %v5777 = vsel %vm579, %v5767, 0
        %5779 = vmatprep.subr.mxu0 0.0
        %5780 = vmatpush1.msra.mxu0 %v5771
        %5781 = vmatprep.subr.mxu0 0.0
        %5782 = vmatpush1.msra.mxu0 %v5773
        %5783 = vmatprep.subr.mxu0 0.0
        %5784 = vmatpush1.msra.mxu0 0.0
        %5785 = vmatprep.subr.mxu0 0.0
        %5786 = vmatpush1.msra.mxu0 0.0
        %5787 = vmatprep.subr.mxu0 0.0
        %5788 = vmatpush1.msra.mxu0 0.0
        %5789 = vmatprep.subr.mxu0 0.0
        %5790 = vmatpush1.msra.mxu0 0.0
        %5791 = vmatprep.subr.mxu0 0.0
        %5792 = vmatpush1.msra.mxu0 0.0
        %5793 = vmatprep.subr.mxu0 0.0
        %5794 = vmatpush1.msra.mxu0 0.0
        %5795 = vmatprep.subr.mxu0 0.0
        %5796 = vmatpush1.msra.mxu0 0.0
        %5797 = vmatprep.subr.mxu0 0.0
        %5798 = vmatpush1.msra.mxu0 0.0
        %5799 = vmatprep.subr.mxu0 0.0
        %5800 = vmatpush1.msra.mxu0 0.0
        %5801 = vmatprep.subr.mxu0 0.0
        %5802 = vmatpush1.msra.mxu0 0.0
        %5803 = vmatprep.subr.mxu0 0.0
        %5804 = vmatpush1.msra.mxu0 0.0
        %5805 = vmatprep.subr.mxu0 0.0
        %5806 = vmatpush1.msra.mxu0 0.0
        %5807 = vmatprep.subr.mxu0 0.0
        %5808 = vmatpush1.msra.mxu0 0.0
        %5809 = vmatprep.subr.mxu0 0.0
        %5810 = vmatpush1.msra.mxu0 0.0
        %5811 = vmatprep.subr.mxu0 0.0
        %5812 = vmatpush1.msra.mxu0 0.0
        %5813 = vmatprep.subr.mxu0 0.0
        %5814 = vmatpush1.msra.mxu0 0.0
        %5815 = vmatprep.subr.mxu0 0.0
        %5816 = vmatpush1.msra.mxu0 0.0
        %5817 = vmatprep.subr.mxu0 0.0
        %5818 = vmatpush1.msra.mxu0 0.0
        %5819 = vmatprep.subr.mxu0 0.0
        %5820 = vmatpush1.msra.mxu0 0.0
        %5821 = vmatprep.subr.mxu0 0.0
        %5822 = vmatpush1.msra.mxu0 0.0
        %5823 = vmatprep.subr.mxu0 0.0
        %5824 = vmatpush1.msra.mxu0 0.0
        %5825 = vmatprep.subr.mxu0 0.0
        %5826 = vmatpush1.msra.mxu0 0.0
        %5827 = vmatprep.subr.mxu0 0.0
        %5828 = vmatpush1.msra.mxu0 0.0
        %5829 = vmatprep.subr.mxu0 0.0
        %5830 = vmatpush1.msra.mxu0 0.0
        %5831 = vmatprep.subr.mxu0 0.0
        %5832 = vmatpush1.msra.mxu0 0.0
        %5833 = vmatprep.subr.mxu0 0.0
        %5834 = vmatpush1.msra.mxu0 0.0
        %5835 = vmatprep.subr.mxu0 0.0
        %5836 = vmatpush1.msra.mxu0 0.0
        %5837 = vmatprep.subr.mxu0 0.0
        %5838 = vmatpush1.msra.mxu0 0.0
        %5839 = vmatprep.subr.mxu0 0.0
        %5840 = vmatpush1.msra.mxu0 0.0
        %5841 = vmatprep.subr.mxu0 0.0
        %5842 = vmatpush1.msra.mxu0 0.0
        %5843 = vmatprep.mubr.f32.mxu0 0.0
        %5844 = vmatmul.mubr.f32.gmra.mrb[0].mxu0 %v5777
        %v5845 = vpop.f32.mrb[0].mxu0
        %v5846 = vadd.f32 0.0, %v5845
        %v5847 = vpop.f32.mrb[0].mxu0
        %5848 = vdwg.mxu0
        %5849 = vrot.lane.b32.xlu0 %v5341, 112
        %v5850 = vpop.permute.xlu0 %5849
        %5851 = vrot.lane.b32.xlu0 %v5420, 112
        %v5852 = vpop.permute.xlu0 %5851
        %5853 = vrot.lane.b32.xlu0 %v5425, 112
        %v5854 = vpop.permute.xlu0 %5853
        %v5855 = vsel %vm495, %v5850, 0
        %v5857 = vsel %vm495, %v5852, 0
        %v5859 = vsel %vm495, %v5854, 0
        %5861 = vmatprep.subr.mxu0 0.0
        %5862 = vmatpush1.xpose.msra.mxu0 %v5857
        %5863 = vmatprep.subr.mxu0 0.0
        %5864 = vmatpush1.xpose.msra.mxu0 %v5859
        %5865 = vmatprep.subr.mxu0 0.0
        %5866 = vmatpush1.xpose.msra.mxu0 0.0
        %5867 = vmatprep.subr.mxu0 0.0
        %5868 = vmatpush1.xpose.msra.mxu0 0.0
        %5869 = vmatprep.subr.mxu0 0.0
        %5870 = vmatpush1.xpose.msra.mxu0 0.0
        %5871 = vmatprep.subr.mxu0 0.0
        %5872 = vmatpush1.xpose.msra.mxu0 0.0
        %5873 = vmatprep.subr.mxu0 0.0
        %5874 = vmatpush1.xpose.msra.mxu0 0.0
        %5875 = vmatprep.subr.mxu0 0.0
        %5876 = vmatpush1.xpose.msra.mxu0 0.0
        %5877 = vmatprep.subr.mxu0 0.0
        %5878 = vmatpush1.xpose.msra.mxu0 0.0
        %5879 = vmatprep.subr.mxu0 0.0
        %5880 = vmatpush1.xpose.msra.mxu0 0.0
        %5881 = vmatprep.subr.mxu0 0.0
        %5882 = vmatpush1.xpose.msra.mxu0 0.0
        %5883 = vmatprep.subr.mxu0 0.0
        %5884 = vmatpush1.xpose.msra.mxu0 0.0
        %5885 = vmatprep.subr.mxu0 0.0
        %5886 = vmatpush1.xpose.msra.mxu0 0.0
        %5887 = vmatprep.subr.mxu0 0.0
        %5888 = vmatpush1.xpose.msra.mxu0 0.0
        %5889 = vmatprep.subr.mxu0 0.0
        %5890 = vmatpush1.xpose.msra.mxu0 0.0
        %5891 = vmatprep.subr.mxu0 0.0
        %5892 = vmatpush1.xpose.msra.mxu0 0.0
        %5893 = vmatprep.subr.mxu0 0.0
        %5894 = vmatpush1.xpose.msra.mxu0 0.0
        %5895 = vmatprep.subr.mxu0 0.0
        %5896 = vmatpush1.xpose.msra.mxu0 0.0
        %5897 = vmatprep.subr.mxu0 0.0
        %5898 = vmatpush1.xpose.msra.mxu0 0.0
        %5899 = vmatprep.subr.mxu0 0.0
        %5900 = vmatpush1.xpose.msra.mxu0 0.0
        %5901 = vmatprep.subr.mxu0 0.0
        %5902 = vmatpush1.xpose.msra.mxu0 0.0
        %5903 = vmatprep.subr.mxu0 0.0
        %5904 = vmatpush1.xpose.msra.mxu0 0.0
        %5905 = vmatprep.subr.mxu0 0.0
        %5906 = vmatpush1.xpose.msra.mxu0 0.0
        %5907 = vmatprep.subr.mxu0 0.0
        %5908 = vmatpush1.xpose.msra.mxu0 0.0
        %5909 = vmatprep.subr.mxu0 0.0
        %5910 = vmatpush1.xpose.msra.mxu0 0.0
        %5911 = vmatprep.subr.mxu0 0.0
        %5912 = vmatpush1.xpose.msra.mxu0 0.0
        %5913 = vmatprep.subr.mxu0 0.0
        %5914 = vmatpush1.xpose.msra.mxu0 0.0
        %5915 = vmatprep.subr.mxu0 0.0
        %5916 = vmatpush1.xpose.msra.mxu0 0.0
        %5917 = vmatprep.subr.mxu0 0.0
        %5918 = vmatpush1.xpose.msra.mxu0 0.0
        %5919 = vmatprep.subr.mxu0 0.0
        %5920 = vmatpush1.xpose.msra.mxu0 0.0
        %5921 = vmatprep.subr.mxu0 0.0
        %5922 = vmatpush1.xpose.msra.mxu0 0.0
        %5923 = vmatprep.subr.mxu0 0.0
        %5924 = vmatpush1.xpose.msra.mxu0 0.0
        %5925 = vmatprep.mubr.f32.mxu0 0.0
        %5926 = vmatmul.mubr.f32.gmra.mrb[0].mxu0 %v5855
        %v5927 = vpop.f32.mrb[0].mxu0
        %v5928 = vadd.f32 %v487, %v5927
        %v5929 = vpop.f32.mrb[0].mxu0
        %5930 = vdwg.mxu0
        %v5931 = vsel %vm579, %v5928, -inf
        %5932 = vmax.xlane.f32.xlu0 %v5931
        %v5933 = vpop.xlane.xlu0 %5932
        %v5934 = vsub.f32 %v5928, %v5933
        %v5935 = vmul.f32 %v5934, 1.442695
        %v5936 = vpow.pop %v5935
        %v5937 = vsel %vm579, %v5936, 0.0
        %5938 = vadd.xlane.f32.xlu0 %v5937
        %v5939 = vpop.xlane.xlu0 %5938
        %v5940 = vrcp.pop %v5939
        %v5941 = vmul.f32 %v5936, %v5940
        %5942 = vrot.lane.b32.xlu0 %v5504, 112
        %v5943 = vpop.permute.xlu0 %5942
        %5944 = vrot.lane.b32.xlu0 %v5509, 112
        %v5945 = vpop.permute.xlu0 %5944
        %v5949 = vsel %vm579, %v5941, 0
        %5951 = vmatprep.subr.mxu0 0.0
        %5952 = vmatpush1.msra.mxu0 %v5943
        %5953 = vmatprep.subr.mxu0 0.0
        %5954 = vmatpush1.msra.mxu0 %v5945
        %5955 = vmatprep.subr.mxu0 0.0
        %5956 = vmatpush1.msra.mxu0 0.0
        %5957 = vmatprep.subr.mxu0 0.0
        %5958 = vmatpush1.msra.mxu0 0.0
        %5959 = vmatprep.subr.mxu0 0.0
        %5960 = vmatpush1.msra.mxu0 0.0
        %5961 = vmatprep.subr.mxu0 0.0
        %5962 = vmatpush1.msra.mxu0 0.0
        %5963 = vmatprep.subr.mxu0 0.0
        %5964 = vmatpush1.msra.mxu0 0.0
        %5965 = vmatprep.subr.mxu0 0.0
        %5966 = vmatpush1.msra.mxu0 0.0
        %5967 = vmatprep.subr.mxu0 0.0
        %5968 = vmatpush1.msra.mxu0 0.0
        %5969 = vmatprep.subr.mxu0 0.0
        %5970 = vmatpush1.msra.mxu0 0.0
        %5971 = vmatprep.subr.mxu0 0.0
        %5972 = vmatpush1.msra.mxu0 0.0
        %5973 = vmatprep.subr.mxu0 0.0
        %5974 = vmatpush1.msra.mxu0 0.0
        %5975 = vmatprep.subr.mxu0 0.0
        %5976 = vmatpush1.msra.mxu0 0.0
        %5977 = vmatprep.subr.mxu0 0.0
        %5978 = vmatpush1.msra.mxu0 0.0
        %5979 = vmatprep.subr.mxu0 0.0
        %5980 = vmatpush1.msra.mxu0 0.0
        %5981 = vmatprep.subr.mxu0 0.0
        %5982 = vmatpush1.msra.mxu0 0.0
        %5983 = vmatprep.subr.mxu0 0.0
        %5984 = vmatpush1.msra.mxu0 0.0
        %5985 = vmatprep.subr.mxu0 0.0
        %5986 = vmatpush1.msra.mxu0 0.0
        %5987 = vmatprep.subr.mxu0 0.0
        %5988 = vmatpush1.msra.mxu0 0.0
        %5989 = vmatprep.subr.mxu0 0.0
        %5990 = vmatpush1.msra.mxu0 0.0
        %5991 = vmatprep.subr.mxu0 0.0
        %5992 = vmatpush1.msra.mxu0 0.0
        %5993 = vmatprep.subr.mxu0 0.0
        %5994 = vmatpush1.msra.mxu0 0.0
        %5995 = vmatprep.subr.mxu0 0.0
        %5996 = vmatpush1.msra.mxu0 0.0
        %5997 = vmatprep.subr.mxu0 0.0
        %5998 = vmatpush1.msra.mxu0 0.0
        %5999 = vmatprep.subr.mxu0 0.0
        %6000 = vmatpush1.msra.mxu0 0.0
        %6001 = vmatprep.subr.mxu0 0.0
        %6002 = vmatpush1.msra.mxu0 0.0
        %6003 = vmatprep.subr.mxu0 0.0
        %6004 = vmatpush1.msra.mxu0 0.0
        %6005 = vmatprep.subr.mxu0 0.0
        %6006 = vmatpush1.msra.mxu0 0.0
        %6007 = vmatprep.subr.mxu0 0.0
        %6008 = vmatpush1.msra.mxu0 0.0
        %6009 = vmatprep.subr.mxu0 0.0
        %6010 = vmatpush1.msra.mxu0 0.0
        %6011 = vmatprep.subr.mxu0 0.0
        %6012 = vmatpush1.msra.mxu0 0.0
        %6013 = vmatprep.subr.mxu0 0.0
        %6014 = vmatpush1.msra.mxu0 0.0
        %6015 = vmatprep.mubr.f32.mxu0 0.0
        %6016 = vmatmul.mubr.f32.gmra.mrb[0].mxu0 %v5949
        %v6017 = vpop.f32.mrb[0].mxu0
        %v6018 = vadd.f32 0.0, %v6017
        %v6019 = vpop.f32.mrb[0].mxu0
        %6020 = vdwg.mxu0
        %6021 = vrot.lane.b32.xlu0 %v5341, 104
        %v6022 = vpop.permute.xlu0 %6021
        %6023 = vrot.lane.b32.xlu0 %v5420, 104
        %v6024 = vpop.permute.xlu0 %6023
        %6025 = vrot.lane.b32.xlu0 %v5425, 104
        %v6026 = vpop.permute.xlu0 %6025
        %v6027 = vsel %vm495, %v6022, 0
        %v6029 = vsel %vm495, %v6024, 0
        %v6031 = vsel %vm495, %v6026, 0
        %6033 = vmatprep.subr.mxu0 0.0
        %6034 = vmatpush1.xpose.msra.mxu0 %v6029
        %6035 = vmatprep.subr.mxu0 0.0
        %6036 = vmatpush1.xpose.msra.mxu0 %v6031
        %6037 = vmatprep.subr.mxu0 0.0
        %6038 = vmatpush1.xpose.msra.mxu0 0.0
        %6039 = vmatprep.subr.mxu0 0.0
        %6040 = vmatpush1.xpose.msra.mxu0 0.0
        %6041 = vmatprep.subr.mxu0 0.0
        %6042 = vmatpush1.xpose.msra.mxu0 0.0
        %6043 = vmatprep.subr.mxu0 0.0
        %6044 = vmatpush1.xpose.msra.mxu0 0.0
        %6045 = vmatprep.subr.mxu0 0.0
        %6046 = vmatpush1.xpose.msra.mxu0 0.0
        %6047 = vmatprep.subr.mxu0 0.0
        %6048 = vmatpush1.xpose.msra.mxu0 0.0
        %6049 = vmatprep.subr.mxu0 0.0
        %6050 = vmatpush1.xpose.msra.mxu0 0.0
        %6051 = vmatprep.subr.mxu0 0.0
        %6052 = vmatpush1.xpose.msra.mxu0 0.0
        %6053 = vmatprep.subr.mxu0 0.0
        %6054 = vmatpush1.xpose.msra.mxu0 0.0
        %6055 = vmatprep.subr.mxu0 0.0
        %6056 = vmatpush1.xpose.msra.mxu0 0.0
        %6057 = vmatprep.subr.mxu0 0.0
        %6058 = vmatpush1.xpose.msra.mxu0 0.0
        %6059 = vmatprep.subr.mxu0 0.0
        %6060 = vmatpush1.xpose.msra.mxu0 0.0
        %6061 = vmatprep.subr.mxu0 0.0
        %6062 = vmatpush1.xpose.msra.mxu0 0.0
        %6063 = vmatprep.subr.mxu0 0.0
        %6064 = vmatpush1.xpose.msra.mxu0 0.0
        %6065 = vmatprep.subr.mxu0 0.0
        %6066 = vmatpush1.xpose.msra.mxu0 0.0
        %6067 = vmatprep.subr.mxu0 0.0
        %6068 = vmatpush1.xpose.msra.mxu0 0.0
        %6069 = vmatprep.subr.mxu0 0.0
        %6070 = vmatpush1.xpose.msra.mxu0 0.0
        %6071 = vmatprep.subr.mxu0 0.0
        %6072 = vmatpush1.xpose.msra.mxu0 0.0
        %6073 = vmatprep.subr.mxu0 0.0
        %6074 = vmatpush1.xpose.msra.mxu0 0.0
        %6075 = vmatprep.subr.mxu0 0.0
        %6076 = vmatpush1.xpose.msra.mxu0 0.0
        %6077 = vmatprep.subr.mxu0 0.0
        %6078 = vmatpush1.xpose.msra.mxu0 0.0
        %6079 = vmatprep.subr.mxu0 0.0
        %6080 = vmatpush1.xpose.msra.mxu0 0.0
        %6081 = vmatprep.subr.mxu0 0.0
        %6082 = vmatpush1.xpose.msra.mxu0 0.0
        %6083 = vmatprep.subr.mxu0 0.0
        %6084 = vmatpush1.xpose.msra.mxu0 0.0
        %6085 = vmatprep.subr.mxu0 0.0
        %6086 = vmatpush1.xpose.msra.mxu0 0.0
        %6087 = vmatprep.subr.mxu0 0.0
        %6088 = vmatpush1.xpose.msra.mxu0 0.0
        %6089 = vmatprep.subr.mxu0 0.0
        %6090 = vmatpush1.xpose.msra.mxu0 0.0
        %6091 = vmatprep.subr.mxu0 0.0
        %6092 = vmatpush1.xpose.msra.mxu0 0.0
        %6093 = vmatprep.subr.mxu0 0.0
        %6094 = vmatpush1.xpose.msra.mxu0 0.0
        %6095 = vmatprep.subr.mxu0 0.0
        %6096 = vmatpush1.xpose.msra.mxu0 0.0
        %6097 = vmatprep.mubr.f32.mxu0 0.0
        %6098 = vmatmul.mubr.f32.gmra.mrb[0].mxu0 %v6027
        %v6099 = vpop.f32.mrb[0].mxu0
        %v6100 = vadd.f32 %v487, %v6099
        %v6101 = vpop.f32.mrb[0].mxu0
        %6102 = vdwg.mxu0
        %v6103 = vsel %vm579, %v6100, -inf
        %6104 = vmax.xlane.f32.xlu0 %v6103
        %v6105 = vpop.xlane.xlu0 %6104
        %v6106 = vsub.f32 %v6100, %v6105
        %v6107 = vmul.f32 %v6106, 1.442695
        %v6108 = vpow.pop %v6107
        %v6109 = vsel %vm579, %v6108, 0.0
        %6110 = vadd.xlane.f32.xlu0 %v6109
        %v6111 = vpop.xlane.xlu0 %6110
        %v6112 = vrcp.pop %v6111
        %v6113 = vmul.f32 %v6108, %v6112
        %6114 = vrot.lane.b32.xlu0 %v5504, 104
        %v6115 = vpop.permute.xlu0 %6114
        %6116 = vrot.lane.b32.xlu0 %v5509, 104
        %v6117 = vpop.permute.xlu0 %6116
        %v6121 = vsel %vm579, %v6113, 0
        %6123 = vmatprep.subr.mxu0 0.0
        %6124 = vmatpush1.msra.mxu0 %v6115
        %6125 = vmatprep.subr.mxu0 0.0
        %6126 = vmatpush1.msra.mxu0 %v6117
        %6127 = vmatprep.subr.mxu0 0.0
        %6128 = vmatpush1.msra.mxu0 0.0
        %6129 = vmatprep.subr.mxu0 0.0
        %6130 = vmatpush1.msra.mxu0 0.0
        %6131 = vmatprep.subr.mxu0 0.0
        %6132 = vmatpush1.msra.mxu0 0.0
        %6133 = vmatprep.subr.mxu0 0.0
        %6134 = vmatpush1.msra.mxu0 0.0
        %6135 = vmatprep.subr.mxu0 0.0
        %6136 = vmatpush1.msra.mxu0 0.0
        %6137 = vmatprep.subr.mxu0 0.0
        %6138 = vmatpush1.msra.mxu0 0.0
        %6139 = vmatprep.subr.mxu0 0.0
        %6140 = vmatpush1.msra.mxu0 0.0
        %6141 = vmatprep.subr.mxu0 0.0
        %6142 = vmatpush1.msra.mxu0 0.0
        %6143 = vmatprep.subr.mxu0 0.0
        %6144 = vmatpush1.msra.mxu0 0.0
        %6145 = vmatprep.subr.mxu0 0.0
        %6146 = vmatpush1.msra.mxu0 0.0
        %6147 = vmatprep.subr.mxu0 0.0
        %6148 = vmatpush1.msra.mxu0 0.0
        %6149 = vmatprep.subr.mxu0 0.0
        %6150 = vmatpush1.msra.mxu0 0.0
        %6151 = vmatprep.subr.mxu0 0.0
        %6152 = vmatpush1.msra.mxu0 0.0
        %6153 = vmatprep.subr.mxu0 0.0
        %6154 = vmatpush1.msra.mxu0 0.0
        %6155 = vmatprep.subr.mxu0 0.0
        %6156 = vmatpush1.msra.mxu0 0.0
        %6157 = vmatprep.subr.mxu0 0.0
        %6158 = vmatpush1.msra.mxu0 0.0
        %6159 = vmatprep.subr.mxu0 0.0
        %6160 = vmatpush1.msra.mxu0 0.0
        %6161 = vmatprep.subr.mxu0 0.0
        %6162 = vmatpush1.msra.mxu0 0.0
        %6163 = vmatprep.subr.mxu0 0.0
        %6164 = vmatpush1.msra.mxu0 0.0
        %6165 = vmatprep.subr.mxu0 0.0
        %6166 = vmatpush1.msra.mxu0 0.0
        %6167 = vmatprep.subr.mxu0 0.0
        %6168 = vmatpush1.msra.mxu0 0.0
        %6169 = vmatprep.subr.mxu0 0.0
        %6170 = vmatpush1.msra.mxu0 0.0
        %6171 = vmatprep.subr.mxu0 0.0
        %6172 = vmatpush1.msra.mxu0 0.0
        %6173 = vmatprep.subr.mxu0 0.0
        %6174 = vmatpush1.msra.mxu0 0.0
        %6175 = vmatprep.subr.mxu0 0.0
        %6176 = vmatpush1.msra.mxu0 0.0
        %6177 = vmatprep.subr.mxu0 0.0
        %6178 = vmatpush1.msra.mxu0 0.0
        %6179 = vmatprep.subr.mxu0 0.0
        %6180 = vmatpush1.msra.mxu0 0.0
        %6181 = vmatprep.subr.mxu0 0.0
        %6182 = vmatpush1.msra.mxu0 0.0
        %6183 = vmatprep.subr.mxu0 0.0
        %6184 = vmatpush1.msra.mxu0 0.0
        %6185 = vmatprep.subr.mxu0 0.0
        %6186 = vmatpush1.msra.mxu0 0.0
        %6187 = vmatprep.mubr.f32.mxu0 0.0
        %6188 = vmatmul.mubr.f32.gmra.mrb[0].mxu0 %v6121
        %v6189 = vpop.f32.mrb[0].mxu0
        %v6190 = vadd.f32 0.0, %v6189
        %v6191 = vpop.f32.mrb[0].mxu0
        %6192 = vdwg.mxu0
        %6194 = vrot.lane.b32.xlu0 %v5846, 8
        %v6195 = vpop.permute.xlu0 %6194
        %6198 = vrot.lane.b32.xlu0 %v6018, 16
        %v6199 = vpop.permute.xlu0 %6198
        %6202 = vrot.lane.b32.xlu0 %v6190, 24
        %v6203 = vpop.permute.xlu0 %6202
        %v6205 = vsel %vm495, %v5672, %v6195
        %v6206 = vsel %vm579, %v6205, %v6199
        %v6207 = vsel %vm1313, %v6206, %v6203
        %v6208 = vld [vmem:[%s4 + $0x440] sm:$0xff]
        %v6209 = vld [vmem:[%s4 + $0x448] sm:$0xff]
        %v6210 = vld [vmem:[%s4 + $0x450] sm:$0xff]
        %v6211 = vld [vmem:[%s4 + $0x458] sm:$0xff]
        %v6212 = vld [vmem:[%s4 + $0x460] sm:$0x1]
        %v6213 = vlaneseq
        %v6214 = vshrl.u32 %v6213, 7
        %v6215 = vsub.s32 0, %v6214
        %v6216 = vrot.slane %v6212, %v6215
        %v6218 = vsel %vm311, %v6207, 0
        %6220 = vmatprep.subr.mxu0 0.0
        %6221 = vmatpush1.msra.mxu0 %v6208
        %6222 = vmatprep.subr.mxu0 0.0
        %6223 = vmatpush1.msra.mxu0 %v6209
        %6224 = vmatprep.subr.mxu0 0.0
        %6225 = vmatpush1.msra.mxu0 %v6210
        %6226 = vmatprep.subr.mxu0 0.0
        %6227 = vmatpush1.msra.mxu0 %v6211
        %6228 = vmatprep.subr.mxu0 0.0
        %6229 = vmatpush1.msra.mxu0 0.0
        %6230 = vmatprep.subr.mxu0 0.0
        %6231 = vmatpush1.msra.mxu0 0.0
        %6232 = vmatprep.subr.mxu0 0.0
        %6233 = vmatpush1.msra.mxu0 0.0
        %6234 = vmatprep.subr.mxu0 0.0
        %6235 = vmatpush1.msra.mxu0 0.0
        %6236 = vmatprep.subr.mxu0 0.0
        %6237 = vmatpush1.msra.mxu0 0.0
        %6238 = vmatprep.subr.mxu0 0.0
        %6239 = vmatpush1.msra.mxu0 0.0
        %6240 = vmatprep.subr.mxu0 0.0
        %6241 = vmatpush1.msra.mxu0 0.0
        %6242 = vmatprep.subr.mxu0 0.0
        %6243 = vmatpush1.msra.mxu0 0.0
        %6244 = vmatprep.subr.mxu0 0.0
        %6245 = vmatpush1.msra.mxu0 0.0
        %6246 = vmatprep.subr.mxu0 0.0
        %6247 = vmatpush1.msra.mxu0 0.0
        %6248 = vmatprep.subr.mxu0 0.0
        %6249 = vmatpush1.msra.mxu0 0.0
        %6250 = vmatprep.subr.mxu0 0.0
        %6251 = vmatpush1.msra.mxu0 0.0
        %6252 = vmatprep.subr.mxu0 0.0
        %6253 = vmatpush1.msra.mxu0 0.0
        %6254 = vmatprep.subr.mxu0 0.0
        %6255 = vmatpush1.msra.mxu0 0.0
        %6256 = vmatprep.subr.mxu0 0.0
        %6257 = vmatpush1.msra.mxu0 0.0
        %6258 = vmatprep.subr.mxu0 0.0
        %6259 = vmatpush1.msra.mxu0 0.0
        %6260 = vmatprep.subr.mxu0 0.0
        %6261 = vmatpush1.msra.mxu0 0.0
        %6262 = vmatprep.subr.mxu0 0.0
        %6263 = vmatpush1.msra.mxu0 0.0
        %6264 = vmatprep.subr.mxu0 0.0
        %6265 = vmatpush1.msra.mxu0 0.0
        %6266 = vmatprep.subr.mxu0 0.0
        %6267 = vmatpush1.msra.mxu0 0.0
        %6268 = vmatprep.subr.mxu0 0.0
        %6269 = vmatpush1.msra.mxu0 0.0
        %6270 = vmatprep.subr.mxu0 0.0
        %6271 = vmatpush1.msra.mxu0 0.0
        %6272 = vmatprep.subr.mxu0 0.0
        %6273 = vmatpush1.msra.mxu0 0.0
        %6274 = vmatprep.subr.mxu0 0.0
        %6275 = vmatpush1.msra.mxu0 0.0
        %6276 = vmatprep.subr.mxu0 0.0
        %6277 = vmatpush1.msra.mxu0 0.0
        %6278 = vmatprep.subr.mxu0 0.0
        %6279 = vmatpush1.msra.mxu0 0.0
        %6280 = vmatprep.subr.mxu0 0.0
        %6281 = vmatpush1.msra.mxu0 0.0
        %6282 = vmatprep.subr.mxu0 0.0
        %6283 = vmatpush1.msra.mxu0 0.0
        %6284 = vmatprep.mubr.f32.mxu0 0.0
        %6285 = vmatmul.mubr.f32.gmra.mrb[0].mxu0 %v6218
        %v6286 = vpop.f32.mrb[0].mxu0
        %v6287 = vadd.f32 %v6216, %v6286
        %v6288 = vpop.f32.mrb[0].mxu0
        %6289 = vdwg.mxu0
        %v6290 = vadd.f32 %v5260, %v6287
        %v6291 = vld [vmem:[%s4 + $0x468] sm:$0x1]
        %v6292 = vld [vmem:[%s4 + $0x470] sm:$0x1]
        %v6293 = vsel %vm311, %v6290, 0.0
        %6294 = vadd.xlane.f32.xlu0 %v6293
        %v6295 = vpop.xlane.xlu0 %6294
        %v6296 = vmul.f32 %v6295, %v1416
        %v6297 = vsub.f32 %v6290, %v6296
        %v6298 = vmul.f32 %v6297, %v6297
        %v6299 = vsel %vm311, %v6298, 0.0
        %6300 = vadd.xlane.f32.xlu0 %v6299
        %v6301 = vpop.xlane.xlu0 %6300
        %v6302 = vmul.f32 %v6301, %v1416
        %v6303 = vadd.f32 %v6302, 1e-05
        %v6304 = vrsqrt.pop %v6303
        %v6305 = vmul.f32 %v6297, %v6304
        %v6306 = vlaneseq
        %v6307 = vshrl.u32 %v6306, 7
        %v6308 = vsub.s32 0, %v6307
        %v6309 = vrot.slane %v6291, %v6308
        %v6310 = vmul.f32 %v6305, %v6309
        %v6311 = vlaneseq
        %v6312 = vshrl.u32 %v6311, 7
        %v6313 = vsub.s32 0, %v6312
        %v6314 = vrot.slane %v6292, %v6313
        %v6315 = vadd.f32 %v6310, %v6314
        %v6316 = vld [vmem:[%s4 + $0x478] sm:$0xff]
        %v6317 = vld [vmem:[%s4 + $0x480] sm:$0xff]
        %v6318 = vld [vmem:[%s4 + $0x488] sm:$0xff]
        %v6319 = vld [vmem:[%s4 + $0x490] sm:$0xff]
        %v6320 = vld [vmem:[%s4 + $0x498] sm:$0x1]
        %v6321 = vlaneseq
        %v6322 = vshrl.u32 %v6321, 7
        %v6323 = vsub.s32 0, %v6322
        %v6324 = vrot.slane %v6320, %v6323
        %v6326 = vsel %vm311, %v6315, 0
        %6328 = vmatprep.subr.mxu0 0.0
        %6329 = vmatpush1.msra.mxu0 %v6316
        %6330 = vmatprep.subr.mxu0 0.0
        %6331 = vmatpush1.msra.mxu0 %v6317
        %6332 = vmatprep.subr.mxu0 0.0
        %6333 = vmatpush1.msra.mxu0 %v6318
        %6334 = vmatprep.subr.mxu0 0.0
        %6335 = vmatpush1.msra.mxu0 %v6319
        %6336 = vmatprep.subr.mxu0 0.0
        %6337 = vmatpush1.msra.mxu0 0.0
        %6338 = vmatprep.subr.mxu0 0.0
        %6339 = vmatpush1.msra.mxu0 0.0
        %6340 = vmatprep.subr.mxu0 0.0
        %6341 = vmatpush1.msra.mxu0 0.0
        %6342 = vmatprep.subr.mxu0 0.0
        %6343 = vmatpush1.msra.mxu0 0.0
        %6344 = vmatprep.subr.mxu0 0.0
        %6345 = vmatpush1.msra.mxu0 0.0
        %6346 = vmatprep.subr.mxu0 0.0
        %6347 = vmatpush1.msra.mxu0 0.0
        %6348 = vmatprep.subr.mxu0 0.0
        %6349 = vmatpush1.msra.mxu0 0.0
        %6350 = vmatprep.subr.mxu0 0.0
        %6351 = vmatpush1.msra.mxu0 0.0
        %6352 = vmatprep.subr.mxu0 0.0
        %6353 = vmatpush1.msra.mxu0 0.0
        %6354 = vmatprep.subr.mxu0 0.0
        %6355 = vmatpush1.msra.mxu0 0.0
        %6356 = vmatprep.subr.mxu0 0.0
        %6357 = vmatpush1.msra.mxu0 0.0
        %6358 = vmatprep.subr.mxu0 0.0
        %6359 = vmatpush1.msra.mxu0 0.0
        %6360 = vmatprep.subr.mxu0 0.0
        %6361 = vmatpush1.msra.mxu0 0.0
        %6362 = vmatprep.subr.mxu0 0.0
        %6363 = vmatpush1.msra.mxu0 0.0
        %6364 = vmatprep.subr.mxu0 0.0
        %6365 = vmatpush1.msra.mxu0 0.0
        %6366 = vmatprep.subr.mxu0 0.0
        %6367 = vmatpush1.msra.mxu0 0.0
        %6368 = vmatprep.subr.mxu0 0.0
        %6369 = vmatpush1.msra.mxu0 0.0
        %6370 = vmatprep.subr.mxu0 0.0
        %6371 = vmatpush1.msra.mxu0 0.0
        %6372 = vmatprep.subr.mxu0 0.0
        %6373 = vmatpush1.msra.mxu0 0.0
        %6374 = vmatprep.subr.mxu0 0.0
        %6375 = vmatpush1.msra.mxu0 0.0
        %6376 = vmatprep.subr.mxu0 0.0
        %6377 = vmatpush1.msra.mxu0 0.0
        %6378 = vmatprep.subr.mxu0 0.0
        %6379 = vmatpush1.msra.mxu0 0.0
        %6380 = vmatprep.subr.mxu0 0.0
        %6381 = vmatpush1.msra.mxu0 0.0
        %6382 = vmatprep.subr.mxu0 0.0
        %6383 = vmatpush1.msra.mxu0 0.0
        %6384 = vmatprep.subr.mxu0 0.0
        %6385 = vmatpush1.msra.mxu0 0.0
        %6386 = vmatprep.subr.mxu0 0.0
        %6387 = vmatpush1.msra.mxu0 0.0
        %6388 = vmatprep.subr.mxu0 0.0
        %6389 = vmatpush1.msra.mxu0 0.0
        %6390 = vmatprep.subr.mxu0 0.0
        %6391 = vmatpush1.msra.mxu0 0.0
        %6392 = vmatprep.mubr.f32.mxu0 0.0
        %6393 = vmatmul.mubr.f32.gmra.mrb[0].mxu0 %v6326
        %v6394 = vpop.f32.mrb[0].mxu0
        %v6395 = vadd.f32 %v6324, %v6394
        %v6396 = vpop.f32.mrb[0].mxu0
        %6397 = vdwg.mxu0
        %v6398 = vmax.f32 %v6395, 0.0
        %v6399 = vld [vmem:[%s4 + $0x4a0] sm:$0xff]
        %v6400 = vld [vmem:[%s4 + $0x4a8] sm:$0xff]
        %v6401 = vld [vmem:[%s4 + $0x4b0] sm:$0xff]
        %v6402 = vld [vmem:[%s4 + $0x4b8] sm:$0xff]
        %v6403 = vld [vmem:[%s4 + $0x4c0] sm:$0xff]
        %v6404 = vld [vmem:[%s4 + $0x4c8] sm:$0xff]
        %v6405 = vld [vmem:[%s4 + $0x4d0] sm:$0xff]
        %v6406 = vld [vmem:[%s4 + $0x4d8] sm:$0xff]
        %v6407 = vld [vmem:[%s4 + $0x4e0] sm:$0x1]
        %v6408 = vlaneseq
        %v6409 = vshrl.u32 %v6408, 7
        %v6410 = vsub.s32 0, %v6409
        %v6411 = vrot.slane %v6407, %v6410
        %v6413 = vsel %vm1554, %v6398, 0
        %6415 = vmatprep.subr.mxu0 0.0
        %6416 = vmatpush1.msra.mxu0 %v6399
        %6417 = vmatprep.subr.mxu0 0.0
        %6418 = vmatpush1.msra.mxu0 %v6400
        %6419 = vmatprep.subr.mxu0 0.0
        %6420 = vmatpush1.msra.mxu0 %v6401
        %6421 = vmatprep.subr.mxu0 0.0
        %6422 = vmatpush1.msra.mxu0 %v6402
        %6423 = vmatprep.subr.mxu0 0.0
        %6424 = vmatpush1.msra.mxu0 %v6403
        %6425 = vmatprep.subr.mxu0 0.0
        %6426 = vmatpush1.msra.mxu0 %v6404
        %6427 = vmatprep.subr.mxu0 0.0
        %6428 = vmatpush1.msra.mxu0 %v6405
        %6429 = vmatprep.subr.mxu0 0.0
        %6430 = vmatpush1.msra.mxu0 %v6406
        %6431 = vmatprep.subr.mxu0 0.0
        %6432 = vmatpush1.msra.mxu0 0.0
        %6433 = vmatprep.subr.mxu0 0.0
        %6434 = vmatpush1.msra.mxu0 0.0
        %6435 = vmatprep.subr.mxu0 0.0
        %6436 = vmatpush1.msra.mxu0 0.0
        %6437 = vmatprep.subr.mxu0 0.0
        %6438 = vmatpush1.msra.mxu0 0.0
        %6439 = vmatprep.subr.mxu0 0.0
        %6440 = vmatpush1.msra.mxu0 0.0
        %6441 = vmatprep.subr.mxu0 0.0
        %6442 = vmatpush1.msra.mxu0 0.0
        %6443 = vmatprep.subr.mxu0 0.0
        %6444 = vmatpush1.msra.mxu0 0.0
        %6445 = vmatprep.subr.mxu0 0.0
        %6446 = vmatpush1.msra.mxu0 0.0
        %6447 = vmatprep.subr.mxu0 0.0
        %6448 = vmatpush1.msra.mxu0 0.0
        %6449 = vmatprep.subr.mxu0 0.0
        %6450 = vmatpush1.msra.mxu0 0.0
        %6451 = vmatprep.subr.mxu0 0.0
        %6452 = vmatpush1.msra.mxu0 0.0
        %6453 = vmatprep.subr.mxu0 0.0
        %6454 = vmatpush1.msra.mxu0 0.0
        %6455 = vmatprep.subr.mxu0 0.0
        %6456 = vmatpush1.msra.mxu0 0.0
        %6457 = vmatprep.subr.mxu0 0.0
        %6458 = vmatpush1.msra.mxu0 0.0
        %6459 = vmatprep.subr.mxu0 0.0
        %6460 = vmatpush1.msra.mxu0 0.0
        %6461 = vmatprep.subr.mxu0 0.0
        %6462 = vmatpush1.msra.mxu0 0.0
        %6463 = vmatprep.subr.mxu0 0.0
        %6464 = vmatpush1.msra.mxu0 0.0
        %6465 = vmatprep.subr.mxu0 0.0
        %6466 = vmatpush1.msra.mxu0 0.0
        %6467 = vmatprep.subr.mxu0 0.0
        %6468 = vmatpush1.msra.mxu0 0.0
        %6469 = vmatprep.subr.mxu0 0.0
        %6470 = vmatpush1.msra.mxu0 0.0
        %6471 = vmatprep.subr.mxu0 0.0
        %6472 = vmatpush1.msra.mxu0 0.0
        %6473 = vmatprep.subr.mxu0 0.0
        %6474 = vmatpush1.msra.mxu0 0.0
        %6475 = vmatprep.subr.mxu0 0.0
        %6476 = vmatpush1.msra.mxu0 0.0
        %6477 = vmatprep.subr.mxu0 0.0
        %6478 = vmatpush1.msra.mxu0 0.0
        %6479 = vmatprep.mubr.f32.mxu0 0.0
        %6480 = vmatmul.mubr.f32.gmra.mrb[0].mxu0 %v6413
        %v6481 = vpop.f32.mrb[0].mxu0
        %v6482 = vadd.f32 %v6411, %v6481
        %v6483 = vpop.f32.mrb[0].mxu0
        %6484 = vdwg.mxu0
        %v6485 = vadd.f32 %v6315, %v6482
        %v6486 = vld [vmem:[%s4 + $0x4e8] sm:$0x1]
        %v6487 = vld [vmem:[%s4 + $0x4f0] sm:$0x1]
        %v6488 = vsel %vm311, %v6485, 0.0
        %6489 = vadd.xlane.f32.xlu0 %v6488
        %v6490 = vpop.xlane.xlu0 %6489
        %v6491 = vmul.f32 %v6490, %v1416
        %v6492 = vsub.f32 %v6485, %v6491
        %v6493 = vmul.f32 %v6492, %v6492
        %v6494 = vsel %vm311, %v6493, 0.0
        %6495 = vadd.xlane.f32.xlu0 %v6494
        %v6496 = vpop.xlane.xlu0 %6495
        %v6497 = vmul.f32 %v6496, %v1416
        %v6498 = vadd.f32 %v6497, 1e-05
        %v6499 = vrsqrt.pop %v6498
        %v6500 = vmul.f32 %v6492, %v6499
        %v6501 = vlaneseq
        %v6502 = vshrl.u32 %v6501, 7
        %v6503 = vsub.s32 0, %v6502
        %v6504 = vrot.slane %v6486, %v6503
        %v6505 = vmul.f32 %v6500, %v6504
        %v6506 = vlaneseq
        %v6507 = vshrl.u32 %v6506, 7
        %v6508 = vsub.s32 0, %v6507
        %v6509 = vrot.slane %v6487, %v6508
        %v6510 = vadd.f32 %v6505, %v6509
        %v6511 = vld [vmem:[%s4 + $0x500] sm:$0x1]
        %v6512 = vld [vmem:[%s4 + $0x508] sm:$0x1]
        %v6513 = vsel %vm311, %v6510, 0.0
        %6514 = vadd.xlane.f32.xlu0 %v6513
        %v6515 = vpop.xlane.xlu0 %6514
        %v6516 = vmul.f32 %v6515, %v1416
        %v6517 = vsub.f32 %v6510, %v6516
        %v6518 = vmul.f32 %v6517, %v6517
        %v6519 = vsel %vm311, %v6518, 0.0
        %6520 = vadd.xlane.f32.xlu0 %v6519
        %v6521 = vpop.xlane.xlu0 %6520
        %v6522 = vmul.f32 %v6521, %v1416
        %v6523 = vadd.f32 %v6522, 1e-05
        %v6524 = vrsqrt.pop %v6523
        %v6525 = vmul.f32 %v6517, %v6524
        %v6526 = vlaneseq
        %v6527 = vshrl.u32 %v6526, 7
        %v6528 = vsub.s32 0, %v6527
        %v6529 = vrot.slane %v6511, %v6528
        %v6530 = vmul.f32 %v6525, %v6529
        %v6531 = vlaneseq
        %v6532 = vshrl.u32 %v6531, 7
        %v6533 = vsub.s32 0, %v6532
        %v6534 = vrot.slane %v6512, %v6533
        %v6535 = vadd.f32 %v6530, %v6534
        %6536 = vst.msk [vmem:[%s281] sm:$0xff] %vm311, %v6535
        %s6537 = sand.u32 %s152, 1
        %s6538 = scalar_lea.sflag [#allocation3], %s6537
        %s6539 = sand.u32 %s152, 1
        %s6540 = smul.addr %s6539, 16
        %s6541 = scalar_lea.vmem [#allocation2], %s6540
        %s6542 = sand.u32 %s178, 1
        %s6543 = scalar_lea.sflag [#allocation5], %s6542
        %s6544 = sand.u32 %s178, 1
        %s6545 = smul.addr %s6544, 8
        %s6546 = scalar_lea.vmem [#allocation4], %s6545
        // Predicated region
        $region41: #{transformer_forward.1} parent=39 // pred_check
          %p6547 = pneg %p162
        $region42: #{transformer_forward.1} parent=39 // pred_check_branch
          %6549 = sbr.rel (%p6547) target = $region44
        $region43: #{transformer_forward.1} parent=39 // pred_region
          %s6551 = ssub.s32 256, 256
          %6552 = vsyncadd %s6538, %s6551
          %s6553 = smul.addr %s24, 2
          %s6554 = smul.addr %s6553, 128
          %s6555 = scalar_lea.hbm %s5, %s6554
          %s6556 = sshll.u32 %s6541, 4
          %s6557 = int_to_ptr.vmem [resolvable:$true] %s6556
          %6562 = dma.vmem_to_hbm [thread:$0]  %s6557, 256, %s6555, %s6538, 128, 128, 8
        $region44: #{transformer_forward.1} parent=39 // pred_fallthru
          _
        // Predicated region
        $region45: #{transformer_forward.1} parent=39 // pred_check
          %p6563 = pneg %p188
        $region46: #{transformer_forward.1} parent=39 // pred_check_branch
          %6565 = sbr.rel (%p6563) target = $region48
        $region47: #{transformer_forward.1} parent=39 // pred_region
          %s6567 = ssub.s32 128, 128
          %6568 = vsyncadd %s6543, %s6567
          %s6569 = smul.addr %s24, 128
          %s6570 = scalar_lea.hbm %s6, %s6569
          %s6572 = sshll.u32 %s6546, 4
          %s6573 = int_to_ptr.vmem [resolvable:$true] %s6572
          %6575 = dma.vmem_to_hbm [thread:$0]  %s6573, 128, %s6570, %s6543
        $region48: #{transformer_forward.1} parent=39 // pred_fallthru
          _
      $region40: #{transformer_forward.1} parent=5 // pred_fallthru
        _
      %p6576 = scmp.le.s32.totalorder 2, %s19
      // Predicated region
      $region49: #{transformer_forward.1} parent=5 // pred_check
        %p6577 = pneg %p6576
      $region50: #{transformer_forward.1} parent=5 // pred_check_branch
        %6579 = sbr.rel (%p6577) target = $region52
      $region51: #{transformer_forward.1} parent=5 // pred_region
        %s6580 = ssub.s32 %s19, 2
        // Predicated region
        $region53: #{transformer_forward.1} parent=51 // pred_check
          %p6581 = pneg %p168
        $region54: #{transformer_forward.1} parent=51 // pred_check_branch
          %6583 = sbr.rel (%p6581) target = $region56
        $region55: #{transformer_forward.1} parent=51 // pred_region
          %s6584 = sand.u32 %s153, 1
          %s6585 = scalar_lea.sflag [#allocation3], %s6584
          %s6586 = sand.u32 %s153, 1
          %s6587 = smul.addr %s6586, 16
          %s6588 = scalar_lea.vmem [#allocation2], %s6587
          %6589 = dma.done %s6585, 256
        $region56: #{transformer_forward.1} parent=51 // pred_fallthru
          _
        // Predicated region
        $region57: #{transformer_forward.1} parent=51 // pred_check
          %p6590 = pneg %p194
        $region58: #{transformer_forward.1} parent=51 // pred_check_branch
          %6592 = sbr.rel (%p6590) target = $region60
        $region59: #{transformer_forward.1} parent=51 // pred_region
          %s6593 = sand.u32 %s179, 1
          %s6594 = scalar_lea.sflag [#allocation5], %s6593
          %s6595 = sand.u32 %s179, 1
          %s6596 = smul.addr %s6595, 8
          %s6597 = scalar_lea.vmem [#allocation4], %s6596
          %6598 = dma.done %s6594, 128
        $region60: #{transformer_forward.1} parent=51 // pred_fallthru
          _
      $region52: #{transformer_forward.1} parent=5 // pred_fallthru
        _
    $region6: #{transformer_forward.1} parent=1 // loop_footer
      %s23 = sadd.s32 1, %s19
    $region7: #{transformer_forward.1} parent=1 // loop_footer_branch
      %18 = sbr.rel target = $region3
    $region8: #{transformer_forward.1} parent=1 // loop_exit
      _
    %6599 = vsyncpa [#allocation3], 1
    %s6600 = scalar_lea.sflag [#allocation3], 1
    %6601 = vsyncpa %s6600, 1
    %6602 = vsyncpa [#allocation5], 1
    %s6603 = scalar_lea.sflag [#allocation5], 1
    %6604 = vsyncpa %s6603, 1

</llo_original>
